<compile_context>
chip_gen: v7x
topology: tpu7x:2x2x1
jax: 0.10.0
libtpu: 0.0.40
codegen_flags: <defaults>
</compile_context>

<pallas_src>
import functools
import math

import jax
import jax.numpy as jnp
from jax.experimental import pallas as pl
from jax.experimental.pallas import tpu as pltpu


NUM_HEADS = 4
LN_EPS = 1e-5


def _layer_norm(x, gamma, beta, eps=LN_EPS):
    mu = jnp.mean(x, axis=-1, keepdims=True)
    xc = x - mu
    var = jnp.mean(xc * xc, axis=-1, keepdims=True)
    return xc * jax.lax.rsqrt(var + eps) * gamma + beta


# ---------------------------------------------------------------------------
# ONE fused kernel for the whole forward pass.
# NOTE: the reference forward never passes attn_mask into the transformers,
# so attention is intentionally unmasked here as well.
# ---------------------------------------------------------------------------
def _semcom_kernel(snr_ref,
                   xt_ref, txt_w_ref, txt_b_ref, txt_g_ref, txt_beta_ref,
                   noise_ref,
                   wqkv_ref, bqkv_ref, wo_ref, bo_ref,
                   ln1_g_ref, ln1_b_ref, w1_ref, b1_ref, w2_ref, b2_ref,
                   ln2_g_ref, ln2_b_ref,
                   we1_ref, be1_ref, we2_ref, be2_ref,
                   wd1_ref, bd1_ref, wd2_ref, bd2_ref,
                   hw_ref, hb_ref,
                   logits_ref, enc_ref, dec_ref,
                   *, num_layers, num_heads, batch, seq, embed_dim):
    bs = batch * seq
    d = enc_ref.shape[-1]
    hd = d // num_heads
    scale = 1.0 / math.sqrt(hd)

    def transformer_layer(x, l):
        # ---- fused QKV projection: one MXU matmul, bf16 in / f32 acc ----
        xb = x.astype(jnp.bfloat16)                               # cast once
        qkv = (jnp.dot(xb, wqkv_ref[l], preferred_element_type=jnp.float32)
               + bqkv_ref[l])                                     # (bs, 3d)
        qkv_b = qkv.reshape(batch, seq, 3 * d).astype(jnp.bfloat16)
        wo_l = wo_ref[l]                                          # (d, d) bf16

        # ---- multi-head attention, batched over batch; per-head W_o
        #      contributions accumulate in registers (no VMEM RMW). ----
        attn = None
        for h in range(num_heads):
            c = h * hd
            qh = qkv_b[:, :, c:c + hd]                            # (B,S,hd)
            kh = qkv_b[:, :, d + c:d + c + hd]
            vh = qkv_b[:, :, 2 * d + c:2 * d + c + hd]
            s = jnp.einsum('bqd,bkd->bqk', qh, kh,
                           preferred_element_type=jnp.float32) * scale
            s = s - jnp.max(s, axis=-1, keepdims=True)
            p = jnp.exp(s)
            p = p * pl.reciprocal(jnp.sum(p, axis=-1, keepdims=True),
                                  approx=True)
            oh = jnp.einsum('bqk,bkd->bqd', p.astype(jnp.bfloat16), vh,
                            preferred_element_type=jnp.float32)   # (B,S,hd)
            contrib = jnp.dot(oh.reshape(bs, hd).astype(jnp.bfloat16),
                              wo_l[c:c + hd, :],
                              preferred_element_type=jnp.float32)  # (bs, d)
            attn = contrib if attn is None else attn + contrib
        attn = attn + bo_ref[l]

        # ---- residual + LayerNorm 1 ----
        x1 = _layer_norm(x + attn, ln1_g_ref[l], ln1_b_ref[l])

        # ---- FFN (d -> 4d ReLU -> d) + residual + LayerNorm 2 ----
        hmid = (jnp.dot(x1.astype(jnp.bfloat16), w1_ref[l],
                        preferred_element_type=jnp.float32) + b1_ref[l])
        hmid = jnp.maximum(hmid, 0.0)
        ffn = (jnp.dot(hmid.astype(jnp.bfloat16), w2_ref[l],
                       preferred_element_type=jnp.float32) + b2_ref[l])
        return _layer_norm(x1 + ffn, ln2_g_ref[l], ln2_b_ref[l])

    # ---- 1) text projection + LayerNorm + task prompt (lane-dense d) ----
    # txt_w is zero-padded to d output columns; txt_b carries the task
    # embedding in lanes [embed_dim, d).  LayerNorm statistics are masked to
    # the text lanes so the task lanes pass through untouched — equivalent to
    # torch.cat([LN(proj(text)), task_emb], dim=-1) without any concatenate.
    y = (jnp.dot(xt_ref[...].astype(jnp.bfloat16), txt_w_ref[...],
                 preferred_element_type=jnp.float32) + txt_b_ref[...])
    lane = jax.lax.broadcasted_iota(jnp.int32, (bs, d), 1)
    tmask = (lane < embed_dim).astype(jnp.float32)
    inv_e = 1.0 / float(embed_dim)
    mu = jnp.sum(y * tmask, axis=-1, keepdims=True) * inv_e
    yc = (y - mu) * tmask
    var = jnp.sum(yc * yc, axis=-1, keepdims=True) * inv_e
    x = (yc * jax.lax.rsqrt(var + LN_EPS) * txt_g_ref[...] + txt_beta_ref[...]
         + y * (1.0 - tmask))                                     # (bs, d)

    # ---- 2) semantic encoder: layers [0, L) ----
    for l in range(num_layers):
        x = transformer_layer(x, l)
    enc_ref[...] = x

    # ---- 3) channel encoder -> AWGN channel -> channel decoder ----
    h = (jnp.dot(x.astype(jnp.bfloat16), we1_ref[...],
                 preferred_element_type=jnp.float32) + be1_ref[...])
    h = jnp.maximum(h, 0.0)
    tx = (jnp.dot(h.astype(jnp.bfloat16), we2_ref[...],
                  preferred_element_type=jnp.float32) + be2_ref[...])
    # AWGN (fading='none'): consecutive feature pairs = (re, im) of a symbol.
    mean_sq = jnp.mean(jnp.mean(tx * tx, axis=-1, keepdims=True),
                       axis=0, keepdims=True)                     # (1, 1)
    snr_lin = snr_ref[0, 0]
    noise_std = jnp.sqrt((2.0 * mean_sq) / (2.0 * snr_lin))
    rx = tx + noise_std * noise_ref[...]
    h2 = (jnp.dot(rx.astype(jnp.bfloat16), wd1_ref[...],
                  preferred_element_type=jnp.float32) + bd1_ref[...])
    h2 = jnp.maximum(h2, 0.0)
    x = (jnp.dot(h2.astype(jnp.bfloat16), wd2_ref[...],
                 preferred_element_type=jnp.float32) + bd2_ref[...])

    # ---- 4) semantic decoder: layers [L, 2L) ----
    for l in range(num_layers, 2 * num_layers):
        x = transformer_layer(x, l)
    dec_ref[...] = x

    # ---- 5) per-task vocab head: single lane-dense MXU matmul ----
    logits_ref[...] = (jnp.dot(x.astype(jnp.bfloat16), hw_ref[...],
                               preferred_element_type=jnp.float32)
                       + hb_ref[...])


def semcom_forward_fused(snr_lin, x_text, txt_w, txt_b_task, txt_g, txt_beta,
                         noise, stack, chan, head_w, head_b, *,
                         num_layers, num_heads, batch, seq, embed_dim):
    bs = batch * seq
    d = stack["wo"].shape[-1]
    vocab = head_w.shape[-1]
    kernel = functools.partial(
        _semcom_kernel, num_layers=num_layers, num_heads=num_heads,
        batch=batch, seq=seq, embed_dim=embed_dim)
    vmem = pl.BlockSpec(memory_space=pltpu.MemorySpace.VMEM)
    smem = pl.BlockSpec(memory_space=pltpu.MemorySpace.SMEM)
    return pl.pallas_call(
        kernel,
        out_shape=(jax.ShapeDtypeStruct((bs, vocab), jnp.float32),
                   jax.ShapeDtypeStruct((bs, d), jnp.float32),
                   jax.ShapeDtypeStruct((bs, d), jnp.float32)),
        in_specs=[smem] + [vmem] * 28,
        out_specs=(vmem, vmem, vmem),
    )(snr_lin, x_text, txt_w, txt_b_task, txt_g, txt_beta, noise,
      stack["wqkv"], stack["bqkv"], stack["wo"], stack["bo"],
      stack["ln1_g"], stack["ln1_b"], stack["w1"], stack["b1"],
      stack["w2"], stack["b2"], stack["ln2_g"], stack["ln2_b"],
      chan["we1"], chan["be1"], chan["we2"], chan["be2"],
      chan["wd1"], chan["bd1"], chan["wd2"], chan["bd2"],
      head_w, head_b)


# ---------------------------------------------------------------------------
# Parameter construction (deterministic, synthetic).  Matmul weights are bf16
# (halves HBM/VMEM traffic), biases / LayerNorm params stay f32.  Encoder and
# decoder layer params are stacked along a single leading axis of size 2*L.
# ---------------------------------------------------------------------------
def make_params(key, *, num_tasks, embed_dim, task_dim, transmit_dim,
                num_layers, vocab_size, max_seq):
    d = embed_dim + task_dim
    ff = 4 * d
    L2 = 2 * num_layers                  # encoder [0,L), decoder [L,2L)
    keys = iter(jax.random.split(key, 32))

    def wb(shape):
        return (0.02 * jax.random.normal(next(keys), shape, jnp.float32)
                ).astype(jnp.bfloat16)

    def wf(shape):
        return 0.02 * jax.random.normal(next(keys), shape, jnp.float32)

    p = {}
    # ---- text encoder stand-in (TODO(synk): pretrained BERT not reproduced) ----
    p["tok_emb"] = wf((vocab_size, embed_dim))
    p["pos_emb"] = wf((max_seq, embed_dim))
    txt_w = 0.02 * jax.random.normal(next(keys), (embed_dim, embed_dim),
                                     jnp.float32)
    # zero-padded to d output columns for a fully lane-dense fused pipeline
    p["txt_w"] = jnp.pad(txt_w, ((0, 0), (0, task_dim))).astype(jnp.bfloat16)
    p["txt_b"] = jnp.zeros((1, embed_dim), jnp.float32)
    p["txt_g"] = jnp.pad(jnp.ones((1, embed_dim), jnp.float32),
                         ((0, 0), (0, task_dim)))
    p["txt_beta"] = jnp.zeros((1, d), jnp.float32)

    # ---- task prompt ----
    p["task_emb"] = wf((num_tasks, task_dim))

    # ---- transformer stacks (encoder + decoder layers stacked together) ----
    p["stack"] = {
        "wqkv": wb((L2, d, 3 * d)),
        "bqkv": jnp.zeros((L2, 1, 3 * d), jnp.float32),
        "wo": wb((L2, d, d)),
        "bo": jnp.zeros((L2, 1, d), jnp.float32),
        "ln1_g": jnp.ones((L2, 1, d), jnp.float32),
        "ln1_b": jnp.zeros((L2, 1, d), jnp.float32),
        "w1": wb((L2, d, ff)),
        "b1": jnp.zeros((L2, 1, ff), jnp.float32),
        "w2": wb((L2, ff, d)),
        "b2": jnp.zeros((L2, 1, d), jnp.float32),
        "ln2_g": jnp.ones((L2, 1, d), jnp.float32),
        "ln2_b": jnp.zeros((L2, 1, d), jnp.float32),
    }

    # ---- channel encoder / decoder ----
    p["chan"] = {
        "we1": wb((d, ff)), "be1": jnp.zeros((1, ff), jnp.float32),
        "we2": wb((ff, transmit_dim)),
        "be2": jnp.zeros((1, transmit_dim), jnp.float32),
        "wd1": wb((transmit_dim, ff)),
        "bd1": jnp.zeros((1, ff), jnp.float32),
        "wd2": wb((ff, d)), "bd2": jnp.zeros((1, d), jnp.float32),
    }

    # ---- multi-task output head ----
    # TODO(synk): MultiTaskHead internals unknown; implemented as a per-task
    #             linear projection to the vocabulary.
    p["head_w"] = wb((num_tasks, d, vocab_size))
    p["head_b"] = jnp.zeros((num_tasks, 1, vocab_size), jnp.float32)
    return p


# ---------------------------------------------------------------------------
# Model forward (matches Transformer_SemCom.forward return signature).
# ---------------------------------------------------------------------------
def transformer_semcom_forward(params, input_ids, attn_mask, task_id,
                               snr_db, noise_key, fading="none"):
    # TODO(synk): only fading='none' (pure AWGN) is implemented, matching the
    #             reference module's default ComplexWirelessChannel config.
    del fading
    B, S = input_ids.shape
    embed_dim = params["tok_emb"].shape[1]
    task_dim = params["task_emb"].shape[1]
    d = embed_dim + task_dim
    transmit_dim = params["chan"]["we2"].shape[1]
    num_layers = params["stack"]["wqkv"].shape[0] // 2

    # ---- text encoder stand-in: embedding gathers in JAX (glue); the
    #      projection + LayerNorm run inside the fused Pallas kernel ----
    tok = jnp.take(params["tok_emb"], input_ids, axis=0)          # (B,S,E)
    pos = params["pos_emb"][:S][None, :, :]
    x_text = (tok + pos).reshape(B * S, embed_dim)
    input_lengths = jnp.sum(attn_mask, axis=1)

    # task prompt rides in the padded projection bias (lanes E..d-1)
    task_row = params["task_emb"][task_id][None, :]               # (1, task)
    txt_b_task = jnp.concatenate([params["txt_b"], task_row], axis=-1)

    noise = jax.random.normal(noise_key, (B * S, transmit_dim), jnp.float32)
    snr_lin = jnp.power(10.0, jnp.asarray(snr_db, jnp.float32) / 10.0
                        ).reshape(1, 1)

    logits, enc, dec = semcom_forward_fused(
        snr_lin, x_text, params["txt_w"], txt_b_task, params["txt_g"],
        params["txt_beta"], noise, params["stack"], params["chan"],
        params["head_w"][task_id], params["head_b"][task_id],
        num_layers=num_layers, num_heads=NUM_HEADS, batch=B, seq=S,
        embed_dim=embed_dim)

    return (logits.reshape(B, S, -1), input_ids, input_lengths,
            enc.reshape(B, S, d), dec.reshape(B, S, d))


# ---------------------------------------------------------------------------
# Main
# ---------------------------------------------------------------------------
if __name__ == "__main__":
    # Small, lane-aligned synthetic shapes (d = 96 + 32 = 128).
    NUM_TASKS = 3
    EMBED_DIM = 96
    TASK_DIM = 32
    TRANSMIT_DIM = 128
    NUM_ENCD_LAYER = 2
    VOCAB_SIZE = 256
    BATCH = 2
    SEQ = 8
    SNR_DB = 15.0

    root = jax.random.PRNGKey(0)
    k_param, k_ids, k_noise = jax.random.split(root, 3)

    params = make_params(
        k_param, num_tasks=NUM_TASKS, embed_dim=EMBED_DIM, task_dim=TASK_DIM,
        transmit_dim=TRANSMIT_DIM, num_layers=NUM_ENCD_LAYER,
        vocab_size=VOCAB_SIZE, max_seq=SEQ)

    # pre-tokenized "text_list" (TODO(synk): real BERT tokenizer not reproduced)
    input_ids = jax.random.randint(k_ids, (BATCH, SEQ), 0, VOCAB_SIZE,
                                   dtype=jnp.int32)
    attn_mask = jnp.ones((BATCH, SEQ), jnp.int32).at[1, SEQ - 2:].set(0)
    task_id = 1

    fwd = jax.jit(transformer_semcom_forward, static_argnames=("fading",))
    outs = fwd(params, input_ids, attn_mask, task_id, SNR_DB, k_noise,
               fading="none")
    jax.block_until_ready(outs)

    d = EMBED_DIM + TASK_DIM
    assert outs[0].shape == (BATCH, SEQ, VOCAB_SIZE)
    assert outs[1].shape == (BATCH, SEQ)
    assert outs[2].shape == (BATCH,)
    assert outs[3].shape == (BATCH, SEQ, d)
    assert outs[4].shape == (BATCH, SEQ, d)
    assert bool(jnp.all(jnp.isfinite(outs[0])))
    assert bool(jnp.all(jnp.isfinite(outs[3])))
    assert bool(jnp.all(jnp.isfinite(outs[4])))

    print("KERNEL_OK")
</pallas_src>

<mosaic_0001>
module attributes {stable_mosaic.version = 11 : i64} {
  func.func @_semcom_kernel(%arg0: memref<1x1xf32, #tpu.memory_space<smem>>, %arg1: memref<16x96xf32, #tpu.memory_space<vmem>>, %arg2: memref<96x128xbf16, #tpu.memory_space<vmem>>, %arg3: memref<1x128xf32, #tpu.memory_space<vmem>>, %arg4: memref<1x128xf32, #tpu.memory_space<vmem>>, %arg5: memref<1x128xf32, #tpu.memory_space<vmem>>, %arg6: memref<16x128xf32, #tpu.memory_space<vmem>>, %arg7: memref<4x128x384xbf16, #tpu.memory_space<vmem>>, %arg8: memref<4x1x384xf32, #tpu.memory_space<vmem>>, %arg9: memref<4x128x128xbf16, #tpu.memory_space<vmem>>, %arg10: memref<4x1x128xf32, #tpu.memory_space<vmem>>, %arg11: memref<4x1x128xf32, #tpu.memory_space<vmem>>, %arg12: memref<4x1x128xf32, #tpu.memory_space<vmem>>, %arg13: memref<4x128x512xbf16, #tpu.memory_space<vmem>>, %arg14: memref<4x1x512xf32, #tpu.memory_space<vmem>>, %arg15: memref<4x512x128xbf16, #tpu.memory_space<vmem>>, %arg16: memref<4x1x128xf32, #tpu.memory_space<vmem>>, %arg17: memref<4x1x128xf32, #tpu.memory_space<vmem>>, %arg18: memref<4x1x128xf32, #tpu.memory_space<vmem>>, %arg19: memref<128x512xbf16, #tpu.memory_space<vmem>>, %arg20: memref<1x512xf32, #tpu.memory_space<vmem>>, %arg21: memref<512x128xbf16, #tpu.memory_space<vmem>>, %arg22: memref<1x128xf32, #tpu.memory_space<vmem>>, %arg23: memref<128x512xbf16, #tpu.memory_space<vmem>>, %arg24: memref<1x512xf32, #tpu.memory_space<vmem>>, %arg25: memref<512x128xbf16, #tpu.memory_space<vmem>>, %arg26: memref<1x128xf32, #tpu.memory_space<vmem>>, %arg27: memref<128x256xbf16, #tpu.memory_space<vmem>>, %arg28: memref<1x256xf32, #tpu.memory_space<vmem>>, %arg29: memref<16x256xf32, #tpu.memory_space<vmem>>, %arg30: memref<16x128xf32, #tpu.memory_space<vmem>>, %arg31: memref<16x128xf32, #tpu.memory_space<vmem>>) attributes {dimension_semantics = [], scalar_prefetch = 0 : i64, scratch_operands = 0 : i64, tpu.core_type = #tpu.core_type<tc>} {
    %c0 = arith.constant 0 : index
    %c0_0 = arith.constant 0 : index
    %0 = vector.load %arg1[%c0, %c0_0] : memref<16x96xf32, #tpu.memory_space<vmem>>, vector<16x96xf32>
    %1 = arith.truncf %0 : vector<16x96xf32> to vector<16x96xbf16>
    %c0_1 = arith.constant 0 : index
    %c0_2 = arith.constant 0 : index
    %2 = vector.load %arg2[%c0_1, %c0_2] : memref<96x128xbf16, #tpu.memory_space<vmem>>, vector<96x128xbf16>
    %cst = arith.constant dense<0.000000e+00> : vector<16x128xf32>
    %3 = tpu.matmul %1, %2, %cst {dimension_numbers = #tpu.dot_dimension_numbers<[1], [0], [0], [1], [0, 0, 1, 1], [], []>} : vector<16x96xbf16>, vector<96x128xbf16>, vector<16x128xf32> -> vector<16x128xf32>
    %c0_3 = arith.constant 0 : index
    %c0_4 = arith.constant 0 : index
    %4 = vector.load %arg3[%c0_3, %c0_4] : memref<1x128xf32, #tpu.memory_space<vmem>>, vector<1x128xf32>
    %5 = vector.broadcast %4 : vector<1x128xf32> to vector<16x128xf32>
    %6 = arith.addf %3, %5 : vector<16x128xf32>
    %7 = tpu.iota {dimensions = array<i32: 1>} : vector<16x128xi32>
    %c96_i32 = arith.constant 96 : i32
    %8 = vector.broadcast %c96_i32 : i32 to vector<16x128xi32>
    %9 = arith.cmpi slt, %7, %8 : vector<16x128xi32>
    %10 = arith.extui %9 : vector<16x128xi1> to vector<16x128xi32>
    %11 = arith.sitofp %10 : vector<16x128xi32> to vector<16x128xf32>
    %12 = arith.mulf %6, %11 : vector<16x128xf32>
    %cst_5 = arith.constant dense<0.000000e+00> : vector<16xf32>
    %13 = vector.multi_reduction <add>, %12, %cst_5 [1] : vector<16x128xf32> to vector<16xf32>
    %14 = vector.shape_cast %13 : vector<16xf32> to vector<16x1xf32>
    %cst_6 = arith.constant 0.010416667 : f32
    %15 = vector.broadcast %cst_6 : f32 to vector<16x1xf32>
    %16 = arith.mulf %14, %15 : vector<16x1xf32>
    %17 = vector.broadcast %16 : vector<16x1xf32> to vector<16x128xf32>
    %18 = arith.subf %6, %17 : vector<16x128xf32>
    %19 = arith.mulf %18, %11 : vector<16x128xf32>
    %20 = arith.mulf %19, %19 : vector<16x128xf32>
    %cst_7 = arith.constant dense<0.000000e+00> : vector<16xf32>
    %21 = vector.multi_reduction <add>, %20, %cst_7 [1] : vector<16x128xf32> to vector<16xf32>
    %22 = vector.shape_cast %21 : vector<16xf32> to vector<16x1xf32>
    %cst_8 = arith.constant 0.010416667 : f32
    %23 = vector.broadcast %cst_8 : f32 to vector<16x1xf32>
    %24 = arith.mulf %22, %23 : vector<16x1xf32>
    %cst_9 = arith.constant 9.99999974E-6 : f32
    %25 = vector.broadcast %cst_9 : f32 to vector<16x1xf32>
    %26 = arith.addf %24, %25 : vector<16x1xf32>
    %27 = math.rsqrt %26 : vector<16x1xf32>
    %28 = vector.broadcast %27 : vector<16x1xf32> to vector<16x128xf32>
    %29 = arith.mulf %19, %28 : vector<16x128xf32>
    %c0_10 = arith.constant 0 : index
    %c0_11 = arith.constant 0 : index
    %30 = vector.load %arg4[%c0_10, %c0_11] : memref<1x128xf32, #tpu.memory_space<vmem>>, vector<1x128xf32>
    %31 = vector.broadcast %30 : vector<1x128xf32> to vector<16x128xf32>
    %32 = arith.mulf %29, %31 : vector<16x128xf32>
    %c0_12 = arith.constant 0 : index
    %c0_13 = arith.constant 0 : index
    %33 = vector.load %arg5[%c0_12, %c0_13] : memref<1x128xf32, #tpu.memory_space<vmem>>, vector<1x128xf32>
    %34 = vector.broadcast %33 : vector<1x128xf32> to vector<16x128xf32>
    %35 = arith.addf %32, %34 : vector<16x128xf32>
    %cst_14 = arith.constant 1.000000e+00 : f32
    %36 = vector.broadcast %cst_14 : f32 to vector<16x128xf32>
    %37 = arith.subf %36, %11 : vector<16x128xf32>
    %38 = arith.mulf %6, %37 : vector<16x128xf32>
    %39 = arith.addf %35, %38 : vector<16x128xf32>
    %40 = arith.truncf %39 : vector<16x128xf32> to vector<16x128xbf16>
    %c0_15 = arith.constant 0 : index
    %c0_16 = arith.constant 0 : index
    %c0_17 = arith.constant 0 : index
    %41 = vector.load %arg7[%c0_15, %c0_16, %c0_17] : memref<4x128x384xbf16, #tpu.memory_space<vmem>>, vector<1x128x384xbf16>
    %42 = vector.shape_cast %41 : vector<1x128x384xbf16> to vector<128x384xbf16>
    %cst_18 = arith.constant dense<0.000000e+00> : vector<16x384xf32>
    %43 = tpu.matmul %40, %42, %cst_18 {dimension_numbers = #tpu.dot_dimension_numbers<[1], [0], [0], [1], [0, 0, 1, 1], [], []>} : vector<16x128xbf16>, vector<128x384xbf16>, vector<16x384xf32> -> vector<16x384xf32>
    %c0_19 = arith.constant 0 : index
    %c0_20 = arith.constant 0 : index
    %c0_21 = arith.constant 0 : index
    %44 = vector.load %arg8[%c0_19, %c0_20, %c0_21] : memref<4x1x384xf32, #tpu.memory_space<vmem>>, vector<1x1x384xf32>
    %45 = vector.shape_cast %44 : vector<1x1x384xf32> to vector<1x384xf32>
    %46 = vector.broadcast %45 : vector<1x384xf32> to vector<16x384xf32>
    %47 = arith.addf %43, %46 : vector<16x384xf32>
    %48 = vector.shape_cast %47 : vector<16x384xf32> to vector<2x8x384xf32>
    %49 = arith.truncf %48 : vector<2x8x384xf32> to vector<2x8x384xbf16>
    %c0_22 = arith.constant 0 : index
    %c0_23 = arith.constant 0 : index
    %c0_24 = arith.constant 0 : index
    %50 = vector.load %arg9[%c0_22, %c0_23, %c0_24] : memref<4x128x128xbf16, #tpu.memory_space<vmem>>, vector<1x128x128xbf16>
    %51 = vector.shape_cast %50 : vector<1x128x128xbf16> to vector<128x128xbf16>
    %52 = vector.extract_strided_slice %49 {offsets = [0, 0, 0], sizes = [2, 8, 32], strides = [1, 1, 1]} : vector<2x8x384xbf16> to vector<2x8x32xbf16>
    %53 = vector.extract_strided_slice %49 {offsets = [0, 0, 128], sizes = [2, 8, 32], strides = [1, 1, 1]} : vector<2x8x384xbf16> to vector<2x8x32xbf16>
    %54 = vector.extract_strided_slice %49 {offsets = [0, 0, 256], sizes = [2, 8, 32], strides = [1, 1, 1]} : vector<2x8x384xbf16> to vector<2x8x32xbf16>
    "tpu.trace_start"() <{level = 10 : i32, message = "bqd,bkd->bqk"}> : () -> ()
    %cst_25 = arith.constant dense<0.000000e+00> : vector<2x8x8xf32>
    %55 = tpu.matmul %52, %53, %cst_25 {dimension_numbers = #tpu.dot_dimension_numbers<[2], [2], [1], [1], [0, 0, 0, 1, 1, 1], [0], [0]>} : vector<2x8x32xbf16>, vector<2x8x32xbf16>, vector<2x8x8xf32> -> vector<2x8x8xf32>
    "tpu.trace_stop"() : () -> ()
    %cst_26 = arith.constant 0.176776692 : f32
    %56 = vector.broadcast %cst_26 : f32 to vector<2x8x8xf32>
    %57 = arith.mulf %55, %56 : vector<2x8x8xf32>
    %cst_27 = arith.constant dense<0xFF800000> : vector<2x8xf32>
    %58 = vector.multi_reduction <maximumf>, %57, %cst_27 [2] : vector<2x8x8xf32> to vector<2x8xf32>
    %59 = vector.shape_cast %58 : vector<2x8xf32> to vector<2x8x1xf32>
    %60 = vector.broadcast %59 : vector<2x8x1xf32> to vector<2x8x8xf32>
    %61 = arith.subf %57, %60 : vector<2x8x8xf32>
    %62 = math.exp %61 : vector<2x8x8xf32>
    %cst_28 = arith.constant dense<0.000000e+00> : vector<2x8xf32>
    %63 = vector.multi_reduction <add>, %62, %cst_28 [2] : vector<2x8x8xf32> to vector<2x8xf32>
    %64 = vector.shape_cast %63 : vector<2x8xf32> to vector<2x8x1xf32>
    %65 = tpu.reciprocal %64 {approx = true} : vector<2x8x1xf32> -> vector<2x8x1xf32>
    %66 = vector.broadcast %65 : vector<2x8x1xf32> to vector<2x8x8xf32>
    %67 = arith.mulf %62, %66 : vector<2x8x8xf32>
    %68 = arith.truncf %67 : vector<2x8x8xf32> to vector<2x8x8xbf16>
    "tpu.trace_start"() <{level = 10 : i32, message = "bqk,bkd->bqd"}> : () -> ()
    %cst_29 = arith.constant dense<0.000000e+00> : vector<2x8x32xf32>
    %69 = tpu.matmul %68, %54, %cst_29 {dimension_numbers = #tpu.dot_dimension_numbers<[2], [1], [1], [2], [0, 0, 0, 1, 1, 2], [0], [0]>} : vector<2x8x8xbf16>, vector<2x8x32xbf16>, vector<2x8x32xf32> -> vector<2x8x32xf32>
    "tpu.trace_stop"() : () -> ()
    %70 = vector.shape_cast %69 : vector<2x8x32xf32> to vector<16x32xf32>
    %71 = arith.truncf %70 : vector<16x32xf32> to vector<16x32xbf16>
    %72 = vector.extract_strided_slice %51 {offsets = [0, 0], sizes = [32, 128], strides = [1, 1]} : vector<128x128xbf16> to vector<32x128xbf16>
    %cst_30 = arith.constant dense<0.000000e+00> : vector<16x128xf32>
    %73 = tpu.matmul %71, %72, %cst_30 {dimension_numbers = #tpu.dot_dimension_numbers<[1], [0], [0], [1], [0, 0, 1, 1], [], []>} : vector<16x32xbf16>, vector<32x128xbf16>, vector<16x128xf32> -> vector<16x128xf32>
    %74 = vector.extract_strided_slice %49 {offsets = [0, 0, 32], sizes = [2, 8, 32], strides = [1, 1, 1]} : vector<2x8x384xbf16> to vector<2x8x32xbf16>
    %75 = vector.extract_strided_slice %49 {offsets = [0, 0, 160], sizes = [2, 8, 32], strides = [1, 1, 1]} : vector<2x8x384xbf16> to vector<2x8x32xbf16>
    %76 = vector.extract_strided_slice %49 {offsets = [0, 0, 288], sizes = [2, 8, 32], strides = [1, 1, 1]} : vector<2x8x384xbf16> to vector<2x8x32xbf16>
    "tpu.trace_start"() <{level = 10 : i32, message = "bqd,bkd->bqk"}> : () -> ()
    %cst_31 = arith.constant dense<0.000000e+00> : vector<2x8x8xf32>
    %77 = tpu.matmul %74, %75, %cst_31 {dimension_numbers = #tpu.dot_dimension_numbers<[2], [2], [1], [1], [0, 0, 0, 1, 1, 1], [0], [0]>} : vector<2x8x32xbf16>, vector<2x8x32xbf16>, vector<2x8x8xf32> -> vector<2x8x8xf32>
    "tpu.trace_stop"() : () -> ()
    %cst_32 = arith.constant 0.176776692 : f32
    %78 = vector.broadcast %cst_32 : f32 to vector<2x8x8xf32>
    %79 = arith.mulf %77, %78 : vector<2x8x8xf32>
    %cst_33 = arith.constant dense<0xFF800000> : vector<2x8xf32>
    %80 = vector.multi_reduction <maximumf>, %79, %cst_33 [2] : vector<2x8x8xf32> to vector<2x8xf32>
    %81 = vector.shape_cast %80 : vector<2x8xf32> to vector<2x8x1xf32>
    %82 = vector.broadcast %81 : vector<2x8x1xf32> to vector<2x8x8xf32>
    %83 = arith.subf %79, %82 : vector<2x8x8xf32>
    %84 = math.exp %83 : vector<2x8x8xf32>
    %cst_34 = arith.constant dense<0.000000e+00> : vector<2x8xf32>
    %85 = vector.multi_reduction <add>, %84, %cst_34 [2] : vector<2x8x8xf32> to vector<2x8xf32>
    %86 = vector.shape_cast %85 : vector<2x8xf32> to vector<2x8x1xf32>
    %87 = tpu.reciprocal %86 {approx = true} : vector<2x8x1xf32> -> vector<2x8x1xf32>
    %88 = vector.broadcast %87 : vector<2x8x1xf32> to vector<2x8x8xf32>
    %89 = arith.mulf %84, %88 : vector<2x8x8xf32>
    %90 = arith.truncf %89 : vector<2x8x8xf32> to vector<2x8x8xbf16>
    "tpu.trace_start"() <{level = 10 : i32, message = "bqk,bkd->bqd"}> : () -> ()
    %cst_35 = arith.constant dense<0.000000e+00> : vector<2x8x32xf32>
    %91 = tpu.matmul %90, %76, %cst_35 {dimension_numbers = #tpu.dot_dimension_numbers<[2], [1], [1], [2], [0, 0, 0, 1, 1, 2], [0], [0]>} : vector<2x8x8xbf16>, vector<2x8x32xbf16>, vector<2x8x32xf32> -> vector<2x8x32xf32>
    "tpu.trace_stop"() : () -> ()
    %92 = vector.shape_cast %91 : vector<2x8x32xf32> to vector<16x32xf32>
    %93 = arith.truncf %92 : vector<16x32xf32> to vector<16x32xbf16>
    %94 = vector.extract_strided_slice %51 {offsets = [32, 0], sizes = [32, 128], strides = [1, 1]} : vector<128x128xbf16> to vector<32x128xbf16>
    %cst_36 = arith.constant dense<0.000000e+00> : vector<16x128xf32>
    %95 = tpu.matmul %93, %94, %cst_36 {dimension_numbers = #tpu.dot_dimension_numbers<[1], [0], [0], [1], [0, 0, 1, 1], [], []>} : vector<16x32xbf16>, vector<32x128xbf16>, vector<16x128xf32> -> vector<16x128xf32>
    %96 = arith.addf %73, %95 : vector<16x128xf32>
    %97 = vector.extract_strided_slice %49 {offsets = [0, 0, 64], sizes = [2, 8, 32], strides = [1, 1, 1]} : vector<2x8x384xbf16> to vector<2x8x32xbf16>
    %98 = vector.extract_strided_slice %49 {offsets = [0, 0, 192], sizes = [2, 8, 32], strides = [1, 1, 1]} : vector<2x8x384xbf16> to vector<2x8x32xbf16>
    %99 = vector.extract_strided_slice %49 {offsets = [0, 0, 320], sizes = [2, 8, 32], strides = [1, 1, 1]} : vector<2x8x384xbf16> to vector<2x8x32xbf16>
    "tpu.trace_start"() <{level = 10 : i32, message = "bqd,bkd->bqk"}> : () -> ()
    %cst_37 = arith.constant dense<0.000000e+00> : vector<2x8x8xf32>
    %100 = tpu.matmul %97, %98, %cst_37 {dimension_numbers = #tpu.dot_dimension_numbers<[2], [2], [1], [1], [0, 0, 0, 1, 1, 1], [0], [0]>} : vector<2x8x32xbf16>, vector<2x8x32xbf16>, vector<2x8x8xf32> -> vector<2x8x8xf32>
    "tpu.trace_stop"() : () -> ()
    %cst_38 = arith.constant 0.176776692 : f32
    %101 = vector.broadcast %cst_38 : f32 to vector<2x8x8xf32>
    %102 = arith.mulf %100, %101 : vector<2x8x8xf32>
    %cst_39 = arith.constant dense<0xFF800000> : vector<2x8xf32>
    %103 = vector.multi_reduction <maximumf>, %102, %cst_39 [2] : vector<2x8x8xf32> to vector<2x8xf32>
    %104 = vector.shape_cast %103 : vector<2x8xf32> to vector<2x8x1xf32>
    %105 = vector.broadcast %104 : vector<2x8x1xf32> to vector<2x8x8xf32>
    %106 = arith.subf %102, %105 : vector<2x8x8xf32>
    %107 = math.exp %106 : vector<2x8x8xf32>
    %cst_40 = arith.constant dense<0.000000e+00> : vector<2x8xf32>
    %108 = vector.multi_reduction <add>, %107, %cst_40 [2] : vector<2x8x8xf32> to vector<2x8xf32>
    %109 = vector.shape_cast %108 : vector<2x8xf32> to vector<2x8x1xf32>
    %110 = tpu.reciprocal %109 {approx = true} : vector<2x8x1xf32> -> vector<2x8x1xf32>
    %111 = vector.broadcast %110 : vector<2x8x1xf32> to vector<2x8x8xf32>
    %112 = arith.mulf %107, %111 : vector<2x8x8xf32>
    %113 = arith.truncf %112 : vector<2x8x8xf32> to vector<2x8x8xbf16>
    "tpu.trace_start"() <{level = 10 : i32, message = "bqk,bkd->bqd"}> : () -> ()
    %cst_41 = arith.constant dense<0.000000e+00> : vector<2x8x32xf32>
    %114 = tpu.matmul %113, %99, %cst_41 {dimension_numbers = #tpu.dot_dimension_numbers<[2], [1], [1], [2], [0, 0, 0, 1, 1, 2], [0], [0]>} : vector<2x8x8xbf16>, vector<2x8x32xbf16>, vector<2x8x32xf32> -> vector<2x8x32xf32>
    "tpu.trace_stop"() : () -> ()
    %115 = vector.shape_cast %114 : vector<2x8x32xf32> to vector<16x32xf32>
    %116 = arith.truncf %115 : vector<16x32xf32> to vector<16x32xbf16>
    %117 = vector.extract_strided_slice %51 {offsets = [64, 0], sizes = [32, 128], strides = [1, 1]} : vector<128x128xbf16> to vector<32x128xbf16>
    %cst_42 = arith.constant dense<0.000000e+00> : vector<16x128xf32>
    %118 = tpu.matmul %116, %117, %cst_42 {dimension_numbers = #tpu.dot_dimension_numbers<[1], [0], [0], [1], [0, 0, 1, 1], [], []>} : vector<16x32xbf16>, vector<32x128xbf16>, vector<16x128xf32> -> vector<16x128xf32>
    %119 = arith.addf %96, %118 : vector<16x128xf32>
    %120 = vector.extract_strided_slice %49 {offsets = [0, 0, 96], sizes = [2, 8, 32], strides = [1, 1, 1]} : vector<2x8x384xbf16> to vector<2x8x32xbf16>
    %121 = vector.extract_strided_slice %49 {offsets = [0, 0, 224], sizes = [2, 8, 32], strides = [1, 1, 1]} : vector<2x8x384xbf16> to vector<2x8x32xbf16>
    %122 = vector.extract_strided_slice %49 {offsets = [0, 0, 352], sizes = [2, 8, 32], strides = [1, 1, 1]} : vector<2x8x384xbf16> to vector<2x8x32xbf16>
    "tpu.trace_start"() <{level = 10 : i32, message = "bqd,bkd->bqk"}> : () -> ()
    %cst_43 = arith.constant dense<0.000000e+00> : vector<2x8x8xf32>
    %123 = tpu.matmul %120, %121, %cst_43 {dimension_numbers = #tpu.dot_dimension_numbers<[2], [2], [1], [1], [0, 0, 0, 1, 1, 1], [0], [0]>} : vector<2x8x32xbf16>, vector<2x8x32xbf16>, vector<2x8x8xf32> -> vector<2x8x8xf32>
    "tpu.trace_stop"() : () -> ()
    %cst_44 = arith.constant 0.176776692 : f32
    %124 = vector.broadcast %cst_44 : f32 to vector<2x8x8xf32>
    %125 = arith.mulf %123, %124 : vector<2x8x8xf32>
    %cst_45 = arith.constant dense<0xFF800000> : vector<2x8xf32>
    %126 = vector.multi_reduction <maximumf>, %125, %cst_45 [2] : vector<2x8x8xf32> to vector<2x8xf32>
    %127 = vector.shape_cast %126 : vector<2x8xf32> to vector<2x8x1xf32>
    %128 = vector.broadcast %127 : vector<2x8x1xf32> to vector<2x8x8xf32>
    %129 = arith.subf %125, %128 : vector<2x8x8xf32>
    %130 = math.exp %129 : vector<2x8x8xf32>
    %cst_46 = arith.constant dense<0.000000e+00> : vector<2x8xf32>
    %131 = vector.multi_reduction <add>, %130, %cst_46 [2] : vector<2x8x8xf32> to vector<2x8xf32>
    %132 = vector.shape_cast %131 : vector<2x8xf32> to vector<2x8x1xf32>
    %133 = tpu.reciprocal %132 {approx = true} : vector<2x8x1xf32> -> vector<2x8x1xf32>
    %134 = vector.broadcast %133 : vector<2x8x1xf32> to vector<2x8x8xf32>
    %135 = arith.mulf %130, %134 : vector<2x8x8xf32>
    %136 = arith.truncf %135 : vector<2x8x8xf32> to vector<2x8x8xbf16>
    "tpu.trace_start"() <{level = 10 : i32, message = "bqk,bkd->bqd"}> : () -> ()
    %cst_47 = arith.constant dense<0.000000e+00> : vector<2x8x32xf32>
    %137 = tpu.matmul %136, %122, %cst_47 {dimension_numbers = #tpu.dot_dimension_numbers<[2], [1], [1], [2], [0, 0, 0, 1, 1, 2], [0], [0]>} : vector<2x8x8xbf16>, vector<2x8x32xbf16>, vector<2x8x32xf32> -> vector<2x8x32xf32>
    "tpu.trace_stop"() : () -> ()
    %138 = vector.shape_cast %137 : vector<2x8x32xf32> to vector<16x32xf32>
    %139 = arith.truncf %138 : vector<16x32xf32> to vector<16x32xbf16>
    %140 = vector.extract_strided_slice %51 {offsets = [96, 0], sizes = [32, 128], strides = [1, 1]} : vector<128x128xbf16> to vector<32x128xbf16>
    %cst_48 = arith.constant dense<0.000000e+00> : vector<16x128xf32>
    %141 = tpu.matmul %139, %140, %cst_48 {dimension_numbers = #tpu.dot_dimension_numbers<[1], [0], [0], [1], [0, 0, 1, 1], [], []>} : vector<16x32xbf16>, vector<32x128xbf16>, vector<16x128xf32> -> vector<16x128xf32>
    %142 = arith.addf %119, %141 : vector<16x128xf32>
    %c0_49 = arith.constant 0 : index
    %c0_50 = arith.constant 0 : index
    %c0_51 = arith.constant 0 : index
    %143 = vector.load %arg10[%c0_49, %c0_50, %c0_51] : memref<4x1x128xf32, #tpu.memory_space<vmem>>, vector<1x1x128xf32>
    %144 = vector.shape_cast %143 : vector<1x1x128xf32> to vector<1x128xf32>
    %145 = vector.broadcast %144 : vector<1x128xf32> to vector<16x128xf32>
    %146 = arith.addf %142, %145 : vector<16x128xf32>
    %147 = arith.addf %39, %146 : vector<16x128xf32>
    %c0_52 = arith.constant 0 : index
    %c0_53 = arith.constant 0 : index
    %c0_54 = arith.constant 0 : index
    %148 = vector.load %arg11[%c0_52, %c0_53, %c0_54] : memref<4x1x128xf32, #tpu.memory_space<vmem>>, vector<1x1x128xf32>
    %149 = vector.shape_cast %148 : vector<1x1x128xf32> to vector<1x128xf32>
    %c0_55 = arith.constant 0 : index
    %c0_56 = arith.constant 0 : index
    %c0_57 = arith.constant 0 : index
    %150 = vector.load %arg12[%c0_55, %c0_56, %c0_57] : memref<4x1x128xf32, #tpu.memory_space<vmem>>, vector<1x1x128xf32>
    %151 = vector.shape_cast %150 : vector<1x1x128xf32> to vector<1x128xf32>
    %cst_58 = arith.constant dense<0.000000e+00> : vector<16xf32>
    %152 = vector.multi_reduction <add>, %147, %cst_58 [1] : vector<16x128xf32> to vector<16xf32>
    %153 = vector.shape_cast %152 : vector<16xf32> to vector<16x1xf32>
    %cst_59 = arith.constant 1.280000e+02 : f32
    %154 = vector.broadcast %cst_59 : f32 to vector<16x1xf32>
    %155 = arith.divf %153, %154 : vector<16x1xf32>
    %156 = vector.broadcast %155 : vector<16x1xf32> to vector<16x128xf32>
    %157 = arith.subf %147, %156 : vector<16x128xf32>
    %158 = arith.mulf %157, %157 : vector<16x128xf32>
    %cst_60 = arith.constant dense<0.000000e+00> : vector<16xf32>
    %159 = vector.multi_reduction <add>, %158, %cst_60 [1] : vector<16x128xf32> to vector<16xf32>
    %160 = vector.shape_cast %159 : vector<16xf32> to vector<16x1xf32>
    %cst_61 = arith.constant 1.280000e+02 : f32
    %161 = vector.broadcast %cst_61 : f32 to vector<16x1xf32>
    %162 = arith.divf %160, %161 : vector<16x1xf32>
    %cst_62 = arith.constant 9.99999974E-6 : f32
    %163 = vector.broadcast %cst_62 : f32 to vector<16x1xf32>
    %164 = arith.addf %162, %163 : vector<16x1xf32>
    %165 = math.rsqrt %164 : vector<16x1xf32>
    %166 = vector.broadcast %165 : vector<16x1xf32> to vector<16x128xf32>
    %167 = arith.mulf %157, %166 : vector<16x128xf32>
    %168 = vector.broadcast %149 : vector<1x128xf32> to vector<16x128xf32>
    %169 = arith.mulf %167, %168 : vector<16x128xf32>
    %170 = vector.broadcast %151 : vector<1x128xf32> to vector<16x128xf32>
    %171 = arith.addf %169, %170 : vector<16x128xf32>
    %172 = arith.truncf %171 : vector<16x128xf32> to vector<16x128xbf16>
    %c0_63 = arith.constant 0 : index
    %c0_64 = arith.constant 0 : index
    %c0_65 = arith.constant 0 : index
    %173 = vector.load %arg13[%c0_63, %c0_64, %c0_65] : memref<4x128x512xbf16, #tpu.memory_space<vmem>>, vector<1x128x512xbf16>
    %174 = vector.shape_cast %173 : vector<1x128x512xbf16> to vector<128x512xbf16>
    %cst_66 = arith.constant dense<0.000000e+00> : vector<16x512xf32>
    %175 = tpu.matmul %172, %174, %cst_66 {dimension_numbers = #tpu.dot_dimension_numbers<[1], [0], [0], [1], [0, 0, 1, 1], [], []>} : vector<16x128xbf16>, vector<128x512xbf16>, vector<16x512xf32> -> vector<16x512xf32>
    %c0_67 = arith.constant 0 : index
    %c0_68 = arith.constant 0 : index
    %c0_69 = arith.constant 0 : index
    %176 = vector.load %arg14[%c0_67, %c0_68, %c0_69] : memref<4x1x512xf32, #tpu.memory_space<vmem>>, vector<1x1x512xf32>
    %177 = vector.shape_cast %176 : vector<1x1x512xf32> to vector<1x512xf32>
    %178 = vector.broadcast %177 : vector<1x512xf32> to vector<16x512xf32>
    %179 = arith.addf %175, %178 : vector<16x512xf32>
    %cst_70 = arith.constant 0.000000e+00 : f32
    %180 = vector.broadcast %cst_70 : f32 to vector<16x512xf32>
    %181 = arith.maximumf %179, %180 : vector<16x512xf32>
    %182 = arith.truncf %181 : vector<16x512xf32> to vector<16x512xbf16>
    %c0_71 = arith.constant 0 : index
    %c0_72 = arith.constant 0 : index
    %c0_73 = arith.constant 0 : index
    %183 = vector.load %arg15[%c0_71, %c0_72, %c0_73] : memref<4x512x128xbf16, #tpu.memory_space<vmem>>, vector<1x512x128xbf16>
    %184 = vector.shape_cast %183 : vector<1x512x128xbf16> to vector<512x128xbf16>
    %cst_74 = arith.constant dense<0.000000e+00> : vector<16x128xf32>
    %185 = tpu.matmul %182, %184, %cst_74 {dimension_numbers = #tpu.dot_dimension_numbers<[1], [0], [0], [1], [0, 0, 1, 1], [], []>} : vector<16x512xbf16>, vector<512x128xbf16>, vector<16x128xf32> -> vector<16x128xf32>
    %c0_75 = arith.constant 0 : index
    %c0_76 = arith.constant 0 : index
    %c0_77 = arith.constant 0 : index
    %186 = vector.load %arg16[%c0_75, %c0_76, %c0_77] : memref<4x1x128xf32, #tpu.memory_space<vmem>>, vector<1x1x128xf32>
    %187 = vector.shape_cast %186 : vector<1x1x128xf32> to vector<1x128xf32>
    %188 = vector.broadcast %187 : vector<1x128xf32> to vector<16x128xf32>
    %189 = arith.addf %185, %188 : vector<16x128xf32>
    %190 = arith.addf %171, %189 : vector<16x128xf32>
    %c0_78 = arith.constant 0 : index
    %c0_79 = arith.constant 0 : index
    %c0_80 = arith.constant 0 : index
    %191 = vector.load %arg17[%c0_78, %c0_79, %c0_80] : memref<4x1x128xf32, #tpu.memory_space<vmem>>, vector<1x1x128xf32>
    %192 = vector.shape_cast %191 : vector<1x1x128xf32> to vector<1x128xf32>
    %c0_81 = arith.constant 0 : index
    %c0_82 = arith.constant 0 : index
    %c0_83 = arith.constant 0 : index
    %193 = vector.load %arg18[%c0_81, %c0_82, %c0_83] : memref<4x1x128xf32, #tpu.memory_space<vmem>>, vector<1x1x128xf32>
    %194 = vector.shape_cast %193 : vector<1x1x128xf32> to vector<1x128xf32>
    %cst_84 = arith.constant dense<0.000000e+00> : vector<16xf32>
    %195 = vector.multi_reduction <add>, %190, %cst_84 [1] : vector<16x128xf32> to vector<16xf32>
    %196 = vector.shape_cast %195 : vector<16xf32> to vector<16x1xf32>
    %cst_85 = arith.constant 1.280000e+02 : f32
    %197 = vector.broadcast %cst_85 : f32 to vector<16x1xf32>
    %198 = arith.divf %196, %197 : vector<16x1xf32>
    %199 = vector.broadcast %198 : vector<16x1xf32> to vector<16x128xf32>
    %200 = arith.subf %190, %199 : vector<16x128xf32>
    %201 = arith.mulf %200, %200 : vector<16x128xf32>
    %cst_86 = arith.constant dense<0.000000e+00> : vector<16xf32>
    %202 = vector.multi_reduction <add>, %201, %cst_86 [1] : vector<16x128xf32> to vector<16xf32>
    %203 = vector.shape_cast %202 : vector<16xf32> to vector<16x1xf32>
    %cst_87 = arith.constant 1.280000e+02 : f32
    %204 = vector.broadcast %cst_87 : f32 to vector<16x1xf32>
    %205 = arith.divf %203, %204 : vector<16x1xf32>
    %cst_88 = arith.constant 9.99999974E-6 : f32
    %206 = vector.broadcast %cst_88 : f32 to vector<16x1xf32>
    %207 = arith.addf %205, %206 : vector<16x1xf32>
    %208 = math.rsqrt %207 : vector<16x1xf32>
    %209 = vector.broadcast %208 : vector<16x1xf32> to vector<16x128xf32>
    %210 = arith.mulf %200, %209 : vector<16x128xf32>
    %211 = vector.broadcast %192 : vector<1x128xf32> to vector<16x128xf32>
    %212 = arith.mulf %210, %211 : vector<16x128xf32>
    %213 = vector.broadcast %194 : vector<1x128xf32> to vector<16x128xf32>
    %214 = arith.addf %212, %213 : vector<16x128xf32>
    %215 = arith.truncf %214 : vector<16x128xf32> to vector<16x128xbf16>
    %c1 = arith.constant 1 : index
    %c0_89 = arith.constant 0 : index
    %c0_90 = arith.constant 0 : index
    %216 = vector.load %arg7[%c1, %c0_89, %c0_90] : memref<4x128x384xbf16, #tpu.memory_space<vmem>>, vector<1x128x384xbf16>
    %217 = vector.shape_cast %216 : vector<1x128x384xbf16> to vector<128x384xbf16>
    %cst_91 = arith.constant dense<0.000000e+00> : vector<16x384xf32>
    %218 = tpu.matmul %215, %217, %cst_91 {dimension_numbers = #tpu.dot_dimension_numbers<[1], [0], [0], [1], [0, 0, 1, 1], [], []>} : vector<16x128xbf16>, vector<128x384xbf16>, vector<16x384xf32> -> vector<16x384xf32>
    %c1_92 = arith.constant 1 : index
    %c0_93 = arith.constant 0 : index
    %c0_94 = arith.constant 0 : index
    %219 = vector.load %arg8[%c1_92, %c0_93, %c0_94] : memref<4x1x384xf32, #tpu.memory_space<vmem>>, vector<1x1x384xf32>
    %220 = vector.shape_cast %219 : vector<1x1x384xf32> to vector<1x384xf32>
    %221 = vector.broadcast %220 : vector<1x384xf32> to vector<16x384xf32>
    %222 = arith.addf %218, %221 : vector<16x384xf32>
    %223 = vector.shape_cast %222 : vector<16x384xf32> to vector<2x8x384xf32>
    %224 = arith.truncf %223 : vector<2x8x384xf32> to vector<2x8x384xbf16>
    %c1_95 = arith.constant 1 : index
    %c0_96 = arith.constant 0 : index
    %c0_97 = arith.constant 0 : index
    %225 = vector.load %arg9[%c1_95, %c0_96, %c0_97] : memref<4x128x128xbf16, #tpu.memory_space<vmem>>, vector<1x128x128xbf16>
    %226 = vector.shape_cast %225 : vector<1x128x128xbf16> to vector<128x128xbf16>
    %227 = vector.extract_strided_slice %224 {offsets = [0, 0, 0], sizes = [2, 8, 32], strides = [1, 1, 1]} : vector<2x8x384xbf16> to vector<2x8x32xbf16>
    %228 = vector.extract_strided_slice %224 {offsets = [0, 0, 128], sizes = [2, 8, 32], strides = [1, 1, 1]} : vector<2x8x384xbf16> to vector<2x8x32xbf16>
    %229 = vector.extract_strided_slice %224 {offsets = [0, 0, 256], sizes = [2, 8, 32], strides = [1, 1, 1]} : vector<2x8x384xbf16> to vector<2x8x32xbf16>
    "tpu.trace_start"() <{level = 10 : i32, message = "bqd,bkd->bqk"}> : () -> ()
    %cst_98 = arith.constant dense<0.000000e+00> : vector<2x8x8xf32>
    %230 = tpu.matmul %227, %228, %cst_98 {dimension_numbers = #tpu.dot_dimension_numbers<[2], [2], [1], [1], [0, 0, 0, 1, 1, 1], [0], [0]>} : vector<2x8x32xbf16>, vector<2x8x32xbf16>, vector<2x8x8xf32> -> vector<2x8x8xf32>
    "tpu.trace_stop"() : () -> ()
    %cst_99 = arith.constant 0.176776692 : f32
    %231 = vector.broadcast %cst_99 : f32 to vector<2x8x8xf32>
    %232 = arith.mulf %230, %231 : vector<2x8x8xf32>
    %cst_100 = arith.constant dense<0xFF800000> : vector<2x8xf32>
    %233 = vector.multi_reduction <maximumf>, %232, %cst_100 [2] : vector<2x8x8xf32> to vector<2x8xf32>
    %234 = vector.shape_cast %233 : vector<2x8xf32> to vector<2x8x1xf32>
    %235 = vector.broadcast %234 : vector<2x8x1xf32> to vector<2x8x8xf32>
    %236 = arith.subf %232, %235 : vector<2x8x8xf32>
    %237 = math.exp %236 : vector<2x8x8xf32>
    %cst_101 = arith.constant dense<0.000000e+00> : vector<2x8xf32>
    %238 = vector.multi_reduction <add>, %237, %cst_101 [2] : vector<2x8x8xf32> to vector<2x8xf32>
    %239 = vector.shape_cast %238 : vector<2x8xf32> to vector<2x8x1xf32>
    %240 = tpu.reciprocal %239 {approx = true} : vector<2x8x1xf32> -> vector<2x8x1xf32>
    %241 = vector.broadcast %240 : vector<2x8x1xf32> to vector<2x8x8xf32>
    %242 = arith.mulf %237, %241 : vector<2x8x8xf32>
    %243 = arith.truncf %242 : vector<2x8x8xf32> to vector<2x8x8xbf16>
    "tpu.trace_start"() <{level = 10 : i32, message = "bqk,bkd->bqd"}> : () -> ()
    %cst_102 = arith.constant dense<0.000000e+00> : vector<2x8x32xf32>
    %244 = tpu.matmul %243, %229, %cst_102 {dimension_numbers = #tpu.dot_dimension_numbers<[2], [1], [1], [2], [0, 0, 0, 1, 1, 2], [0], [0]>} : vector<2x8x8xbf16>, vector<2x8x32xbf16>, vector<2x8x32xf32> -> vector<2x8x32xf32>
    "tpu.trace_stop"() : () -> ()
    %245 = vector.shape_cast %244 : vector<2x8x32xf32> to vector<16x32xf32>
    %246 = arith.truncf %245 : vector<16x32xf32> to vector<16x32xbf16>
    %247 = vector.extract_strided_slice %226 {offsets = [0, 0], sizes = [32, 128], strides = [1, 1]} : vector<128x128xbf16> to vector<32x128xbf16>
    %cst_103 = arith.constant dense<0.000000e+00> : vector<16x128xf32>
    %248 = tpu.matmul %246, %247, %cst_103 {dimension_numbers = #tpu.dot_dimension_numbers<[1], [0], [0], [1], [0, 0, 1, 1], [], []>} : vector<16x32xbf16>, vector<32x128xbf16>, vector<16x128xf32> -> vector<16x128xf32>
    %249 = vector.extract_strided_slice %224 {offsets = [0, 0, 32], sizes = [2, 8, 32], strides = [1, 1, 1]} : vector<2x8x384xbf16> to vector<2x8x32xbf16>
    %250 = vector.extract_strided_slice %224 {offsets = [0, 0, 160], sizes = [2, 8, 32], strides = [1, 1, 1]} : vector<2x8x384xbf16> to vector<2x8x32xbf16>
    %251 = vector.extract_strided_slice %224 {offsets = [0, 0, 288], sizes = [2, 8, 32], strides = [1, 1, 1]} : vector<2x8x384xbf16> to vector<2x8x32xbf16>
    "tpu.trace_start"() <{level = 10 : i32, message = "bqd,bkd->bqk"}> : () -> ()
    %cst_104 = arith.constant dense<0.000000e+00> : vector<2x8x8xf32>
    %252 = tpu.matmul %249, %250, %cst_104 {dimension_numbers = #tpu.dot_dimension_numbers<[2], [2], [1], [1], [0, 0, 0, 1, 1, 1], [0], [0]>} : vector<2x8x32xbf16>, vector<2x8x32xbf16>, vector<2x8x8xf32> -> vector<2x8x8xf32>
    "tpu.trace_stop"() : () -> ()
    %cst_105 = arith.constant 0.176776692 : f32
    %253 = vector.broadcast %cst_105 : f32 to vector<2x8x8xf32>
    %254 = arith.mulf %252, %253 : vector<2x8x8xf32>
    %cst_106 = arith.constant dense<0xFF800000> : vector<2x8xf32>
    %255 = vector.multi_reduction <maximumf>, %254, %cst_106 [2] : vector<2x8x8xf32> to vector<2x8xf32>
    %256 = vector.shape_cast %255 : vector<2x8xf32> to vector<2x8x1xf32>
    %257 = vector.broadcast %256 : vector<2x8x1xf32> to vector<2x8x8xf32>
    %258 = arith.subf %254, %257 : vector<2x8x8xf32>
    %259 = math.exp %258 : vector<2x8x8xf32>
    %cst_107 = arith.constant dense<0.000000e+00> : vector<2x8xf32>
    %260 = vector.multi_reduction <add>, %259, %cst_107 [2] : vector<2x8x8xf32> to vector<2x8xf32>
    %261 = vector.shape_cast %260 : vector<2x8xf32> to vector<2x8x1xf32>
    %262 = tpu.reciprocal %261 {approx = true} : vector<2x8x1xf32> -> vector<2x8x1xf32>
    %263 = vector.broadcast %262 : vector<2x8x1xf32> to vector<2x8x8xf32>
    %264 = arith.mulf %259, %263 : vector<2x8x8xf32>
    %265 = arith.truncf %264 : vector<2x8x8xf32> to vector<2x8x8xbf16>
    "tpu.trace_start"() <{level = 10 : i32, message = "bqk,bkd->bqd"}> : () -> ()
    %cst_108 = arith.constant dense<0.000000e+00> : vector<2x8x32xf32>
    %266 = tpu.matmul %265, %251, %cst_108 {dimension_numbers = #tpu.dot_dimension_numbers<[2], [1], [1], [2], [0, 0, 0, 1, 1, 2], [0], [0]>} : vector<2x8x8xbf16>, vector<2x8x32xbf16>, vector<2x8x32xf32> -> vector<2x8x32xf32>
    "tpu.trace_stop"() : () -> ()
    %267 = vector.shape_cast %266 : vector<2x8x32xf32> to vector<16x32xf32>
    %268 = arith.truncf %267 : vector<16x32xf32> to vector<16x32xbf16>
    %269 = vector.extract_strided_slice %226 {offsets = [32, 0], sizes = [32, 128], strides = [1, 1]} : vector<128x128xbf16> to vector<32x128xbf16>
    %cst_109 = arith.constant dense<0.000000e+00> : vector<16x128xf32>
    %270 = tpu.matmul %268, %269, %cst_109 {dimension_numbers = #tpu.dot_dimension_numbers<[1], [0], [0], [1], [0, 0, 1, 1], [], []>} : vector<16x32xbf16>, vector<32x128xbf16>, vector<16x128xf32> -> vector<16x128xf32>
    %271 = arith.addf %248, %270 : vector<16x128xf32>
    %272 = vector.extract_strided_slice %224 {offsets = [0, 0, 64], sizes = [2, 8, 32], strides = [1, 1, 1]} : vector<2x8x384xbf16> to vector<2x8x32xbf16>
    %273 = vector.extract_strided_slice %224 {offsets = [0, 0, 192], sizes = [2, 8, 32], strides = [1, 1, 1]} : vector<2x8x384xbf16> to vector<2x8x32xbf16>
    %274 = vector.extract_strided_slice %224 {offsets = [0, 0, 320], sizes = [2, 8, 32], strides = [1, 1, 1]} : vector<2x8x384xbf16> to vector<2x8x32xbf16>
    "tpu.trace_start"() <{level = 10 : i32, message = "bqd,bkd->bqk"}> : () -> ()
    %cst_110 = arith.constant dense<0.000000e+00> : vector<2x8x8xf32>
    %275 = tpu.matmul %272, %273, %cst_110 {dimension_numbers = #tpu.dot_dimension_numbers<[2], [2], [1], [1], [0, 0, 0, 1, 1, 1], [0], [0]>} : vector<2x8x32xbf16>, vector<2x8x32xbf16>, vector<2x8x8xf32> -> vector<2x8x8xf32>
    "tpu.trace_stop"() : () -> ()
    %cst_111 = arith.constant 0.176776692 : f32
    %276 = vector.broadcast %cst_111 : f32 to vector<2x8x8xf32>
    %277 = arith.mulf %275, %276 : vector<2x8x8xf32>
    %cst_112 = arith.constant dense<0xFF800000> : vector<2x8xf32>
    %278 = vector.multi_reduction <maximumf>, %277, %cst_112 [2] : vector<2x8x8xf32> to vector<2x8xf32>
    %279 = vector.shape_cast %278 : vector<2x8xf32> to vector<2x8x1xf32>
    %280 = vector.broadcast %279 : vector<2x8x1xf32> to vector<2x8x8xf32>
    %281 = arith.subf %277, %280 : vector<2x8x8xf32>
    %282 = math.exp %281 : vector<2x8x8xf32>
    %cst_113 = arith.constant dense<0.000000e+00> : vector<2x8xf32>
    %283 = vector.multi_reduction <add>, %282, %cst_113 [2] : vector<2x8x8xf32> to vector<2x8xf32>
    %284 = vector.shape_cast %283 : vector<2x8xf32> to vector<2x8x1xf32>
    %285 = tpu.reciprocal %284 {approx = true} : vector<2x8x1xf32> -> vector<2x8x1xf32>
    %286 = vector.broadcast %285 : vector<2x8x1xf32> to vector<2x8x8xf32>
    %287 = arith.mulf %282, %286 : vector<2x8x8xf32>
    %288 = arith.truncf %287 : vector<2x8x8xf32> to vector<2x8x8xbf16>
    "tpu.trace_start"() <{level = 10 : i32, message = "bqk,bkd->bqd"}> : () -> ()
    %cst_114 = arith.constant dense<0.000000e+00> : vector<2x8x32xf32>
    %289 = tpu.matmul %288, %274, %cst_114 {dimension_numbers = #tpu.dot_dimension_numbers<[2], [1], [1], [2], [0, 0, 0, 1, 1, 2], [0], [0]>} : vector<2x8x8xbf16>, vector<2x8x32xbf16>, vector<2x8x32xf32> -> vector<2x8x32xf32>
    "tpu.trace_stop"() : () -> ()
    %290 = vector.shape_cast %289 : vector<2x8x32xf32> to vector<16x32xf32>
    %291 = arith.truncf %290 : vector<16x32xf32> to vector<16x32xbf16>
    %292 = vector.extract_strided_slice %226 {offsets = [64, 0], sizes = [32, 128], strides = [1, 1]} : vector<128x128xbf16> to vector<32x128xbf16>
    %cst_115 = arith.constant dense<0.000000e+00> : vector<16x128xf32>
    %293 = tpu.matmul %291, %292, %cst_115 {dimension_numbers = #tpu.dot_dimension_numbers<[1], [0], [0], [1], [0, 0, 1, 1], [], []>} : vector<16x32xbf16>, vector<32x128xbf16>, vector<16x128xf32> -> vector<16x128xf32>
    %294 = arith.addf %271, %293 : vector<16x128xf32>
    %295 = vector.extract_strided_slice %224 {offsets = [0, 0, 96], sizes = [2, 8, 32], strides = [1, 1, 1]} : vector<2x8x384xbf16> to vector<2x8x32xbf16>
    %296 = vector.extract_strided_slice %224 {offsets = [0, 0, 224], sizes = [2, 8, 32], strides = [1, 1, 1]} : vector<2x8x384xbf16> to vector<2x8x32xbf16>
    %297 = vector.extract_strided_slice %224 {offsets = [0, 0, 352], sizes = [2, 8, 32], strides = [1, 1, 1]} : vector<2x8x384xbf16> to vector<2x8x32xbf16>
    "tpu.trace_start"() <{level = 10 : i32, message = "bqd,bkd->bqk"}> : () -> ()
    %cst_116 = arith.constant dense<0.000000e+00> : vector<2x8x8xf32>
    %298 = tpu.matmul %295, %296, %cst_116 {dimension_numbers = #tpu.dot_dimension_numbers<[2], [2], [1], [1], [0, 0, 0, 1, 1, 1], [0], [0]>} : vector<2x8x32xbf16>, vector<2x8x32xbf16>, vector<2x8x8xf32> -> vector<2x8x8xf32>
    "tpu.trace_stop"() : () -> ()
    %cst_117 = arith.constant 0.176776692 : f32
    %299 = vector.broadcast %cst_117 : f32 to vector<2x8x8xf32>
    %300 = arith.mulf %298, %299 : vector<2x8x8xf32>
    %cst_118 = arith.constant dense<0xFF800000> : vector<2x8xf32>
    %301 = vector.multi_reduction <maximumf>, %300, %cst_118 [2] : vector<2x8x8xf32> to vector<2x8xf32>
    %302 = vector.shape_cast %301 : vector<2x8xf32> to vector<2x8x1xf32>
    %303 = vector.broadcast %302 : vector<2x8x1xf32> to vector<2x8x8xf32>
    %304 = arith.subf %300, %303 : vector<2x8x8xf32>
    %305 = math.exp %304 : vector<2x8x8xf32>
    %cst_119 = arith.constant dense<0.000000e+00> : vector<2x8xf32>
    %306 = vector.multi_reduction <add>, %305, %cst_119 [2] : vector<2x8x8xf32> to vector<2x8xf32>
    %307 = vector.shape_cast %306 : vector<2x8xf32> to vector<2x8x1xf32>
    %308 = tpu.reciprocal %307 {approx = true} : vector<2x8x1xf32> -> vector<2x8x1xf32>
    %309 = vector.broadcast %308 : vector<2x8x1xf32> to vector<2x8x8xf32>
    %310 = arith.mulf %305, %309 : vector<2x8x8xf32>
    %311 = arith.truncf %310 : vector<2x8x8xf32> to vector<2x8x8xbf16>
    "tpu.trace_start"() <{level = 10 : i32, message = "bqk,bkd->bqd"}> : () -> ()
    %cst_120 = arith.constant dense<0.000000e+00> : vector<2x8x32xf32>
    %312 = tpu.matmul %311, %297, %cst_120 {dimension_numbers = #tpu.dot_dimension_numbers<[2], [1], [1], [2], [0, 0, 0, 1, 1, 2], [0], [0]>} : vector<2x8x8xbf16>, vector<2x8x32xbf16>, vector<2x8x32xf32> -> vector<2x8x32xf32>
    "tpu.trace_stop"() : () -> ()
    %313 = vector.shape_cast %312 : vector<2x8x32xf32> to vector<16x32xf32>
    %314 = arith.truncf %313 : vector<16x32xf32> to vector<16x32xbf16>
    %315 = vector.extract_strided_slice %226 {offsets = [96, 0], sizes = [32, 128], strides = [1, 1]} : vector<128x128xbf16> to vector<32x128xbf16>
    %cst_121 = arith.constant dense<0.000000e+00> : vector<16x128xf32>
    %316 = tpu.matmul %314, %315, %cst_121 {dimension_numbers = #tpu.dot_dimension_numbers<[1], [0], [0], [1], [0, 0, 1, 1], [], []>} : vector<16x32xbf16>, vector<32x128xbf16>, vector<16x128xf32> -> vector<16x128xf32>
    %317 = arith.addf %294, %316 : vector<16x128xf32>
    %c1_122 = arith.constant 1 : index
    %c0_123 = arith.constant 0 : index
    %c0_124 = arith.constant 0 : index
    %318 = vector.load %arg10[%c1_122, %c0_123, %c0_124] : memref<4x1x128xf32, #tpu.memory_space<vmem>>, vector<1x1x128xf32>
    %319 = vector.shape_cast %318 : vector<1x1x128xf32> to vector<1x128xf32>
    %320 = vector.broadcast %319 : vector<1x128xf32> to vector<16x128xf32>
    %321 = arith.addf %317, %320 : vector<16x128xf32>
    %322 = arith.addf %214, %321 : vector<16x128xf32>
    %c1_125 = arith.constant 1 : index
    %c0_126 = arith.constant 0 : index
    %c0_127 = arith.constant 0 : index
    %323 = vector.load %arg11[%c1_125, %c0_126, %c0_127] : memref<4x1x128xf32, #tpu.memory_space<vmem>>, vector<1x1x128xf32>
    %324 = vector.shape_cast %323 : vector<1x1x128xf32> to vector<1x128xf32>
    %c1_128 = arith.constant 1 : index
    %c0_129 = arith.constant 0 : index
    %c0_130 = arith.constant 0 : index
    %325 = vector.load %arg12[%c1_128, %c0_129, %c0_130] : memref<4x1x128xf32, #tpu.memory_space<vmem>>, vector<1x1x128xf32>
    %326 = vector.shape_cast %325 : vector<1x1x128xf32> to vector<1x128xf32>
    %cst_131 = arith.constant dense<0.000000e+00> : vector<16xf32>
    %327 = vector.multi_reduction <add>, %322, %cst_131 [1] : vector<16x128xf32> to vector<16xf32>
    %328 = vector.shape_cast %327 : vector<16xf32> to vector<16x1xf32>
    %cst_132 = arith.constant 1.280000e+02 : f32
    %329 = vector.broadcast %cst_132 : f32 to vector<16x1xf32>
    %330 = arith.divf %328, %329 : vector<16x1xf32>
    %331 = vector.broadcast %330 : vector<16x1xf32> to vector<16x128xf32>
    %332 = arith.subf %322, %331 : vector<16x128xf32>
    %333 = arith.mulf %332, %332 : vector<16x128xf32>
    %cst_133 = arith.constant dense<0.000000e+00> : vector<16xf32>
    %334 = vector.multi_reduction <add>, %333, %cst_133 [1] : vector<16x128xf32> to vector<16xf32>
    %335 = vector.shape_cast %334 : vector<16xf32> to vector<16x1xf32>
    %cst_134 = arith.constant 1.280000e+02 : f32
    %336 = vector.broadcast %cst_134 : f32 to vector<16x1xf32>
    %337 = arith.divf %335, %336 : vector<16x1xf32>
    %cst_135 = arith.constant 9.99999974E-6 : f32
    %338 = vector.broadcast %cst_135 : f32 to vector<16x1xf32>
    %339 = arith.addf %337, %338 : vector<16x1xf32>
    %340 = math.rsqrt %339 : vector<16x1xf32>
    %341 = vector.broadcast %340 : vector<16x1xf32> to vector<16x128xf32>
    %342 = arith.mulf %332, %341 : vector<16x128xf32>
    %343 = vector.broadcast %324 : vector<1x128xf32> to vector<16x128xf32>
    %344 = arith.mulf %342, %343 : vector<16x128xf32>
    %345 = vector.broadcast %326 : vector<1x128xf32> to vector<16x128xf32>
    %346 = arith.addf %344, %345 : vector<16x128xf32>
    %347 = arith.truncf %346 : vector<16x128xf32> to vector<16x128xbf16>
    %c1_136 = arith.constant 1 : index
    %c0_137 = arith.constant 0 : index
    %c0_138 = arith.constant 0 : index
    %348 = vector.load %arg13[%c1_136, %c0_137, %c0_138] : memref<4x128x512xbf16, #tpu.memory_space<vmem>>, vector<1x128x512xbf16>
    %349 = vector.shape_cast %348 : vector<1x128x512xbf16> to vector<128x512xbf16>
    %cst_139 = arith.constant dense<0.000000e+00> : vector<16x512xf32>
    %350 = tpu.matmul %347, %349, %cst_139 {dimension_numbers = #tpu.dot_dimension_numbers<[1], [0], [0], [1], [0, 0, 1, 1], [], []>} : vector<16x128xbf16>, vector<128x512xbf16>, vector<16x512xf32> -> vector<16x512xf32>
    %c1_140 = arith.constant 1 : index
    %c0_141 = arith.constant 0 : index
    %c0_142 = arith.constant 0 : index
    %351 = vector.load %arg14[%c1_140, %c0_141, %c0_142] : memref<4x1x512xf32, #tpu.memory_space<vmem>>, vector<1x1x512xf32>
    %352 = vector.shape_cast %351 : vector<1x1x512xf32> to vector<1x512xf32>
    %353 = vector.broadcast %352 : vector<1x512xf32> to vector<16x512xf32>
    %354 = arith.addf %350, %353 : vector<16x512xf32>
    %cst_143 = arith.constant 0.000000e+00 : f32
    %355 = vector.broadcast %cst_143 : f32 to vector<16x512xf32>
    %356 = arith.maximumf %354, %355 : vector<16x512xf32>
    %357 = arith.truncf %356 : vector<16x512xf32> to vector<16x512xbf16>
    %c1_144 = arith.constant 1 : index
    %c0_145 = arith.constant 0 : index
    %c0_146 = arith.constant 0 : index
    %358 = vector.load %arg15[%c1_144, %c0_145, %c0_146] : memref<4x512x128xbf16, #tpu.memory_space<vmem>>, vector<1x512x128xbf16>
    %359 = vector.shape_cast %358 : vector<1x512x128xbf16> to vector<512x128xbf16>
    %cst_147 = arith.constant dense<0.000000e+00> : vector<16x128xf32>
    %360 = tpu.matmul %357, %359, %cst_147 {dimension_numbers = #tpu.dot_dimension_numbers<[1], [0], [0], [1], [0, 0, 1, 1], [], []>} : vector<16x512xbf16>, vector<512x128xbf16>, vector<16x128xf32> -> vector<16x128xf32>
    %c1_148 = arith.constant 1 : index
    %c0_149 = arith.constant 0 : index
    %c0_150 = arith.constant 0 : index
    %361 = vector.load %arg16[%c1_148, %c0_149, %c0_150] : memref<4x1x128xf32, #tpu.memory_space<vmem>>, vector<1x1x128xf32>
    %362 = vector.shape_cast %361 : vector<1x1x128xf32> to vector<1x128xf32>
    %363 = vector.broadcast %362 : vector<1x128xf32> to vector<16x128xf32>
    %364 = arith.addf %360, %363 : vector<16x128xf32>
    %365 = arith.addf %346, %364 : vector<16x128xf32>
    %c1_151 = arith.constant 1 : index
    %c0_152 = arith.constant 0 : index
    %c0_153 = arith.constant 0 : index
    %366 = vector.load %arg17[%c1_151, %c0_152, %c0_153] : memref<4x1x128xf32, #tpu.memory_space<vmem>>, vector<1x1x128xf32>
    %367 = vector.shape_cast %366 : vector<1x1x128xf32> to vector<1x128xf32>
    %c1_154 = arith.constant 1 : index
    %c0_155 = arith.constant 0 : index
    %c0_156 = arith.constant 0 : index
    %368 = vector.load %arg18[%c1_154, %c0_155, %c0_156] : memref<4x1x128xf32, #tpu.memory_space<vmem>>, vector<1x1x128xf32>
    %369 = vector.shape_cast %368 : vector<1x1x128xf32> to vector<1x128xf32>
    %cst_157 = arith.constant dense<0.000000e+00> : vector<16xf32>
    %370 = vector.multi_reduction <add>, %365, %cst_157 [1] : vector<16x128xf32> to vector<16xf32>
    %371 = vector.shape_cast %370 : vector<16xf32> to vector<16x1xf32>
    %cst_158 = arith.constant 1.280000e+02 : f32
    %372 = vector.broadcast %cst_158 : f32 to vector<16x1xf32>
    %373 = arith.divf %371, %372 : vector<16x1xf32>
    %374 = vector.broadcast %373 : vector<16x1xf32> to vector<16x128xf32>
    %375 = arith.subf %365, %374 : vector<16x128xf32>
    %376 = arith.mulf %375, %375 : vector<16x128xf32>
    %cst_159 = arith.constant dense<0.000000e+00> : vector<16xf32>
    %377 = vector.multi_reduction <add>, %376, %cst_159 [1] : vector<16x128xf32> to vector<16xf32>
    %378 = vector.shape_cast %377 : vector<16xf32> to vector<16x1xf32>
    %cst_160 = arith.constant 1.280000e+02 : f32
    %379 = vector.broadcast %cst_160 : f32 to vector<16x1xf32>
    %380 = arith.divf %378, %379 : vector<16x1xf32>
    %cst_161 = arith.constant 9.99999974E-6 : f32
    %381 = vector.broadcast %cst_161 : f32 to vector<16x1xf32>
    %382 = arith.addf %380, %381 : vector<16x1xf32>
    %383 = math.rsqrt %382 : vector<16x1xf32>
    %384 = vector.broadcast %383 : vector<16x1xf32> to vector<16x128xf32>
    %385 = arith.mulf %375, %384 : vector<16x128xf32>
    %386 = vector.broadcast %367 : vector<1x128xf32> to vector<16x128xf32>
    %387 = arith.mulf %385, %386 : vector<16x128xf32>
    %388 = vector.broadcast %369 : vector<1x128xf32> to vector<16x128xf32>
    %389 = arith.addf %387, %388 : vector<16x128xf32>
    %c0_162 = arith.constant 0 : index
    %c0_163 = arith.constant 0 : index
    %390 = vector.load %arg30[%c0_162, %c0_163] : memref<16x128xf32, #tpu.memory_space<vmem>>, vector<16x128xf32>
    tpu.vector_store %arg30[%c0_162, %c0_163], %389 {strides = array<i32>} : memref<16x128xf32, #tpu.memory_space<vmem>>, vector<16x128xf32>,
    %391 = arith.truncf %389 : vector<16x128xf32> to vector<16x128xbf16>
    %c0_164 = arith.constant 0 : index
    %c0_165 = arith.constant 0 : index
    %392 = vector.load %arg19[%c0_164, %c0_165] : memref<128x512xbf16, #tpu.memory_space<vmem>>, vector<128x512xbf16>
    %cst_166 = arith.constant dense<0.000000e+00> : vector<16x512xf32>
    %393 = tpu.matmul %391, %392, %cst_166 {dimension_numbers = #tpu.dot_dimension_numbers<[1], [0], [0], [1], [0, 0, 1, 1], [], []>} : vector<16x128xbf16>, vector<128x512xbf16>, vector<16x512xf32> -> vector<16x512xf32>
    %c0_167 = arith.constant 0 : index
    %c0_168 = arith.constant 0 : index
    %394 = vector.load %arg20[%c0_167, %c0_168] : memref<1x512xf32, #tpu.memory_space<vmem>>, vector<1x512xf32>
    %395 = vector.broadcast %394 : vector<1x512xf32> to vector<16x512xf32>
    %396 = arith.addf %393, %395 : vector<16x512xf32>
    %cst_169 = arith.constant 0.000000e+00 : f32
    %397 = vector.broadcast %cst_169 : f32 to vector<16x512xf32>
    %398 = arith.maximumf %396, %397 : vector<16x512xf32>
    %399 = arith.truncf %398 : vector<16x512xf32> to vector<16x512xbf16>
    %c0_170 = arith.constant 0 : index
    %c0_171 = arith.constant 0 : index
    %400 = vector.load %arg21[%c0_170, %c0_171] : memref<512x128xbf16, #tpu.memory_space<vmem>>, vector<512x128xbf16>
    %cst_172 = arith.constant dense<0.000000e+00> : vector<16x128xf32>
    %401 = tpu.matmul %399, %400, %cst_172 {dimension_numbers = #tpu.dot_dimension_numbers<[1], [0], [0], [1], [0, 0, 1, 1], [], []>} : vector<16x512xbf16>, vector<512x128xbf16>, vector<16x128xf32> -> vector<16x128xf32>
    %c0_173 = arith.constant 0 : index
    %c0_174 = arith.constant 0 : index
    %402 = vector.load %arg22[%c0_173, %c0_174] : memref<1x128xf32, #tpu.memory_space<vmem>>, vector<1x128xf32>
    %403 = vector.broadcast %402 : vector<1x128xf32> to vector<16x128xf32>
    %404 = arith.addf %401, %403 : vector<16x128xf32>
    %405 = arith.mulf %404, %404 : vector<16x128xf32>
    %cst_175 = arith.constant dense<0.000000e+00> : vector<16xf32>
    %406 = vector.multi_reduction <add>, %405, %cst_175 [1] : vector<16x128xf32> to vector<16xf32>
    %407 = vector.shape_cast %406 : vector<16xf32> to vector<16x1xf32>
    %cst_176 = arith.constant 1.280000e+02 : f32
    %408 = vector.broadcast %cst_176 : f32 to vector<16x1xf32>
    %409 = arith.divf %407, %408 : vector<16x1xf32>
    %cst_177 = arith.constant dense<0.000000e+00> : vector<1xf32>
    %410 = vector.multi_reduction <add>, %409, %cst_177 [0] : vector<16x1xf32> to vector<1xf32>
    %411 = vector.shape_cast %410 : vector<1xf32> to vector<1x1xf32>
    %cst_178 = arith.constant 1.600000e+01 : f32
    %412 = vector.broadcast %cst_178 : f32 to vector<1x1xf32>
    %413 = arith.divf %411, %412 : vector<1x1xf32>
    %c0_179 = arith.constant 0 : index
    %c0_180 = arith.constant 0 : index
    %414 = memref.load %arg0[%c0_179, %c0_180] : memref<1x1xf32, #tpu.memory_space<smem>>
    %cst_181 = arith.constant 2.000000e+00 : f32
    %415 = vector.broadcast %cst_181 : f32 to vector<1x1xf32>
    %416 = arith.mulf %415, %413 : vector<1x1xf32>
    %cst_182 = arith.constant 2.000000e+00 : f32
    %417 = arith.mulf %cst_182, %414 : f32
    %418 = vector.broadcast %417 : f32 to vector<1x1xf32>
    %419 = arith.divf %416, %418 : vector<1x1xf32>
    %420 = math.sqrt %419 : vector<1x1xf32>
    %c0_183 = arith.constant 0 : index
    %c0_184 = arith.constant 0 : index
    %421 = vector.load %arg6[%c0_183, %c0_184] : memref<16x128xf32, #tpu.memory_space<vmem>>, vector<16x128xf32>
    %422 = vector.broadcast %420 : vector<1x1xf32> to vector<16x128xf32>
    %423 = arith.mulf %422, %421 : vector<16x128xf32>
    %424 = arith.addf %404, %423 : vector<16x128xf32>
    %425 = arith.truncf %424 : vector<16x128xf32> to vector<16x128xbf16>
    %c0_185 = arith.constant 0 : index
    %c0_186 = arith.constant 0 : index
    %426 = vector.load %arg23[%c0_185, %c0_186] : memref<128x512xbf16, #tpu.memory_space<vmem>>, vector<128x512xbf16>
    %cst_187 = arith.constant dense<0.000000e+00> : vector<16x512xf32>
    %427 = tpu.matmul %425, %426, %cst_187 {dimension_numbers = #tpu.dot_dimension_numbers<[1], [0], [0], [1], [0, 0, 1, 1], [], []>} : vector<16x128xbf16>, vector<128x512xbf16>, vector<16x512xf32> -> vector<16x512xf32>
    %c0_188 = arith.constant 0 : index
    %c0_189 = arith.constant 0 : index
    %428 = vector.load %arg24[%c0_188, %c0_189] : memref<1x512xf32, #tpu.memory_space<vmem>>, vector<1x512xf32>
    %429 = vector.broadcast %428 : vector<1x512xf32> to vector<16x512xf32>
    %430 = arith.addf %427, %429 : vector<16x512xf32>
    %cst_190 = arith.constant 0.000000e+00 : f32
    %431 = vector.broadcast %cst_190 : f32 to vector<16x512xf32>
    %432 = arith.maximumf %430, %431 : vector<16x512xf32>
    %433 = arith.truncf %432 : vector<16x512xf32> to vector<16x512xbf16>
    %c0_191 = arith.constant 0 : index
    %c0_192 = arith.constant 0 : index
    %434 = vector.load %arg25[%c0_191, %c0_192] : memref<512x128xbf16, #tpu.memory_space<vmem>>, vector<512x128xbf16>
    %cst_193 = arith.constant dense<0.000000e+00> : vector<16x128xf32>
    %435 = tpu.matmul %433, %434, %cst_193 {dimension_numbers = #tpu.dot_dimension_numbers<[1], [0], [0], [1], [0, 0, 1, 1], [], []>} : vector<16x512xbf16>, vector<512x128xbf16>, vector<16x128xf32> -> vector<16x128xf32>
    %c0_194 = arith.constant 0 : index
    %c0_195 = arith.constant 0 : index
    %436 = vector.load %arg26[%c0_194, %c0_195] : memref<1x128xf32, #tpu.memory_space<vmem>>, vector<1x128xf32>
    %437 = vector.broadcast %436 : vector<1x128xf32> to vector<16x128xf32>
    %438 = arith.addf %435, %437 : vector<16x128xf32>
    %439 = arith.truncf %438 : vector<16x128xf32> to vector<16x128xbf16>
    %c2 = arith.constant 2 : index
    %c0_196 = arith.constant 0 : index
    %c0_197 = arith.constant 0 : index
    %440 = vector.load %arg7[%c2, %c0_196, %c0_197] : memref<4x128x384xbf16, #tpu.memory_space<vmem>>, vector<1x128x384xbf16>
    %441 = vector.shape_cast %440 : vector<1x128x384xbf16> to vector<128x384xbf16>
    %cst_198 = arith.constant dense<0.000000e+00> : vector<16x384xf32>
    %442 = tpu.matmul %439, %441, %cst_198 {dimension_numbers = #tpu.dot_dimension_numbers<[1], [0], [0], [1], [0, 0, 1, 1], [], []>} : vector<16x128xbf16>, vector<128x384xbf16>, vector<16x384xf32> -> vector<16x384xf32>
    %c2_199 = arith.constant 2 : index
    %c0_200 = arith.constant 0 : index
    %c0_201 = arith.constant 0 : index
    %443 = vector.load %arg8[%c2_199, %c0_200, %c0_201] : memref<4x1x384xf32, #tpu.memory_space<vmem>>, vector<1x1x384xf32>
    %444 = vector.shape_cast %443 : vector<1x1x384xf32> to vector<1x384xf32>
    %445 = vector.broadcast %444 : vector<1x384xf32> to vector<16x384xf32>
    %446 = arith.addf %442, %445 : vector<16x384xf32>
    %447 = vector.shape_cast %446 : vector<16x384xf32> to vector<2x8x384xf32>
    %448 = arith.truncf %447 : vector<2x8x384xf32> to vector<2x8x384xbf16>
    %c2_202 = arith.constant 2 : index
    %c0_203 = arith.constant 0 : index
    %c0_204 = arith.constant 0 : index
    %449 = vector.load %arg9[%c2_202, %c0_203, %c0_204] : memref<4x128x128xbf16, #tpu.memory_space<vmem>>, vector<1x128x128xbf16>
    %450 = vector.shape_cast %449 : vector<1x128x128xbf16> to vector<128x128xbf16>
    %451 = vector.extract_strided_slice %448 {offsets = [0, 0, 0], sizes = [2, 8, 32], strides = [1, 1, 1]} : vector<2x8x384xbf16> to vector<2x8x32xbf16>
    %452 = vector.extract_strided_slice %448 {offsets = [0, 0, 128], sizes = [2, 8, 32], strides = [1, 1, 1]} : vector<2x8x384xbf16> to vector<2x8x32xbf16>
    %453 = vector.extract_strided_slice %448 {offsets = [0, 0, 256], sizes = [2, 8, 32], strides = [1, 1, 1]} : vector<2x8x384xbf16> to vector<2x8x32xbf16>
    "tpu.trace_start"() <{level = 10 : i32, message = "bqd,bkd->bqk"}> : () -> ()
    %cst_205 = arith.constant dense<0.000000e+00> : vector<2x8x8xf32>
    %454 = tpu.matmul %451, %452, %cst_205 {dimension_numbers = #tpu.dot_dimension_numbers<[2], [2], [1], [1], [0, 0, 0, 1, 1, 1], [0], [0]>} : vector<2x8x32xbf16>, vector<2x8x32xbf16>, vector<2x8x8xf32> -> vector<2x8x8xf32>
    "tpu.trace_stop"() : () -> ()
    %cst_206 = arith.constant 0.176776692 : f32
    %455 = vector.broadcast %cst_206 : f32 to vector<2x8x8xf32>
    %456 = arith.mulf %454, %455 : vector<2x8x8xf32>
    %cst_207 = arith.constant dense<0xFF800000> : vector<2x8xf32>
    %457 = vector.multi_reduction <maximumf>, %456, %cst_207 [2] : vector<2x8x8xf32> to vector<2x8xf32>
    %458 = vector.shape_cast %457 : vector<2x8xf32> to vector<2x8x1xf32>
    %459 = vector.broadcast %458 : vector<2x8x1xf32> to vector<2x8x8xf32>
    %460 = arith.subf %456, %459 : vector<2x8x8xf32>
    %461 = math.exp %460 : vector<2x8x8xf32>
    %cst_208 = arith.constant dense<0.000000e+00> : vector<2x8xf32>
    %462 = vector.multi_reduction <add>, %461, %cst_208 [2] : vector<2x8x8xf32> to vector<2x8xf32>
    %463 = vector.shape_cast %462 : vector<2x8xf32> to vector<2x8x1xf32>
    %464 = tpu.reciprocal %463 {approx = true} : vector<2x8x1xf32> -> vector<2x8x1xf32>
    %465 = vector.broadcast %464 : vector<2x8x1xf32> to vector<2x8x8xf32>
    %466 = arith.mulf %461, %465 : vector<2x8x8xf32>
    %467 = arith.truncf %466 : vector<2x8x8xf32> to vector<2x8x8xbf16>
    "tpu.trace_start"() <{level = 10 : i32, message = "bqk,bkd->bqd"}> : () -> ()
    %cst_209 = arith.constant dense<0.000000e+00> : vector<2x8x32xf32>
    %468 = tpu.matmul %467, %453, %cst_209 {dimension_numbers = #tpu.dot_dimension_numbers<[2], [1], [1], [2], [0, 0, 0, 1, 1, 2], [0], [0]>} : vector<2x8x8xbf16>, vector<2x8x32xbf16>, vector<2x8x32xf32> -> vector<2x8x32xf32>
    "tpu.trace_stop"() : () -> ()
    %469 = vector.shape_cast %468 : vector<2x8x32xf32> to vector<16x32xf32>
    %470 = arith.truncf %469 : vector<16x32xf32> to vector<16x32xbf16>
    %471 = vector.extract_strided_slice %450 {offsets = [0, 0], sizes = [32, 128], strides = [1, 1]} : vector<128x128xbf16> to vector<32x128xbf16>
    %cst_210 = arith.constant dense<0.000000e+00> : vector<16x128xf32>
    %472 = tpu.matmul %470, %471, %cst_210 {dimension_numbers = #tpu.dot_dimension_numbers<[1], [0], [0], [1], [0, 0, 1, 1], [], []>} : vector<16x32xbf16>, vector<32x128xbf16>, vector<16x128xf32> -> vector<16x128xf32>
    %473 = vector.extract_strided_slice %448 {offsets = [0, 0, 32], sizes = [2, 8, 32], strides = [1, 1, 1]} : vector<2x8x384xbf16> to vector<2x8x32xbf16>
    %474 = vector.extract_strided_slice %448 {offsets = [0, 0, 160], sizes = [2, 8, 32], strides = [1, 1, 1]} : vector<2x8x384xbf16> to vector<2x8x32xbf16>
    %475 = vector.extract_strided_slice %448 {offsets = [0, 0, 288], sizes = [2, 8, 32], strides = [1, 1, 1]} : vector<2x8x384xbf16> to vector<2x8x32xbf16>
    "tpu.trace_start"() <{level = 10 : i32, message = "bqd,bkd->bqk"}> : () -> ()
    %cst_211 = arith.constant dense<0.000000e+00> : vector<2x8x8xf32>
    %476 = tpu.matmul %473, %474, %cst_211 {dimension_numbers = #tpu.dot_dimension_numbers<[2], [2], [1], [1], [0, 0, 0, 1, 1, 1], [0], [0]>} : vector<2x8x32xbf16>, vector<2x8x32xbf16>, vector<2x8x8xf32> -> vector<2x8x8xf32>
    "tpu.trace_stop"() : () -> ()
    %cst_212 = arith.constant 0.176776692 : f32
    %477 = vector.broadcast %cst_212 : f32 to vector<2x8x8xf32>
    %478 = arith.mulf %476, %477 : vector<2x8x8xf32>
    %cst_213 = arith.constant dense<0xFF800000> : vector<2x8xf32>
    %479 = vector.multi_reduction <maximumf>, %478, %cst_213 [2] : vector<2x8x8xf32> to vector<2x8xf32>
    %480 = vector.shape_cast %479 : vector<2x8xf32> to vector<2x8x1xf32>
    %481 = vector.broadcast %480 : vector<2x8x1xf32> to vector<2x8x8xf32>
    %482 = arith.subf %478, %481 : vector<2x8x8xf32>
    %483 = math.exp %482 : vector<2x8x8xf32>
    %cst_214 = arith.constant dense<0.000000e+00> : vector<2x8xf32>
    %484 = vector.multi_reduction <add>, %483, %cst_214 [2] : vector<2x8x8xf32> to vector<2x8xf32>
    %485 = vector.shape_cast %484 : vector<2x8xf32> to vector<2x8x1xf32>
    %486 = tpu.reciprocal %485 {approx = true} : vector<2x8x1xf32> -> vector<2x8x1xf32>
    %487 = vector.broadcast %486 : vector<2x8x1xf32> to vector<2x8x8xf32>
    %488 = arith.mulf %483, %487 : vector<2x8x8xf32>
    %489 = arith.truncf %488 : vector<2x8x8xf32> to vector<2x8x8xbf16>
    "tpu.trace_start"() <{level = 10 : i32, message = "bqk,bkd->bqd"}> : () -> ()
    %cst_215 = arith.constant dense<0.000000e+00> : vector<2x8x32xf32>
    %490 = tpu.matmul %489, %475, %cst_215 {dimension_numbers = #tpu.dot_dimension_numbers<[2], [1], [1], [2], [0, 0, 0, 1, 1, 2], [0], [0]>} : vector<2x8x8xbf16>, vector<2x8x32xbf16>, vector<2x8x32xf32> -> vector<2x8x32xf32>
    "tpu.trace_stop"() : () -> ()
    %491 = vector.shape_cast %490 : vector<2x8x32xf32> to vector<16x32xf32>
    %492 = arith.truncf %491 : vector<16x32xf32> to vector<16x32xbf16>
    %493 = vector.extract_strided_slice %450 {offsets = [32, 0], sizes = [32, 128], strides = [1, 1]} : vector<128x128xbf16> to vector<32x128xbf16>
    %cst_216 = arith.constant dense<0.000000e+00> : vector<16x128xf32>
    %494 = tpu.matmul %492, %493, %cst_216 {dimension_numbers = #tpu.dot_dimension_numbers<[1], [0], [0], [1], [0, 0, 1, 1], [], []>} : vector<16x32xbf16>, vector<32x128xbf16>, vector<16x128xf32> -> vector<16x128xf32>
    %495 = arith.addf %472, %494 : vector<16x128xf32>
    %496 = vector.extract_strided_slice %448 {offsets = [0, 0, 64], sizes = [2, 8, 32], strides = [1, 1, 1]} : vector<2x8x384xbf16> to vector<2x8x32xbf16>
    %497 = vector.extract_strided_slice %448 {offsets = [0, 0, 192], sizes = [2, 8, 32], strides = [1, 1, 1]} : vector<2x8x384xbf16> to vector<2x8x32xbf16>
    %498 = vector.extract_strided_slice %448 {offsets = [0, 0, 320], sizes = [2, 8, 32], strides = [1, 1, 1]} : vector<2x8x384xbf16> to vector<2x8x32xbf16>
    "tpu.trace_start"() <{level = 10 : i32, message = "bqd,bkd->bqk"}> : () -> ()
    %cst_217 = arith.constant dense<0.000000e+00> : vector<2x8x8xf32>
    %499 = tpu.matmul %496, %497, %cst_217 {dimension_numbers = #tpu.dot_dimension_numbers<[2], [2], [1], [1], [0, 0, 0, 1, 1, 1], [0], [0]>} : vector<2x8x32xbf16>, vector<2x8x32xbf16>, vector<2x8x8xf32> -> vector<2x8x8xf32>
    "tpu.trace_stop"() : () -> ()
    %cst_218 = arith.constant 0.176776692 : f32
    %500 = vector.broadcast %cst_218 : f32 to vector<2x8x8xf32>
    %501 = arith.mulf %499, %500 : vector<2x8x8xf32>
    %cst_219 = arith.constant dense<0xFF800000> : vector<2x8xf32>
    %502 = vector.multi_reduction <maximumf>, %501, %cst_219 [2] : vector<2x8x8xf32> to vector<2x8xf32>
    %503 = vector.shape_cast %502 : vector<2x8xf32> to vector<2x8x1xf32>
    %504 = vector.broadcast %503 : vector<2x8x1xf32> to vector<2x8x8xf32>
    %505 = arith.subf %501, %504 : vector<2x8x8xf32>
    %506 = math.exp %505 : vector<2x8x8xf32>
    %cst_220 = arith.constant dense<0.000000e+00> : vector<2x8xf32>
    %507 = vector.multi_reduction <add>, %506, %cst_220 [2] : vector<2x8x8xf32> to vector<2x8xf32>
    %508 = vector.shape_cast %507 : vector<2x8xf32> to vector<2x8x1xf32>
    %509 = tpu.reciprocal %508 {approx = true} : vector<2x8x1xf32> -> vector<2x8x1xf32>
    %510 = vector.broadcast %509 : vector<2x8x1xf32> to vector<2x8x8xf32>
    %511 = arith.mulf %506, %510 : vector<2x8x8xf32>
    %512 = arith.truncf %511 : vector<2x8x8xf32> to vector<2x8x8xbf16>
    "tpu.trace_start"() <{level = 10 : i32, message = "bqk,bkd->bqd"}> : () -> ()
    %cst_221 = arith.constant dense<0.000000e+00> : vector<2x8x32xf32>
    %513 = tpu.matmul %512, %498, %cst_221 {dimension_numbers = #tpu.dot_dimension_numbers<[2], [1], [1], [2], [0, 0, 0, 1, 1, 2], [0], [0]>} : vector<2x8x8xbf16>, vector<2x8x32xbf16>, vector<2x8x32xf32> -> vector<2x8x32xf32>
    "tpu.trace_stop"() : () -> ()
    %514 = vector.shape_cast %513 : vector<2x8x32xf32> to vector<16x32xf32>
    %515 = arith.truncf %514 : vector<16x32xf32> to vector<16x32xbf16>
    %516 = vector.extract_strided_slice %450 {offsets = [64, 0], sizes = [32, 128], strides = [1, 1]} : vector<128x128xbf16> to vector<32x128xbf16>
    %cst_222 = arith.constant dense<0.000000e+00> : vector<16x128xf32>
    %517 = tpu.matmul %515, %516, %cst_222 {dimension_numbers = #tpu.dot_dimension_numbers<[1], [0], [0], [1], [0, 0, 1, 1], [], []>} : vector<16x32xbf16>, vector<32x128xbf16>, vector<16x128xf32> -> vector<16x128xf32>
    %518 = arith.addf %495, %517 : vector<16x128xf32>
    %519 = vector.extract_strided_slice %448 {offsets = [0, 0, 96], sizes = [2, 8, 32], strides = [1, 1, 1]} : vector<2x8x384xbf16> to vector<2x8x32xbf16>
    %520 = vector.extract_strided_slice %448 {offsets = [0, 0, 224], sizes = [2, 8, 32], strides = [1, 1, 1]} : vector<2x8x384xbf16> to vector<2x8x32xbf16>
    %521 = vector.extract_strided_slice %448 {offsets = [0, 0, 352], sizes = [2, 8, 32], strides = [1, 1, 1]} : vector<2x8x384xbf16> to vector<2x8x32xbf16>
    "tpu.trace_start"() <{level = 10 : i32, message = "bqd,bkd->bqk"}> : () -> ()
    %cst_223 = arith.constant dense<0.000000e+00> : vector<2x8x8xf32>
    %522 = tpu.matmul %519, %520, %cst_223 {dimension_numbers = #tpu.dot_dimension_numbers<[2], [2], [1], [1], [0, 0, 0, 1, 1, 1], [0], [0]>} : vector<2x8x32xbf16>, vector<2x8x32xbf16>, vector<2x8x8xf32> -> vector<2x8x8xf32>
    "tpu.trace_stop"() : () -> ()
    %cst_224 = arith.constant 0.176776692 : f32
    %523 = vector.broadcast %cst_224 : f32 to vector<2x8x8xf32>
    %524 = arith.mulf %522, %523 : vector<2x8x8xf32>
    %cst_225 = arith.constant dense<0xFF800000> : vector<2x8xf32>
    %525 = vector.multi_reduction <maximumf>, %524, %cst_225 [2] : vector<2x8x8xf32> to vector<2x8xf32>
    %526 = vector.shape_cast %525 : vector<2x8xf32> to vector<2x8x1xf32>
    %527 = vector.broadcast %526 : vector<2x8x1xf32> to vector<2x8x8xf32>
    %528 = arith.subf %524, %527 : vector<2x8x8xf32>
    %529 = math.exp %528 : vector<2x8x8xf32>
    %cst_226 = arith.constant dense<0.000000e+00> : vector<2x8xf32>
    %530 = vector.multi_reduction <add>, %529, %cst_226 [2] : vector<2x8x8xf32> to vector<2x8xf32>
    %531 = vector.shape_cast %530 : vector<2x8xf32> to vector<2x8x1xf32>
    %532 = tpu.reciprocal %531 {approx = true} : vector<2x8x1xf32> -> vector<2x8x1xf32>
    %533 = vector.broadcast %532 : vector<2x8x1xf32> to vector<2x8x8xf32>
    %534 = arith.mulf %529, %533 : vector<2x8x8xf32>
    %535 = arith.truncf %534 : vector<2x8x8xf32> to vector<2x8x8xbf16>
    "tpu.trace_start"() <{level = 10 : i32, message = "bqk,bkd->bqd"}> : () -> ()
    %cst_227 = arith.constant dense<0.000000e+00> : vector<2x8x32xf32>
    %536 = tpu.matmul %535, %521, %cst_227 {dimension_numbers = #tpu.dot_dimension_numbers<[2], [1], [1], [2], [0, 0, 0, 1, 1, 2], [0], [0]>} : vector<2x8x8xbf16>, vector<2x8x32xbf16>, vector<2x8x32xf32> -> vector<2x8x32xf32>
    "tpu.trace_stop"() : () -> ()
    %537 = vector.shape_cast %536 : vector<2x8x32xf32> to vector<16x32xf32>
    %538 = arith.truncf %537 : vector<16x32xf32> to vector<16x32xbf16>
    %539 = vector.extract_strided_slice %450 {offsets = [96, 0], sizes = [32, 128], strides = [1, 1]} : vector<128x128xbf16> to vector<32x128xbf16>
    %cst_228 = arith.constant dense<0.000000e+00> : vector<16x128xf32>
    %540 = tpu.matmul %538, %539, %cst_228 {dimension_numbers = #tpu.dot_dimension_numbers<[1], [0], [0], [1], [0, 0, 1, 1], [], []>} : vector<16x32xbf16>, vector<32x128xbf16>, vector<16x128xf32> -> vector<16x128xf32>
    %541 = arith.addf %518, %540 : vector<16x128xf32>
    %c2_229 = arith.constant 2 : index
    %c0_230 = arith.constant 0 : index
    %c0_231 = arith.constant 0 : index
    %542 = vector.load %arg10[%c2_229, %c0_230, %c0_231] : memref<4x1x128xf32, #tpu.memory_space<vmem>>, vector<1x1x128xf32>
    %543 = vector.shape_cast %542 : vector<1x1x128xf32> to vector<1x128xf32>
    %544 = vector.broadcast %543 : vector<1x128xf32> to vector<16x128xf32>
    %545 = arith.addf %541, %544 : vector<16x128xf32>
    %546 = arith.addf %438, %545 : vector<16x128xf32>
    %c2_232 = arith.constant 2 : index
    %c0_233 = arith.constant 0 : index
    %c0_234 = arith.constant 0 : index
    %547 = vector.load %arg11[%c2_232, %c0_233, %c0_234] : memref<4x1x128xf32, #tpu.memory_space<vmem>>, vector<1x1x128xf32>
    %548 = vector.shape_cast %547 : vector<1x1x128xf32> to vector<1x128xf32>
    %c2_235 = arith.constant 2 : index
    %c0_236 = arith.constant 0 : index
    %c0_237 = arith.constant 0 : index
    %549 = vector.load %arg12[%c2_235, %c0_236, %c0_237] : memref<4x1x128xf32, #tpu.memory_space<vmem>>, vector<1x1x128xf32>
    %550 = vector.shape_cast %549 : vector<1x1x128xf32> to vector<1x128xf32>
    %cst_238 = arith.constant dense<0.000000e+00> : vector<16xf32>
    %551 = vector.multi_reduction <add>, %546, %cst_238 [1] : vector<16x128xf32> to vector<16xf32>
    %552 = vector.shape_cast %551 : vector<16xf32> to vector<16x1xf32>
    %cst_239 = arith.constant 1.280000e+02 : f32
    %553 = vector.broadcast %cst_239 : f32 to vector<16x1xf32>
    %554 = arith.divf %552, %553 : vector<16x1xf32>
    %555 = vector.broadcast %554 : vector<16x1xf32> to vector<16x128xf32>
    %556 = arith.subf %546, %555 : vector<16x128xf32>
    %557 = arith.mulf %556, %556 : vector<16x128xf32>
    %cst_240 = arith.constant dense<0.000000e+00> : vector<16xf32>
    %558 = vector.multi_reduction <add>, %557, %cst_240 [1] : vector<16x128xf32> to vector<16xf32>
    %559 = vector.shape_cast %558 : vector<16xf32> to vector<16x1xf32>
    %cst_241 = arith.constant 1.280000e+02 : f32
    %560 = vector.broadcast %cst_241 : f32 to vector<16x1xf32>
    %561 = arith.divf %559, %560 : vector<16x1xf32>
    %cst_242 = arith.constant 9.99999974E-6 : f32
    %562 = vector.broadcast %cst_242 : f32 to vector<16x1xf32>
    %563 = arith.addf %561, %562 : vector<16x1xf32>
    %564 = math.rsqrt %563 : vector<16x1xf32>
    %565 = vector.broadcast %564 : vector<16x1xf32> to vector<16x128xf32>
    %566 = arith.mulf %556, %565 : vector<16x128xf32>
    %567 = vector.broadcast %548 : vector<1x128xf32> to vector<16x128xf32>
    %568 = arith.mulf %566, %567 : vector<16x128xf32>
    %569 = vector.broadcast %550 : vector<1x128xf32> to vector<16x128xf32>
    %570 = arith.addf %568, %569 : vector<16x128xf32>
    %571 = arith.truncf %570 : vector<16x128xf32> to vector<16x128xbf16>
    %c2_243 = arith.constant 2 : index
    %c0_244 = arith.constant 0 : index
    %c0_245 = arith.constant 0 : index
    %572 = vector.load %arg13[%c2_243, %c0_244, %c0_245] : memref<4x128x512xbf16, #tpu.memory_space<vmem>>, vector<1x128x512xbf16>
    %573 = vector.shape_cast %572 : vector<1x128x512xbf16> to vector<128x512xbf16>
    %cst_246 = arith.constant dense<0.000000e+00> : vector<16x512xf32>
    %574 = tpu.matmul %571, %573, %cst_246 {dimension_numbers = #tpu.dot_dimension_numbers<[1], [0], [0], [1], [0, 0, 1, 1], [], []>} : vector<16x128xbf16>, vector<128x512xbf16>, vector<16x512xf32> -> vector<16x512xf32>
    %c2_247 = arith.constant 2 : index
    %c0_248 = arith.constant 0 : index
    %c0_249 = arith.constant 0 : index
    %575 = vector.load %arg14[%c2_247, %c0_248, %c0_249] : memref<4x1x512xf32, #tpu.memory_space<vmem>>, vector<1x1x512xf32>
    %576 = vector.shape_cast %575 : vector<1x1x512xf32> to vector<1x512xf32>
    %577 = vector.broadcast %576 : vector<1x512xf32> to vector<16x512xf32>
    %578 = arith.addf %574, %577 : vector<16x512xf32>
    %cst_250 = arith.constant 0.000000e+00 : f32
    %579 = vector.broadcast %cst_250 : f32 to vector<16x512xf32>
    %580 = arith.maximumf %578, %579 : vector<16x512xf32>
    %581 = arith.truncf %580 : vector<16x512xf32> to vector<16x512xbf16>
    %c2_251 = arith.constant 2 : index
    %c0_252 = arith.constant 0 : index
    %c0_253 = arith.constant 0 : index
    %582 = vector.load %arg15[%c2_251, %c0_252, %c0_253] : memref<4x512x128xbf16, #tpu.memory_space<vmem>>, vector<1x512x128xbf16>
    %583 = vector.shape_cast %582 : vector<1x512x128xbf16> to vector<512x128xbf16>
    %cst_254 = arith.constant dense<0.000000e+00> : vector<16x128xf32>
    %584 = tpu.matmul %581, %583, %cst_254 {dimension_numbers = #tpu.dot_dimension_numbers<[1], [0], [0], [1], [0, 0, 1, 1], [], []>} : vector<16x512xbf16>, vector<512x128xbf16>, vector<16x128xf32> -> vector<16x128xf32>
    %c2_255 = arith.constant 2 : index
    %c0_256 = arith.constant 0 : index
    %c0_257 = arith.constant 0 : index
    %585 = vector.load %arg16[%c2_255, %c0_256, %c0_257] : memref<4x1x128xf32, #tpu.memory_space<vmem>>, vector<1x1x128xf32>
    %586 = vector.shape_cast %585 : vector<1x1x128xf32> to vector<1x128xf32>
    %587 = vector.broadcast %586 : vector<1x128xf32> to vector<16x128xf32>
    %588 = arith.addf %584, %587 : vector<16x128xf32>
    %589 = arith.addf %570, %588 : vector<16x128xf32>
    %c2_258 = arith.constant 2 : index
    %c0_259 = arith.constant 0 : index
    %c0_260 = arith.constant 0 : index
    %590 = vector.load %arg17[%c2_258, %c0_259, %c0_260] : memref<4x1x128xf32, #tpu.memory_space<vmem>>, vector<1x1x128xf32>
    %591 = vector.shape_cast %590 : vector<1x1x128xf32> to vector<1x128xf32>
    %c2_261 = arith.constant 2 : index
    %c0_262 = arith.constant 0 : index
    %c0_263 = arith.constant 0 : index
    %592 = vector.load %arg18[%c2_261, %c0_262, %c0_263] : memref<4x1x128xf32, #tpu.memory_space<vmem>>, vector<1x1x128xf32>
    %593 = vector.shape_cast %592 : vector<1x1x128xf32> to vector<1x128xf32>
    %cst_264 = arith.constant dense<0.000000e+00> : vector<16xf32>
    %594 = vector.multi_reduction <add>, %589, %cst_264 [1] : vector<16x128xf32> to vector<16xf32>
    %595 = vector.shape_cast %594 : vector<16xf32> to vector<16x1xf32>
    %cst_265 = arith.constant 1.280000e+02 : f32
    %596 = vector.broadcast %cst_265 : f32 to vector<16x1xf32>
    %597 = arith.divf %595, %596 : vector<16x1xf32>
    %598 = vector.broadcast %597 : vector<16x1xf32> to vector<16x128xf32>
    %599 = arith.subf %589, %598 : vector<16x128xf32>
    %600 = arith.mulf %599, %599 : vector<16x128xf32>
    %cst_266 = arith.constant dense<0.000000e+00> : vector<16xf32>
    %601 = vector.multi_reduction <add>, %600, %cst_266 [1] : vector<16x128xf32> to vector<16xf32>
    %602 = vector.shape_cast %601 : vector<16xf32> to vector<16x1xf32>
    %cst_267 = arith.constant 1.280000e+02 : f32
    %603 = vector.broadcast %cst_267 : f32 to vector<16x1xf32>
    %604 = arith.divf %602, %603 : vector<16x1xf32>
    %cst_268 = arith.constant 9.99999974E-6 : f32
    %605 = vector.broadcast %cst_268 : f32 to vector<16x1xf32>
    %606 = arith.addf %604, %605 : vector<16x1xf32>
    %607 = math.rsqrt %606 : vector<16x1xf32>
    %608 = vector.broadcast %607 : vector<16x1xf32> to vector<16x128xf32>
    %609 = arith.mulf %599, %608 : vector<16x128xf32>
    %610 = vector.broadcast %591 : vector<1x128xf32> to vector<16x128xf32>
    %611 = arith.mulf %609, %610 : vector<16x128xf32>
    %612 = vector.broadcast %593 : vector<1x128xf32> to vector<16x128xf32>
    %613 = arith.addf %611, %612 : vector<16x128xf32>
    %614 = arith.truncf %613 : vector<16x128xf32> to vector<16x128xbf16>
    %c3 = arith.constant 3 : index
    %c0_269 = arith.constant 0 : index
    %c0_270 = arith.constant 0 : index
    %615 = vector.load %arg7[%c3, %c0_269, %c0_270] : memref<4x128x384xbf16, #tpu.memory_space<vmem>>, vector<1x128x384xbf16>
    %616 = vector.shape_cast %615 : vector<1x128x384xbf16> to vector<128x384xbf16>
    %cst_271 = arith.constant dense<0.000000e+00> : vector<16x384xf32>
    %617 = tpu.matmul %614, %616, %cst_271 {dimension_numbers = #tpu.dot_dimension_numbers<[1], [0], [0], [1], [0, 0, 1, 1], [], []>} : vector<16x128xbf16>, vector<128x384xbf16>, vector<16x384xf32> -> vector<16x384xf32>
    %c3_272 = arith.constant 3 : index
    %c0_273 = arith.constant 0 : index
    %c0_274 = arith.constant 0 : index
    %618 = vector.load %arg8[%c3_272, %c0_273, %c0_274] : memref<4x1x384xf32, #tpu.memory_space<vmem>>, vector<1x1x384xf32>
    %619 = vector.shape_cast %618 : vector<1x1x384xf32> to vector<1x384xf32>
    %620 = vector.broadcast %619 : vector<1x384xf32> to vector<16x384xf32>
    %621 = arith.addf %617, %620 : vector<16x384xf32>
    %622 = vector.shape_cast %621 : vector<16x384xf32> to vector<2x8x384xf32>
    %623 = arith.truncf %622 : vector<2x8x384xf32> to vector<2x8x384xbf16>
    %c3_275 = arith.constant 3 : index
    %c0_276 = arith.constant 0 : index
    %c0_277 = arith.constant 0 : index
    %624 = vector.load %arg9[%c3_275, %c0_276, %c0_277] : memref<4x128x128xbf16, #tpu.memory_space<vmem>>, vector<1x128x128xbf16>
    %625 = vector.shape_cast %624 : vector<1x128x128xbf16> to vector<128x128xbf16>
    %626 = vector.extract_strided_slice %623 {offsets = [0, 0, 0], sizes = [2, 8, 32], strides = [1, 1, 1]} : vector<2x8x384xbf16> to vector<2x8x32xbf16>
    %627 = vector.extract_strided_slice %623 {offsets = [0, 0, 128], sizes = [2, 8, 32], strides = [1, 1, 1]} : vector<2x8x384xbf16> to vector<2x8x32xbf16>
    %628 = vector.extract_strided_slice %623 {offsets = [0, 0, 256], sizes = [2, 8, 32], strides = [1, 1, 1]} : vector<2x8x384xbf16> to vector<2x8x32xbf16>
    "tpu.trace_start"() <{level = 10 : i32, message = "bqd,bkd->bqk"}> : () -> ()
    %cst_278 = arith.constant dense<0.000000e+00> : vector<2x8x8xf32>
    %629 = tpu.matmul %626, %627, %cst_278 {dimension_numbers = #tpu.dot_dimension_numbers<[2], [2], [1], [1], [0, 0, 0, 1, 1, 1], [0], [0]>} : vector<2x8x32xbf16>, vector<2x8x32xbf16>, vector<2x8x8xf32> -> vector<2x8x8xf32>
    "tpu.trace_stop"() : () -> ()
    %cst_279 = arith.constant 0.176776692 : f32
    %630 = vector.broadcast %cst_279 : f32 to vector<2x8x8xf32>
    %631 = arith.mulf %629, %630 : vector<2x8x8xf32>
    %cst_280 = arith.constant dense<0xFF800000> : vector<2x8xf32>
    %632 = vector.multi_reduction <maximumf>, %631, %cst_280 [2] : vector<2x8x8xf32> to vector<2x8xf32>
    %633 = vector.shape_cast %632 : vector<2x8xf32> to vector<2x8x1xf32>
    %634 = vector.broadcast %633 : vector<2x8x1xf32> to vector<2x8x8xf32>
    %635 = arith.subf %631, %634 : vector<2x8x8xf32>
    %636 = math.exp %635 : vector<2x8x8xf32>
    %cst_281 = arith.constant dense<0.000000e+00> : vector<2x8xf32>
    %637 = vector.multi_reduction <add>, %636, %cst_281 [2] : vector<2x8x8xf32> to vector<2x8xf32>
    %638 = vector.shape_cast %637 : vector<2x8xf32> to vector<2x8x1xf32>
    %639 = tpu.reciprocal %638 {approx = true} : vector<2x8x1xf32> -> vector<2x8x1xf32>
    %640 = vector.broadcast %639 : vector<2x8x1xf32> to vector<2x8x8xf32>
    %641 = arith.mulf %636, %640 : vector<2x8x8xf32>
    %642 = arith.truncf %641 : vector<2x8x8xf32> to vector<2x8x8xbf16>
    "tpu.trace_start"() <{level = 10 : i32, message = "bqk,bkd->bqd"}> : () -> ()
    %cst_282 = arith.constant dense<0.000000e+00> : vector<2x8x32xf32>
    %643 = tpu.matmul %642, %628, %cst_282 {dimension_numbers = #tpu.dot_dimension_numbers<[2], [1], [1], [2], [0, 0, 0, 1, 1, 2], [0], [0]>} : vector<2x8x8xbf16>, vector<2x8x32xbf16>, vector<2x8x32xf32> -> vector<2x8x32xf32>
    "tpu.trace_stop"() : () -> ()
    %644 = vector.shape_cast %643 : vector<2x8x32xf32> to vector<16x32xf32>
    %645 = arith.truncf %644 : vector<16x32xf32> to vector<16x32xbf16>
    %646 = vector.extract_strided_slice %625 {offsets = [0, 0], sizes = [32, 128], strides = [1, 1]} : vector<128x128xbf16> to vector<32x128xbf16>
    %cst_283 = arith.constant dense<0.000000e+00> : vector<16x128xf32>
    %647 = tpu.matmul %645, %646, %cst_283 {dimension_numbers = #tpu.dot_dimension_numbers<[1], [0], [0], [1], [0, 0, 1, 1], [], []>} : vector<16x32xbf16>, vector<32x128xbf16>, vector<16x128xf32> -> vector<16x128xf32>
    %648 = vector.extract_strided_slice %623 {offsets = [0, 0, 32], sizes = [2, 8, 32], strides = [1, 1, 1]} : vector<2x8x384xbf16> to vector<2x8x32xbf16>
    %649 = vector.extract_strided_slice %623 {offsets = [0, 0, 160], sizes = [2, 8, 32], strides = [1, 1, 1]} : vector<2x8x384xbf16> to vector<2x8x32xbf16>
    %650 = vector.extract_strided_slice %623 {offsets = [0, 0, 288], sizes = [2, 8, 32], strides = [1, 1, 1]} : vector<2x8x384xbf16> to vector<2x8x32xbf16>
    "tpu.trace_start"() <{level = 10 : i32, message = "bqd,bkd->bqk"}> : () -> ()
    %cst_284 = arith.constant dense<0.000000e+00> : vector<2x8x8xf32>
    %651 = tpu.matmul %648, %649, %cst_284 {dimension_numbers = #tpu.dot_dimension_numbers<[2], [2], [1], [1], [0, 0, 0, 1, 1, 1], [0], [0]>} : vector<2x8x32xbf16>, vector<2x8x32xbf16>, vector<2x8x8xf32> -> vector<2x8x8xf32>
    "tpu.trace_stop"() : () -> ()
    %cst_285 = arith.constant 0.176776692 : f32
    %652 = vector.broadcast %cst_285 : f32 to vector<2x8x8xf32>
    %653 = arith.mulf %651, %652 : vector<2x8x8xf32>
    %cst_286 = arith.constant dense<0xFF800000> : vector<2x8xf32>
    %654 = vector.multi_reduction <maximumf>, %653, %cst_286 [2] : vector<2x8x8xf32> to vector<2x8xf32>
    %655 = vector.shape_cast %654 : vector<2x8xf32> to vector<2x8x1xf32>
    %656 = vector.broadcast %655 : vector<2x8x1xf32> to vector<2x8x8xf32>
    %657 = arith.subf %653, %656 : vector<2x8x8xf32>
    %658 = math.exp %657 : vector<2x8x8xf32>
    %cst_287 = arith.constant dense<0.000000e+00> : vector<2x8xf32>
    %659 = vector.multi_reduction <add>, %658, %cst_287 [2] : vector<2x8x8xf32> to vector<2x8xf32>
    %660 = vector.shape_cast %659 : vector<2x8xf32> to vector<2x8x1xf32>
    %661 = tpu.reciprocal %660 {approx = true} : vector<2x8x1xf32> -> vector<2x8x1xf32>
    %662 = vector.broadcast %661 : vector<2x8x1xf32> to vector<2x8x8xf32>
    %663 = arith.mulf %658, %662 : vector<2x8x8xf32>
    %664 = arith.truncf %663 : vector<2x8x8xf32> to vector<2x8x8xbf16>
    "tpu.trace_start"() <{level = 10 : i32, message = "bqk,bkd->bqd"}> : () -> ()
    %cst_288 = arith.constant dense<0.000000e+00> : vector<2x8x32xf32>
    %665 = tpu.matmul %664, %650, %cst_288 {dimension_numbers = #tpu.dot_dimension_numbers<[2], [1], [1], [2], [0, 0, 0, 1, 1, 2], [0], [0]>} : vector<2x8x8xbf16>, vector<2x8x32xbf16>, vector<2x8x32xf32> -> vector<2x8x32xf32>
    "tpu.trace_stop"() : () -> ()
    %666 = vector.shape_cast %665 : vector<2x8x32xf32> to vector<16x32xf32>
    %667 = arith.truncf %666 : vector<16x32xf32> to vector<16x32xbf16>
    %668 = vector.extract_strided_slice %625 {offsets = [32, 0], sizes = [32, 128], strides = [1, 1]} : vector<128x128xbf16> to vector<32x128xbf16>
    %cst_289 = arith.constant dense<0.000000e+00> : vector<16x128xf32>
    %669 = tpu.matmul %667, %668, %cst_289 {dimension_numbers = #tpu.dot_dimension_numbers<[1], [0], [0], [1], [0, 0, 1, 1], [], []>} : vector<16x32xbf16>, vector<32x128xbf16>, vector<16x128xf32> -> vector<16x128xf32>
    %670 = arith.addf %647, %669 : vector<16x128xf32>
    %671 = vector.extract_strided_slice %623 {offsets = [0, 0, 64], sizes = [2, 8, 32], strides = [1, 1, 1]} : vector<2x8x384xbf16> to vector<2x8x32xbf16>
    %672 = vector.extract_strided_slice %623 {offsets = [0, 0, 192], sizes = [2, 8, 32], strides = [1, 1, 1]} : vector<2x8x384xbf16> to vector<2x8x32xbf16>
    %673 = vector.extract_strided_slice %623 {offsets = [0, 0, 320], sizes = [2, 8, 32], strides = [1, 1, 1]} : vector<2x8x384xbf16> to vector<2x8x32xbf16>
    "tpu.trace_start"() <{level = 10 : i32, message = "bqd,bkd->bqk"}> : () -> ()
    %cst_290 = arith.constant dense<0.000000e+00> : vector<2x8x8xf32>
    %674 = tpu.matmul %671, %672, %cst_290 {dimension_numbers = #tpu.dot_dimension_numbers<[2], [2], [1], [1], [0, 0, 0, 1, 1, 1], [0], [0]>} : vector<2x8x32xbf16>, vector<2x8x32xbf16>, vector<2x8x8xf32> -> vector<2x8x8xf32>
    "tpu.trace_stop"() : () -> ()
    %cst_291 = arith.constant 0.176776692 : f32
    %675 = vector.broadcast %cst_291 : f32 to vector<2x8x8xf32>
    %676 = arith.mulf %674, %675 : vector<2x8x8xf32>
    %cst_292 = arith.constant dense<0xFF800000> : vector<2x8xf32>
    %677 = vector.multi_reduction <maximumf>, %676, %cst_292 [2] : vector<2x8x8xf32> to vector<2x8xf32>
    %678 = vector.shape_cast %677 : vector<2x8xf32> to vector<2x8x1xf32>
    %679 = vector.broadcast %678 : vector<2x8x1xf32> to vector<2x8x8xf32>
    %680 = arith.subf %676, %679 : vector<2x8x8xf32>
    %681 = math.exp %680 : vector<2x8x8xf32>
    %cst_293 = arith.constant dense<0.000000e+00> : vector<2x8xf32>
    %682 = vector.multi_reduction <add>, %681, %cst_293 [2] : vector<2x8x8xf32> to vector<2x8xf32>
    %683 = vector.shape_cast %682 : vector<2x8xf32> to vector<2x8x1xf32>
    %684 = tpu.reciprocal %683 {approx = true} : vector<2x8x1xf32> -> vector<2x8x1xf32>
    %685 = vector.broadcast %684 : vector<2x8x1xf32> to vector<2x8x8xf32>
    %686 = arith.mulf %681, %685 : vector<2x8x8xf32>
    %687 = arith.truncf %686 : vector<2x8x8xf32> to vector<2x8x8xbf16>
    "tpu.trace_start"() <{level = 10 : i32, message = "bqk,bkd->bqd"}> : () -> ()
    %cst_294 = arith.constant dense<0.000000e+00> : vector<2x8x32xf32>
    %688 = tpu.matmul %687, %673, %cst_294 {dimension_numbers = #tpu.dot_dimension_numbers<[2], [1], [1], [2], [0, 0, 0, 1, 1, 2], [0], [0]>} : vector<2x8x8xbf16>, vector<2x8x32xbf16>, vector<2x8x32xf32> -> vector<2x8x32xf32>
    "tpu.trace_stop"() : () -> ()
    %689 = vector.shape_cast %688 : vector<2x8x32xf32> to vector<16x32xf32>
    %690 = arith.truncf %689 : vector<16x32xf32> to vector<16x32xbf16>
    %691 = vector.extract_strided_slice %625 {offsets = [64, 0], sizes = [32, 128], strides = [1, 1]} : vector<128x128xbf16> to vector<32x128xbf16>
    %cst_295 = arith.constant dense<0.000000e+00> : vector<16x128xf32>
    %692 = tpu.matmul %690, %691, %cst_295 {dimension_numbers = #tpu.dot_dimension_numbers<[1], [0], [0], [1], [0, 0, 1, 1], [], []>} : vector<16x32xbf16>, vector<32x128xbf16>, vector<16x128xf32> -> vector<16x128xf32>
    %693 = arith.addf %670, %692 : vector<16x128xf32>
    %694 = vector.extract_strided_slice %623 {offsets = [0, 0, 96], sizes = [2, 8, 32], strides = [1, 1, 1]} : vector<2x8x384xbf16> to vector<2x8x32xbf16>
    %695 = vector.extract_strided_slice %623 {offsets = [0, 0, 224], sizes = [2, 8, 32], strides = [1, 1, 1]} : vector<2x8x384xbf16> to vector<2x8x32xbf16>
    %696 = vector.extract_strided_slice %623 {offsets = [0, 0, 352], sizes = [2, 8, 32], strides = [1, 1, 1]} : vector<2x8x384xbf16> to vector<2x8x32xbf16>
    "tpu.trace_start"() <{level = 10 : i32, message = "bqd,bkd->bqk"}> : () -> ()
    %cst_296 = arith.constant dense<0.000000e+00> : vector<2x8x8xf32>
    %697 = tpu.matmul %694, %695, %cst_296 {dimension_numbers = #tpu.dot_dimension_numbers<[2], [2], [1], [1], [0, 0, 0, 1, 1, 1], [0], [0]>} : vector<2x8x32xbf16>, vector<2x8x32xbf16>, vector<2x8x8xf32> -> vector<2x8x8xf32>
    "tpu.trace_stop"() : () -> ()
    %cst_297 = arith.constant 0.176776692 : f32
    %698 = vector.broadcast %cst_297 : f32 to vector<2x8x8xf32>
    %699 = arith.mulf %697, %698 : vector<2x8x8xf32>
    %cst_298 = arith.constant dense<0xFF800000> : vector<2x8xf32>
    %700 = vector.multi_reduction <maximumf>, %699, %cst_298 [2] : vector<2x8x8xf32> to vector<2x8xf32>
    %701 = vector.shape_cast %700 : vector<2x8xf32> to vector<2x8x1xf32>
    %702 = vector.broadcast %701 : vector<2x8x1xf32> to vector<2x8x8xf32>
    %703 = arith.subf %699, %702 : vector<2x8x8xf32>
    %704 = math.exp %703 : vector<2x8x8xf32>
    %cst_299 = arith.constant dense<0.000000e+00> : vector<2x8xf32>
    %705 = vector.multi_reduction <add>, %704, %cst_299 [2] : vector<2x8x8xf32> to vector<2x8xf32>
    %706 = vector.shape_cast %705 : vector<2x8xf32> to vector<2x8x1xf32>
    %707 = tpu.reciprocal %706 {approx = true} : vector<2x8x1xf32> -> vector<2x8x1xf32>
    %708 = vector.broadcast %707 : vector<2x8x1xf32> to vector<2x8x8xf32>
    %709 = arith.mulf %704, %708 : vector<2x8x8xf32>
    %710 = arith.truncf %709 : vector<2x8x8xf32> to vector<2x8x8xbf16>
    "tpu.trace_start"() <{level = 10 : i32, message = "bqk,bkd->bqd"}> : () -> ()
    %cst_300 = arith.constant dense<0.000000e+00> : vector<2x8x32xf32>
    %711 = tpu.matmul %710, %696, %cst_300 {dimension_numbers = #tpu.dot_dimension_numbers<[2], [1], [1], [2], [0, 0, 0, 1, 1, 2], [0], [0]>} : vector<2x8x8xbf16>, vector<2x8x32xbf16>, vector<2x8x32xf32> -> vector<2x8x32xf32>
    "tpu.trace_stop"() : () -> ()
    %712 = vector.shape_cast %711 : vector<2x8x32xf32> to vector<16x32xf32>
    %713 = arith.truncf %712 : vector<16x32xf32> to vector<16x32xbf16>
    %714 = vector.extract_strided_slice %625 {offsets = [96, 0], sizes = [32, 128], strides = [1, 1]} : vector<128x128xbf16> to vector<32x128xbf16>
    %cst_301 = arith.constant dense<0.000000e+00> : vector<16x128xf32>
    %715 = tpu.matmul %713, %714, %cst_301 {dimension_numbers = #tpu.dot_dimension_numbers<[1], [0], [0], [1], [0, 0, 1, 1], [], []>} : vector<16x32xbf16>, vector<32x128xbf16>, vector<16x128xf32> -> vector<16x128xf32>
    %716 = arith.addf %693, %715 : vector<16x128xf32>
    %c3_302 = arith.constant 3 : index
    %c0_303 = arith.constant 0 : index
    %c0_304 = arith.constant 0 : index
    %717 = vector.load %arg10[%c3_302, %c0_303, %c0_304] : memref<4x1x128xf32, #tpu.memory_space<vmem>>, vector<1x1x128xf32>
    %718 = vector.shape_cast %717 : vector<1x1x128xf32> to vector<1x128xf32>
    %719 = vector.broadcast %718 : vector<1x128xf32> to vector<16x128xf32>
    %720 = arith.addf %716, %719 : vector<16x128xf32>
    %721 = arith.addf %613, %720 : vector<16x128xf32>
    %c3_305 = arith.constant 3 : index
    %c0_306 = arith.constant 0 : index
    %c0_307 = arith.constant 0 : index
    %722 = vector.load %arg11[%c3_305, %c0_306, %c0_307] : memref<4x1x128xf32, #tpu.memory_space<vmem>>, vector<1x1x128xf32>
    %723 = vector.shape_cast %722 : vector<1x1x128xf32> to vector<1x128xf32>
    %c3_308 = arith.constant 3 : index
    %c0_309 = arith.constant 0 : index
    %c0_310 = arith.constant 0 : index
    %724 = vector.load %arg12[%c3_308, %c0_309, %c0_310] : memref<4x1x128xf32, #tpu.memory_space<vmem>>, vector<1x1x128xf32>
    %725 = vector.shape_cast %724 : vector<1x1x128xf32> to vector<1x128xf32>
    %cst_311 = arith.constant dense<0.000000e+00> : vector<16xf32>
    %726 = vector.multi_reduction <add>, %721, %cst_311 [1] : vector<16x128xf32> to vector<16xf32>
    %727 = vector.shape_cast %726 : vector<16xf32> to vector<16x1xf32>
    %cst_312 = arith.constant 1.280000e+02 : f32
    %728 = vector.broadcast %cst_312 : f32 to vector<16x1xf32>
    %729 = arith.divf %727, %728 : vector<16x1xf32>
    %730 = vector.broadcast %729 : vector<16x1xf32> to vector<16x128xf32>
    %731 = arith.subf %721, %730 : vector<16x128xf32>
    %732 = arith.mulf %731, %731 : vector<16x128xf32>
    %cst_313 = arith.constant dense<0.000000e+00> : vector<16xf32>
    %733 = vector.multi_reduction <add>, %732, %cst_313 [1] : vector<16x128xf32> to vector<16xf32>
    %734 = vector.shape_cast %733 : vector<16xf32> to vector<16x1xf32>
    %cst_314 = arith.constant 1.280000e+02 : f32
    %735 = vector.broadcast %cst_314 : f32 to vector<16x1xf32>
    %736 = arith.divf %734, %735 : vector<16x1xf32>
    %cst_315 = arith.constant 9.99999974E-6 : f32
    %737 = vector.broadcast %cst_315 : f32 to vector<16x1xf32>
    %738 = arith.addf %736, %737 : vector<16x1xf32>
    %739 = math.rsqrt %738 : vector<16x1xf32>
    %740 = vector.broadcast %739 : vector<16x1xf32> to vector<16x128xf32>
    %741 = arith.mulf %731, %740 : vector<16x128xf32>
    %742 = vector.broadcast %723 : vector<1x128xf32> to vector<16x128xf32>
    %743 = arith.mulf %741, %742 : vector<16x128xf32>
    %744 = vector.broadcast %725 : vector<1x128xf32> to vector<16x128xf32>
    %745 = arith.addf %743, %744 : vector<16x128xf32>
    %746 = arith.truncf %745 : vector<16x128xf32> to vector<16x128xbf16>
    %c3_316 = arith.constant 3 : index
    %c0_317 = arith.constant 0 : index
    %c0_318 = arith.constant 0 : index
    %747 = vector.load %arg13[%c3_316, %c0_317, %c0_318] : memref<4x128x512xbf16, #tpu.memory_space<vmem>>, vector<1x128x512xbf16>
    %748 = vector.shape_cast %747 : vector<1x128x512xbf16> to vector<128x512xbf16>
    %cst_319 = arith.constant dense<0.000000e+00> : vector<16x512xf32>
    %749 = tpu.matmul %746, %748, %cst_319 {dimension_numbers = #tpu.dot_dimension_numbers<[1], [0], [0], [1], [0, 0, 1, 1], [], []>} : vector<16x128xbf16>, vector<128x512xbf16>, vector<16x512xf32> -> vector<16x512xf32>
    %c3_320 = arith.constant 3 : index
    %c0_321 = arith.constant 0 : index
    %c0_322 = arith.constant 0 : index
    %750 = vector.load %arg14[%c3_320, %c0_321, %c0_322] : memref<4x1x512xf32, #tpu.memory_space<vmem>>, vector<1x1x512xf32>
    %751 = vector.shape_cast %750 : vector<1x1x512xf32> to vector<1x512xf32>
    %752 = vector.broadcast %751 : vector<1x512xf32> to vector<16x512xf32>
    %753 = arith.addf %749, %752 : vector<16x512xf32>
    %cst_323 = arith.constant 0.000000e+00 : f32
    %754 = vector.broadcast %cst_323 : f32 to vector<16x512xf32>
    %755 = arith.maximumf %753, %754 : vector<16x512xf32>
    %756 = arith.truncf %755 : vector<16x512xf32> to vector<16x512xbf16>
    %c3_324 = arith.constant 3 : index
    %c0_325 = arith.constant 0 : index
    %c0_326 = arith.constant 0 : index
    %757 = vector.load %arg15[%c3_324, %c0_325, %c0_326] : memref<4x512x128xbf16, #tpu.memory_space<vmem>>, vector<1x512x128xbf16>
    %758 = vector.shape_cast %757 : vector<1x512x128xbf16> to vector<512x128xbf16>
    %cst_327 = arith.constant dense<0.000000e+00> : vector<16x128xf32>
    %759 = tpu.matmul %756, %758, %cst_327 {dimension_numbers = #tpu.dot_dimension_numbers<[1], [0], [0], [1], [0, 0, 1, 1], [], []>} : vector<16x512xbf16>, vector<512x128xbf16>, vector<16x128xf32> -> vector<16x128xf32>
    %c3_328 = arith.constant 3 : index
    %c0_329 = arith.constant 0 : index
    %c0_330 = arith.constant 0 : index
    %760 = vector.load %arg16[%c3_328, %c0_329, %c0_330] : memref<4x1x128xf32, #tpu.memory_space<vmem>>, vector<1x1x128xf32>
    %761 = vector.shape_cast %760 : vector<1x1x128xf32> to vector<1x128xf32>
    %762 = vector.broadcast %761 : vector<1x128xf32> to vector<16x128xf32>
    %763 = arith.addf %759, %762 : vector<16x128xf32>
    %764 = arith.addf %745, %763 : vector<16x128xf32>
    %c3_331 = arith.constant 3 : index
    %c0_332 = arith.constant 0 : index
    %c0_333 = arith.constant 0 : index
    %765 = vector.load %arg17[%c3_331, %c0_332, %c0_333] : memref<4x1x128xf32, #tpu.memory_space<vmem>>, vector<1x1x128xf32>
    %766 = vector.shape_cast %765 : vector<1x1x128xf32> to vector<1x128xf32>
    %c3_334 = arith.constant 3 : index
    %c0_335 = arith.constant 0 : index
    %c0_336 = arith.constant 0 : index
    %767 = vector.load %arg18[%c3_334, %c0_335, %c0_336] : memref<4x1x128xf32, #tpu.memory_space<vmem>>, vector<1x1x128xf32>
    %768 = vector.shape_cast %767 : vector<1x1x128xf32> to vector<1x128xf32>
    %cst_337 = arith.constant dense<0.000000e+00> : vector<16xf32>
    %769 = vector.multi_reduction <add>, %764, %cst_337 [1] : vector<16x128xf32> to vector<16xf32>
    %770 = vector.shape_cast %769 : vector<16xf32> to vector<16x1xf32>
    %cst_338 = arith.constant 1.280000e+02 : f32
    %771 = vector.broadcast %cst_338 : f32 to vector<16x1xf32>
    %772 = arith.divf %770, %771 : vector<16x1xf32>
    %773 = vector.broadcast %772 : vector<16x1xf32> to vector<16x128xf32>
    %774 = arith.subf %764, %773 : vector<16x128xf32>
    %775 = arith.mulf %774, %774 : vector<16x128xf32>
    %cst_339 = arith.constant dense<0.000000e+00> : vector<16xf32>
    %776 = vector.multi_reduction <add>, %775, %cst_339 [1] : vector<16x128xf32> to vector<16xf32>
    %777 = vector.shape_cast %776 : vector<16xf32> to vector<16x1xf32>
    %cst_340 = arith.constant 1.280000e+02 : f32
    %778 = vector.broadcast %cst_340 : f32 to vector<16x1xf32>
    %779 = arith.divf %777, %778 : vector<16x1xf32>
    %cst_341 = arith.constant 9.99999974E-6 : f32
    %780 = vector.broadcast %cst_341 : f32 to vector<16x1xf32>
    %781 = arith.addf %779, %780 : vector<16x1xf32>
    %782 = math.rsqrt %781 : vector<16x1xf32>
    %783 = vector.broadcast %782 : vector<16x1xf32> to vector<16x128xf32>
    %784 = arith.mulf %774, %783 : vector<16x128xf32>
    %785 = vector.broadcast %766 : vector<1x128xf32> to vector<16x128xf32>
    %786 = arith.mulf %784, %785 : vector<16x128xf32>
    %787 = vector.broadcast %768 : vector<1x128xf32> to vector<16x128xf32>
    %788 = arith.addf %786, %787 : vector<16x128xf32>
    %c0_342 = arith.constant 0 : index
    %c0_343 = arith.constant 0 : index
    %789 = vector.load %arg31[%c0_342, %c0_343] : memref<16x128xf32, #tpu.memory_space<vmem>>, vector<16x128xf32>
    tpu.vector_store %arg31[%c0_342, %c0_343], %788 {strides = array<i32>} : memref<16x128xf32, #tpu.memory_space<vmem>>, vector<16x128xf32>,
    %790 = arith.truncf %788 : vector<16x128xf32> to vector<16x128xbf16>
    %c0_344 = arith.constant 0 : index
    %c0_345 = arith.constant 0 : index
    %791 = vector.load %arg27[%c0_344, %c0_345] : memref<128x256xbf16, #tpu.memory_space<vmem>>, vector<128x256xbf16>
    %cst_346 = arith.constant dense<0.000000e+00> : vector<16x256xf32>
    %792 = tpu.matmul %790, %791, %cst_346 {dimension_numbers = #tpu.dot_dimension_numbers<[1], [0], [0], [1], [0, 0, 1, 1], [], []>} : vector<16x128xbf16>, vector<128x256xbf16>, vector<16x256xf32> -> vector<16x256xf32>
    %c0_347 = arith.constant 0 : index
    %c0_348 = arith.constant 0 : index
    %793 = vector.load %arg28[%c0_347, %c0_348] : memref<1x256xf32, #tpu.memory_space<vmem>>, vector<1x256xf32>
    %794 = vector.broadcast %793 : vector<1x256xf32> to vector<16x256xf32>
    %795 = arith.addf %792, %794 : vector<16x256xf32>
    %c0_349 = arith.constant 0 : index
    %c0_350 = arith.constant 0 : index
    %796 = vector.load %arg29[%c0_349, %c0_350] : memref<16x256xf32, #tpu.memory_space<vmem>>, vector<16x256xf32>
    tpu.vector_store %arg29[%c0_349, %c0_350], %795 {strides = array<i32>} : memref<16x256xf32, #tpu.memory_space<vmem>>, vector<16x256xf32>,
    return
  }
}

</mosaic_0001>

<llo_original>
// kernel: transformer_semcom_forward.1
$region0: #{transformer_semcom_forward.1}
  #allocation0 [shape = 'u32[]', space=smem, size = 0x4, offset = 0x4, fixed_abs, tag = 'smem constant byte address 0x4 - core index']
  #allocation1 [shape = 'u32[144,128]{1,0:T(1,128)}', space=vmem, size = 0x12000, scoped, tag = 'internal scratch']
  #allocation2 [shape = 'f32[1,1]{1,0:T(1,128)S(6)}', space=smem, size = 0x200, scoped, tag = 'scoped memory for transformer_semcom_forward.1']
  %s0 = inlined_call_operand.smem [shape: u32[32], index: -1, kind: input, shape index: {}]
  %s1 = sld [smem:[%s0]]
  %s2 = scalar_lea.smem %s0, 1
  %s3 = sld [smem:[%s2]]
  %s4 = scalar_lea.smem %s0, 2
  %s5 = sld [smem:[%s4]]
  %s6 = scalar_lea.smem %s0, 3
  %s7 = sld [smem:[%s6]]
  %s8 = scalar_lea.smem %s0, 4
  %s9 = sld [smem:[%s8]]
  %s10 = scalar_lea.smem %s0, 5
  %s11 = sld [smem:[%s10]]
  %s12 = scalar_lea.smem %s0, 6
  %s13 = sld [smem:[%s12]]
  %s14 = scalar_lea.smem %s0, 7
  %s15 = sld [smem:[%s14]]
  %s16 = scalar_lea.smem %s0, 8
  %s17 = sld [smem:[%s16]]
  %s18 = scalar_lea.smem %s0, 9
  %s19 = sld [smem:[%s18]]
  %s20 = scalar_lea.smem %s0, 10
  %s21 = sld [smem:[%s20]]
  %s22 = scalar_lea.smem %s0, 11
  %s23 = sld [smem:[%s22]]
  %s24 = scalar_lea.smem %s0, 12
  %s25 = sld [smem:[%s24]]
  %s26 = scalar_lea.smem %s0, 13
  %s27 = sld [smem:[%s26]]
  %s28 = scalar_lea.smem %s0, 14
  %s29 = sld [smem:[%s28]]
  %s30 = scalar_lea.smem %s0, 15
  %s31 = sld [smem:[%s30]]
  %s32 = scalar_lea.smem %s0, 16
  %s33 = sld [smem:[%s32]]
  %s34 = scalar_lea.smem %s0, 17
  %s35 = sld [smem:[%s34]]
  %s36 = scalar_lea.smem %s0, 18
  %s37 = sld [smem:[%s36]]
  %s38 = scalar_lea.smem %s0, 19
  %s39 = sld [smem:[%s38]]
  %s40 = scalar_lea.smem %s0, 20
  %s41 = sld [smem:[%s40]]
  %s42 = scalar_lea.smem %s0, 21
  %s43 = sld [smem:[%s42]]
  %s44 = scalar_lea.smem %s0, 22
  %s45 = sld [smem:[%s44]]
  %s46 = scalar_lea.smem %s0, 23
  %s47 = sld [smem:[%s46]]
  %s48 = scalar_lea.smem %s0, 24
  %s49 = sld [smem:[%s48]]
  %s50 = scalar_lea.smem %s0, 25
  %s51 = sld [smem:[%s50]]
  %s52 = scalar_lea.smem %s0, 26
  %s53 = sld [smem:[%s52]]
  %s54 = scalar_lea.smem %s0, 27
  %s55 = sld [smem:[%s54]]
  %s56 = scalar_lea.smem %s0, 28
  %s57 = sld [smem:[%s56]]
  %s58 = scalar_lea.smem %s0, 29
  %s59 = sld [smem:[%s58]]
  %s60 = scalar_lea.smem %s0, 30
  %s61 = sld [smem:[%s60]]
  %s62 = scalar_lea.smem %s0, 31
  %s63 = sld [smem:[%s62]]
  %64 = xla_tuple %s59, %s61, %s63
  %s65 = sld [smem:[#allocation0]]
  $region214: #{transformer_semcom_forward.1} parent=0
    _
  %s67 = ssub.s32 1, %s65
  %s68 = scalar_select 0, %s67, %s65
  %69 = sst [smem:[#allocation2]] %s1
  $region1: #{transformer_semcom_forward.1} parent=0
    #allocation3 [shape = 'u8[393216]{0}', space=vmem, size = 0x60000, scoped, tag = 'input window, operand 7, single buffered']
    #allocation4 [shape = 's32[1]{0}', space=sflag, size = 0x4, scoped, tag = 'scoped memory for transformer_semcom_forward.1']
    #allocation5 [shape = 's32[1]{0}', space=sflag, size = 0x4, scoped, tag = 'scoped memory for transformer_semcom_forward.1']
    #allocation6 [shape = 'u8[131072]{0}', space=vmem, size = 0x20000, scoped, tag = 'input window, operand 9, single buffered']
    #allocation7 [shape = 's32[1]{0}', space=sflag, size = 0x4, scoped, tag = 'scoped memory for transformer_semcom_forward.1']
    #allocation8 [shape = 'u8[2048]{0}', space=vmem, size = 0x800, scoped, tag = 'input window, operand 10, single buffered']
    #allocation9 [shape = 'u8[2048]{0}', space=vmem, size = 0x800, scoped, tag = 'input window, operand 11, single buffered']
    #allocation10 [shape = 's32[1]{0}', space=sflag, size = 0x4, scoped, tag = 'scoped memory for transformer_semcom_forward.1']
    #allocation11 [shape = 'u8[2048]{0}', space=vmem, size = 0x800, scoped, tag = 'input window, operand 12, single buffered']
    #allocation12 [shape = 'u8[8192]{0}', space=vmem, size = 0x2000, scoped, tag = 'input window, operand 14, single buffered']
    #allocation13 [shape = 's32[1]{0}', space=sflag, size = 0x4, scoped, tag = 'scoped memory for transformer_semcom_forward.1']
    #allocation14 [shape = 'u8[524288]{0}', space=vmem, size = 0x80000, scoped, tag = 'input window, operand 15, single buffered']
    #allocation15 [shape = 'u8[2048]{0}', space=vmem, size = 0x800, scoped, tag = 'input window, operand 16, single buffered']
    #allocation16 [shape = 's32[1]{0}', space=sflag, size = 0x4, scoped, tag = 'scoped memory for transformer_semcom_forward.1']
    #allocation17 [shape = 'u8[2048]{0}', space=vmem, size = 0x800, scoped, tag = 'input window, operand 17, single buffered']
    #allocation18 [shape = 'u8[2048]{0}', space=vmem, size = 0x800, scoped, tag = 'input window, operand 18, single buffered']
    #allocation19 [shape = 's32[1]{0}', space=sflag, size = 0x4, scoped, tag = 'scoped memory for transformer_semcom_forward.1']
    #allocation20 [shape = 'u8[131072]{0}', space=vmem, size = 0x20000, scoped, tag = 'input window, operand 19, single buffered']
    #allocation21 [shape = 'u8[2048]{0}', space=vmem, size = 0x800, scoped, tag = 'input window, operand 20, single buffered']
    #allocation22 [shape = 's32[1]{0}', space=sflag, size = 0x4, scoped, tag = 'scoped memory for transformer_semcom_forward.1']
    #allocation23 [shape = 'u8[131072]{0}', space=vmem, size = 0x20000, scoped, tag = 'input window, operand 21, single buffered']
    #allocation24 [shape = 'u8[512]{0}', space=vmem, size = 0x400, scoped, tag = 'input window, operand 22, single buffered']
    #allocation25 [shape = 's32[1]{0}', space=sflag, size = 0x4, scoped, tag = 'scoped memory for transformer_semcom_forward.1']
    #allocation26 [shape = 'u8[131072]{0}', space=vmem, size = 0x20000, scoped, tag = 'input window, operand 23, single buffered']
    #allocation27 [shape = 'u8[2048]{0}', space=vmem, size = 0x800, scoped, tag = 'input window, operand 24, single buffered']
    #allocation28 [shape = 's32[1]{0}', space=sflag, size = 0x4, scoped, tag = 'scoped memory for transformer_semcom_forward.1']
    #allocation29 [shape = 'u8[131072]{0}', space=vmem, size = 0x20000, scoped, tag = 'input window, operand 25, single buffered']
    #allocation30 [shape = 'u8[512]{0}', space=vmem, size = 0x400, scoped, tag = 'input window, operand 26, single buffered']
    #allocation31 [shape = 's32[1]{0}', space=sflag, size = 0x4, scoped, tag = 'scoped memory for transformer_semcom_forward.1']
    #allocation32 [shape = 'u8[16384]{0}', space=vmem, size = 0x4000, scoped, tag = 'output window, operand 0, single buffered']
    #allocation33 [shape = 'u8[8192]{0}', space=vmem, size = 0x2000, scoped, tag = 'output window, operand 1, single buffered']
    #allocation34 [shape = 's32[1]{0}', space=sflag, size = 0x4, scoped, tag = 'scoped memory for transformer_semcom_forward.1']
    #allocation35 [shape = 'u8[8192]{0}', space=vmem, size = 0x2000, scoped, tag = 'output window, operand 2, single buffered']
    %70 = vsyncpa [#allocation4], 0
    %71 = vsyncpa [#allocation7], 0
    %72 = vsyncpa [#allocation10], 0
    %73 = vsyncpa [#allocation13], 0
    %74 = vsyncpa [#allocation16], 0
    %75 = vsyncpa [#allocation19], 0
    %76 = vsyncpa [#allocation22], 0
    %77 = vsyncpa [#allocation25], 0
    %78 = vsyncpa [#allocation28], 0
    %79 = vsyncpa [#allocation31], 0
    %80 = vsyncpa [#allocation5], 0
    %81 = vsyncpa [#allocation34], 0
    // Predicated region
    $region2: #{transformer_semcom_forward.1} parent=1 // pred_check
      _
    $region3: #{transformer_semcom_forward.1} parent=1 // pred_check_branch
      %83 = sbr.rel (0) target = $region5
    $region4: #{transformer_semcom_forward.1} parent=1 // pred_region
      _
    $region5: #{transformer_semcom_forward.1} parent=1 // pred_fallthru
      _
    // Predicated region
    $region6: #{transformer_semcom_forward.1} parent=1 // pred_check
      _
    $region7: #{transformer_semcom_forward.1} parent=1 // pred_check_branch
      %85 = sbr.rel (0) target = $region9
    $region8: #{transformer_semcom_forward.1} parent=1 // pred_region
      _
    $region9: #{transformer_semcom_forward.1} parent=1 // pred_fallthru
      _
    // Predicated region
    $region10: #{transformer_semcom_forward.1} parent=1 // pred_check
      _
    $region11: #{transformer_semcom_forward.1} parent=1 // pred_check_branch
      %87 = sbr.rel (0) target = $region13
    $region12: #{transformer_semcom_forward.1} parent=1 // pred_region
      _
    $region13: #{transformer_semcom_forward.1} parent=1 // pred_fallthru
      _
    // Predicated region
    $region14: #{transformer_semcom_forward.1} parent=1 // pred_check
      _
    $region15: #{transformer_semcom_forward.1} parent=1 // pred_check_branch
      %89 = sbr.rel (0) target = $region17
    $region16: #{transformer_semcom_forward.1} parent=1 // pred_region
      _
    $region17: #{transformer_semcom_forward.1} parent=1 // pred_fallthru
      _
    // Predicated region
    $region18: #{transformer_semcom_forward.1} parent=1 // pred_check
      _
    $region19: #{transformer_semcom_forward.1} parent=1 // pred_check_branch
      %91 = sbr.rel (0) target = $region21
    $region20: #{transformer_semcom_forward.1} parent=1 // pred_region
      _
    $region21: #{transformer_semcom_forward.1} parent=1 // pred_fallthru
      _
    // Predicated region
    $region22: #{transformer_semcom_forward.1} parent=1 // pred_check
      _
    $region23: #{transformer_semcom_forward.1} parent=1 // pred_check_branch
      %93 = sbr.rel (0) target = $region25
    $region24: #{transformer_semcom_forward.1} parent=1 // pred_region
      _
    $region25: #{transformer_semcom_forward.1} parent=1 // pred_fallthru
      _
    // Predicated region
    $region26: #{transformer_semcom_forward.1} parent=1 // pred_check
      _
    $region27: #{transformer_semcom_forward.1} parent=1 // pred_check_branch
      %95 = sbr.rel (0) target = $region29
    $region28: #{transformer_semcom_forward.1} parent=1 // pred_region
      _
    $region29: #{transformer_semcom_forward.1} parent=1 // pred_fallthru
      _
    // Predicated region
    $region30: #{transformer_semcom_forward.1} parent=1 // pred_check
      _
    $region31: #{transformer_semcom_forward.1} parent=1 // pred_check_branch
      %97 = sbr.rel (0) target = $region33
    $region32: #{transformer_semcom_forward.1} parent=1 // pred_region
      %s99 = ssub.s32 12288, 12288
      %100 = vsyncadd [#allocation4], %s99
      %s101 = sshll.u32 [#allocation3], 4
      %s102 = int_to_ptr.vmem [resolvable:$true] %s101
      %107 = dma.hbm_to_vmem [thread:$0]  %s15, 12288, %s102, [#allocation4], 192, 192, 12
    $region33: #{transformer_semcom_forward.1} parent=1 // pred_fallthru
      _
    // Predicated region
    $region34: #{transformer_semcom_forward.1} parent=1 // pred_check
      _
    $region35: #{transformer_semcom_forward.1} parent=1 // pred_check_branch
      %109 = sbr.rel (0) target = $region37
    $region36: #{transformer_semcom_forward.1} parent=1 // pred_region
      _
    $region37: #{transformer_semcom_forward.1} parent=1 // pred_fallthru
      _
    // Predicated region
    $region38: #{transformer_semcom_forward.1} parent=1 // pred_check
      _
    $region39: #{transformer_semcom_forward.1} parent=1 // pred_check_branch
      %111 = sbr.rel (0) target = $region41
    $region40: #{transformer_semcom_forward.1} parent=1 // pred_region
      %s113 = ssub.s32 4096, 4096
      %114 = vsyncadd [#allocation7], %s113
      %s115 = sshll.u32 [#allocation6], 4
      %s116 = int_to_ptr.vmem [resolvable:$true] %s115
      %121 = dma.hbm_to_vmem [thread:$0]  %s19, 4096, %s116, [#allocation7], 64, 64, 4
    $region41: #{transformer_semcom_forward.1} parent=1 // pred_fallthru
      _
    // Predicated region
    $region42: #{transformer_semcom_forward.1} parent=1 // pred_check
      _
    $region43: #{transformer_semcom_forward.1} parent=1 // pred_check_branch
      %123 = sbr.rel (0) target = $region45
    $region44: #{transformer_semcom_forward.1} parent=1 // pred_region
      %s125 = ssub.s32 64, 64
      %126 = vsyncadd [#allocation7], %s125
      %s127 = sshll.u32 [#allocation8], 4
      %s128 = int_to_ptr.vmem [resolvable:$true] %s127
      %133 = dma.hbm_to_vmem [thread:$0]  %s21, 64, %s128, [#allocation7], 16, 16, 1
    $region45: #{transformer_semcom_forward.1} parent=1 // pred_fallthru
      _
    // Predicated region
    $region46: #{transformer_semcom_forward.1} parent=1 // pred_check
      _
    $region47: #{transformer_semcom_forward.1} parent=1 // pred_check_branch
      %135 = sbr.rel (0) target = $region49
    $region48: #{transformer_semcom_forward.1} parent=1 // pred_region
      %s137 = ssub.s32 64, 64
      %138 = vsyncadd [#allocation10], %s137
      %s139 = sshll.u32 [#allocation9], 4
      %s140 = int_to_ptr.vmem [resolvable:$true] %s139
      %145 = dma.hbm_to_vmem [thread:$0]  %s23, 64, %s140, [#allocation10], 16, 16, 1
    $region49: #{transformer_semcom_forward.1} parent=1 // pred_fallthru
      _
    // Predicated region
    $region50: #{transformer_semcom_forward.1} parent=1 // pred_check
      _
    $region51: #{transformer_semcom_forward.1} parent=1 // pred_check_branch
      %147 = sbr.rel (0) target = $region53
    $region52: #{transformer_semcom_forward.1} parent=1 // pred_region
      %s149 = ssub.s32 64, 64
      %150 = vsyncadd [#allocation10], %s149
      %s151 = sshll.u32 [#allocation11], 4
      %s152 = int_to_ptr.vmem [resolvable:$true] %s151
      %157 = dma.hbm_to_vmem [thread:$0]  %s25, 64, %s152, [#allocation10], 16, 16, 1
    $region53: #{transformer_semcom_forward.1} parent=1 // pred_fallthru
      _
    // Predicated region
    $region54: #{transformer_semcom_forward.1} parent=1 // pred_check
      _
    $region55: #{transformer_semcom_forward.1} parent=1 // pred_check_branch
      %159 = sbr.rel (0) target = $region57
    $region56: #{transformer_semcom_forward.1} parent=1 // pred_region
      _
    $region57: #{transformer_semcom_forward.1} parent=1 // pred_fallthru
      _
    // Predicated region
    $region58: #{transformer_semcom_forward.1} parent=1 // pred_check
      _
    $region59: #{transformer_semcom_forward.1} parent=1 // pred_check_branch
      %161 = sbr.rel (0) target = $region61
    $region60: #{transformer_semcom_forward.1} parent=1 // pred_region
      %s163 = ssub.s32 256, 256
      %164 = vsyncadd [#allocation13], %s163
      %s165 = sshll.u32 [#allocation12], 4
      %s166 = int_to_ptr.vmem [resolvable:$true] %s165
      %171 = dma.hbm_to_vmem [thread:$0]  %s29, 256, %s166, [#allocation13], 64, 64, 4
    $region61: #{transformer_semcom_forward.1} parent=1 // pred_fallthru
      _
    // Predicated region
    $region62: #{transformer_semcom_forward.1} parent=1 // pred_check
      _
    $region63: #{transformer_semcom_forward.1} parent=1 // pred_check_branch
      %173 = sbr.rel (0) target = $region65
    $region64: #{transformer_semcom_forward.1} parent=1 // pred_region
      %s175 = ssub.s32 16384, 16384
      %176 = vsyncadd [#allocation13], %s175
      %s177 = sshll.u32 [#allocation14], 4
      %s178 = int_to_ptr.vmem [resolvable:$true] %s177
      %183 = dma.hbm_to_vmem [thread:$0]  %s31, 16384, %s178, [#allocation13], 64, 64, 4
    $region65: #{transformer_semcom_forward.1} parent=1 // pred_fallthru
      _
    // Predicated region
    $region66: #{transformer_semcom_forward.1} parent=1 // pred_check
      _
    $region67: #{transformer_semcom_forward.1} parent=1 // pred_check_branch
      %185 = sbr.rel (0) target = $region69
    $region68: #{transformer_semcom_forward.1} parent=1 // pred_region
      %s187 = ssub.s32 64, 64
      %188 = vsyncadd [#allocation16], %s187
      %s189 = sshll.u32 [#allocation15], 4
      %s190 = int_to_ptr.vmem [resolvable:$true] %s189
      %195 = dma.hbm_to_vmem [thread:$0]  %s33, 64, %s190, [#allocation16], 16, 16, 1
    $region69: #{transformer_semcom_forward.1} parent=1 // pred_fallthru
      _
    // Predicated region
    $region70: #{transformer_semcom_forward.1} parent=1 // pred_check
      _
    $region71: #{transformer_semcom_forward.1} parent=1 // pred_check_branch
      %197 = sbr.rel (0) target = $region73
    $region72: #{transformer_semcom_forward.1} parent=1 // pred_region
      %s199 = ssub.s32 64, 64
      %200 = vsyncadd [#allocation16], %s199
      %s201 = sshll.u32 [#allocation17], 4
      %s202 = int_to_ptr.vmem [resolvable:$true] %s201
      %207 = dma.hbm_to_vmem [thread:$0]  %s35, 64, %s202, [#allocation16], 16, 16, 1
    $region73: #{transformer_semcom_forward.1} parent=1 // pred_fallthru
      _
    // Predicated region
    $region74: #{transformer_semcom_forward.1} parent=1 // pred_check
      _
    $region75: #{transformer_semcom_forward.1} parent=1 // pred_check_branch
      %209 = sbr.rel (0) target = $region77
    $region76: #{transformer_semcom_forward.1} parent=1 // pred_region
      %s211 = ssub.s32 64, 64
      %212 = vsyncadd [#allocation19], %s211
      %s213 = sshll.u32 [#allocation18], 4
      %s214 = int_to_ptr.vmem [resolvable:$true] %s213
      %219 = dma.hbm_to_vmem [thread:$0]  %s37, 64, %s214, [#allocation19], 16, 16, 1
    $region77: #{transformer_semcom_forward.1} parent=1 // pred_fallthru
      _
    // Predicated region
    $region78: #{transformer_semcom_forward.1} parent=1 // pred_check
      _
    $region79: #{transformer_semcom_forward.1} parent=1 // pred_check_branch
      %221 = sbr.rel (0) target = $region81
    $region80: #{transformer_semcom_forward.1} parent=1 // pred_region
      %s223 = ssub.s32 4096, 4096
      %224 = vsyncadd [#allocation19], %s223
      %s225 = sshll.u32 [#allocation20], 4
      %s226 = int_to_ptr.vmem [resolvable:$true] %s225
      %231 = dma.hbm_to_vmem [thread:$0]  %s39, 4096, %s226, [#allocation19], 256, 256, 16
    $region81: #{transformer_semcom_forward.1} parent=1 // pred_fallthru
      _
    // Predicated region
    $region82: #{transformer_semcom_forward.1} parent=1 // pred_check
      _
    $region83: #{transformer_semcom_forward.1} parent=1 // pred_check_branch
      %233 = sbr.rel (0) target = $region85
    $region84: #{transformer_semcom_forward.1} parent=1 // pred_region
      %s235 = ssub.s32 64, 64
      %236 = vsyncadd [#allocation22], %s235
      %s238 = sshll.u32 [#allocation21], 4
      %s239 = int_to_ptr.vmem [resolvable:$true] %s238
      %241 = dma.hbm_to_vmem [thread:$0]  %s41, 64, %s239, [#allocation22]
    $region85: #{transformer_semcom_forward.1} parent=1 // pred_fallthru
      _
    // Predicated region
    $region86: #{transformer_semcom_forward.1} parent=1 // pred_check
      _
    $region87: #{transformer_semcom_forward.1} parent=1 // pred_check_branch
      %243 = sbr.rel (0) target = $region89
    $region88: #{transformer_semcom_forward.1} parent=1 // pred_region
      %s245 = ssub.s32 4096, 4096
      %246 = vsyncadd [#allocation22], %s245
      %s247 = sshll.u32 [#allocation23], 4
      %s248 = int_to_ptr.vmem [resolvable:$true] %s247
      %253 = dma.hbm_to_vmem [thread:$0]  %s43, 4096, %s248, [#allocation22], 64, 64, 4
    $region89: #{transformer_semcom_forward.1} parent=1 // pred_fallthru
      _
    // Predicated region
    $region90: #{transformer_semcom_forward.1} parent=1 // pred_check
      _
    $region91: #{transformer_semcom_forward.1} parent=1 // pred_check_branch
      %255 = sbr.rel (0) target = $region93
    $region92: #{transformer_semcom_forward.1} parent=1 // pred_region
      %s257 = ssub.s32 16, 16
      %258 = vsyncadd [#allocation25], %s257
      %s260 = sshll.u32 [#allocation24], 4
      %s261 = int_to_ptr.vmem [resolvable:$true] %s260
      %263 = dma.hbm_to_vmem [thread:$0]  %s45, 16, %s261, [#allocation25]
    $region93: #{transformer_semcom_forward.1} parent=1 // pred_fallthru
      _
    // Predicated region
    $region94: #{transformer_semcom_forward.1} parent=1 // pred_check
      _
    $region95: #{transformer_semcom_forward.1} parent=1 // pred_check_branch
      %265 = sbr.rel (0) target = $region97
    $region96: #{transformer_semcom_forward.1} parent=1 // pred_region
      %s267 = ssub.s32 4096, 4096
      %268 = vsyncadd [#allocation25], %s267
      %s269 = sshll.u32 [#allocation26], 4
      %s270 = int_to_ptr.vmem [resolvable:$true] %s269
      %275 = dma.hbm_to_vmem [thread:$0]  %s47, 4096, %s270, [#allocation25], 256, 256, 16
    $region97: #{transformer_semcom_forward.1} parent=1 // pred_fallthru
      _
    // Predicated region
    $region98: #{transformer_semcom_forward.1} parent=1 // pred_check
      _
    $region99: #{transformer_semcom_forward.1} parent=1 // pred_check_branch
      %277 = sbr.rel (0) target = $region101
    $region100: #{transformer_semcom_forward.1} parent=1 // pred_region
      %s279 = ssub.s32 64, 64
      %280 = vsyncadd [#allocation28], %s279
      %s282 = sshll.u32 [#allocation27], 4
      %s283 = int_to_ptr.vmem [resolvable:$true] %s282
      %285 = dma.hbm_to_vmem [thread:$0]  %s49, 64, %s283, [#allocation28]
    $region101: #{transformer_semcom_forward.1} parent=1 // pred_fallthru
      _
    // Predicated region
    $region102: #{transformer_semcom_forward.1} parent=1 // pred_check
      _
    $region103: #{transformer_semcom_forward.1} parent=1 // pred_check_branch
      %287 = sbr.rel (0) target = $region105
    $region104: #{transformer_semcom_forward.1} parent=1 // pred_region
      %s289 = ssub.s32 4096, 4096
      %290 = vsyncadd [#allocation28], %s289
      %s291 = sshll.u32 [#allocation29], 4
      %s292 = int_to_ptr.vmem [resolvable:$true] %s291
      %297 = dma.hbm_to_vmem [thread:$0]  %s51, 4096, %s292, [#allocation28], 64, 64, 4
    $region105: #{transformer_semcom_forward.1} parent=1 // pred_fallthru
      _
    // Predicated region
    $region106: #{transformer_semcom_forward.1} parent=1 // pred_check
      _
    $region107: #{transformer_semcom_forward.1} parent=1 // pred_check_branch
      %299 = sbr.rel (0) target = $region109
    $region108: #{transformer_semcom_forward.1} parent=1 // pred_region
      %s301 = ssub.s32 16, 16
      %302 = vsyncadd [#allocation31], %s301
      %s304 = sshll.u32 [#allocation30], 4
      %s305 = int_to_ptr.vmem [resolvable:$true] %s304
      %307 = dma.hbm_to_vmem [thread:$0]  %s53, 16, %s305, [#allocation31]
    $region109: #{transformer_semcom_forward.1} parent=1 // pred_fallthru
      _
    // Predicated region
    $region110: #{transformer_semcom_forward.1} parent=1 // pred_check
      _
    $region111: #{transformer_semcom_forward.1} parent=1 // pred_check_branch
      %309 = sbr.rel (0) target = $region113
    $region112: #{transformer_semcom_forward.1} parent=1 // pred_region
      _
    $region113: #{transformer_semcom_forward.1} parent=1 // pred_fallthru
      _
    // Predicated region
    $region114: #{transformer_semcom_forward.1} parent=1 // pred_check
      _
    $region115: #{transformer_semcom_forward.1} parent=1 // pred_check_branch
      %311 = sbr.rel (0) target = $region117
    $region116: #{transformer_semcom_forward.1} parent=1 // pred_region
      _
    $region117: #{transformer_semcom_forward.1} parent=1 // pred_fallthru
      _
    // Predicated region
    $region118: #{transformer_semcom_forward.1} parent=1 // pred_check
      _
    $region119: #{transformer_semcom_forward.1} parent=1 // pred_check_branch
      %313 = sbr.rel (0) target = $region121
    $region120: #{transformer_semcom_forward.1} parent=1 // pred_region
      %314 = dma.done [#allocation4], 12288
    $region121: #{transformer_semcom_forward.1} parent=1 // pred_fallthru
      _
    // Predicated region
    $region122: #{transformer_semcom_forward.1} parent=1 // pred_check
      _
    $region123: #{transformer_semcom_forward.1} parent=1 // pred_check_branch
      %316 = sbr.rel (0) target = $region125
    $region124: #{transformer_semcom_forward.1} parent=1 // pred_region
      %317 = dma.done [#allocation7], 4096
    $region125: #{transformer_semcom_forward.1} parent=1 // pred_fallthru
      _
    // Predicated region
    $region126: #{transformer_semcom_forward.1} parent=1 // pred_check
      _
    $region127: #{transformer_semcom_forward.1} parent=1 // pred_check_branch
      %319 = sbr.rel (0) target = $region129
    $region128: #{transformer_semcom_forward.1} parent=1 // pred_region
      %320 = dma.done [#allocation7], 64
    $region129: #{transformer_semcom_forward.1} parent=1 // pred_fallthru
      _
    // Predicated region
    $region130: #{transformer_semcom_forward.1} parent=1 // pred_check
      _
    $region131: #{transformer_semcom_forward.1} parent=1 // pred_check_branch
      %322 = sbr.rel (0) target = $region133
    $region132: #{transformer_semcom_forward.1} parent=1 // pred_region
      %323 = dma.done [#allocation10], 64
    $region133: #{transformer_semcom_forward.1} parent=1 // pred_fallthru
      _
    // Predicated region
    $region134: #{transformer_semcom_forward.1} parent=1 // pred_check
      _
    $region135: #{transformer_semcom_forward.1} parent=1 // pred_check_branch
      %325 = sbr.rel (0) target = $region137
    $region136: #{transformer_semcom_forward.1} parent=1 // pred_region
      %326 = dma.done [#allocation10], 64
    $region137: #{transformer_semcom_forward.1} parent=1 // pred_fallthru
      _
    // Predicated region
    $region138: #{transformer_semcom_forward.1} parent=1 // pred_check
      _
    $region139: #{transformer_semcom_forward.1} parent=1 // pred_check_branch
      %328 = sbr.rel (0) target = $region141
    $region140: #{transformer_semcom_forward.1} parent=1 // pred_region
      %329 = dma.done [#allocation13], 256
    $region141: #{transformer_semcom_forward.1} parent=1 // pred_fallthru
      _
    // Predicated region
    $region142: #{transformer_semcom_forward.1} parent=1 // pred_check
      _
    $region143: #{transformer_semcom_forward.1} parent=1 // pred_check_branch
      %331 = sbr.rel (0) target = $region145
    $region144: #{transformer_semcom_forward.1} parent=1 // pred_region
      %332 = dma.done [#allocation13], 16384
    $region145: #{transformer_semcom_forward.1} parent=1 // pred_fallthru
      _
    // Predicated region
    $region146: #{transformer_semcom_forward.1} parent=1 // pred_check
      _
    $region147: #{transformer_semcom_forward.1} parent=1 // pred_check_branch
      %334 = sbr.rel (0) target = $region149
    $region148: #{transformer_semcom_forward.1} parent=1 // pred_region
      %335 = dma.done [#allocation16], 64
    $region149: #{transformer_semcom_forward.1} parent=1 // pred_fallthru
      _
    // Predicated region
    $region150: #{transformer_semcom_forward.1} parent=1 // pred_check
      _
    $region151: #{transformer_semcom_forward.1} parent=1 // pred_check_branch
      %337 = sbr.rel (0) target = $region153
    $region152: #{transformer_semcom_forward.1} parent=1 // pred_region
      %338 = dma.done [#allocation16], 64
    $region153: #{transformer_semcom_forward.1} parent=1 // pred_fallthru
      _
    // Predicated region
    $region154: #{transformer_semcom_forward.1} parent=1 // pred_check
      _
    $region155: #{transformer_semcom_forward.1} parent=1 // pred_check_branch
      %340 = sbr.rel (0) target = $region157
    $region156: #{transformer_semcom_forward.1} parent=1 // pred_region
      %341 = dma.done [#allocation19], 64
    $region157: #{transformer_semcom_forward.1} parent=1 // pred_fallthru
      _
    // Predicated region
    $region158: #{transformer_semcom_forward.1} parent=1 // pred_check
      _
    $region159: #{transformer_semcom_forward.1} parent=1 // pred_check_branch
      %343 = sbr.rel (0) target = $region161
    $region160: #{transformer_semcom_forward.1} parent=1 // pred_region
      %344 = dma.done [#allocation19], 4096
    $region161: #{transformer_semcom_forward.1} parent=1 // pred_fallthru
      _
    // Predicated region
    $region162: #{transformer_semcom_forward.1} parent=1 // pred_check
      _
    $region163: #{transformer_semcom_forward.1} parent=1 // pred_check_branch
      %346 = sbr.rel (0) target = $region165
    $region164: #{transformer_semcom_forward.1} parent=1 // pred_region
      %347 = dma.done [#allocation22], 64
    $region165: #{transformer_semcom_forward.1} parent=1 // pred_fallthru
      _
    // Predicated region
    $region166: #{transformer_semcom_forward.1} parent=1 // pred_check
      _
    $region167: #{transformer_semcom_forward.1} parent=1 // pred_check_branch
      %349 = sbr.rel (0) target = $region169
    $region168: #{transformer_semcom_forward.1} parent=1 // pred_region
      %350 = dma.done [#allocation22], 4096
    $region169: #{transformer_semcom_forward.1} parent=1 // pred_fallthru
      _
    // Predicated region
    $region170: #{transformer_semcom_forward.1} parent=1 // pred_check
      _
    $region171: #{transformer_semcom_forward.1} parent=1 // pred_check_branch
      %352 = sbr.rel (0) target = $region173
    $region172: #{transformer_semcom_forward.1} parent=1 // pred_region
      %353 = dma.done [#allocation25], 16
    $region173: #{transformer_semcom_forward.1} parent=1 // pred_fallthru
      _
    // Predicated region
    $region174: #{transformer_semcom_forward.1} parent=1 // pred_check
      _
    $region175: #{transformer_semcom_forward.1} parent=1 // pred_check_branch
      %355 = sbr.rel (0) target = $region177
    $region176: #{transformer_semcom_forward.1} parent=1 // pred_region
      %356 = dma.done [#allocation25], 4096
    $region177: #{transformer_semcom_forward.1} parent=1 // pred_fallthru
      _
    // Predicated region
    $region178: #{transformer_semcom_forward.1} parent=1 // pred_check
      _
    $region179: #{transformer_semcom_forward.1} parent=1 // pred_check_branch
      %358 = sbr.rel (0) target = $region181
    $region180: #{transformer_semcom_forward.1} parent=1 // pred_region
      %359 = dma.done [#allocation28], 64
    $region181: #{transformer_semcom_forward.1} parent=1 // pred_fallthru
      _
    // Predicated region
    $region182: #{transformer_semcom_forward.1} parent=1 // pred_check
      _
    $region183: #{transformer_semcom_forward.1} parent=1 // pred_check_branch
      %361 = sbr.rel (0) target = $region185
    $region184: #{transformer_semcom_forward.1} parent=1 // pred_region
      %362 = dma.done [#allocation28], 4096
    $region185: #{transformer_semcom_forward.1} parent=1 // pred_fallthru
      _
    // Predicated region
    $region186: #{transformer_semcom_forward.1} parent=1 // pred_check
      _
    $region187: #{transformer_semcom_forward.1} parent=1 // pred_check_branch
      %364 = sbr.rel (0) target = $region189
    $region188: #{transformer_semcom_forward.1} parent=1 // pred_region
      %365 = dma.done [#allocation31], 16
    $region189: #{transformer_semcom_forward.1} parent=1 // pred_fallthru
      _
    %v367 = vld [vmem:[%s3] sm:$0xff]
    %v368 = vld [vmem:[%s3 + $0x8] sm:$0xff]
    %v369 = vpack.c.bf16 %v368, %v367
    %v370 = vld [vmem:[%s5] sm:$0xf]
    %v371 = vld [vmem:[%s5 + $0x4] sm:$0xf]
    %v372 = vld [vmem:[%s5 + $0x8] sm:$0xf]
    %v373 = vld [vmem:[%s5 + $0xc] sm:$0xf]
    %v374 = vld [vmem:[%s5 + $0x10] sm:$0xf]
    %v375 = vld [vmem:[%s5 + $0x14] sm:$0xf]
    %v376 = vld [vmem:[%s5 + $0x18] sm:$0xf]
    %v377 = vld [vmem:[%s5 + $0x1c] sm:$0xf]
    %v378 = vld [vmem:[%s5 + $0x20] sm:$0xf]
    %v379 = vld [vmem:[%s5 + $0x24] sm:$0xf]
    %v380 = vld [vmem:[%s5 + $0x28] sm:$0xf]
    %v381 = vld [vmem:[%s5 + $0x2c] sm:$0xf]
    %v382 = vld [vmem:[%s7] sm:$0x1]
    %v384 = vlaneseq
    %v385 = vshrl.u32 %v384, 7
    %v386 = vsub.s32 0, %v385
    %v387 = vrot.slane %v382, %v386
    %v401 = vunpack.c.l.b16 %v370
    %v402 = vunpack.c.l.b16 %v371
    %v403 = vunpack.c.l.b16 %v372
    %v404 = vunpack.c.l.b16 %v373
    %v405 = vunpack.c.l.b16 %v374
    %v406 = vunpack.c.l.b16 %v375
    %v407 = vunpack.c.l.b16 %v376
    %v408 = vunpack.c.l.b16 %v377
    %v409 = vunpack.c.l.b16 %v378
    %v410 = vunpack.c.l.b16 %v379
    %v411 = vunpack.c.l.b16 %v380
    %v412 = vunpack.c.l.b16 %v381
    %v413 = vpack.c.b16 %v402, %v401
    %v414 = vpack.c.b16 %v404, %v403
    %v415 = vpack.c.b16 %v406, %v405
    %v416 = vpack.c.b16 %v408, %v407
    %v417 = vpack.c.b16 %v410, %v409
    %v418 = vpack.c.b16 %v412, %v411
    %vm425 = vcmask 785408
    %v427 = vsel %vm425, %v369, 0
    %429 = vmatprep.subr.bf16.mxu0 0
    %430 = vmatpush1.bf16.msra.mxu0 %v413
    %431 = vmatprep.subr.bf16.mxu0 0
    %432 = vmatpush1.bf16.msra.mxu0 %v414
    %433 = vmatprep.subr.bf16.mxu0 0
    %434 = vmatpush1.bf16.msra.mxu0 %v415
    %435 = vmatprep.subr.bf16.mxu0 0
    %436 = vmatpush1.bf16.msra.mxu0 %v416
    %437 = vmatprep.subr.bf16.mxu0 0
    %438 = vmatpush1.bf16.msra.mxu0 %v417
    %439 = vmatprep.subr.bf16.mxu0 0
    %440 = vmatpush1.bf16.msra.mxu0 %v418
    %441 = vmatprep.subr.bf16.mxu0 0
    %442 = vmatpush1.bf16.msra.mxu0 0
    %443 = vmatprep.subr.bf16.mxu0 0
    %444 = vmatpush1.bf16.msra.mxu0 0
    %445 = vmatprep.subr.bf16.mxu0 0
    %446 = vmatpush1.bf16.msra.mxu0 0
    %447 = vmatprep.subr.bf16.mxu0 0
    %448 = vmatpush1.bf16.msra.mxu0 0
    %449 = vmatprep.subr.bf16.mxu0 0
    %450 = vmatpush1.bf16.msra.mxu0 0
    %451 = vmatprep.subr.bf16.mxu0 0
    %452 = vmatpush1.bf16.msra.mxu0 0
    %453 = vmatprep.subr.bf16.mxu0 0
    %454 = vmatpush1.bf16.msra.mxu0 0
    %455 = vmatprep.subr.bf16.mxu0 0
    %456 = vmatpush1.bf16.msra.mxu0 0
    %457 = vmatprep.subr.bf16.mxu0 0
    %458 = vmatpush1.bf16.msra.mxu0 0
    %459 = vmatprep.subr.bf16.mxu0 0
    %460 = vmatpush1.bf16.msra.mxu0 0
    %461 = vmatprep.mubr.bf16.mxu0 0
    %462 = vmatmul.mubr.bf16.gmra.mrb[0].mxu0 %v427
    %v463 = vpop.f32.mrb[0].mxu0
    %v464 = vadd.f32 %v387, %v463
    %v465 = vpop.f32.mrb[0].mxu0
    %v466 = vpop.f32.mrb[0].mxu0
    %v467 = vadd.f32 %v387, %v466
    %v468 = vpop.f32.mrb[0].mxu0
    %469 = vdwg.mxu0
    %v470 = vlaneseq
    %v471 = vand.u32 %v470, 127
    %vm472 = vcmp.lt.s32.totalorder %v471, 96
    %v473 = vsel %vm472, 1, 0
    %v474 = vcvt.s32.f32 %v473
    %v475 = vmul.f32 %v464, %v474
    %v476 = vmul.f32 %v467, %v474
    %477 = vadd.xlane.f32.xlu0 %v475
    %v478 = vpop.xlane.xlu0 %477
    %479 = vadd.xlane.f32.xlu0 %v476
    %v480 = vpop.xlane.xlu0 %479
    %v481 = vmul.f32 %v478, 0.010416667
    %v482 = vmul.f32 %v480, 0.010416667
    %v483 = vsub.f32 %v464, %v481
    %v484 = vsub.f32 %v467, %v482
    %v485 = vmul.f32 %v483, %v474
    %v486 = vmul.f32 %v484, %v474
    %v487 = vmul.f32 %v485, %v485
    %v488 = vmul.f32 %v486, %v486
    %489 = vadd.xlane.f32.xlu0 %v487
    %v490 = vpop.xlane.xlu0 %489
    %491 = vadd.xlane.f32.xlu0 %v488
    %v492 = vpop.xlane.xlu0 %491
    %v493 = vmul.f32 %v490, 0.010416667
    %v494 = vmul.f32 %v492, 0.010416667
    %v495 = vadd.f32 %v493, 1e-05
    %v496 = vadd.f32 %v494, 1e-05
    %v497 = vrsqrt.pop %v495
    %v498 = vrsqrt.pop %v496
    %v499 = vmul.f32 %v485, %v497
    %v500 = vmul.f32 %v486, %v498
    %v501 = vld [vmem:[%s9] sm:$0x1]
    %v503 = vlaneseq
    %v504 = vshrl.u32 %v503, 7
    %v505 = vsub.s32 0, %v504
    %v506 = vrot.slane %v501, %v505
    %v508 = vmul.f32 %v499, %v506
    %v509 = vmul.f32 %v500, %v506
    %v510 = vld [vmem:[%s11] sm:$0x1]
    %v512 = vlaneseq
    %v513 = vshrl.u32 %v512, 7
    %v514 = vsub.s32 0, %v513
    %v515 = vrot.slane %v510, %v514
    %v517 = vadd.f32 %v508, %v515
    %v518 = vadd.f32 %v509, %v515
    %v519 = vsub.f32 1.0, %v474
    %v520 = vmul.f32 %v464, %v519
    %v521 = vmul.f32 %v467, %v519
    %v522 = vadd.f32 %v517, %v520
    %v523 = vadd.f32 %v518, %v521
    %v524 = vpack.c.bf16 %v523, %v522
    %v525 = vld [vmem:[#allocation3] sm:$0xff]
    %v526 = vld [vmem:[#allocation3 + $0x8] sm:$0xf]
    %v527 = vld [vmem:[#allocation3 + $0xc] sm:$0xff]
    %v528 = vld [vmem:[#allocation3 + $0x14] sm:$0xf]
    %v529 = vld [vmem:[#allocation3 + $0x18] sm:$0xff]
    %v530 = vld [vmem:[#allocation3 + $0x20] sm:$0xf]
    %v531 = vld [vmem:[#allocation3 + $0x24] sm:$0xff]
    %v532 = vld [vmem:[#allocation3 + $0x2c] sm:$0xf]
    %v533 = vld [vmem:[#allocation3 + $0x30] sm:$0xff]
    %v534 = vld [vmem:[#allocation3 + $0x38] sm:$0xf]
    %v535 = vld [vmem:[#allocation3 + $0x3c] sm:$0xff]
    %v536 = vld [vmem:[#allocation3 + $0x44] sm:$0xf]
    %v537 = vld [vmem:[#allocation3 + $0x48] sm:$0xff]
    %v538 = vld [vmem:[#allocation3 + $0x50] sm:$0xf]
    %v539 = vld [vmem:[#allocation3 + $0x54] sm:$0xff]
    %v540 = vld [vmem:[#allocation3 + $0x5c] sm:$0xf]
    %v541 = vld [vmem:[#allocation3 + $0x60] sm:$0xff]
    %v542 = vld [vmem:[#allocation3 + $0x68] sm:$0xf]
    %v543 = vld [vmem:[#allocation3 + $0x6c] sm:$0xff]
    %v544 = vld [vmem:[#allocation3 + $0x74] sm:$0xf]
    %v545 = vld [vmem:[#allocation3 + $0x78] sm:$0xff]
    %v546 = vld [vmem:[#allocation3 + $0x80] sm:$0xf]
    %v547 = vld [vmem:[#allocation3 + $0x84] sm:$0xff]
    %v548 = vld [vmem:[#allocation3 + $0x8c] sm:$0xf]
    %v549 = vld [vmem:[#allocation3 + $0x90] sm:$0xff]
    %v550 = vld [vmem:[#allocation3 + $0x98] sm:$0xf]
    %v551 = vld [vmem:[#allocation3 + $0x9c] sm:$0xff]
    %v552 = vld [vmem:[#allocation3 + $0xa4] sm:$0xf]
    %v553 = vld [vmem:[#allocation3 + $0xa8] sm:$0xff]
    %v554 = vld [vmem:[#allocation3 + $0xb0] sm:$0xf]
    %v555 = vld [vmem:[#allocation3 + $0xb4] sm:$0xff]
    %v556 = vld [vmem:[#allocation3 + $0xbc] sm:$0xf]
    %v557 = vld [vmem:[%s17] sm:$0x7]
    %v559 = vlaneseq
    %v560 = vshrl.u32 %v559, 7
    %v561 = vsub.s32 0, %v560
    %v562 = vrot.slane %v557, %v561
    %v563 = vlaneseq
    %v564 = vshrl.u32 %v563, 7
    %v565 = vsub.s32 1, %v564
    %v566 = vrot.slane %v557, %v565
    %v567 = vlaneseq
    %v568 = vshrl.u32 %v567, 7
    %v569 = vsub.s32 2, %v568
    %v570 = vrot.slane %v557, %v569
    %v606 = vunpack.c.l.b16 %v525
    %v607 = vunpack.c.h.b16 %v525
    %v608 = vunpack.c.l.b16 %v526
    %v609 = vunpack.c.l.b16 %v527
    %v610 = vunpack.c.h.b16 %v527
    %v611 = vunpack.c.l.b16 %v528
    %v612 = vunpack.c.l.b16 %v529
    %v613 = vunpack.c.h.b16 %v529
    %v614 = vunpack.c.l.b16 %v530
    %v615 = vunpack.c.l.b16 %v531
    %v616 = vunpack.c.h.b16 %v531
    %v617 = vunpack.c.l.b16 %v532
    %v618 = vunpack.c.l.b16 %v533
    %v619 = vunpack.c.h.b16 %v533
    %v620 = vunpack.c.l.b16 %v534
    %v621 = vunpack.c.l.b16 %v535
    %v622 = vunpack.c.h.b16 %v535
    %v623 = vunpack.c.l.b16 %v536
    %v624 = vunpack.c.l.b16 %v537
    %v625 = vunpack.c.h.b16 %v537
    %v626 = vunpack.c.l.b16 %v538
    %v627 = vunpack.c.l.b16 %v539
    %v628 = vunpack.c.h.b16 %v539
    %v629 = vunpack.c.l.b16 %v540
    %v630 = vunpack.c.l.b16 %v541
    %v631 = vunpack.c.h.b16 %v541
    %v632 = vunpack.c.l.b16 %v542
    %v633 = vunpack.c.l.b16 %v543
    %v634 = vunpack.c.h.b16 %v543
    %v635 = vunpack.c.l.b16 %v544
    %v636 = vunpack.c.l.b16 %v545
    %v637 = vunpack.c.h.b16 %v545
    %v638 = vunpack.c.l.b16 %v546
    %v639 = vunpack.c.l.b16 %v547
    %v640 = vunpack.c.h.b16 %v547
    %v641 = vunpack.c.l.b16 %v548
    %v642 = vunpack.c.l.b16 %v549
    %v643 = vunpack.c.h.b16 %v549
    %v644 = vunpack.c.l.b16 %v550
    %v645 = vunpack.c.l.b16 %v551
    %v646 = vunpack.c.h.b16 %v551
    %v647 = vunpack.c.l.b16 %v552
    %v648 = vunpack.c.l.b16 %v553
    %v649 = vunpack.c.h.b16 %v553
    %v650 = vunpack.c.l.b16 %v554
    %v651 = vunpack.c.l.b16 %v555
    %v652 = vunpack.c.h.b16 %v555
    %v653 = vunpack.c.l.b16 %v556
    %v654 = vpack.c.b16 %v609, %v606
    %v655 = vpack.c.b16 %v610, %v607
    %v656 = vpack.c.b16 %v611, %v608
    %v657 = vpack.c.b16 %v615, %v612
    %v658 = vpack.c.b16 %v616, %v613
    %v659 = vpack.c.b16 %v617, %v614
    %v660 = vpack.c.b16 %v621, %v618
    %v661 = vpack.c.b16 %v622, %v619
    %v662 = vpack.c.b16 %v623, %v620
    %v663 = vpack.c.b16 %v627, %v624
    %v664 = vpack.c.b16 %v628, %v625
    %v665 = vpack.c.b16 %v629, %v626
    %v666 = vpack.c.b16 %v633, %v630
    %v667 = vpack.c.b16 %v634, %v631
    %v668 = vpack.c.b16 %v635, %v632
    %v669 = vpack.c.b16 %v639, %v636
    %v670 = vpack.c.b16 %v640, %v637
    %v671 = vpack.c.b16 %v641, %v638
    %v672 = vpack.c.b16 %v645, %v642
    %v673 = vpack.c.b16 %v646, %v643
    %v674 = vpack.c.b16 %v647, %v644
    %v675 = vpack.c.b16 %v651, %v648
    %v676 = vpack.c.b16 %v652, %v649
    %v677 = vpack.c.b16 %v653, %v650
    %702 = vmatprep.subr.bf16.mxu0 %v655
    %703 = vmatpush1.bf16.msra.mxu0 %v654
    %704 = vmatprep.subr.bf16.mxu0 %v658
    %705 = vmatpush1.bf16.msra.mxu0 %v657
    %706 = vmatprep.subr.bf16.mxu0 %v661
    %707 = vmatpush1.bf16.msra.mxu0 %v660
    %708 = vmatprep.subr.bf16.mxu0 %v664
    %709 = vmatpush1.bf16.msra.mxu0 %v663
    %710 = vmatprep.subr.bf16.mxu0 %v667
    %711 = vmatpush1.bf16.msra.mxu0 %v666
    %712 = vmatprep.subr.bf16.mxu0 %v670
    %713 = vmatpush1.bf16.msra.mxu0 %v669
    %714 = vmatprep.subr.bf16.mxu0 %v673
    %715 = vmatpush1.bf16.msra.mxu0 %v672
    %716 = vmatprep.subr.bf16.mxu0 %v676
    %717 = vmatpush1.bf16.msra.mxu0 %v675
    %718 = vmatprep.subr.bf16.mxu0 0
    %719 = vmatpush1.bf16.msra.mxu0 0
    %720 = vmatprep.subr.bf16.mxu0 0
    %721 = vmatpush1.bf16.msra.mxu0 0
    %722 = vmatprep.subr.bf16.mxu0 0
    %723 = vmatpush1.bf16.msra.mxu0 0
    %724 = vmatprep.subr.bf16.mxu0 0
    %725 = vmatpush1.bf16.msra.mxu0 0
    %726 = vmatprep.subr.bf16.mxu0 0
    %727 = vmatpush1.bf16.msra.mxu0 0
    %728 = vmatprep.subr.bf16.mxu0 0
    %729 = vmatpush1.bf16.msra.mxu0 0
    %730 = vmatprep.subr.bf16.mxu0 0
    %731 = vmatpush1.bf16.msra.mxu0 0
    %732 = vmatprep.subr.bf16.mxu0 0
    %733 = vmatpush1.bf16.msra.mxu0 0
    %734 = vmatprep.mubr.bf16.mxu0 0
    %735 = vmatmul.mubr.bf16.gmra.mrb[0].mxu0 %v524
    %v736 = vpop.f32.mrb[0].mxu0
    %v737 = vadd.f32 %v562, %v736
    %v738 = vpop.f32.mrb[0].mxu0
    %v739 = vadd.f32 %v566, %v738
    %v740 = vpop.f32.mrb[0].mxu0
    %v741 = vadd.f32 %v562, %v740
    %v742 = vpop.f32.mrb[0].mxu0
    %v743 = vadd.f32 %v566, %v742
    %744 = vdwg.mxu0
    %745 = vmatprep.subr.bf16.mxu0 0
    %746 = vmatpush1.bf16.msra.mxu0 %v656
    %747 = vmatprep.subr.bf16.mxu0 0
    %748 = vmatpush1.bf16.msra.mxu0 %v659
    %749 = vmatprep.subr.bf16.mxu0 0
    %750 = vmatpush1.bf16.msra.mxu0 %v662
    %751 = vmatprep.subr.bf16.mxu0 0
    %752 = vmatpush1.bf16.msra.mxu0 %v665
    %753 = vmatprep.subr.bf16.mxu0 0
    %754 = vmatpush1.bf16.msra.mxu0 %v668
    %755 = vmatprep.subr.bf16.mxu0 0
    %756 = vmatpush1.bf16.msra.mxu0 %v671
    %757 = vmatprep.subr.bf16.mxu0 0
    %758 = vmatpush1.bf16.msra.mxu0 %v674
    %759 = vmatprep.subr.bf16.mxu0 0
    %760 = vmatpush1.bf16.msra.mxu0 %v677
    %761 = vmatprep.subr.bf16.mxu0 0
    %762 = vmatpush1.bf16.msra.mxu0 0
    %763 = vmatprep.subr.bf16.mxu0 0
    %764 = vmatpush1.bf16.msra.mxu0 0
    %765 = vmatprep.subr.bf16.mxu0 0
    %766 = vmatpush1.bf16.msra.mxu0 0
    %767 = vmatprep.subr.bf16.mxu0 0
    %768 = vmatpush1.bf16.msra.mxu0 0
    %769 = vmatprep.subr.bf16.mxu0 0
    %770 = vmatpush1.bf16.msra.mxu0 0
    %771 = vmatprep.subr.bf16.mxu0 0
    %772 = vmatpush1.bf16.msra.mxu0 0
    %773 = vmatprep.subr.bf16.mxu0 0
    %774 = vmatpush1.bf16.msra.mxu0 0
    %775 = vmatprep.subr.bf16.mxu0 0
    %776 = vmatpush1.bf16.msra.mxu0 0
    %777 = vmatprep.mubr.bf16.mxu0 0
    %778 = vmatmul.mubr.bf16.gmra.mrb[0].mxu0 %v524
    %v779 = vpop.f32.mrb[0].mxu0
    %v780 = vadd.f32 %v570, %v779
    %v781 = vpop.f32.mrb[0].mxu0
    %v782 = vpop.f32.mrb[0].mxu0
    %v783 = vadd.f32 %v570, %v782
    %v784 = vpop.f32.mrb[0].mxu0
    %785 = vdwg.mxu0
    %v786 = vpack.c.bf16 %v737, %v737
    %v787 = vpack.c.bf16 %v739, %v739
    %v788 = vpack.c.bf16 %v780, %v780
    %v789 = vpack.c.bf16 %v741, %v741
    %v790 = vpack.c.bf16 %v743, %v743
    %v791 = vpack.c.bf16 %v783, %v783
    %v792 = vld [vmem:[#allocation6] sm:$0xf]
    %v793 = vld [vmem:[#allocation6 + $0x4] sm:$0xf]
    %v794 = vld [vmem:[#allocation6 + $0x8] sm:$0xf]
    %v795 = vld [vmem:[#allocation6 + $0xc] sm:$0xf]
    %v796 = vld [vmem:[#allocation6 + $0x10] sm:$0xf]
    %v797 = vld [vmem:[#allocation6 + $0x14] sm:$0xf]
    %v798 = vld [vmem:[#allocation6 + $0x18] sm:$0xf]
    %v799 = vld [vmem:[#allocation6 + $0x1c] sm:$0xf]
    %v800 = vld [vmem:[#allocation6 + $0x20] sm:$0xf]
    %v801 = vld [vmem:[#allocation6 + $0x24] sm:$0xf]
    %v802 = vld [vmem:[#allocation6 + $0x28] sm:$0xf]
    %v803 = vld [vmem:[#allocation6 + $0x2c] sm:$0xf]
    %v804 = vld [vmem:[#allocation6 + $0x30] sm:$0xf]
    %v805 = vld [vmem:[#allocation6 + $0x34] sm:$0xf]
    %v806 = vld [vmem:[#allocation6 + $0x38] sm:$0xf]
    %v807 = vld [vmem:[#allocation6 + $0x3c] sm:$0xf]
    %vm808 = vcmask 261120
    %v810 = vsel %vm808, %v786, 0
    %v813 = vsel %vm808, %v787, 0
    %815 = vmatprep.subr.bf16.mxu0 0
    %816 = vmatpush1.bf16.xpose.msra.mxu0 %v813
    %817 = vmatprep.subr.bf16.mxu0 0
    %818 = vmatpush1.bf16.xpose.msra.mxu0 0
    %819 = vmatprep.subr.bf16.mxu0 0
    %820 = vmatpush1.bf16.xpose.msra.mxu0 0
    %821 = vmatprep.subr.bf16.mxu0 0
    %822 = vmatpush1.bf16.xpose.msra.mxu0 0
    %823 = vmatprep.subr.bf16.mxu0 0
    %824 = vmatpush1.bf16.xpose.msra.mxu0 0
    %825 = vmatprep.subr.bf16.mxu0 0
    %826 = vmatpush1.bf16.xpose.msra.mxu0 0
    %827 = vmatprep.subr.bf16.mxu0 0
    %828 = vmatpush1.bf16.xpose.msra.mxu0 0
    %829 = vmatprep.subr.bf16.mxu0 0
    %830 = vmatpush1.bf16.xpose.msra.mxu0 0
    %831 = vmatprep.subr.bf16.mxu0 0
    %832 = vmatpush1.bf16.xpose.msra.mxu0 0
    %833 = vmatprep.subr.bf16.mxu0 0
    %834 = vmatpush1.bf16.xpose.msra.mxu0 0
    %835 = vmatprep.subr.bf16.mxu0 0
    %836 = vmatpush1.bf16.xpose.msra.mxu0 0
    %837 = vmatprep.subr.bf16.mxu0 0
    %838 = vmatpush1.bf16.xpose.msra.mxu0 0
    %839 = vmatprep.subr.bf16.mxu0 0
    %840 = vmatpush1.bf16.xpose.msra.mxu0 0
    %841 = vmatprep.subr.bf16.mxu0 0
    %842 = vmatpush1.bf16.xpose.msra.mxu0 0
    %843 = vmatprep.subr.bf16.mxu0 0
    %844 = vmatpush1.bf16.xpose.msra.mxu0 0
    %845 = vmatprep.subr.bf16.mxu0 0
    %846 = vmatpush1.bf16.xpose.msra.mxu0 0
    %847 = vmatprep.mubr.bf16.mxu0 0
    %848 = vmatmul.mubr.bf16.gmra.mrb[0].mxu0 %v810
    %v849 = vpop.f32.mrb[0].mxu0
    %v850 = vadd.f32 0.0, %v849
    %v851 = vpop.f32.mrb[0].mxu0
    %v852 = vpop.f32.mrb[0].mxu0
    %v853 = vpop.f32.mrb[0].mxu0
    %854 = vdwg.mxu0
    %v856 = vsel %vm808, %v789, 0
    %v859 = vsel %vm808, %v790, 0
    %861 = vmatprep.subr.bf16.mxu0 0
    %862 = vmatpush1.bf16.xpose.msra.mxu0 %v859
    %863 = vmatprep.subr.bf16.mxu0 0
    %864 = vmatpush1.bf16.xpose.msra.mxu0 0
    %865 = vmatprep.subr.bf16.mxu0 0
    %866 = vmatpush1.bf16.xpose.msra.mxu0 0
    %867 = vmatprep.subr.bf16.mxu0 0
    %868 = vmatpush1.bf16.xpose.msra.mxu0 0
    %869 = vmatprep.subr.bf16.mxu0 0
    %870 = vmatpush1.bf16.xpose.msra.mxu0 0
    %871 = vmatprep.subr.bf16.mxu0 0
    %872 = vmatpush1.bf16.xpose.msra.mxu0 0
    %873 = vmatprep.subr.bf16.mxu0 0
    %874 = vmatpush1.bf16.xpose.msra.mxu0 0
    %875 = vmatprep.subr.bf16.mxu0 0
    %876 = vmatpush1.bf16.xpose.msra.mxu0 0
    %877 = vmatprep.subr.bf16.mxu0 0
    %878 = vmatpush1.bf16.xpose.msra.mxu0 0
    %879 = vmatprep.subr.bf16.mxu0 0
    %880 = vmatpush1.bf16.xpose.msra.mxu0 0
    %881 = vmatprep.subr.bf16.mxu0 0
    %882 = vmatpush1.bf16.xpose.msra.mxu0 0
    %883 = vmatprep.subr.bf16.mxu0 0
    %884 = vmatpush1.bf16.xpose.msra.mxu0 0
    %885 = vmatprep.subr.bf16.mxu0 0
    %886 = vmatpush1.bf16.xpose.msra.mxu0 0
    %887 = vmatprep.subr.bf16.mxu0 0
    %888 = vmatpush1.bf16.xpose.msra.mxu0 0
    %889 = vmatprep.subr.bf16.mxu0 0
    %890 = vmatpush1.bf16.xpose.msra.mxu0 0
    %891 = vmatprep.subr.bf16.mxu0 0
    %892 = vmatpush1.bf16.xpose.msra.mxu0 0
    %893 = vmatprep.mubr.bf16.mxu0 0
    %894 = vmatmul.mubr.bf16.gmra.mrb[0].mxu0 %v856
    %v895 = vpop.f32.mrb[0].mxu0
    %v896 = vadd.f32 0.0, %v895
    %v897 = vpop.f32.mrb[0].mxu0
    %v898 = vpop.f32.mrb[0].mxu0
    %v899 = vpop.f32.mrb[0].mxu0
    %900 = vdwg.mxu0
    %v901 = vmul.f32 %v850, 0.17677669
    %v902 = vmul.f32 %v896, 0.17677669
    %vm903 = vcmask 64512
    %v904 = vsel %vm903, %v901, -inf
    %905 = vmax.xlane.f32.xlu0 %v904
    %v906 = vpop.xlane.xlu0 %905
    %v907 = vsel %vm903, %v902, -inf
    %908 = vmax.xlane.f32.xlu0 %v907
    %v909 = vpop.xlane.xlu0 %908
    %v910 = vsub.f32 %v901, %v906
    %v911 = vsub.f32 %v902, %v909
    %v912 = vmul.f32 %v910, 1.442695
    %v913 = vpow.pop %v912
    %v914 = vmul.f32 %v911, 1.442695
    %v915 = vpow.pop %v914
    %v916 = vsel %vm903, %v913, 0.0
    %917 = vadd.xlane.f32.xlu0 %v916
    %v918 = vpop.xlane.xlu0 %917
    %v919 = vsel %vm903, %v915, 0.0
    %920 = vadd.xlane.f32.xlu0 %v919
    %v921 = vpop.xlane.xlu0 %920
    %v922 = vrcp.pop %v918
    %v923 = vrcp.pop %v921
    %v924 = vmul.f32 %v913, %v922
    %v925 = vmul.f32 %v915, %v923
    %v926 = vpack.c.bf16 %v924, %v924
    %v927 = vpack.c.bf16 %v925, %v925
    %v929 = vsel %vm903, %v926, 0
    %vm931 = vcmask 1043456
    %v933 = vsel %vm931, %v788, 0
    %935 = vmatprep.subr.bf16.mxu0 0
    %936 = vmatpush1.bf16.msra.mxu0 %v933
    %937 = vmatprep.subr.bf16.mxu0 0
    %938 = vmatpush1.bf16.msra.mxu0 0
    %939 = vmatprep.subr.bf16.mxu0 0
    %940 = vmatpush1.bf16.msra.mxu0 0
    %941 = vmatprep.subr.bf16.mxu0 0
    %942 = vmatpush1.bf16.msra.mxu0 0
    %943 = vmatprep.subr.bf16.mxu0 0
    %944 = vmatpush1.bf16.msra.mxu0 0
    %945 = vmatprep.subr.bf16.mxu0 0
    %946 = vmatpush1.bf16.msra.mxu0 0
    %947 = vmatprep.subr.bf16.mxu0 0
    %948 = vmatpush1.bf16.msra.mxu0 0
    %949 = vmatprep.subr.bf16.mxu0 0
    %950 = vmatpush1.bf16.msra.mxu0 0
    %951 = vmatprep.subr.bf16.mxu0 0
    %952 = vmatpush1.bf16.msra.mxu0 0
    %953 = vmatprep.subr.bf16.mxu0 0
    %954 = vmatpush1.bf16.msra.mxu0 0
    %955 = vmatprep.subr.bf16.mxu0 0
    %956 = vmatpush1.bf16.msra.mxu0 0
    %957 = vmatprep.subr.bf16.mxu0 0
    %958 = vmatpush1.bf16.msra.mxu0 0
    %959 = vmatprep.subr.bf16.mxu0 0
    %960 = vmatpush1.bf16.msra.mxu0 0
    %961 = vmatprep.subr.bf16.mxu0 0
    %962 = vmatpush1.bf16.msra.mxu0 0
    %963 = vmatprep.subr.bf16.mxu0 0
    %964 = vmatpush1.bf16.msra.mxu0 0
    %965 = vmatprep.subr.bf16.mxu0 0
    %966 = vmatpush1.bf16.msra.mxu0 0
    %967 = vmatprep.mubr.bf16.mxu0 0
    %968 = vmatmul.mubr.bf16.gmra.mrb[0].mxu0 %v929
    %v969 = vpop.f32.mrb[0].mxu0
    %v970 = vadd.f32 0.0, %v969
    %v971 = vpop.f32.mrb[0].mxu0
    %v972 = vpop.f32.mrb[0].mxu0
    %v973 = vpop.f32.mrb[0].mxu0
    %974 = vdwg.mxu0
    %v976 = vsel %vm903, %v927, 0
    %v979 = vsel %vm931, %v791, 0
    %981 = vmatprep.subr.bf16.mxu0 0
    %982 = vmatpush1.bf16.msra.mxu0 %v979
    %983 = vmatprep.subr.bf16.mxu0 0
    %984 = vmatpush1.bf16.msra.mxu0 0
    %985 = vmatprep.subr.bf16.mxu0 0
    %986 = vmatpush1.bf16.msra.mxu0 0
    %987 = vmatprep.subr.bf16.mxu0 0
    %988 = vmatpush1.bf16.msra.mxu0 0
    %989 = vmatprep.subr.bf16.mxu0 0
    %990 = vmatpush1.bf16.msra.mxu0 0
    %991 = vmatprep.subr.bf16.mxu0 0
    %992 = vmatpush1.bf16.msra.mxu0 0
    %993 = vmatprep.subr.bf16.mxu0 0
    %994 = vmatpush1.bf16.msra.mxu0 0
    %995 = vmatprep.subr.bf16.mxu0 0
    %996 = vmatpush1.bf16.msra.mxu0 0
    %997 = vmatprep.subr.bf16.mxu0 0
    %998 = vmatpush1.bf16.msra.mxu0 0
    %999 = vmatprep.subr.bf16.mxu0 0
    %1000 = vmatpush1.bf16.msra.mxu0 0
    %1001 = vmatprep.subr.bf16.mxu0 0
    %1002 = vmatpush1.bf16.msra.mxu0 0
    %1003 = vmatprep.subr.bf16.mxu0 0
    %1004 = vmatpush1.bf16.msra.mxu0 0
    %1005 = vmatprep.subr.bf16.mxu0 0
    %1006 = vmatpush1.bf16.msra.mxu0 0
    %1007 = vmatprep.subr.bf16.mxu0 0
    %1008 = vmatpush1.bf16.msra.mxu0 0
    %1009 = vmatprep.subr.bf16.mxu0 0
    %1010 = vmatpush1.bf16.msra.mxu0 0
    %1011 = vmatprep.subr.bf16.mxu0 0
    %1012 = vmatpush1.bf16.msra.mxu0 0
    %1013 = vmatprep.mubr.bf16.mxu0 0
    %1014 = vmatmul.mubr.bf16.gmra.mrb[0].mxu0 %v976
    %v1015 = vpop.f32.mrb[0].mxu0
    %v1016 = vadd.f32 0.0, %v1015
    %v1017 = vpop.f32.mrb[0].mxu0
    %v1018 = vpop.f32.mrb[0].mxu0
    %v1019 = vpop.f32.mrb[0].mxu0
    %1020 = vdwg.mxu0
    %v1021 = vpack.c.bf16 %v1016, %v970
    %1023 = vrot.lane.b32.xlu0 %v786, 96
    %v1024 = vpop.permute.xlu0 %1023
    %1026 = vrot.lane.b32.xlu0 %v787, 96
    %v1027 = vpop.permute.xlu0 %1026
    %v1029 = vsel %vm808, %v1024, 0
    %v1032 = vsel %vm808, %v1027, 0
    %1034 = vmatprep.subr.bf16.mxu0 0
    %1035 = vmatpush1.bf16.xpose.msra.mxu0 %v1032
    %1036 = vmatprep.subr.bf16.mxu0 0
    %1037 = vmatpush1.bf16.xpose.msra.mxu0 0
    %1038 = vmatprep.subr.bf16.mxu0 0
    %1039 = vmatpush1.bf16.xpose.msra.mxu0 0
    %1040 = vmatprep.subr.bf16.mxu0 0
    %1041 = vmatpush1.bf16.xpose.msra.mxu0 0
    %1042 = vmatprep.subr.bf16.mxu0 0
    %1043 = vmatpush1.bf16.xpose.msra.mxu0 0
    %1044 = vmatprep.subr.bf16.mxu0 0
    %1045 = vmatpush1.bf16.xpose.msra.mxu0 0
    %1046 = vmatprep.subr.bf16.mxu0 0
    %1047 = vmatpush1.bf16.xpose.msra.mxu0 0
    %1048 = vmatprep.subr.bf16.mxu0 0
    %1049 = vmatpush1.bf16.xpose.msra.mxu0 0
    %1050 = vmatprep.subr.bf16.mxu0 0
    %1051 = vmatpush1.bf16.xpose.msra.mxu0 0
    %1052 = vmatprep.subr.bf16.mxu0 0
    %1053 = vmatpush1.bf16.xpose.msra.mxu0 0
    %1054 = vmatprep.subr.bf16.mxu0 0
    %1055 = vmatpush1.bf16.xpose.msra.mxu0 0
    %1056 = vmatprep.subr.bf16.mxu0 0
    %1057 = vmatpush1.bf16.xpose.msra.mxu0 0
    %1058 = vmatprep.subr.bf16.mxu0 0
    %1059 = vmatpush1.bf16.xpose.msra.mxu0 0
    %1060 = vmatprep.subr.bf16.mxu0 0
    %1061 = vmatpush1.bf16.xpose.msra.mxu0 0
    %1062 = vmatprep.subr.bf16.mxu0 0
    %1063 = vmatpush1.bf16.xpose.msra.mxu0 0
    %1064 = vmatprep.subr.bf16.mxu0 0
    %1065 = vmatpush1.bf16.xpose.msra.mxu0 0
    %1066 = vmatprep.mubr.bf16.mxu0 0
    %1067 = vmatmul.mubr.bf16.gmra.mrb[0].mxu0 %v1029
    %v1068 = vpop.f32.mrb[0].mxu0
    %v1069 = vadd.f32 0.0, %v1068
    %v1070 = vpop.f32.mrb[0].mxu0
    %v1071 = vpop.f32.mrb[0].mxu0
    %v1072 = vpop.f32.mrb[0].mxu0
    %1073 = vdwg.mxu0
    %1075 = vrot.lane.b32.xlu0 %v789, 96
    %v1076 = vpop.permute.xlu0 %1075
    %1078 = vrot.lane.b32.xlu0 %v790, 96
    %v1079 = vpop.permute.xlu0 %1078
    %v1081 = vsel %vm808, %v1076, 0
    %v1084 = vsel %vm808, %v1079, 0
    %1086 = vmatprep.subr.bf16.mxu0 0
    %1087 = vmatpush1.bf16.xpose.msra.mxu0 %v1084
    %1088 = vmatprep.subr.bf16.mxu0 0
    %1089 = vmatpush1.bf16.xpose.msra.mxu0 0
    %1090 = vmatprep.subr.bf16.mxu0 0
    %1091 = vmatpush1.bf16.xpose.msra.mxu0 0
    %1092 = vmatprep.subr.bf16.mxu0 0
    %1093 = vmatpush1.bf16.xpose.msra.mxu0 0
    %1094 = vmatprep.subr.bf16.mxu0 0
    %1095 = vmatpush1.bf16.xpose.msra.mxu0 0
    %1096 = vmatprep.subr.bf16.mxu0 0
    %1097 = vmatpush1.bf16.xpose.msra.mxu0 0
    %1098 = vmatprep.subr.bf16.mxu0 0
    %1099 = vmatpush1.bf16.xpose.msra.mxu0 0
    %1100 = vmatprep.subr.bf16.mxu0 0
    %1101 = vmatpush1.bf16.xpose.msra.mxu0 0
    %1102 = vmatprep.subr.bf16.mxu0 0
    %1103 = vmatpush1.bf16.xpose.msra.mxu0 0
    %1104 = vmatprep.subr.bf16.mxu0 0
    %1105 = vmatpush1.bf16.xpose.msra.mxu0 0
    %1106 = vmatprep.subr.bf16.mxu0 0
    %1107 = vmatpush1.bf16.xpose.msra.mxu0 0
    %1108 = vmatprep.subr.bf16.mxu0 0
    %1109 = vmatpush1.bf16.xpose.msra.mxu0 0
    %1110 = vmatprep.subr.bf16.mxu0 0
    %1111 = vmatpush1.bf16.xpose.msra.mxu0 0
    %1112 = vmatprep.subr.bf16.mxu0 0
    %1113 = vmatpush1.bf16.xpose.msra.mxu0 0
    %1114 = vmatprep.subr.bf16.mxu0 0
    %1115 = vmatpush1.bf16.xpose.msra.mxu0 0
    %1116 = vmatprep.subr.bf16.mxu0 0
    %1117 = vmatpush1.bf16.xpose.msra.mxu0 0
    %1118 = vmatprep.mubr.bf16.mxu0 0
    %1119 = vmatmul.mubr.bf16.gmra.mrb[0].mxu0 %v1081
    %v1120 = vpop.f32.mrb[0].mxu0
    %v1121 = vadd.f32 0.0, %v1120
    %v1122 = vpop.f32.mrb[0].mxu0
    %v1123 = vpop.f32.mrb[0].mxu0
    %v1124 = vpop.f32.mrb[0].mxu0
    %1125 = vdwg.mxu0
    %v1126 = vmul.f32 %v1069, 0.17677669
    %v1127 = vmul.f32 %v1121, 0.17677669
    %v1128 = vsel %vm903, %v1126, -inf
    %1129 = vmax.xlane.f32.xlu0 %v1128
    %v1130 = vpop.xlane.xlu0 %1129
    %v1131 = vsel %vm903, %v1127, -inf
    %1132 = vmax.xlane.f32.xlu0 %v1131
    %v1133 = vpop.xlane.xlu0 %1132
    %v1134 = vsub.f32 %v1126, %v1130
    %v1135 = vsub.f32 %v1127, %v1133
    %v1136 = vmul.f32 %v1134, 1.442695
    %v1137 = vpow.pop %v1136
    %v1138 = vmul.f32 %v1135, 1.442695
    %v1139 = vpow.pop %v1138
    %v1140 = vsel %vm903, %v1137, 0.0
    %1141 = vadd.xlane.f32.xlu0 %v1140
    %v1142 = vpop.xlane.xlu0 %1141
    %v1143 = vsel %vm903, %v1139, 0.0
    %1144 = vadd.xlane.f32.xlu0 %v1143
    %v1145 = vpop.xlane.xlu0 %1144
    %v1146 = vrcp.pop %v1142
    %v1147 = vrcp.pop %v1145
    %v1148 = vmul.f32 %v1137, %v1146
    %v1149 = vmul.f32 %v1139, %v1147
    %v1150 = vpack.c.bf16 %v1148, %v1148
    %v1151 = vpack.c.bf16 %v1149, %v1149
    %1153 = vrot.lane.b32.xlu0 %v788, 96
    %v1154 = vpop.permute.xlu0 %1153
    %v1156 = vsel %vm903, %v1150, 0
    %v1159 = vsel %vm931, %v1154, 0
    %1161 = vmatprep.subr.bf16.mxu0 0
    %1162 = vmatpush1.bf16.msra.mxu0 %v1159
    %1163 = vmatprep.subr.bf16.mxu0 0
    %1164 = vmatpush1.bf16.msra.mxu0 0
    %1165 = vmatprep.subr.bf16.mxu0 0
    %1166 = vmatpush1.bf16.msra.mxu0 0
    %1167 = vmatprep.subr.bf16.mxu0 0
    %1168 = vmatpush1.bf16.msra.mxu0 0
    %1169 = vmatprep.subr.bf16.mxu0 0
    %1170 = vmatpush1.bf16.msra.mxu0 0
    %1171 = vmatprep.subr.bf16.mxu0 0
    %1172 = vmatpush1.bf16.msra.mxu0 0
    %1173 = vmatprep.subr.bf16.mxu0 0
    %1174 = vmatpush1.bf16.msra.mxu0 0
    %1175 = vmatprep.subr.bf16.mxu0 0
    %1176 = vmatpush1.bf16.msra.mxu0 0
    %1177 = vmatprep.subr.bf16.mxu0 0
    %1178 = vmatpush1.bf16.msra.mxu0 0
    %1179 = vmatprep.subr.bf16.mxu0 0
    %1180 = vmatpush1.bf16.msra.mxu0 0
    %1181 = vmatprep.subr.bf16.mxu0 0
    %1182 = vmatpush1.bf16.msra.mxu0 0
    %1183 = vmatprep.subr.bf16.mxu0 0
    %1184 = vmatpush1.bf16.msra.mxu0 0
    %1185 = vmatprep.subr.bf16.mxu0 0
    %1186 = vmatpush1.bf16.msra.mxu0 0
    %1187 = vmatprep.subr.bf16.mxu0 0
    %1188 = vmatpush1.bf16.msra.mxu0 0
    %1189 = vmatprep.subr.bf16.mxu0 0
    %1190 = vmatpush1.bf16.msra.mxu0 0
    %1191 = vmatprep.subr.bf16.mxu0 0
    %1192 = vmatpush1.bf16.msra.mxu0 0
    %1193 = vmatprep.mubr.bf16.mxu0 0
    %1194 = vmatmul.mubr.bf16.gmra.mrb[0].mxu0 %v1156
    %v1195 = vpop.f32.mrb[0].mxu0
    %v1196 = vadd.f32 0.0, %v1195
    %v1197 = vpop.f32.mrb[0].mxu0
    %v1198 = vpop.f32.mrb[0].mxu0
    %v1199 = vpop.f32.mrb[0].mxu0
    %1200 = vdwg.mxu0
    %1202 = vrot.lane.b32.xlu0 %v791, 96
    %v1203 = vpop.permute.xlu0 %1202
    %v1205 = vsel %vm903, %v1151, 0
    %v1208 = vsel %vm931, %v1203, 0
    %1210 = vmatprep.subr.bf16.mxu0 0
    %1211 = vmatpush1.bf16.msra.mxu0 %v1208
    %1212 = vmatprep.subr.bf16.mxu0 0
    %1213 = vmatpush1.bf16.msra.mxu0 0
    %1214 = vmatprep.subr.bf16.mxu0 0
    %1215 = vmatpush1.bf16.msra.mxu0 0
    %1216 = vmatprep.subr.bf16.mxu0 0
    %1217 = vmatpush1.bf16.msra.mxu0 0
    %1218 = vmatprep.subr.bf16.mxu0 0
    %1219 = vmatpush1.bf16.msra.mxu0 0
    %1220 = vmatprep.subr.bf16.mxu0 0
    %1221 = vmatpush1.bf16.msra.mxu0 0
    %1222 = vmatprep.subr.bf16.mxu0 0
    %1223 = vmatpush1.bf16.msra.mxu0 0
    %1224 = vmatprep.subr.bf16.mxu0 0
    %1225 = vmatpush1.bf16.msra.mxu0 0
    %1226 = vmatprep.subr.bf16.mxu0 0
    %1227 = vmatpush1.bf16.msra.mxu0 0
    %1228 = vmatprep.subr.bf16.mxu0 0
    %1229 = vmatpush1.bf16.msra.mxu0 0
    %1230 = vmatprep.subr.bf16.mxu0 0
    %1231 = vmatpush1.bf16.msra.mxu0 0
    %1232 = vmatprep.subr.bf16.mxu0 0
    %1233 = vmatpush1.bf16.msra.mxu0 0
    %1234 = vmatprep.subr.bf16.mxu0 0
    %1235 = vmatpush1.bf16.msra.mxu0 0
    %1236 = vmatprep.subr.bf16.mxu0 0
    %1237 = vmatpush1.bf16.msra.mxu0 0
    %1238 = vmatprep.subr.bf16.mxu0 0
    %1239 = vmatpush1.bf16.msra.mxu0 0
    %1240 = vmatprep.subr.bf16.mxu0 0
    %1241 = vmatpush1.bf16.msra.mxu0 0
    %1242 = vmatprep.mubr.bf16.mxu0 0
    %1243 = vmatmul.mubr.bf16.gmra.mrb[0].mxu0 %v1205
    %v1244 = vpop.f32.mrb[0].mxu0
    %v1245 = vadd.f32 0.0, %v1244
    %v1246 = vpop.f32.mrb[0].mxu0
    %v1247 = vpop.f32.mrb[0].mxu0
    %v1248 = vpop.f32.mrb[0].mxu0
    %1249 = vdwg.mxu0
    %v1250 = vpack.c.bf16 %v1245, %v1196
    %v1255 = vunpack.c.l.b16 %v796
    %v1256 = vunpack.c.l.b16 %v797
    %v1257 = vunpack.c.l.b16 %v798
    %v1258 = vunpack.c.l.b16 %v799
    %v1259 = vpack.c.b16 %v1256, %v1255
    %v1260 = vpack.c.b16 %v1258, %v1257
    %v1264 = vsel %vm808, %v1250, 0
    %1266 = vmatprep.subr.bf16.mxu0 0
    %1267 = vmatpush1.bf16.msra.mxu0 %v1259
    %1268 = vmatprep.subr.bf16.mxu0 0
    %1269 = vmatpush1.bf16.msra.mxu0 %v1260
    %1270 = vmatprep.subr.bf16.mxu0 0
    %1271 = vmatpush1.bf16.msra.mxu0 0
    %1272 = vmatprep.subr.bf16.mxu0 0
    %1273 = vmatpush1.bf16.msra.mxu0 0
    %1274 = vmatprep.subr.bf16.mxu0 0
    %1275 = vmatpush1.bf16.msra.mxu0 0
    %1276 = vmatprep.subr.bf16.mxu0 0
    %1277 = vmatpush1.bf16.msra.mxu0 0
    %1278 = vmatprep.subr.bf16.mxu0 0
    %1279 = vmatpush1.bf16.msra.mxu0 0
    %1280 = vmatprep.subr.bf16.mxu0 0
    %1281 = vmatpush1.bf16.msra.mxu0 0
    %1282 = vmatprep.subr.bf16.mxu0 0
    %1283 = vmatpush1.bf16.msra.mxu0 0
    %1284 = vmatprep.subr.bf16.mxu0 0
    %1285 = vmatpush1.bf16.msra.mxu0 0
    %1286 = vmatprep.subr.bf16.mxu0 0
    %1287 = vmatpush1.bf16.msra.mxu0 0
    %1288 = vmatprep.subr.bf16.mxu0 0
    %1289 = vmatpush1.bf16.msra.mxu0 0
    %1290 = vmatprep.subr.bf16.mxu0 0
    %1291 = vmatpush1.bf16.msra.mxu0 0
    %1292 = vmatprep.subr.bf16.mxu0 0
    %1293 = vmatpush1.bf16.msra.mxu0 0
    %1294 = vmatprep.subr.bf16.mxu0 0
    %1295 = vmatpush1.bf16.msra.mxu0 0
    %1296 = vmatprep.subr.bf16.mxu0 0
    %1297 = vmatpush1.bf16.msra.mxu0 0
    %1298 = vmatprep.mubr.bf16.mxu0 0
    %1299 = vmatmul.mubr.bf16.gmra.mrb[0].mxu0 %v1264
    %v1300 = vpop.f32.mrb[0].mxu0
    %v1301 = vadd.f32 0.0, %v1300
    %v1302 = vpop.f32.mrb[0].mxu0
    %v1303 = vpop.f32.mrb[0].mxu0
    %v1304 = vadd.f32 0.0, %v1303
    %v1305 = vpop.f32.mrb[0].mxu0
    %1306 = vdwg.mxu0
    %v1311 = vunpack.c.l.b16 %v792
    %v1312 = vunpack.c.l.b16 %v793
    %v1313 = vunpack.c.l.b16 %v794
    %v1314 = vunpack.c.l.b16 %v795
    %v1315 = vpack.c.b16 %v1312, %v1311
    %v1316 = vpack.c.b16 %v1314, %v1313
    %v1320 = vsel %vm808, %v1021, 0
    %1322 = vmatprep.subr.bf16.mxu0 0
    %1323 = vmatpush1.bf16.msra.mxu0 %v1315
    %1324 = vmatprep.subr.bf16.mxu0 0
    %1325 = vmatpush1.bf16.msra.mxu0 %v1316
    %1326 = vmatprep.subr.bf16.mxu0 0
    %1327 = vmatpush1.bf16.msra.mxu0 0
    %1328 = vmatprep.subr.bf16.mxu0 0
    %1329 = vmatpush1.bf16.msra.mxu0 0
    %1330 = vmatprep.subr.bf16.mxu0 0
    %1331 = vmatpush1.bf16.msra.mxu0 0
    %1332 = vmatprep.subr.bf16.mxu0 0
    %1333 = vmatpush1.bf16.msra.mxu0 0
    %1334 = vmatprep.subr.bf16.mxu0 0
    %1335 = vmatpush1.bf16.msra.mxu0 0
    %1336 = vmatprep.subr.bf16.mxu0 0
    %1337 = vmatpush1.bf16.msra.mxu0 0
    %1338 = vmatprep.subr.bf16.mxu0 0
    %1339 = vmatpush1.bf16.msra.mxu0 0
    %1340 = vmatprep.subr.bf16.mxu0 0
    %1341 = vmatpush1.bf16.msra.mxu0 0
    %1342 = vmatprep.subr.bf16.mxu0 0
    %1343 = vmatpush1.bf16.msra.mxu0 0
    %1344 = vmatprep.subr.bf16.mxu0 0
    %1345 = vmatpush1.bf16.msra.mxu0 0
    %1346 = vmatprep.subr.bf16.mxu0 0
    %1347 = vmatpush1.bf16.msra.mxu0 0
    %1348 = vmatprep.subr.bf16.mxu0 0
    %1349 = vmatpush1.bf16.msra.mxu0 0
    %1350 = vmatprep.subr.bf16.mxu0 0
    %1351 = vmatpush1.bf16.msra.mxu0 0
    %1352 = vmatprep.subr.bf16.mxu0 0
    %1353 = vmatpush1.bf16.msra.mxu0 0
    %1354 = vmatprep.mubr.bf16.mxu0 0
    %1355 = vmatmul.mubr.bf16.gmra.mrb[0].mxu0 %v1320
    %v1356 = vpop.f32.mrb[0].mxu0
    %v1357 = vadd.f32 %v1301, %v1356
    %v1358 = vpop.f32.mrb[0].mxu0
    %v1359 = vpop.f32.mrb[0].mxu0
    %v1360 = vadd.f32 %v1304, %v1359
    %v1361 = vpop.f32.mrb[0].mxu0
    %1362 = vdwg.mxu0
    %1363 = vrot.lane.b32.xlu0 %v786, 64
    %v1364 = vpop.permute.xlu0 %1363
    %1365 = vrot.lane.b32.xlu0 %v787, 64
    %v1366 = vpop.permute.xlu0 %1365
    %v1368 = vsel %vm808, %v1364, 0
    %v1371 = vsel %vm808, %v1366, 0
    %1373 = vmatprep.subr.bf16.mxu0 0
    %1374 = vmatpush1.bf16.xpose.msra.mxu0 %v1371
    %1375 = vmatprep.subr.bf16.mxu0 0
    %1376 = vmatpush1.bf16.xpose.msra.mxu0 0
    %1377 = vmatprep.subr.bf16.mxu0 0
    %1378 = vmatpush1.bf16.xpose.msra.mxu0 0
    %1379 = vmatprep.subr.bf16.mxu0 0
    %1380 = vmatpush1.bf16.xpose.msra.mxu0 0
    %1381 = vmatprep.subr.bf16.mxu0 0
    %1382 = vmatpush1.bf16.xpose.msra.mxu0 0
    %1383 = vmatprep.subr.bf16.mxu0 0
    %1384 = vmatpush1.bf16.xpose.msra.mxu0 0
    %1385 = vmatprep.subr.bf16.mxu0 0
    %1386 = vmatpush1.bf16.xpose.msra.mxu0 0
    %1387 = vmatprep.subr.bf16.mxu0 0
    %1388 = vmatpush1.bf16.xpose.msra.mxu0 0
    %1389 = vmatprep.subr.bf16.mxu0 0
    %1390 = vmatpush1.bf16.xpose.msra.mxu0 0
    %1391 = vmatprep.subr.bf16.mxu0 0
    %1392 = vmatpush1.bf16.xpose.msra.mxu0 0
    %1393 = vmatprep.subr.bf16.mxu0 0
    %1394 = vmatpush1.bf16.xpose.msra.mxu0 0
    %1395 = vmatprep.subr.bf16.mxu0 0
    %1396 = vmatpush1.bf16.xpose.msra.mxu0 0
    %1397 = vmatprep.subr.bf16.mxu0 0
    %1398 = vmatpush1.bf16.xpose.msra.mxu0 0
    %1399 = vmatprep.subr.bf16.mxu0 0
    %1400 = vmatpush1.bf16.xpose.msra.mxu0 0
    %1401 = vmatprep.subr.bf16.mxu0 0
    %1402 = vmatpush1.bf16.xpose.msra.mxu0 0
    %1403 = vmatprep.subr.bf16.mxu0 0
    %1404 = vmatpush1.bf16.xpose.msra.mxu0 0
    %1405 = vmatprep.mubr.bf16.mxu0 0
    %1406 = vmatmul.mubr.bf16.gmra.mrb[0].mxu0 %v1368
    %v1407 = vpop.f32.mrb[0].mxu0
    %v1408 = vadd.f32 0.0, %v1407
    %v1409 = vpop.f32.mrb[0].mxu0
    %v1410 = vpop.f32.mrb[0].mxu0
    %v1411 = vpop.f32.mrb[0].mxu0
    %1412 = vdwg.mxu0
    %1413 = vrot.lane.b32.xlu0 %v789, 64
    %v1414 = vpop.permute.xlu0 %1413
    %1415 = vrot.lane.b32.xlu0 %v790, 64
    %v1416 = vpop.permute.xlu0 %1415
    %v1418 = vsel %vm808, %v1414, 0
    %v1421 = vsel %vm808, %v1416, 0
    %1423 = vmatprep.subr.bf16.mxu0 0
    %1424 = vmatpush1.bf16.xpose.msra.mxu0 %v1421
    %1425 = vmatprep.subr.bf16.mxu0 0
    %1426 = vmatpush1.bf16.xpose.msra.mxu0 0
    %1427 = vmatprep.subr.bf16.mxu0 0
    %1428 = vmatpush1.bf16.xpose.msra.mxu0 0
    %1429 = vmatprep.subr.bf16.mxu0 0
    %1430 = vmatpush1.bf16.xpose.msra.mxu0 0
    %1431 = vmatprep.subr.bf16.mxu0 0
    %1432 = vmatpush1.bf16.xpose.msra.mxu0 0
    %1433 = vmatprep.subr.bf16.mxu0 0
    %1434 = vmatpush1.bf16.xpose.msra.mxu0 0
    %1435 = vmatprep.subr.bf16.mxu0 0
    %1436 = vmatpush1.bf16.xpose.msra.mxu0 0
    %1437 = vmatprep.subr.bf16.mxu0 0
    %1438 = vmatpush1.bf16.xpose.msra.mxu0 0
    %1439 = vmatprep.subr.bf16.mxu0 0
    %1440 = vmatpush1.bf16.xpose.msra.mxu0 0
    %1441 = vmatprep.subr.bf16.mxu0 0
    %1442 = vmatpush1.bf16.xpose.msra.mxu0 0
    %1443 = vmatprep.subr.bf16.mxu0 0
    %1444 = vmatpush1.bf16.xpose.msra.mxu0 0
    %1445 = vmatprep.subr.bf16.mxu0 0
    %1446 = vmatpush1.bf16.xpose.msra.mxu0 0
    %1447 = vmatprep.subr.bf16.mxu0 0
    %1448 = vmatpush1.bf16.xpose.msra.mxu0 0
    %1449 = vmatprep.subr.bf16.mxu0 0
    %1450 = vmatpush1.bf16.xpose.msra.mxu0 0
    %1451 = vmatprep.subr.bf16.mxu0 0
    %1452 = vmatpush1.bf16.xpose.msra.mxu0 0
    %1453 = vmatprep.subr.bf16.mxu0 0
    %1454 = vmatpush1.bf16.xpose.msra.mxu0 0
    %1455 = vmatprep.mubr.bf16.mxu0 0
    %1456 = vmatmul.mubr.bf16.gmra.mrb[0].mxu0 %v1418
    %v1457 = vpop.f32.mrb[0].mxu0
    %v1458 = vadd.f32 0.0, %v1457
    %v1459 = vpop.f32.mrb[0].mxu0
    %v1460 = vpop.f32.mrb[0].mxu0
    %v1461 = vpop.f32.mrb[0].mxu0
    %1462 = vdwg.mxu0
    %v1463 = vmul.f32 %v1408, 0.17677669
    %v1464 = vmul.f32 %v1458, 0.17677669
    %v1465 = vsel %vm903, %v1463, -inf
    %1466 = vmax.xlane.f32.xlu0 %v1465
    %v1467 = vpop.xlane.xlu0 %1466
    %v1468 = vsel %vm903, %v1464, -inf
    %1469 = vmax.xlane.f32.xlu0 %v1468
    %v1470 = vpop.xlane.xlu0 %1469
    %v1471 = vsub.f32 %v1463, %v1467
    %v1472 = vsub.f32 %v1464, %v1470
    %v1473 = vmul.f32 %v1471, 1.442695
    %v1474 = vpow.pop %v1473
    %v1475 = vmul.f32 %v1472, 1.442695
    %v1476 = vpow.pop %v1475
    %v1477 = vsel %vm903, %v1474, 0.0
    %1478 = vadd.xlane.f32.xlu0 %v1477
    %v1479 = vpop.xlane.xlu0 %1478
    %v1480 = vsel %vm903, %v1476, 0.0
    %1481 = vadd.xlane.f32.xlu0 %v1480
    %v1482 = vpop.xlane.xlu0 %1481
    %v1483 = vrcp.pop %v1479
    %v1484 = vrcp.pop %v1482
    %v1485 = vmul.f32 %v1474, %v1483
    %v1486 = vmul.f32 %v1476, %v1484
    %v1487 = vpack.c.bf16 %v1485, %v1485
    %v1488 = vpack.c.bf16 %v1486, %v1486
    %1489 = vrot.lane.b32.xlu0 %v788, 64
    %v1490 = vpop.permute.xlu0 %1489
    %v1492 = vsel %vm903, %v1487, 0
    %v1495 = vsel %vm931, %v1490, 0
    %1497 = vmatprep.subr.bf16.mxu0 0
    %1498 = vmatpush1.bf16.msra.mxu0 %v1495
    %1499 = vmatprep.subr.bf16.mxu0 0
    %1500 = vmatpush1.bf16.msra.mxu0 0
    %1501 = vmatprep.subr.bf16.mxu0 0
    %1502 = vmatpush1.bf16.msra.mxu0 0
    %1503 = vmatprep.subr.bf16.mxu0 0
    %1504 = vmatpush1.bf16.msra.mxu0 0
    %1505 = vmatprep.subr.bf16.mxu0 0
    %1506 = vmatpush1.bf16.msra.mxu0 0
    %1507 = vmatprep.subr.bf16.mxu0 0
    %1508 = vmatpush1.bf16.msra.mxu0 0
    %1509 = vmatprep.subr.bf16.mxu0 0
    %1510 = vmatpush1.bf16.msra.mxu0 0
    %1511 = vmatprep.subr.bf16.mxu0 0
    %1512 = vmatpush1.bf16.msra.mxu0 0
    %1513 = vmatprep.subr.bf16.mxu0 0
    %1514 = vmatpush1.bf16.msra.mxu0 0
    %1515 = vmatprep.subr.bf16.mxu0 0
    %1516 = vmatpush1.bf16.msra.mxu0 0
    %1517 = vmatprep.subr.bf16.mxu0 0
    %1518 = vmatpush1.bf16.msra.mxu0 0
    %1519 = vmatprep.subr.bf16.mxu0 0
    %1520 = vmatpush1.bf16.msra.mxu0 0
    %1521 = vmatprep.subr.bf16.mxu0 0
    %1522 = vmatpush1.bf16.msra.mxu0 0
    %1523 = vmatprep.subr.bf16.mxu0 0
    %1524 = vmatpush1.bf16.msra.mxu0 0
    %1525 = vmatprep.subr.bf16.mxu0 0
    %1526 = vmatpush1.bf16.msra.mxu0 0
    %1527 = vmatprep.subr.bf16.mxu0 0
    %1528 = vmatpush1.bf16.msra.mxu0 0
    %1529 = vmatprep.mubr.bf16.mxu0 0
    %1530 = vmatmul.mubr.bf16.gmra.mrb[0].mxu0 %v1492
    %v1531 = vpop.f32.mrb[0].mxu0
    %v1532 = vadd.f32 0.0, %v1531
    %v1533 = vpop.f32.mrb[0].mxu0
    %v1534 = vpop.f32.mrb[0].mxu0
    %v1535 = vpop.f32.mrb[0].mxu0
    %1536 = vdwg.mxu0
    %1537 = vrot.lane.b32.xlu0 %v791, 64
    %v1538 = vpop.permute.xlu0 %1537
    %v1540 = vsel %vm903, %v1488, 0
    %v1543 = vsel %vm931, %v1538, 0
    %1545 = vmatprep.subr.bf16.mxu0 0
    %1546 = vmatpush1.bf16.msra.mxu0 %v1543
    %1547 = vmatprep.subr.bf16.mxu0 0
    %1548 = vmatpush1.bf16.msra.mxu0 0
    %1549 = vmatprep.subr.bf16.mxu0 0
    %1550 = vmatpush1.bf16.msra.mxu0 0
    %1551 = vmatprep.subr.bf16.mxu0 0
    %1552 = vmatpush1.bf16.msra.mxu0 0
    %1553 = vmatprep.subr.bf16.mxu0 0
    %1554 = vmatpush1.bf16.msra.mxu0 0
    %1555 = vmatprep.subr.bf16.mxu0 0
    %1556 = vmatpush1.bf16.msra.mxu0 0
    %1557 = vmatprep.subr.bf16.mxu0 0
    %1558 = vmatpush1.bf16.msra.mxu0 0
    %1559 = vmatprep.subr.bf16.mxu0 0
    %1560 = vmatpush1.bf16.msra.mxu0 0
    %1561 = vmatprep.subr.bf16.mxu0 0
    %1562 = vmatpush1.bf16.msra.mxu0 0
    %1563 = vmatprep.subr.bf16.mxu0 0
    %1564 = vmatpush1.bf16.msra.mxu0 0
    %1565 = vmatprep.subr.bf16.mxu0 0
    %1566 = vmatpush1.bf16.msra.mxu0 0
    %1567 = vmatprep.subr.bf16.mxu0 0
    %1568 = vmatpush1.bf16.msra.mxu0 0
    %1569 = vmatprep.subr.bf16.mxu0 0
    %1570 = vmatpush1.bf16.msra.mxu0 0
    %1571 = vmatprep.subr.bf16.mxu0 0
    %1572 = vmatpush1.bf16.msra.mxu0 0
    %1573 = vmatprep.subr.bf16.mxu0 0
    %1574 = vmatpush1.bf16.msra.mxu0 0
    %1575 = vmatprep.subr.bf16.mxu0 0
    %1576 = vmatpush1.bf16.msra.mxu0 0
    %1577 = vmatprep.mubr.bf16.mxu0 0
    %1578 = vmatmul.mubr.bf16.gmra.mrb[0].mxu0 %v1540
    %v1579 = vpop.f32.mrb[0].mxu0
    %v1580 = vadd.f32 0.0, %v1579
    %v1581 = vpop.f32.mrb[0].mxu0
    %v1582 = vpop.f32.mrb[0].mxu0
    %v1583 = vpop.f32.mrb[0].mxu0
    %1584 = vdwg.mxu0
    %v1585 = vpack.c.bf16 %v1580, %v1532
    %v1590 = vunpack.c.l.b16 %v800
    %v1591 = vunpack.c.l.b16 %v801
    %v1592 = vunpack.c.l.b16 %v802
    %v1593 = vunpack.c.l.b16 %v803
    %v1594 = vpack.c.b16 %v1591, %v1590
    %v1595 = vpack.c.b16 %v1593, %v1592
    %v1599 = vsel %vm808, %v1585, 0
    %1601 = vmatprep.subr.bf16.mxu0 0
    %1602 = vmatpush1.bf16.msra.mxu0 %v1594
    %1603 = vmatprep.subr.bf16.mxu0 0
    %1604 = vmatpush1.bf16.msra.mxu0 %v1595
    %1605 = vmatprep.subr.bf16.mxu0 0
    %1606 = vmatpush1.bf16.msra.mxu0 0
    %1607 = vmatprep.subr.bf16.mxu0 0
    %1608 = vmatpush1.bf16.msra.mxu0 0
    %1609 = vmatprep.subr.bf16.mxu0 0
    %1610 = vmatpush1.bf16.msra.mxu0 0
    %1611 = vmatprep.subr.bf16.mxu0 0
    %1612 = vmatpush1.bf16.msra.mxu0 0
    %1613 = vmatprep.subr.bf16.mxu0 0
    %1614 = vmatpush1.bf16.msra.mxu0 0
    %1615 = vmatprep.subr.bf16.mxu0 0
    %1616 = vmatpush1.bf16.msra.mxu0 0
    %1617 = vmatprep.subr.bf16.mxu0 0
    %1618 = vmatpush1.bf16.msra.mxu0 0
    %1619 = vmatprep.subr.bf16.mxu0 0
    %1620 = vmatpush1.bf16.msra.mxu0 0
    %1621 = vmatprep.subr.bf16.mxu0 0
    %1622 = vmatpush1.bf16.msra.mxu0 0
    %1623 = vmatprep.subr.bf16.mxu0 0
    %1624 = vmatpush1.bf16.msra.mxu0 0
    %1625 = vmatprep.subr.bf16.mxu0 0
    %1626 = vmatpush1.bf16.msra.mxu0 0
    %1627 = vmatprep.subr.bf16.mxu0 0
    %1628 = vmatpush1.bf16.msra.mxu0 0
    %1629 = vmatprep.subr.bf16.mxu0 0
    %1630 = vmatpush1.bf16.msra.mxu0 0
    %1631 = vmatprep.subr.bf16.mxu0 0
    %1632 = vmatpush1.bf16.msra.mxu0 0
    %1633 = vmatprep.mubr.bf16.mxu0 0
    %1634 = vmatmul.mubr.bf16.gmra.mrb[0].mxu0 %v1599
    %v1635 = vpop.f32.mrb[0].mxu0
    %v1636 = vadd.f32 0.0, %v1635
    %v1637 = vpop.f32.mrb[0].mxu0
    %v1638 = vpop.f32.mrb[0].mxu0
    %v1639 = vadd.f32 0.0, %v1638
    %v1640 = vpop.f32.mrb[0].mxu0
    %1641 = vdwg.mxu0
    %v1642 = vadd.f32 %v1357, %v1636
    %v1643 = vadd.f32 %v1360, %v1639
    %1644 = vrot.lane.b32.xlu0 %v786, 32
    %v1645 = vpop.permute.xlu0 %1644
    %1646 = vrot.lane.b32.xlu0 %v787, 32
    %v1647 = vpop.permute.xlu0 %1646
    %v1649 = vsel %vm808, %v1645, 0
    %v1652 = vsel %vm808, %v1647, 0
    %1654 = vmatprep.subr.bf16.mxu0 0
    %1655 = vmatpush1.bf16.xpose.msra.mxu0 %v1652
    %1656 = vmatprep.subr.bf16.mxu0 0
    %1657 = vmatpush1.bf16.xpose.msra.mxu0 0
    %1658 = vmatprep.subr.bf16.mxu0 0
    %1659 = vmatpush1.bf16.xpose.msra.mxu0 0
    %1660 = vmatprep.subr.bf16.mxu0 0
    %1661 = vmatpush1.bf16.xpose.msra.mxu0 0
    %1662 = vmatprep.subr.bf16.mxu0 0
    %1663 = vmatpush1.bf16.xpose.msra.mxu0 0
    %1664 = vmatprep.subr.bf16.mxu0 0
    %1665 = vmatpush1.bf16.xpose.msra.mxu0 0
    %1666 = vmatprep.subr.bf16.mxu0 0
    %1667 = vmatpush1.bf16.xpose.msra.mxu0 0
    %1668 = vmatprep.subr.bf16.mxu0 0
    %1669 = vmatpush1.bf16.xpose.msra.mxu0 0
    %1670 = vmatprep.subr.bf16.mxu0 0
    %1671 = vmatpush1.bf16.xpose.msra.mxu0 0
    %1672 = vmatprep.subr.bf16.mxu0 0
    %1673 = vmatpush1.bf16.xpose.msra.mxu0 0
    %1674 = vmatprep.subr.bf16.mxu0 0
    %1675 = vmatpush1.bf16.xpose.msra.mxu0 0
    %1676 = vmatprep.subr.bf16.mxu0 0
    %1677 = vmatpush1.bf16.xpose.msra.mxu0 0
    %1678 = vmatprep.subr.bf16.mxu0 0
    %1679 = vmatpush1.bf16.xpose.msra.mxu0 0
    %1680 = vmatprep.subr.bf16.mxu0 0
    %1681 = vmatpush1.bf16.xpose.msra.mxu0 0
    %1682 = vmatprep.subr.bf16.mxu0 0
    %1683 = vmatpush1.bf16.xpose.msra.mxu0 0
    %1684 = vmatprep.subr.bf16.mxu0 0
    %1685 = vmatpush1.bf16.xpose.msra.mxu0 0
    %1686 = vmatprep.mubr.bf16.mxu0 0
    %1687 = vmatmul.mubr.bf16.gmra.mrb[0].mxu0 %v1649
    %v1688 = vpop.f32.mrb[0].mxu0
    %v1689 = vadd.f32 0.0, %v1688
    %v1690 = vpop.f32.mrb[0].mxu0
    %v1691 = vpop.f32.mrb[0].mxu0
    %v1692 = vpop.f32.mrb[0].mxu0
    %1693 = vdwg.mxu0
    %1694 = vrot.lane.b32.xlu0 %v789, 32
    %v1695 = vpop.permute.xlu0 %1694
    %1696 = vrot.lane.b32.xlu0 %v790, 32
    %v1697 = vpop.permute.xlu0 %1696
    %v1699 = vsel %vm808, %v1695, 0
    %v1702 = vsel %vm808, %v1697, 0
    %1704 = vmatprep.subr.bf16.mxu0 0
    %1705 = vmatpush1.bf16.xpose.msra.mxu0 %v1702
    %1706 = vmatprep.subr.bf16.mxu0 0
    %1707 = vmatpush1.bf16.xpose.msra.mxu0 0
    %1708 = vmatprep.subr.bf16.mxu0 0
    %1709 = vmatpush1.bf16.xpose.msra.mxu0 0
    %1710 = vmatprep.subr.bf16.mxu0 0
    %1711 = vmatpush1.bf16.xpose.msra.mxu0 0
    %1712 = vmatprep.subr.bf16.mxu0 0
    %1713 = vmatpush1.bf16.xpose.msra.mxu0 0
    %1714 = vmatprep.subr.bf16.mxu0 0
    %1715 = vmatpush1.bf16.xpose.msra.mxu0 0
    %1716 = vmatprep.subr.bf16.mxu0 0
    %1717 = vmatpush1.bf16.xpose.msra.mxu0 0
    %1718 = vmatprep.subr.bf16.mxu0 0
    %1719 = vmatpush1.bf16.xpose.msra.mxu0 0
    %1720 = vmatprep.subr.bf16.mxu0 0
    %1721 = vmatpush1.bf16.xpose.msra.mxu0 0
    %1722 = vmatprep.subr.bf16.mxu0 0
    %1723 = vmatpush1.bf16.xpose.msra.mxu0 0
    %1724 = vmatprep.subr.bf16.mxu0 0
    %1725 = vmatpush1.bf16.xpose.msra.mxu0 0
    %1726 = vmatprep.subr.bf16.mxu0 0
    %1727 = vmatpush1.bf16.xpose.msra.mxu0 0
    %1728 = vmatprep.subr.bf16.mxu0 0
    %1729 = vmatpush1.bf16.xpose.msra.mxu0 0
    %1730 = vmatprep.subr.bf16.mxu0 0
    %1731 = vmatpush1.bf16.xpose.msra.mxu0 0
    %1732 = vmatprep.subr.bf16.mxu0 0
    %1733 = vmatpush1.bf16.xpose.msra.mxu0 0
    %1734 = vmatprep.subr.bf16.mxu0 0
    %1735 = vmatpush1.bf16.xpose.msra.mxu0 0
    %1736 = vmatprep.mubr.bf16.mxu0 0
    %1737 = vmatmul.mubr.bf16.gmra.mrb[0].mxu0 %v1699
    %v1738 = vpop.f32.mrb[0].mxu0
    %v1739 = vadd.f32 0.0, %v1738
    %v1740 = vpop.f32.mrb[0].mxu0
    %v1741 = vpop.f32.mrb[0].mxu0
    %v1742 = vpop.f32.mrb[0].mxu0
    %1743 = vdwg.mxu0
    %v1744 = vmul.f32 %v1689, 0.17677669
    %v1745 = vmul.f32 %v1739, 0.17677669
    %v1746 = vsel %vm903, %v1744, -inf
    %1747 = vmax.xlane.f32.xlu0 %v1746
    %v1748 = vpop.xlane.xlu0 %1747
    %v1749 = vsel %vm903, %v1745, -inf
    %1750 = vmax.xlane.f32.xlu0 %v1749
    %v1751 = vpop.xlane.xlu0 %1750
    %v1752 = vsub.f32 %v1744, %v1748
    %v1753 = vsub.f32 %v1745, %v1751
    %v1754 = vmul.f32 %v1752, 1.442695
    %v1755 = vpow.pop %v1754
    %v1756 = vmul.f32 %v1753, 1.442695
    %v1757 = vpow.pop %v1756
    %v1758 = vsel %vm903, %v1755, 0.0
    %1759 = vadd.xlane.f32.xlu0 %v1758
    %v1760 = vpop.xlane.xlu0 %1759
    %v1761 = vsel %vm903, %v1757, 0.0
    %1762 = vadd.xlane.f32.xlu0 %v1761
    %v1763 = vpop.xlane.xlu0 %1762
    %v1764 = vrcp.pop %v1760
    %v1765 = vrcp.pop %v1763
    %v1766 = vmul.f32 %v1755, %v1764
    %v1767 = vmul.f32 %v1757, %v1765
    %v1768 = vpack.c.bf16 %v1766, %v1766
    %v1769 = vpack.c.bf16 %v1767, %v1767
    %1770 = vrot.lane.b32.xlu0 %v788, 32
    %v1771 = vpop.permute.xlu0 %1770
    %v1773 = vsel %vm903, %v1768, 0
    %v1776 = vsel %vm931, %v1771, 0
    %1778 = vmatprep.subr.bf16.mxu0 0
    %1779 = vmatpush1.bf16.msra.mxu0 %v1776
    %1780 = vmatprep.subr.bf16.mxu0 0
    %1781 = vmatpush1.bf16.msra.mxu0 0
    %1782 = vmatprep.subr.bf16.mxu0 0
    %1783 = vmatpush1.bf16.msra.mxu0 0
    %1784 = vmatprep.subr.bf16.mxu0 0
    %1785 = vmatpush1.bf16.msra.mxu0 0
    %1786 = vmatprep.subr.bf16.mxu0 0
    %1787 = vmatpush1.bf16.msra.mxu0 0
    %1788 = vmatprep.subr.bf16.mxu0 0
    %1789 = vmatpush1.bf16.msra.mxu0 0
    %1790 = vmatprep.subr.bf16.mxu0 0
    %1791 = vmatpush1.bf16.msra.mxu0 0
    %1792 = vmatprep.subr.bf16.mxu0 0
    %1793 = vmatpush1.bf16.msra.mxu0 0
    %1794 = vmatprep.subr.bf16.mxu0 0
    %1795 = vmatpush1.bf16.msra.mxu0 0
    %1796 = vmatprep.subr.bf16.mxu0 0
    %1797 = vmatpush1.bf16.msra.mxu0 0
    %1798 = vmatprep.subr.bf16.mxu0 0
    %1799 = vmatpush1.bf16.msra.mxu0 0
    %1800 = vmatprep.subr.bf16.mxu0 0
    %1801 = vmatpush1.bf16.msra.mxu0 0
    %1802 = vmatprep.subr.bf16.mxu0 0
    %1803 = vmatpush1.bf16.msra.mxu0 0
    %1804 = vmatprep.subr.bf16.mxu0 0
    %1805 = vmatpush1.bf16.msra.mxu0 0
    %1806 = vmatprep.subr.bf16.mxu0 0
    %1807 = vmatpush1.bf16.msra.mxu0 0
    %1808 = vmatprep.subr.bf16.mxu0 0
    %1809 = vmatpush1.bf16.msra.mxu0 0
    %1810 = vmatprep.mubr.bf16.mxu0 0
    %1811 = vmatmul.mubr.bf16.gmra.mrb[0].mxu0 %v1773
    %v1812 = vpop.f32.mrb[0].mxu0
    %v1813 = vadd.f32 0.0, %v1812
    %v1814 = vpop.f32.mrb[0].mxu0
    %v1815 = vpop.f32.mrb[0].mxu0
    %v1816 = vpop.f32.mrb[0].mxu0
    %1817 = vdwg.mxu0
    %1818 = vrot.lane.b32.xlu0 %v791, 32
    %v1819 = vpop.permute.xlu0 %1818
    %v1821 = vsel %vm903, %v1769, 0
    %v1824 = vsel %vm931, %v1819, 0
    %1826 = vmatprep.subr.bf16.mxu0 0
    %1827 = vmatpush1.bf16.msra.mxu0 %v1824
    %1828 = vmatprep.subr.bf16.mxu0 0
    %1829 = vmatpush1.bf16.msra.mxu0 0
    %1830 = vmatprep.subr.bf16.mxu0 0
    %1831 = vmatpush1.bf16.msra.mxu0 0
    %1832 = vmatprep.subr.bf16.mxu0 0
    %1833 = vmatpush1.bf16.msra.mxu0 0
    %1834 = vmatprep.subr.bf16.mxu0 0
    %1835 = vmatpush1.bf16.msra.mxu0 0
    %1836 = vmatprep.subr.bf16.mxu0 0
    %1837 = vmatpush1.bf16.msra.mxu0 0
    %1838 = vmatprep.subr.bf16.mxu0 0
    %1839 = vmatpush1.bf16.msra.mxu0 0
    %1840 = vmatprep.subr.bf16.mxu0 0
    %1841 = vmatpush1.bf16.msra.mxu0 0
    %1842 = vmatprep.subr.bf16.mxu0 0
    %1843 = vmatpush1.bf16.msra.mxu0 0
    %1844 = vmatprep.subr.bf16.mxu0 0
    %1845 = vmatpush1.bf16.msra.mxu0 0
    %1846 = vmatprep.subr.bf16.mxu0 0
    %1847 = vmatpush1.bf16.msra.mxu0 0
    %1848 = vmatprep.subr.bf16.mxu0 0
    %1849 = vmatpush1.bf16.msra.mxu0 0
    %1850 = vmatprep.subr.bf16.mxu0 0
    %1851 = vmatpush1.bf16.msra.mxu0 0
    %1852 = vmatprep.subr.bf16.mxu0 0
    %1853 = vmatpush1.bf16.msra.mxu0 0
    %1854 = vmatprep.subr.bf16.mxu0 0
    %1855 = vmatpush1.bf16.msra.mxu0 0
    %1856 = vmatprep.subr.bf16.mxu0 0
    %1857 = vmatpush1.bf16.msra.mxu0 0
    %1858 = vmatprep.mubr.bf16.mxu0 0
    %1859 = vmatmul.mubr.bf16.gmra.mrb[0].mxu0 %v1821
    %v1860 = vpop.f32.mrb[0].mxu0
    %v1861 = vadd.f32 0.0, %v1860
    %v1862 = vpop.f32.mrb[0].mxu0
    %v1863 = vpop.f32.mrb[0].mxu0
    %v1864 = vpop.f32.mrb[0].mxu0
    %1865 = vdwg.mxu0
    %v1866 = vpack.c.bf16 %v1861, %v1813
    %v1871 = vunpack.c.l.b16 %v804
    %v1872 = vunpack.c.l.b16 %v805
    %v1873 = vunpack.c.l.b16 %v806
    %v1874 = vunpack.c.l.b16 %v807
    %v1875 = vpack.c.b16 %v1872, %v1871
    %v1876 = vpack.c.b16 %v1874, %v1873
    %v1880 = vsel %vm808, %v1866, 0
    %1882 = vmatprep.subr.bf16.mxu0 0
    %1883 = vmatpush1.bf16.msra.mxu0 %v1875
    %1884 = vmatprep.subr.bf16.mxu0 0
    %1885 = vmatpush1.bf16.msra.mxu0 %v1876
    %1886 = vmatprep.subr.bf16.mxu0 0
    %1887 = vmatpush1.bf16.msra.mxu0 0
    %1888 = vmatprep.subr.bf16.mxu0 0
    %1889 = vmatpush1.bf16.msra.mxu0 0
    %1890 = vmatprep.subr.bf16.mxu0 0
    %1891 = vmatpush1.bf16.msra.mxu0 0
    %1892 = vmatprep.subr.bf16.mxu0 0
    %1893 = vmatpush1.bf16.msra.mxu0 0
    %1894 = vmatprep.subr.bf16.mxu0 0
    %1895 = vmatpush1.bf16.msra.mxu0 0
    %1896 = vmatprep.subr.bf16.mxu0 0
    %1897 = vmatpush1.bf16.msra.mxu0 0
    %1898 = vmatprep.subr.bf16.mxu0 0
    %1899 = vmatpush1.bf16.msra.mxu0 0
    %1900 = vmatprep.subr.bf16.mxu0 0
    %1901 = vmatpush1.bf16.msra.mxu0 0
    %1902 = vmatprep.subr.bf16.mxu0 0
    %1903 = vmatpush1.bf16.msra.mxu0 0
    %1904 = vmatprep.subr.bf16.mxu0 0
    %1905 = vmatpush1.bf16.msra.mxu0 0
    %1906 = vmatprep.subr.bf16.mxu0 0
    %1907 = vmatpush1.bf16.msra.mxu0 0
    %1908 = vmatprep.subr.bf16.mxu0 0
    %1909 = vmatpush1.bf16.msra.mxu0 0
    %1910 = vmatprep.subr.bf16.mxu0 0
    %1911 = vmatpush1.bf16.msra.mxu0 0
    %1912 = vmatprep.subr.bf16.mxu0 0
    %1913 = vmatpush1.bf16.msra.mxu0 0
    %1914 = vmatprep.mubr.bf16.mxu0 0
    %1915 = vmatmul.mubr.bf16.gmra.mrb[0].mxu0 %v1880
    %v1916 = vpop.f32.mrb[0].mxu0
    %v1917 = vadd.f32 0.0, %v1916
    %v1918 = vpop.f32.mrb[0].mxu0
    %v1919 = vpop.f32.mrb[0].mxu0
    %v1920 = vadd.f32 0.0, %v1919
    %v1921 = vpop.f32.mrb[0].mxu0
    %1922 = vdwg.mxu0
    %v1923 = vadd.f32 %v1642, %v1917
    %v1924 = vadd.f32 %v1643, %v1920
    %v1925 = vld [vmem:[#allocation8] sm:$0x1]
    %v1927 = vlaneseq
    %v1928 = vshrl.u32 %v1927, 7
    %v1929 = vsub.s32 0, %v1928
    %v1930 = vrot.slane %v1925, %v1929
    %v1932 = vadd.f32 %v1923, %v1930
    %v1933 = vadd.f32 %v1924, %v1930
    %v1934 = vadd.f32 %v522, %v1932
    %v1935 = vadd.f32 %v523, %v1933
    %v1936 = vld [vmem:[#allocation9] sm:$0x1]
    %v1937 = vld [vmem:[#allocation11] sm:$0x1]
    %1938 = vadd.xlane.f32.xlu0 %v1934
    %v1939 = vpop.xlane.xlu0 %1938
    %1940 = vadd.xlane.f32.xlu0 %v1935
    %v1941 = vpop.xlane.xlu0 %1940
    %v1942 = vrcp.pop 128.0
    %v1943 = vmul.f32 %v1939, %v1942
    %v1944 = vmul.f32 %v1941, %v1942
    %v1945 = vsub.f32 %v1934, %v1943
    %v1946 = vsub.f32 %v1935, %v1944
    %v1947 = vmul.f32 %v1945, %v1945
    %v1948 = vmul.f32 %v1946, %v1946
    %1949 = vadd.xlane.f32.xlu0 %v1947
    %v1950 = vpop.xlane.xlu0 %1949
    %1951 = vadd.xlane.f32.xlu0 %v1948
    %v1952 = vpop.xlane.xlu0 %1951
    %v1953 = vmul.f32 %v1950, %v1942
    %v1954 = vmul.f32 %v1952, %v1942
    %v1955 = vadd.f32 %v1953, 1e-05
    %v1956 = vadd.f32 %v1954, 1e-05
    %v1957 = vrsqrt.pop %v1955
    %v1958 = vrsqrt.pop %v1956
    %v1959 = vmul.f32 %v1945, %v1957
    %v1960 = vmul.f32 %v1946, %v1958
    %v1962 = vlaneseq
    %v1963 = vshrl.u32 %v1962, 7
    %v1964 = vsub.s32 0, %v1963
    %v1965 = vrot.slane %v1936, %v1964
    %v1967 = vmul.f32 %v1959, %v1965
    %v1968 = vmul.f32 %v1960, %v1965
    %v1970 = vlaneseq
    %v1971 = vshrl.u32 %v1970, 7
    %v1972 = vsub.s32 0, %v1971
    %v1973 = vrot.slane %v1937, %v1972
    %v1975 = vadd.f32 %v1967, %v1973
    %v1976 = vadd.f32 %v1968, %v1973
    %v1977 = vpack.c.bf16 %v1976, %v1975
    %v1978 = vld [vmem:[%s27] sm:$0xff]
    %v1979 = vld [vmem:[%s27 + $0x8] sm:$0xff]
    %v1980 = vld [vmem:[%s27 + $0x10] sm:$0xff]
    %v1981 = vld [vmem:[%s27 + $0x18] sm:$0xff]
    %v1982 = vld [vmem:[%s27 + $0x20] sm:$0xff]
    %v1983 = vld [vmem:[%s27 + $0x28] sm:$0xff]
    %v1984 = vld [vmem:[%s27 + $0x30] sm:$0xff]
    %v1985 = vld [vmem:[%s27 + $0x38] sm:$0xff]
    %v1986 = vld [vmem:[%s27 + $0x40] sm:$0xff]
    %v1987 = vld [vmem:[%s27 + $0x48] sm:$0xff]
    %v1988 = vld [vmem:[%s27 + $0x50] sm:$0xff]
    %v1989 = vld [vmem:[%s27 + $0x58] sm:$0xff]
    %v1990 = vld [vmem:[%s27 + $0x60] sm:$0xff]
    %v1991 = vld [vmem:[%s27 + $0x68] sm:$0xff]
    %v1992 = vld [vmem:[%s27 + $0x70] sm:$0xff]
    %v1993 = vld [vmem:[%s27 + $0x78] sm:$0xff]
    %v1994 = vld [vmem:[%s27 + $0x80] sm:$0xff]
    %v1995 = vld [vmem:[%s27 + $0x88] sm:$0xff]
    %v1996 = vld [vmem:[%s27 + $0x90] sm:$0xff]
    %v1997 = vld [vmem:[%s27 + $0x98] sm:$0xff]
    %v1998 = vld [vmem:[%s27 + $0xa0] sm:$0xff]
    %v1999 = vld [vmem:[%s27 + $0xa8] sm:$0xff]
    %v2000 = vld [vmem:[%s27 + $0xb0] sm:$0xff]
    %v2001 = vld [vmem:[%s27 + $0xb8] sm:$0xff]
    %v2002 = vld [vmem:[%s27 + $0xc0] sm:$0xff]
    %v2003 = vld [vmem:[%s27 + $0xc8] sm:$0xff]
    %v2004 = vld [vmem:[%s27 + $0xd0] sm:$0xff]
    %v2005 = vld [vmem:[%s27 + $0xd8] sm:$0xff]
    %v2006 = vld [vmem:[%s27 + $0xe0] sm:$0xff]
    %v2007 = vld [vmem:[%s27 + $0xe8] sm:$0xff]
    %v2008 = vld [vmem:[%s27 + $0xf0] sm:$0xff]
    %v2009 = vld [vmem:[%s27 + $0xf8] sm:$0xff]
    %v2010 = vld [vmem:[#allocation12] sm:$0xf]
    %v2012 = vlaneseq
    %v2013 = vshrl.u32 %v2012, 7
    %v2014 = vsub.s32 0, %v2013
    %v2015 = vrot.slane %v2010, %v2014
    %v2016 = vlaneseq
    %v2017 = vshrl.u32 %v2016, 7
    %v2018 = vsub.s32 1, %v2017
    %v2019 = vrot.slane %v2010, %v2018
    %v2020 = vlaneseq
    %v2021 = vshrl.u32 %v2020, 7
    %v2022 = vsub.s32 2, %v2021
    %v2023 = vrot.slane %v2010, %v2022
    %v2024 = vlaneseq
    %v2025 = vshrl.u32 %v2024, 7
    %v2026 = vsub.s32 3, %v2025
    %v2027 = vrot.slane %v2010, %v2026
    %v2064 = vunpack.c.l.b16 %v1978
    %v2065 = vunpack.c.h.b16 %v1978
    %v2066 = vunpack.c.l.b16 %v1979
    %v2067 = vunpack.c.h.b16 %v1979
    %v2068 = vunpack.c.l.b16 %v1980
    %v2069 = vunpack.c.h.b16 %v1980
    %v2070 = vunpack.c.l.b16 %v1981
    %v2071 = vunpack.c.h.b16 %v1981
    %v2072 = vunpack.c.l.b16 %v1982
    %v2073 = vunpack.c.h.b16 %v1982
    %v2074 = vunpack.c.l.b16 %v1983
    %v2075 = vunpack.c.h.b16 %v1983
    %v2076 = vunpack.c.l.b16 %v1984
    %v2077 = vunpack.c.h.b16 %v1984
    %v2078 = vunpack.c.l.b16 %v1985
    %v2079 = vunpack.c.h.b16 %v1985
    %v2080 = vunpack.c.l.b16 %v1986
    %v2081 = vunpack.c.h.b16 %v1986
    %v2082 = vunpack.c.l.b16 %v1987
    %v2083 = vunpack.c.h.b16 %v1987
    %v2084 = vunpack.c.l.b16 %v1988
    %v2085 = vunpack.c.h.b16 %v1988
    %v2086 = vunpack.c.l.b16 %v1989
    %v2087 = vunpack.c.h.b16 %v1989
    %v2088 = vunpack.c.l.b16 %v1990
    %v2089 = vunpack.c.h.b16 %v1990
    %v2090 = vunpack.c.l.b16 %v1991
    %v2091 = vunpack.c.h.b16 %v1991
    %v2092 = vunpack.c.l.b16 %v1992
    %v2093 = vunpack.c.h.b16 %v1992
    %v2094 = vunpack.c.l.b16 %v1993
    %v2095 = vunpack.c.h.b16 %v1993
    %v2096 = vunpack.c.l.b16 %v1994
    %v2097 = vunpack.c.h.b16 %v1994
    %v2098 = vunpack.c.l.b16 %v1995
    %v2099 = vunpack.c.h.b16 %v1995
    %v2100 = vunpack.c.l.b16 %v1996
    %v2101 = vunpack.c.h.b16 %v1996
    %v2102 = vunpack.c.l.b16 %v1997
    %v2103 = vunpack.c.h.b16 %v1997
    %v2104 = vunpack.c.l.b16 %v1998
    %v2105 = vunpack.c.h.b16 %v1998
    %v2106 = vunpack.c.l.b16 %v1999
    %v2107 = vunpack.c.h.b16 %v1999
    %v2108 = vunpack.c.l.b16 %v2000
    %v2109 = vunpack.c.h.b16 %v2000
    %v2110 = vunpack.c.l.b16 %v2001
    %v2111 = vunpack.c.h.b16 %v2001
    %v2112 = vunpack.c.l.b16 %v2002
    %v2113 = vunpack.c.h.b16 %v2002
    %v2114 = vunpack.c.l.b16 %v2003
    %v2115 = vunpack.c.h.b16 %v2003
    %v2116 = vunpack.c.l.b16 %v2004
    %v2117 = vunpack.c.h.b16 %v2004
    %v2118 = vunpack.c.l.b16 %v2005
    %v2119 = vunpack.c.h.b16 %v2005
    %v2120 = vunpack.c.l.b16 %v2006
    %v2121 = vunpack.c.h.b16 %v2006
    %v2122 = vunpack.c.l.b16 %v2007
    %v2123 = vunpack.c.h.b16 %v2007
    %v2124 = vunpack.c.l.b16 %v2008
    %v2125 = vunpack.c.h.b16 %v2008
    %v2126 = vunpack.c.l.b16 %v2009
    %v2127 = vunpack.c.h.b16 %v2009
    %v2128 = vpack.c.b16 %v2068, %v2064
    %v2129 = vpack.c.b16 %v2069, %v2065
    %v2130 = vpack.c.b16 %v2070, %v2066
    %v2131 = vpack.c.b16 %v2071, %v2067
    %v2132 = vpack.c.b16 %v2076, %v2072
    %v2133 = vpack.c.b16 %v2077, %v2073
    %v2134 = vpack.c.b16 %v2078, %v2074
    %v2135 = vpack.c.b16 %v2079, %v2075
    %v2136 = vpack.c.b16 %v2084, %v2080
    %v2137 = vpack.c.b16 %v2085, %v2081
    %v2138 = vpack.c.b16 %v2086, %v2082
    %v2139 = vpack.c.b16 %v2087, %v2083
    %v2140 = vpack.c.b16 %v2092, %v2088
    %v2141 = vpack.c.b16 %v2093, %v2089
    %v2142 = vpack.c.b16 %v2094, %v2090
    %v2143 = vpack.c.b16 %v2095, %v2091
    %v2144 = vpack.c.b16 %v2100, %v2096
    %v2145 = vpack.c.b16 %v2101, %v2097
    %v2146 = vpack.c.b16 %v2102, %v2098
    %v2147 = vpack.c.b16 %v2103, %v2099
    %v2148 = vpack.c.b16 %v2108, %v2104
    %v2149 = vpack.c.b16 %v2109, %v2105
    %v2150 = vpack.c.b16 %v2110, %v2106
    %v2151 = vpack.c.b16 %v2111, %v2107
    %v2152 = vpack.c.b16 %v2116, %v2112
    %v2153 = vpack.c.b16 %v2117, %v2113
    %v2154 = vpack.c.b16 %v2118, %v2114
    %v2155 = vpack.c.b16 %v2119, %v2115
    %v2156 = vpack.c.b16 %v2124, %v2120
    %v2157 = vpack.c.b16 %v2125, %v2121
    %v2158 = vpack.c.b16 %v2126, %v2122
    %v2159 = vpack.c.b16 %v2127, %v2123
    %2192 = vmatprep.subr.bf16.mxu0 %v2129
    %2193 = vmatpush1.bf16.msra.mxu0 %v2128
    %2194 = vmatprep.subr.bf16.mxu0 %v2133
    %2195 = vmatpush1.bf16.msra.mxu0 %v2132
    %2196 = vmatprep.subr.bf16.mxu0 %v2137
    %2197 = vmatpush1.bf16.msra.mxu0 %v2136
    %2198 = vmatprep.subr.bf16.mxu0 %v2141
    %2199 = vmatpush1.bf16.msra.mxu0 %v2140
    %2200 = vmatprep.subr.bf16.mxu0 %v2145
    %2201 = vmatpush1.bf16.msra.mxu0 %v2144
    %2202 = vmatprep.subr.bf16.mxu0 %v2149
    %2203 = vmatpush1.bf16.msra.mxu0 %v2148
    %2204 = vmatprep.subr.bf16.mxu0 %v2153
    %2205 = vmatpush1.bf16.msra.mxu0 %v2152
    %2206 = vmatprep.subr.bf16.mxu0 %v2157
    %2207 = vmatpush1.bf16.msra.mxu0 %v2156
    %2208 = vmatprep.subr.bf16.mxu0 0
    %2209 = vmatpush1.bf16.msra.mxu0 0
    %2210 = vmatprep.subr.bf16.mxu0 0
    %2211 = vmatpush1.bf16.msra.mxu0 0
    %2212 = vmatprep.subr.bf16.mxu0 0
    %2213 = vmatpush1.bf16.msra.mxu0 0
    %2214 = vmatprep.subr.bf16.mxu0 0
    %2215 = vmatpush1.bf16.msra.mxu0 0
    %2216 = vmatprep.subr.bf16.mxu0 0
    %2217 = vmatpush1.bf16.msra.mxu0 0
    %2218 = vmatprep.subr.bf16.mxu0 0
    %2219 = vmatpush1.bf16.msra.mxu0 0
    %2220 = vmatprep.subr.bf16.mxu0 0
    %2221 = vmatpush1.bf16.msra.mxu0 0
    %2222 = vmatprep.subr.bf16.mxu0 0
    %2223 = vmatpush1.bf16.msra.mxu0 0
    %2224 = vmatprep.mubr.bf16.mxu0 0
    %2225 = vmatmul.mubr.bf16.gmra.mrb[0].mxu0 %v1977
    %v2226 = vpop.f32.mrb[0].mxu0
    %v2227 = vadd.f32 %v2015, %v2226
    %v2228 = vpop.f32.mrb[0].mxu0
    %v2229 = vadd.f32 %v2019, %v2228
    %v2230 = vpop.f32.mrb[0].mxu0
    %v2231 = vadd.f32 %v2015, %v2230
    %v2232 = vpop.f32.mrb[0].mxu0
    %v2233 = vadd.f32 %v2019, %v2232
    %2234 = vdwg.mxu0
    %2235 = vmatprep.subr.bf16.mxu0 %v2131
    %2236 = vmatpush1.bf16.msra.mxu0 %v2130
    %2237 = vmatprep.subr.bf16.mxu0 %v2135
    %2238 = vmatpush1.bf16.msra.mxu0 %v2134
    %2239 = vmatprep.subr.bf16.mxu0 %v2139
    %2240 = vmatpush1.bf16.msra.mxu0 %v2138
    %2241 = vmatprep.subr.bf16.mxu0 %v2143
    %2242 = vmatpush1.bf16.msra.mxu0 %v2142
    %2243 = vmatprep.subr.bf16.mxu0 %v2147
    %2244 = vmatpush1.bf16.msra.mxu0 %v2146
    %2245 = vmatprep.subr.bf16.mxu0 %v2151
    %2246 = vmatpush1.bf16.msra.mxu0 %v2150
    %2247 = vmatprep.subr.bf16.mxu0 %v2155
    %2248 = vmatpush1.bf16.msra.mxu0 %v2154
    %2249 = vmatprep.subr.bf16.mxu0 %v2159
    %2250 = vmatpush1.bf16.msra.mxu0 %v2158
    %2251 = vmatprep.subr.bf16.mxu0 0
    %2252 = vmatpush1.bf16.msra.mxu0 0
    %2253 = vmatprep.subr.bf16.mxu0 0
    %2254 = vmatpush1.bf16.msra.mxu0 0
    %2255 = vmatprep.subr.bf16.mxu0 0
    %2256 = vmatpush1.bf16.msra.mxu0 0
    %2257 = vmatprep.subr.bf16.mxu0 0
    %2258 = vmatpush1.bf16.msra.mxu0 0
    %2259 = vmatprep.subr.bf16.mxu0 0
    %2260 = vmatpush1.bf16.msra.mxu0 0
    %2261 = vmatprep.subr.bf16.mxu0 0
    %2262 = vmatpush1.bf16.msra.mxu0 0
    %2263 = vmatprep.subr.bf16.mxu0 0
    %2264 = vmatpush1.bf16.msra.mxu0 0
    %2265 = vmatprep.subr.bf16.mxu0 0
    %2266 = vmatpush1.bf16.msra.mxu0 0
    %2267 = vmatprep.mubr.bf16.mxu0 0
    %2268 = vmatmul.mubr.bf16.gmra.mrb[0].mxu0 %v1977
    %v2269 = vpop.f32.mrb[0].mxu0
    %v2270 = vadd.f32 %v2023, %v2269
    %v2271 = vpop.f32.mrb[0].mxu0
    %v2272 = vadd.f32 %v2027, %v2271
    %v2273 = vpop.f32.mrb[0].mxu0
    %v2274 = vadd.f32 %v2023, %v2273
    %v2275 = vpop.f32.mrb[0].mxu0
    %v2276 = vadd.f32 %v2027, %v2275
    %2277 = vdwg.mxu0
    %v2278 = vmax.f32 %v2227, 0.0
    %v2279 = vmax.f32 %v2229, 0.0
    %v2280 = vmax.f32 %v2270, 0.0
    %v2281 = vmax.f32 %v2272, 0.0
    %v2282 = vmax.f32 %v2231, 0.0
    %v2283 = vmax.f32 %v2233, 0.0
    %v2284 = vmax.f32 %v2274, 0.0
    %v2285 = vmax.f32 %v2276, 0.0
    %v2286 = vpack.c.bf16 %v2282, %v2278
    %v2287 = vpack.c.bf16 %v2283, %v2279
    %v2288 = vpack.c.bf16 %v2284, %v2280
    %v2289 = vpack.c.bf16 %v2285, %v2281
    %v2290 = vld [vmem:[#allocation14] sm:$0xf]
    %v2291 = vld [vmem:[#allocation14 + $0x4] sm:$0xf]
    %v2292 = vld [vmem:[#allocation14 + $0x8] sm:$0xf]
    %v2293 = vld [vmem:[#allocation14 + $0xc] sm:$0xf]
    %v2294 = vld [vmem:[#allocation14 + $0x10] sm:$0xf]
    %v2295 = vld [vmem:[#allocation14 + $0x14] sm:$0xf]
    %v2296 = vld [vmem:[#allocation14 + $0x18] sm:$0xf]
    %v2297 = vld [vmem:[#allocation14 + $0x1c] sm:$0xf]
    %v2298 = vld [vmem:[#allocation14 + $0x20] sm:$0xf]
    %v2299 = vld [vmem:[#allocation14 + $0x24] sm:$0xf]
    %v2300 = vld [vmem:[#allocation14 + $0x28] sm:$0xf]
    %v2301 = vld [vmem:[#allocation14 + $0x2c] sm:$0xf]
    %v2302 = vld [vmem:[#allocation14 + $0x30] sm:$0xf]
    %v2303 = vld [vmem:[#allocation14 + $0x34] sm:$0xf]
    %v2304 = vld [vmem:[#allocation14 + $0x38] sm:$0xf]
    %v2305 = vld [vmem:[#allocation14 + $0x3c] sm:$0xf]
    %v2306 = vld [vmem:[#allocation14 + $0x40] sm:$0xf]
    %v2307 = vld [vmem:[#allocation14 + $0x44] sm:$0xf]
    %v2308 = vld [vmem:[#allocation14 + $0x48] sm:$0xf]
    %v2309 = vld [vmem:[#allocation14 + $0x4c] sm:$0xf]
    %v2310 = vld [vmem:[#allocation14 + $0x50] sm:$0xf]
    %v2311 = vld [vmem:[#allocation14 + $0x54] sm:$0xf]
    %v2312 = vld [vmem:[#allocation14 + $0x58] sm:$0xf]
    %v2313 = vld [vmem:[#allocation14 + $0x5c] sm:$0xf]
    %v2314 = vld [vmem:[#allocation14 + $0x60] sm:$0xf]
    %v2315 = vld [vmem:[#allocation14 + $0x64] sm:$0xf]
    %v2316 = vld [vmem:[#allocation14 + $0x68] sm:$0xf]
    %v2317 = vld [vmem:[#allocation14 + $0x6c] sm:$0xf]
    %v2318 = vld [vmem:[#allocation14 + $0x70] sm:$0xf]
    %v2319 = vld [vmem:[#allocation14 + $0x74] sm:$0xf]
    %v2320 = vld [vmem:[#allocation14 + $0x78] sm:$0xf]
    %v2321 = vld [vmem:[#allocation14 + $0x7c] sm:$0xf]
    %v2322 = vld [vmem:[#allocation14 + $0x80] sm:$0xf]
    %v2323 = vld [vmem:[#allocation14 + $0x84] sm:$0xf]
    %v2324 = vld [vmem:[#allocation14 + $0x88] sm:$0xf]
    %v2325 = vld [vmem:[#allocation14 + $0x8c] sm:$0xf]
    %v2326 = vld [vmem:[#allocation14 + $0x90] sm:$0xf]
    %v2327 = vld [vmem:[#allocation14 + $0x94] sm:$0xf]
    %v2328 = vld [vmem:[#allocation14 + $0x98] sm:$0xf]
    %v2329 = vld [vmem:[#allocation14 + $0x9c] sm:$0xf]
    %v2330 = vld [vmem:[#allocation14 + $0xa0] sm:$0xf]
    %v2331 = vld [vmem:[#allocation14 + $0xa4] sm:$0xf]
    %v2332 = vld [vmem:[#allocation14 + $0xa8] sm:$0xf]
    %v2333 = vld [vmem:[#allocation14 + $0xac] sm:$0xf]
    %v2334 = vld [vmem:[#allocation14 + $0xb0] sm:$0xf]
    %v2335 = vld [vmem:[#allocation14 + $0xb4] sm:$0xf]
    %v2336 = vld [vmem:[#allocation14 + $0xb8] sm:$0xf]
    %v2337 = vld [vmem:[#allocation14 + $0xbc] sm:$0xf]
    %v2338 = vld [vmem:[#allocation14 + $0xc0] sm:$0xf]
    %v2339 = vld [vmem:[#allocation14 + $0xc4] sm:$0xf]
    %v2340 = vld [vmem:[#allocation14 + $0xc8] sm:$0xf]
    %v2341 = vld [vmem:[#allocation14 + $0xcc] sm:$0xf]
    %v2342 = vld [vmem:[#allocation14 + $0xd0] sm:$0xf]
    %v2343 = vld [vmem:[#allocation14 + $0xd4] sm:$0xf]
    %v2344 = vld [vmem:[#allocation14 + $0xd8] sm:$0xf]
    %v2345 = vld [vmem:[#allocation14 + $0xdc] sm:$0xf]
    %v2346 = vld [vmem:[#allocation14 + $0xe0] sm:$0xf]
    %v2347 = vld [vmem:[#allocation14 + $0xe4] sm:$0xf]
    %v2348 = vld [vmem:[#allocation14 + $0xe8] sm:$0xf]
    %v2349 = vld [vmem:[#allocation14 + $0xec] sm:$0xf]
    %v2350 = vld [vmem:[#allocation14 + $0xf0] sm:$0xf]
    %v2351 = vld [vmem:[#allocation14 + $0xf4] sm:$0xf]
    %v2352 = vld [vmem:[#allocation14 + $0xf8] sm:$0xf]
    %v2353 = vld [vmem:[#allocation14 + $0xfc] sm:$0xf]
    %v2354 = vld [vmem:[#allocation15] sm:$0x1]
    %v2356 = vlaneseq
    %v2357 = vshrl.u32 %v2356, 7
    %v2358 = vsub.s32 0, %v2357
    %v2359 = vrot.slane %v2354, %v2358
    %v2425 = vunpack.c.l.b16 %v2290
    %v2426 = vunpack.c.l.b16 %v2291
    %v2427 = vunpack.c.l.b16 %v2292
    %v2428 = vunpack.c.l.b16 %v2293
    %v2429 = vunpack.c.l.b16 %v2294
    %v2430 = vunpack.c.l.b16 %v2295
    %v2431 = vunpack.c.l.b16 %v2296
    %v2432 = vunpack.c.l.b16 %v2297
    %v2433 = vunpack.c.l.b16 %v2298
    %v2434 = vunpack.c.l.b16 %v2299
    %v2435 = vunpack.c.l.b16 %v2300
    %v2436 = vunpack.c.l.b16 %v2301
    %v2437 = vunpack.c.l.b16 %v2302
    %v2438 = vunpack.c.l.b16 %v2303
    %v2439 = vunpack.c.l.b16 %v2304
    %v2440 = vunpack.c.l.b16 %v2305
    %v2441 = vunpack.c.l.b16 %v2306
    %v2442 = vunpack.c.l.b16 %v2307
    %v2443 = vunpack.c.l.b16 %v2308
    %v2444 = vunpack.c.l.b16 %v2309
    %v2445 = vunpack.c.l.b16 %v2310
    %v2446 = vunpack.c.l.b16 %v2311
    %v2447 = vunpack.c.l.b16 %v2312
    %v2448 = vunpack.c.l.b16 %v2313
    %v2449 = vunpack.c.l.b16 %v2314
    %v2450 = vunpack.c.l.b16 %v2315
    %v2451 = vunpack.c.l.b16 %v2316
    %v2452 = vunpack.c.l.b16 %v2317
    %v2453 = vunpack.c.l.b16 %v2318
    %v2454 = vunpack.c.l.b16 %v2319
    %v2455 = vunpack.c.l.b16 %v2320
    %v2456 = vunpack.c.l.b16 %v2321
    %v2457 = vunpack.c.l.b16 %v2322
    %v2458 = vunpack.c.l.b16 %v2323
    %v2459 = vunpack.c.l.b16 %v2324
    %v2460 = vunpack.c.l.b16 %v2325
    %v2461 = vunpack.c.l.b16 %v2326
    %v2462 = vunpack.c.l.b16 %v2327
    %v2463 = vunpack.c.l.b16 %v2328
    %v2464 = vunpack.c.l.b16 %v2329
    %v2465 = vunpack.c.l.b16 %v2330
    %v2466 = vunpack.c.l.b16 %v2331
    %v2467 = vunpack.c.l.b16 %v2332
    %v2468 = vunpack.c.l.b16 %v2333
    %v2469 = vunpack.c.l.b16 %v2334
    %v2470 = vunpack.c.l.b16 %v2335
    %v2471 = vunpack.c.l.b16 %v2336
    %v2472 = vunpack.c.l.b16 %v2337
    %v2473 = vunpack.c.l.b16 %v2338
    %v2474 = vunpack.c.l.b16 %v2339
    %v2475 = vunpack.c.l.b16 %v2340
    %v2476 = vunpack.c.l.b16 %v2341
    %v2477 = vunpack.c.l.b16 %v2342
    %v2478 = vunpack.c.l.b16 %v2343
    %v2479 = vunpack.c.l.b16 %v2344
    %v2480 = vunpack.c.l.b16 %v2345
    %v2481 = vunpack.c.l.b16 %v2346
    %v2482 = vunpack.c.l.b16 %v2347
    %v2483 = vunpack.c.l.b16 %v2348
    %v2484 = vunpack.c.l.b16 %v2349
    %v2485 = vunpack.c.l.b16 %v2350
    %v2486 = vunpack.c.l.b16 %v2351
    %v2487 = vunpack.c.l.b16 %v2352
    %v2488 = vunpack.c.l.b16 %v2353
    %v2489 = vpack.c.b16 %v2426, %v2425
    %v2490 = vpack.c.b16 %v2428, %v2427
    %v2491 = vpack.c.b16 %v2430, %v2429
    %v2492 = vpack.c.b16 %v2432, %v2431
    %v2493 = vpack.c.b16 %v2434, %v2433
    %v2494 = vpack.c.b16 %v2436, %v2435
    %v2495 = vpack.c.b16 %v2438, %v2437
    %v2496 = vpack.c.b16 %v2440, %v2439
    %v2497 = vpack.c.b16 %v2442, %v2441
    %v2498 = vpack.c.b16 %v2444, %v2443
    %v2499 = vpack.c.b16 %v2446, %v2445
    %v2500 = vpack.c.b16 %v2448, %v2447
    %v2501 = vpack.c.b16 %v2450, %v2449
    %v2502 = vpack.c.b16 %v2452, %v2451
    %v2503 = vpack.c.b16 %v2454, %v2453
    %v2504 = vpack.c.b16 %v2456, %v2455
    %v2505 = vpack.c.b16 %v2458, %v2457
    %v2506 = vpack.c.b16 %v2460, %v2459
    %v2507 = vpack.c.b16 %v2462, %v2461
    %v2508 = vpack.c.b16 %v2464, %v2463
    %v2509 = vpack.c.b16 %v2466, %v2465
    %v2510 = vpack.c.b16 %v2468, %v2467
    %v2511 = vpack.c.b16 %v2470, %v2469
    %v2512 = vpack.c.b16 %v2472, %v2471
    %v2513 = vpack.c.b16 %v2474, %v2473
    %v2514 = vpack.c.b16 %v2476, %v2475
    %v2515 = vpack.c.b16 %v2478, %v2477
    %v2516 = vpack.c.b16 %v2480, %v2479
    %v2517 = vpack.c.b16 %v2482, %v2481
    %v2518 = vpack.c.b16 %v2484, %v2483
    %v2519 = vpack.c.b16 %v2486, %v2485
    %v2520 = vpack.c.b16 %v2488, %v2487
    %2553 = vmatprep.subr.bf16.mxu0 0
    %2554 = vmatpush1.bf16.msra.mxu0 %v2489
    %2555 = vmatprep.subr.bf16.mxu0 0
    %2556 = vmatpush1.bf16.msra.mxu0 %v2490
    %2557 = vmatprep.subr.bf16.mxu0 0
    %2558 = vmatpush1.bf16.msra.mxu0 %v2491
    %2559 = vmatprep.subr.bf16.mxu0 0
    %2560 = vmatpush1.bf16.msra.mxu0 %v2492
    %2561 = vmatprep.subr.bf16.mxu0 0
    %2562 = vmatpush1.bf16.msra.mxu0 %v2493
    %2563 = vmatprep.subr.bf16.mxu0 0
    %2564 = vmatpush1.bf16.msra.mxu0 %v2494
    %2565 = vmatprep.subr.bf16.mxu0 0
    %2566 = vmatpush1.bf16.msra.mxu0 %v2495
    %2567 = vmatprep.subr.bf16.mxu0 0
    %2568 = vmatpush1.bf16.msra.mxu0 %v2496
    %2569 = vmatprep.subr.bf16.mxu0 0
    %2570 = vmatpush1.bf16.msra.mxu0 %v2497
    %2571 = vmatprep.subr.bf16.mxu0 0
    %2572 = vmatpush1.bf16.msra.mxu0 %v2498
    %2573 = vmatprep.subr.bf16.mxu0 0
    %2574 = vmatpush1.bf16.msra.mxu0 %v2499
    %2575 = vmatprep.subr.bf16.mxu0 0
    %2576 = vmatpush1.bf16.msra.mxu0 %v2500
    %2577 = vmatprep.subr.bf16.mxu0 0
    %2578 = vmatpush1.bf16.msra.mxu0 %v2501
    %2579 = vmatprep.subr.bf16.mxu0 0
    %2580 = vmatpush1.bf16.msra.mxu0 %v2502
    %2581 = vmatprep.subr.bf16.mxu0 0
    %2582 = vmatpush1.bf16.msra.mxu0 %v2503
    %2583 = vmatprep.subr.bf16.mxu0 0
    %2584 = vmatpush1.bf16.msra.mxu0 %v2504
    %2585 = vmatprep.mubr.bf16.mxu0 %v2287
    %2586 = vmatmul.mubr.bf16.gmra.mrb[0].mxu0 %v2286
    %v2587 = vpop.f32.mrb[0].mxu0
    %v2588 = vadd.f32 %v2359, %v2587
    %v2589 = vpop.f32.mrb[0].mxu0
    %v2590 = vpop.f32.mrb[0].mxu0
    %v2591 = vadd.f32 %v2359, %v2590
    %v2592 = vpop.f32.mrb[0].mxu0
    %2593 = vdwg.mxu0
    %2594 = vmatprep.subr.bf16.mxu0 0
    %2595 = vmatpush1.bf16.msra.mxu0 %v2505
    %2596 = vmatprep.subr.bf16.mxu0 0
    %2597 = vmatpush1.bf16.msra.mxu0 %v2506
    %2598 = vmatprep.subr.bf16.mxu0 0
    %2599 = vmatpush1.bf16.msra.mxu0 %v2507
    %2600 = vmatprep.subr.bf16.mxu0 0
    %2601 = vmatpush1.bf16.msra.mxu0 %v2508
    %2602 = vmatprep.subr.bf16.mxu0 0
    %2603 = vmatpush1.bf16.msra.mxu0 %v2509
    %2604 = vmatprep.subr.bf16.mxu0 0
    %2605 = vmatpush1.bf16.msra.mxu0 %v2510
    %2606 = vmatprep.subr.bf16.mxu0 0
    %2607 = vmatpush1.bf16.msra.mxu0 %v2511
    %2608 = vmatprep.subr.bf16.mxu0 0
    %2609 = vmatpush1.bf16.msra.mxu0 %v2512
    %2610 = vmatprep.subr.bf16.mxu0 0
    %2611 = vmatpush1.bf16.msra.mxu0 %v2513
    %2612 = vmatprep.subr.bf16.mxu0 0
    %2613 = vmatpush1.bf16.msra.mxu0 %v2514
    %2614 = vmatprep.subr.bf16.mxu0 0
    %2615 = vmatpush1.bf16.msra.mxu0 %v2515
    %2616 = vmatprep.subr.bf16.mxu0 0
    %2617 = vmatpush1.bf16.msra.mxu0 %v2516
    %2618 = vmatprep.subr.bf16.mxu0 0
    %2619 = vmatpush1.bf16.msra.mxu0 %v2517
    %2620 = vmatprep.subr.bf16.mxu0 0
    %2621 = vmatpush1.bf16.msra.mxu0 %v2518
    %2622 = vmatprep.subr.bf16.mxu0 0
    %2623 = vmatpush1.bf16.msra.mxu0 %v2519
    %2624 = vmatprep.subr.bf16.mxu0 0
    %2625 = vmatpush1.bf16.msra.mxu0 %v2520
    %2626 = vmatprep.mubr.bf16.mxu0 %v2289
    %2627 = vmatmul.mubr.bf16.gmra.mrb[0].mxu0 %v2288
    %v2628 = vpop.f32.mrb[0].mxu0
    %v2629 = vadd.f32 %v2588, %v2628
    %v2630 = vpop.f32.mrb[0].mxu0
    %v2631 = vpop.f32.mrb[0].mxu0
    %v2632 = vadd.f32 %v2591, %v2631
    %v2633 = vpop.f32.mrb[0].mxu0
    %2634 = vdwg.mxu0
    %v2635 = vadd.f32 %v1975, %v2629
    %v2636 = vadd.f32 %v1976, %v2632
    %v2637 = vld [vmem:[#allocation17] sm:$0x1]
    %v2638 = vld [vmem:[#allocation18] sm:$0x1]
    %2639 = vadd.xlane.f32.xlu0 %v2635
    %v2640 = vpop.xlane.xlu0 %2639
    %2641 = vadd.xlane.f32.xlu0 %v2636
    %v2642 = vpop.xlane.xlu0 %2641
    %v2643 = vmul.f32 %v2640, %v1942
    %v2644 = vmul.f32 %v2642, %v1942
    %v2645 = vsub.f32 %v2635, %v2643
    %v2646 = vsub.f32 %v2636, %v2644
    %v2647 = vmul.f32 %v2645, %v2645
    %v2648 = vmul.f32 %v2646, %v2646
    %2649 = vadd.xlane.f32.xlu0 %v2647
    %v2650 = vpop.xlane.xlu0 %2649
    %2651 = vadd.xlane.f32.xlu0 %v2648
    %v2652 = vpop.xlane.xlu0 %2651
    %v2653 = vmul.f32 %v2650, %v1942
    %v2654 = vmul.f32 %v2652, %v1942
    %v2655 = vadd.f32 %v2653, 1e-05
    %v2656 = vadd.f32 %v2654, 1e-05
    %v2657 = vrsqrt.pop %v2655
    %v2658 = vrsqrt.pop %v2656
    %v2659 = vmul.f32 %v2645, %v2657
    %v2660 = vmul.f32 %v2646, %v2658
    %v2662 = vlaneseq
    %v2663 = vshrl.u32 %v2662, 7
    %v2664 = vsub.s32 0, %v2663
    %v2665 = vrot.slane %v2637, %v2664
    %v2667 = vmul.f32 %v2659, %v2665
    %v2668 = vmul.f32 %v2660, %v2665
    %v2670 = vlaneseq
    %v2671 = vshrl.u32 %v2670, 7
    %v2672 = vsub.s32 0, %v2671
    %v2673 = vrot.slane %v2638, %v2672
    %v2675 = vadd.f32 %v2667, %v2673
    %v2676 = vadd.f32 %v2668, %v2673
    %v2677 = vpack.c.bf16 %v2676, %v2675
    %s2678 = scalar_lea.vmem [#allocation3], 192
    %v2679 = vld [vmem:[%s2678] sm:$0xff]
    %v2680 = vld [vmem:[%s2678 + $0x8] sm:$0xf]
    %v2681 = vld [vmem:[%s2678 + $0xc] sm:$0xff]
    %v2682 = vld [vmem:[%s2678 + $0x14] sm:$0xf]
    %v2683 = vld [vmem:[%s2678 + $0x18] sm:$0xff]
    %v2684 = vld [vmem:[%s2678 + $0x20] sm:$0xf]
    %v2685 = vld [vmem:[%s2678 + $0x24] sm:$0xff]
    %v2686 = vld [vmem:[%s2678 + $0x2c] sm:$0xf]
    %v2687 = vld [vmem:[%s2678 + $0x30] sm:$0xff]
    %v2688 = vld [vmem:[%s2678 + $0x38] sm:$0xf]
    %v2689 = vld [vmem:[%s2678 + $0x3c] sm:$0xff]
    %v2690 = vld [vmem:[%s2678 + $0x44] sm:$0xf]
    %v2691 = vld [vmem:[%s2678 + $0x48] sm:$0xff]
    %v2692 = vld [vmem:[%s2678 + $0x50] sm:$0xf]
    %v2693 = vld [vmem:[%s2678 + $0x54] sm:$0xff]
    %v2694 = vld [vmem:[%s2678 + $0x5c] sm:$0xf]
    %v2695 = vld [vmem:[%s2678 + $0x60] sm:$0xff]
    %v2696 = vld [vmem:[%s2678 + $0x68] sm:$0xf]
    %v2697 = vld [vmem:[%s2678 + $0x6c] sm:$0xff]
    %v2698 = vld [vmem:[%s2678 + $0x74] sm:$0xf]
    %v2699 = vld [vmem:[%s2678 + $0x78] sm:$0xff]
    %v2700 = vld [vmem:[%s2678 + $0x80] sm:$0xf]
    %v2701 = vld [vmem:[%s2678 + $0x84] sm:$0xff]
    %v2702 = vld [vmem:[%s2678 + $0x8c] sm:$0xf]
    %v2703 = vld [vmem:[%s2678 + $0x90] sm:$0xff]
    %v2704 = vld [vmem:[%s2678 + $0x98] sm:$0xf]
    %v2705 = vld [vmem:[%s2678 + $0x9c] sm:$0xff]
    %v2706 = vld [vmem:[%s2678 + $0xa4] sm:$0xf]
    %v2707 = vld [vmem:[%s2678 + $0xa8] sm:$0xff]
    %v2708 = vld [vmem:[%s2678 + $0xb0] sm:$0xf]
    %v2709 = vld [vmem:[%s2678 + $0xb4] sm:$0xff]
    %v2710 = vld [vmem:[%s2678 + $0xbc] sm:$0xf]
    %s2711 = scalar_lea.vmem %s17, 3
    %v2712 = vld [vmem:[%s2711] sm:$0x7]
    %v2714 = vlaneseq
    %v2715 = vshrl.u32 %v2714, 7
    %v2716 = vsub.s32 0, %v2715
    %v2717 = vrot.slane %v2712, %v2716
    %v2718 = vlaneseq
    %v2719 = vshrl.u32 %v2718, 7
    %v2720 = vsub.s32 1, %v2719
    %v2721 = vrot.slane %v2712, %v2720
    %v2722 = vlaneseq
    %v2723 = vshrl.u32 %v2722, 7
    %v2724 = vsub.s32 2, %v2723
    %v2725 = vrot.slane %v2712, %v2724
    %v2761 = vunpack.c.l.b16 %v2679
    %v2762 = vunpack.c.h.b16 %v2679
    %v2763 = vunpack.c.l.b16 %v2680
    %v2764 = vunpack.c.l.b16 %v2681
    %v2765 = vunpack.c.h.b16 %v2681
    %v2766 = vunpack.c.l.b16 %v2682
    %v2767 = vunpack.c.l.b16 %v2683
    %v2768 = vunpack.c.h.b16 %v2683
    %v2769 = vunpack.c.l.b16 %v2684
    %v2770 = vunpack.c.l.b16 %v2685
    %v2771 = vunpack.c.h.b16 %v2685
    %v2772 = vunpack.c.l.b16 %v2686
    %v2773 = vunpack.c.l.b16 %v2687
    %v2774 = vunpack.c.h.b16 %v2687
    %v2775 = vunpack.c.l.b16 %v2688
    %v2776 = vunpack.c.l.b16 %v2689
    %v2777 = vunpack.c.h.b16 %v2689
    %v2778 = vunpack.c.l.b16 %v2690
    %v2779 = vunpack.c.l.b16 %v2691
    %v2780 = vunpack.c.h.b16 %v2691
    %v2781 = vunpack.c.l.b16 %v2692
    %v2782 = vunpack.c.l.b16 %v2693
    %v2783 = vunpack.c.h.b16 %v2693
    %v2784 = vunpack.c.l.b16 %v2694
    %v2785 = vunpack.c.l.b16 %v2695
    %v2786 = vunpack.c.h.b16 %v2695
    %v2787 = vunpack.c.l.b16 %v2696
    %v2788 = vunpack.c.l.b16 %v2697
    %v2789 = vunpack.c.h.b16 %v2697
    %v2790 = vunpack.c.l.b16 %v2698
    %v2791 = vunpack.c.l.b16 %v2699
    %v2792 = vunpack.c.h.b16 %v2699
    %v2793 = vunpack.c.l.b16 %v2700
    %v2794 = vunpack.c.l.b16 %v2701
    %v2795 = vunpack.c.h.b16 %v2701
    %v2796 = vunpack.c.l.b16 %v2702
    %v2797 = vunpack.c.l.b16 %v2703
    %v2798 = vunpack.c.h.b16 %v2703
    %v2799 = vunpack.c.l.b16 %v2704
    %v2800 = vunpack.c.l.b16 %v2705
    %v2801 = vunpack.c.h.b16 %v2705
    %v2802 = vunpack.c.l.b16 %v2706
    %v2803 = vunpack.c.l.b16 %v2707
    %v2804 = vunpack.c.h.b16 %v2707
    %v2805 = vunpack.c.l.b16 %v2708
    %v2806 = vunpack.c.l.b16 %v2709
    %v2807 = vunpack.c.h.b16 %v2709
    %v2808 = vunpack.c.l.b16 %v2710
    %v2809 = vpack.c.b16 %v2764, %v2761
    %v2810 = vpack.c.b16 %v2765, %v2762
    %v2811 = vpack.c.b16 %v2766, %v2763
    %v2812 = vpack.c.b16 %v2770, %v2767
    %v2813 = vpack.c.b16 %v2771, %v2768
    %v2814 = vpack.c.b16 %v2772, %v2769
    %v2815 = vpack.c.b16 %v2776, %v2773
    %v2816 = vpack.c.b16 %v2777, %v2774
    %v2817 = vpack.c.b16 %v2778, %v2775
    %v2818 = vpack.c.b16 %v2782, %v2779
    %v2819 = vpack.c.b16 %v2783, %v2780
    %v2820 = vpack.c.b16 %v2784, %v2781
    %v2821 = vpack.c.b16 %v2788, %v2785
    %v2822 = vpack.c.b16 %v2789, %v2786
    %v2823 = vpack.c.b16 %v2790, %v2787
    %v2824 = vpack.c.b16 %v2794, %v2791
    %v2825 = vpack.c.b16 %v2795, %v2792
    %v2826 = vpack.c.b16 %v2796, %v2793
    %v2827 = vpack.c.b16 %v2800, %v2797
    %v2828 = vpack.c.b16 %v2801, %v2798
    %v2829 = vpack.c.b16 %v2802, %v2799
    %v2830 = vpack.c.b16 %v2806, %v2803
    %v2831 = vpack.c.b16 %v2807, %v2804
    %v2832 = vpack.c.b16 %v2808, %v2805
    %2857 = vmatprep.subr.bf16.mxu0 %v2810
    %2858 = vmatpush1.bf16.msra.mxu0 %v2809
    %2859 = vmatprep.subr.bf16.mxu0 %v2813
    %2860 = vmatpush1.bf16.msra.mxu0 %v2812
    %2861 = vmatprep.subr.bf16.mxu0 %v2816
    %2862 = vmatpush1.bf16.msra.mxu0 %v2815
    %2863 = vmatprep.subr.bf16.mxu0 %v2819
    %2864 = vmatpush1.bf16.msra.mxu0 %v2818
    %2865 = vmatprep.subr.bf16.mxu0 %v2822
    %2866 = vmatpush1.bf16.msra.mxu0 %v2821
    %2867 = vmatprep.subr.bf16.mxu0 %v2825
    %2868 = vmatpush1.bf16.msra.mxu0 %v2824
    %2869 = vmatprep.subr.bf16.mxu0 %v2828
    %2870 = vmatpush1.bf16.msra.mxu0 %v2827
    %2871 = vmatprep.subr.bf16.mxu0 %v2831
    %2872 = vmatpush1.bf16.msra.mxu0 %v2830
    %2873 = vmatprep.subr.bf16.mxu0 0
    %2874 = vmatpush1.bf16.msra.mxu0 0
    %2875 = vmatprep.subr.bf16.mxu0 0
    %2876 = vmatpush1.bf16.msra.mxu0 0
    %2877 = vmatprep.subr.bf16.mxu0 0
    %2878 = vmatpush1.bf16.msra.mxu0 0
    %2879 = vmatprep.subr.bf16.mxu0 0
    %2880 = vmatpush1.bf16.msra.mxu0 0
    %2881 = vmatprep.subr.bf16.mxu0 0
    %2882 = vmatpush1.bf16.msra.mxu0 0
    %2883 = vmatprep.subr.bf16.mxu0 0
    %2884 = vmatpush1.bf16.msra.mxu0 0
    %2885 = vmatprep.subr.bf16.mxu0 0
    %2886 = vmatpush1.bf16.msra.mxu0 0
    %2887 = vmatprep.subr.bf16.mxu0 0
    %2888 = vmatpush1.bf16.msra.mxu0 0
    %2889 = vmatprep.mubr.bf16.mxu0 0
    %2890 = vmatmul.mubr.bf16.gmra.mrb[0].mxu0 %v2677
    %v2891 = vpop.f32.mrb[0].mxu0
    %v2892 = vadd.f32 %v2717, %v2891
    %v2893 = vpop.f32.mrb[0].mxu0
    %v2894 = vadd.f32 %v2721, %v2893
    %v2895 = vpop.f32.mrb[0].mxu0
    %v2896 = vadd.f32 %v2717, %v2895
    %v2897 = vpop.f32.mrb[0].mxu0
    %v2898 = vadd.f32 %v2721, %v2897
    %2899 = vdwg.mxu0
    %2900 = vmatprep.subr.bf16.mxu0 0
    %2901 = vmatpush1.bf16.msra.mxu0 %v2811
    %2902 = vmatprep.subr.bf16.mxu0 0
    %2903 = vmatpush1.bf16.msra.mxu0 %v2814
    %2904 = vmatprep.subr.bf16.mxu0 0
    %2905 = vmatpush1.bf16.msra.mxu0 %v2817
    %2906 = vmatprep.subr.bf16.mxu0 0
    %2907 = vmatpush1.bf16.msra.mxu0 %v2820
    %2908 = vmatprep.subr.bf16.mxu0 0
    %2909 = vmatpush1.bf16.msra.mxu0 %v2823
    %2910 = vmatprep.subr.bf16.mxu0 0
    %2911 = vmatpush1.bf16.msra.mxu0 %v2826
    %2912 = vmatprep.subr.bf16.mxu0 0
    %2913 = vmatpush1.bf16.msra.mxu0 %v2829
    %2914 = vmatprep.subr.bf16.mxu0 0
    %2915 = vmatpush1.bf16.msra.mxu0 %v2832
    %2916 = vmatprep.subr.bf16.mxu0 0
    %2917 = vmatpush1.bf16.msra.mxu0 0
    %2918 = vmatprep.subr.bf16.mxu0 0
    %2919 = vmatpush1.bf16.msra.mxu0 0
    %2920 = vmatprep.subr.bf16.mxu0 0
    %2921 = vmatpush1.bf16.msra.mxu0 0
    %2922 = vmatprep.subr.bf16.mxu0 0
    %2923 = vmatpush1.bf16.msra.mxu0 0
    %2924 = vmatprep.subr.bf16.mxu0 0
    %2925 = vmatpush1.bf16.msra.mxu0 0
    %2926 = vmatprep.subr.bf16.mxu0 0
    %2927 = vmatpush1.bf16.msra.mxu0 0
    %2928 = vmatprep.subr.bf16.mxu0 0
    %2929 = vmatpush1.bf16.msra.mxu0 0
    %2930 = vmatprep.subr.bf16.mxu0 0
    %2931 = vmatpush1.bf16.msra.mxu0 0
    %2932 = vmatprep.mubr.bf16.mxu0 0
    %2933 = vmatmul.mubr.bf16.gmra.mrb[0].mxu0 %v2677
    %v2934 = vpop.f32.mrb[0].mxu0
    %v2935 = vadd.f32 %v2725, %v2934
    %v2936 = vpop.f32.mrb[0].mxu0
    %v2937 = vpop.f32.mrb[0].mxu0
    %v2938 = vadd.f32 %v2725, %v2937
    %v2939 = vpop.f32.mrb[0].mxu0
    %2940 = vdwg.mxu0
    %v2941 = vpack.c.bf16 %v2892, %v2892
    %v2942 = vpack.c.bf16 %v2894, %v2894
    %v2943 = vpack.c.bf16 %v2935, %v2935
    %v2944 = vpack.c.bf16 %v2896, %v2896
    %v2945 = vpack.c.bf16 %v2898, %v2898
    %v2946 = vpack.c.bf16 %v2938, %v2938
    %s2947 = scalar_lea.vmem [#allocation6], 64
    %v2948 = vld [vmem:[%s2947] sm:$0xf]
    %v2949 = vld [vmem:[%s2947 + $0x4] sm:$0xf]
    %v2950 = vld [vmem:[%s2947 + $0x8] sm:$0xf]
    %v2951 = vld [vmem:[%s2947 + $0xc] sm:$0xf]
    %v2952 = vld [vmem:[%s2947 + $0x10] sm:$0xf]
    %v2953 = vld [vmem:[%s2947 + $0x14] sm:$0xf]
    %v2954 = vld [vmem:[%s2947 + $0x18] sm:$0xf]
    %v2955 = vld [vmem:[%s2947 + $0x1c] sm:$0xf]
    %v2956 = vld [vmem:[%s2947 + $0x20] sm:$0xf]
    %v2957 = vld [vmem:[%s2947 + $0x24] sm:$0xf]
    %v2958 = vld [vmem:[%s2947 + $0x28] sm:$0xf]
    %v2959 = vld [vmem:[%s2947 + $0x2c] sm:$0xf]
    %v2960 = vld [vmem:[%s2947 + $0x30] sm:$0xf]
    %v2961 = vld [vmem:[%s2947 + $0x34] sm:$0xf]
    %v2962 = vld [vmem:[%s2947 + $0x38] sm:$0xf]
    %v2963 = vld [vmem:[%s2947 + $0x3c] sm:$0xf]
    %v2965 = vsel %vm808, %v2941, 0
    %v2968 = vsel %vm808, %v2942, 0
    %2970 = vmatprep.subr.bf16.mxu0 0
    %2971 = vmatpush1.bf16.xpose.msra.mxu0 %v2968
    %2972 = vmatprep.subr.bf16.mxu0 0
    %2973 = vmatpush1.bf16.xpose.msra.mxu0 0
    %2974 = vmatprep.subr.bf16.mxu0 0
    %2975 = vmatpush1.bf16.xpose.msra.mxu0 0
    %2976 = vmatprep.subr.bf16.mxu0 0
    %2977 = vmatpush1.bf16.xpose.msra.mxu0 0
    %2978 = vmatprep.subr.bf16.mxu0 0
    %2979 = vmatpush1.bf16.xpose.msra.mxu0 0
    %2980 = vmatprep.subr.bf16.mxu0 0
    %2981 = vmatpush1.bf16.xpose.msra.mxu0 0
    %2982 = vmatprep.subr.bf16.mxu0 0
    %2983 = vmatpush1.bf16.xpose.msra.mxu0 0
    %2984 = vmatprep.subr.bf16.mxu0 0
    %2985 = vmatpush1.bf16.xpose.msra.mxu0 0
    %2986 = vmatprep.subr.bf16.mxu0 0
    %2987 = vmatpush1.bf16.xpose.msra.mxu0 0
    %2988 = vmatprep.subr.bf16.mxu0 0
    %2989 = vmatpush1.bf16.xpose.msra.mxu0 0
    %2990 = vmatprep.subr.bf16.mxu0 0
    %2991 = vmatpush1.bf16.xpose.msra.mxu0 0
    %2992 = vmatprep.subr.bf16.mxu0 0
    %2993 = vmatpush1.bf16.xpose.msra.mxu0 0
    %2994 = vmatprep.subr.bf16.mxu0 0
    %2995 = vmatpush1.bf16.xpose.msra.mxu0 0
    %2996 = vmatprep.subr.bf16.mxu0 0
    %2997 = vmatpush1.bf16.xpose.msra.mxu0 0
    %2998 = vmatprep.subr.bf16.mxu0 0
    %2999 = vmatpush1.bf16.xpose.msra.mxu0 0
    %3000 = vmatprep.subr.bf16.mxu0 0
    %3001 = vmatpush1.bf16.xpose.msra.mxu0 0
    %3002 = vmatprep.mubr.bf16.mxu0 0
    %3003 = vmatmul.mubr.bf16.gmra.mrb[0].mxu0 %v2965
    %v3004 = vpop.f32.mrb[0].mxu0
    %v3005 = vadd.f32 0.0, %v3004
    %v3006 = vpop.f32.mrb[0].mxu0
    %v3007 = vpop.f32.mrb[0].mxu0
    %v3008 = vpop.f32.mrb[0].mxu0
    %3009 = vdwg.mxu0
    %v3011 = vsel %vm808, %v2944, 0
    %v3014 = vsel %vm808, %v2945, 0
    %3016 = vmatprep.subr.bf16.mxu0 0
    %3017 = vmatpush1.bf16.xpose.msra.mxu0 %v3014
    %3018 = vmatprep.subr.bf16.mxu0 0
    %3019 = vmatpush1.bf16.xpose.msra.mxu0 0
    %3020 = vmatprep.subr.bf16.mxu0 0
    %3021 = vmatpush1.bf16.xpose.msra.mxu0 0
    %3022 = vmatprep.subr.bf16.mxu0 0
    %3023 = vmatpush1.bf16.xpose.msra.mxu0 0
    %3024 = vmatprep.subr.bf16.mxu0 0
    %3025 = vmatpush1.bf16.xpose.msra.mxu0 0
    %3026 = vmatprep.subr.bf16.mxu0 0
    %3027 = vmatpush1.bf16.xpose.msra.mxu0 0
    %3028 = vmatprep.subr.bf16.mxu0 0
    %3029 = vmatpush1.bf16.xpose.msra.mxu0 0
    %3030 = vmatprep.subr.bf16.mxu0 0
    %3031 = vmatpush1.bf16.xpose.msra.mxu0 0
    %3032 = vmatprep.subr.bf16.mxu0 0
    %3033 = vmatpush1.bf16.xpose.msra.mxu0 0
    %3034 = vmatprep.subr.bf16.mxu0 0
    %3035 = vmatpush1.bf16.xpose.msra.mxu0 0
    %3036 = vmatprep.subr.bf16.mxu0 0
    %3037 = vmatpush1.bf16.xpose.msra.mxu0 0
    %3038 = vmatprep.subr.bf16.mxu0 0
    %3039 = vmatpush1.bf16.xpose.msra.mxu0 0
    %3040 = vmatprep.subr.bf16.mxu0 0
    %3041 = vmatpush1.bf16.xpose.msra.mxu0 0
    %3042 = vmatprep.subr.bf16.mxu0 0
    %3043 = vmatpush1.bf16.xpose.msra.mxu0 0
    %3044 = vmatprep.subr.bf16.mxu0 0
    %3045 = vmatpush1.bf16.xpose.msra.mxu0 0
    %3046 = vmatprep.subr.bf16.mxu0 0
    %3047 = vmatpush1.bf16.xpose.msra.mxu0 0
    %3048 = vmatprep.mubr.bf16.mxu0 0
    %3049 = vmatmul.mubr.bf16.gmra.mrb[0].mxu0 %v3011
    %v3050 = vpop.f32.mrb[0].mxu0
    %v3051 = vadd.f32 0.0, %v3050
    %v3052 = vpop.f32.mrb[0].mxu0
    %v3053 = vpop.f32.mrb[0].mxu0
    %v3054 = vpop.f32.mrb[0].mxu0
    %3055 = vdwg.mxu0
    %v3056 = vmul.f32 %v3005, 0.17677669
    %v3057 = vmul.f32 %v3051, 0.17677669
    %v3058 = vsel %vm903, %v3056, -inf
    %3059 = vmax.xlane.f32.xlu0 %v3058
    %v3060 = vpop.xlane.xlu0 %3059
    %v3061 = vsel %vm903, %v3057, -inf
    %3062 = vmax.xlane.f32.xlu0 %v3061
    %v3063 = vpop.xlane.xlu0 %3062
    %v3064 = vsub.f32 %v3056, %v3060
    %v3065 = vsub.f32 %v3057, %v3063
    %v3066 = vmul.f32 %v3064, 1.442695
    %v3067 = vpow.pop %v3066
    %v3068 = vmul.f32 %v3065, 1.442695
    %v3069 = vpow.pop %v3068
    %v3070 = vsel %vm903, %v3067, 0.0
    %3071 = vadd.xlane.f32.xlu0 %v3070
    %v3072 = vpop.xlane.xlu0 %3071
    %v3073 = vsel %vm903, %v3069, 0.0
    %3074 = vadd.xlane.f32.xlu0 %v3073
    %v3075 = vpop.xlane.xlu0 %3074
    %v3076 = vrcp.pop %v3072
    %v3077 = vrcp.pop %v3075
    %v3078 = vmul.f32 %v3067, %v3076
    %v3079 = vmul.f32 %v3069, %v3077
    %v3080 = vpack.c.bf16 %v3078, %v3078
    %v3081 = vpack.c.bf16 %v3079, %v3079
    %v3083 = vsel %vm903, %v3080, 0
    %v3086 = vsel %vm931, %v2943, 0
    %3088 = vmatprep.subr.bf16.mxu0 0
    %3089 = vmatpush1.bf16.msra.mxu0 %v3086
    %3090 = vmatprep.subr.bf16.mxu0 0
    %3091 = vmatpush1.bf16.msra.mxu0 0
    %3092 = vmatprep.subr.bf16.mxu0 0
    %3093 = vmatpush1.bf16.msra.mxu0 0
    %3094 = vmatprep.subr.bf16.mxu0 0
    %3095 = vmatpush1.bf16.msra.mxu0 0
    %3096 = vmatprep.subr.bf16.mxu0 0
    %3097 = vmatpush1.bf16.msra.mxu0 0
    %3098 = vmatprep.subr.bf16.mxu0 0
    %3099 = vmatpush1.bf16.msra.mxu0 0
    %3100 = vmatprep.subr.bf16.mxu0 0
    %3101 = vmatpush1.bf16.msra.mxu0 0
    %3102 = vmatprep.subr.bf16.mxu0 0
    %3103 = vmatpush1.bf16.msra.mxu0 0
    %3104 = vmatprep.subr.bf16.mxu0 0
    %3105 = vmatpush1.bf16.msra.mxu0 0
    %3106 = vmatprep.subr.bf16.mxu0 0
    %3107 = vmatpush1.bf16.msra.mxu0 0
    %3108 = vmatprep.subr.bf16.mxu0 0
    %3109 = vmatpush1.bf16.msra.mxu0 0
    %3110 = vmatprep.subr.bf16.mxu0 0
    %3111 = vmatpush1.bf16.msra.mxu0 0
    %3112 = vmatprep.subr.bf16.mxu0 0
    %3113 = vmatpush1.bf16.msra.mxu0 0
    %3114 = vmatprep.subr.bf16.mxu0 0
    %3115 = vmatpush1.bf16.msra.mxu0 0
    %3116 = vmatprep.subr.bf16.mxu0 0
    %3117 = vmatpush1.bf16.msra.mxu0 0
    %3118 = vmatprep.subr.bf16.mxu0 0
    %3119 = vmatpush1.bf16.msra.mxu0 0
    %3120 = vmatprep.mubr.bf16.mxu0 0
    %3121 = vmatmul.mubr.bf16.gmra.mrb[0].mxu0 %v3083
    %v3122 = vpop.f32.mrb[0].mxu0
    %v3123 = vadd.f32 0.0, %v3122
    %v3124 = vpop.f32.mrb[0].mxu0
    %v3125 = vpop.f32.mrb[0].mxu0
    %v3126 = vpop.f32.mrb[0].mxu0
    %3127 = vdwg.mxu0
    %v3129 = vsel %vm903, %v3081, 0
    %v3132 = vsel %vm931, %v2946, 0
    %3134 = vmatprep.subr.bf16.mxu0 0
    %3135 = vmatpush1.bf16.msra.mxu0 %v3132
    %3136 = vmatprep.subr.bf16.mxu0 0
    %3137 = vmatpush1.bf16.msra.mxu0 0
    %3138 = vmatprep.subr.bf16.mxu0 0
    %3139 = vmatpush1.bf16.msra.mxu0 0
    %3140 = vmatprep.subr.bf16.mxu0 0
    %3141 = vmatpush1.bf16.msra.mxu0 0
    %3142 = vmatprep.subr.bf16.mxu0 0
    %3143 = vmatpush1.bf16.msra.mxu0 0
    %3144 = vmatprep.subr.bf16.mxu0 0
    %3145 = vmatpush1.bf16.msra.mxu0 0
    %3146 = vmatprep.subr.bf16.mxu0 0
    %3147 = vmatpush1.bf16.msra.mxu0 0
    %3148 = vmatprep.subr.bf16.mxu0 0
    %3149 = vmatpush1.bf16.msra.mxu0 0
    %3150 = vmatprep.subr.bf16.mxu0 0
    %3151 = vmatpush1.bf16.msra.mxu0 0
    %3152 = vmatprep.subr.bf16.mxu0 0
    %3153 = vmatpush1.bf16.msra.mxu0 0
    %3154 = vmatprep.subr.bf16.mxu0 0
    %3155 = vmatpush1.bf16.msra.mxu0 0
    %3156 = vmatprep.subr.bf16.mxu0 0
    %3157 = vmatpush1.bf16.msra.mxu0 0
    %3158 = vmatprep.subr.bf16.mxu0 0
    %3159 = vmatpush1.bf16.msra.mxu0 0
    %3160 = vmatprep.subr.bf16.mxu0 0
    %3161 = vmatpush1.bf16.msra.mxu0 0
    %3162 = vmatprep.subr.bf16.mxu0 0
    %3163 = vmatpush1.bf16.msra.mxu0 0
    %3164 = vmatprep.subr.bf16.mxu0 0
    %3165 = vmatpush1.bf16.msra.mxu0 0
    %3166 = vmatprep.mubr.bf16.mxu0 0
    %3167 = vmatmul.mubr.bf16.gmra.mrb[0].mxu0 %v3129
    %v3168 = vpop.f32.mrb[0].mxu0
    %v3169 = vadd.f32 0.0, %v3168
    %v3170 = vpop.f32.mrb[0].mxu0
    %v3171 = vpop.f32.mrb[0].mxu0
    %v3172 = vpop.f32.mrb[0].mxu0
    %3173 = vdwg.mxu0
    %v3174 = vpack.c.bf16 %v3169, %v3123
    %3176 = vrot.lane.b32.xlu0 %v2941, 96
    %v3177 = vpop.permute.xlu0 %3176
    %3179 = vrot.lane.b32.xlu0 %v2942, 96
    %v3180 = vpop.permute.xlu0 %3179
    %v3182 = vsel %vm808, %v3177, 0
    %v3185 = vsel %vm808, %v3180, 0
    %3187 = vmatprep.subr.bf16.mxu0 0
    %3188 = vmatpush1.bf16.xpose.msra.mxu0 %v3185
    %3189 = vmatprep.subr.bf16.mxu0 0
    %3190 = vmatpush1.bf16.xpose.msra.mxu0 0
    %3191 = vmatprep.subr.bf16.mxu0 0
    %3192 = vmatpush1.bf16.xpose.msra.mxu0 0
    %3193 = vmatprep.subr.bf16.mxu0 0
    %3194 = vmatpush1.bf16.xpose.msra.mxu0 0
    %3195 = vmatprep.subr.bf16.mxu0 0
    %3196 = vmatpush1.bf16.xpose.msra.mxu0 0
    %3197 = vmatprep.subr.bf16.mxu0 0
    %3198 = vmatpush1.bf16.xpose.msra.mxu0 0
    %3199 = vmatprep.subr.bf16.mxu0 0
    %3200 = vmatpush1.bf16.xpose.msra.mxu0 0
    %3201 = vmatprep.subr.bf16.mxu0 0
    %3202 = vmatpush1.bf16.xpose.msra.mxu0 0
    %3203 = vmatprep.subr.bf16.mxu0 0
    %3204 = vmatpush1.bf16.xpose.msra.mxu0 0
    %3205 = vmatprep.subr.bf16.mxu0 0
    %3206 = vmatpush1.bf16.xpose.msra.mxu0 0
    %3207 = vmatprep.subr.bf16.mxu0 0
    %3208 = vmatpush1.bf16.xpose.msra.mxu0 0
    %3209 = vmatprep.subr.bf16.mxu0 0
    %3210 = vmatpush1.bf16.xpose.msra.mxu0 0
    %3211 = vmatprep.subr.bf16.mxu0 0
    %3212 = vmatpush1.bf16.xpose.msra.mxu0 0
    %3213 = vmatprep.subr.bf16.mxu0 0
    %3214 = vmatpush1.bf16.xpose.msra.mxu0 0
    %3215 = vmatprep.subr.bf16.mxu0 0
    %3216 = vmatpush1.bf16.xpose.msra.mxu0 0
    %3217 = vmatprep.subr.bf16.mxu0 0
    %3218 = vmatpush1.bf16.xpose.msra.mxu0 0
    %3219 = vmatprep.mubr.bf16.mxu0 0
    %3220 = vmatmul.mubr.bf16.gmra.mrb[0].mxu0 %v3182
    %v3221 = vpop.f32.mrb[0].mxu0
    %v3222 = vadd.f32 0.0, %v3221
    %v3223 = vpop.f32.mrb[0].mxu0
    %v3224 = vpop.f32.mrb[0].mxu0
    %v3225 = vpop.f32.mrb[0].mxu0
    %3226 = vdwg.mxu0
    %3228 = vrot.lane.b32.xlu0 %v2944, 96
    %v3229 = vpop.permute.xlu0 %3228
    %3231 = vrot.lane.b32.xlu0 %v2945, 96
    %v3232 = vpop.permute.xlu0 %3231
    %v3234 = vsel %vm808, %v3229, 0
    %v3237 = vsel %vm808, %v3232, 0
    %3239 = vmatprep.subr.bf16.mxu0 0
    %3240 = vmatpush1.bf16.xpose.msra.mxu0 %v3237
    %3241 = vmatprep.subr.bf16.mxu0 0
    %3242 = vmatpush1.bf16.xpose.msra.mxu0 0
    %3243 = vmatprep.subr.bf16.mxu0 0
    %3244 = vmatpush1.bf16.xpose.msra.mxu0 0
    %3245 = vmatprep.subr.bf16.mxu0 0
    %3246 = vmatpush1.bf16.xpose.msra.mxu0 0
    %3247 = vmatprep.subr.bf16.mxu0 0
    %3248 = vmatpush1.bf16.xpose.msra.mxu0 0
    %3249 = vmatprep.subr.bf16.mxu0 0
    %3250 = vmatpush1.bf16.xpose.msra.mxu0 0
    %3251 = vmatprep.subr.bf16.mxu0 0
    %3252 = vmatpush1.bf16.xpose.msra.mxu0 0
    %3253 = vmatprep.subr.bf16.mxu0 0
    %3254 = vmatpush1.bf16.xpose.msra.mxu0 0
    %3255 = vmatprep.subr.bf16.mxu0 0
    %3256 = vmatpush1.bf16.xpose.msra.mxu0 0
    %3257 = vmatprep.subr.bf16.mxu0 0
    %3258 = vmatpush1.bf16.xpose.msra.mxu0 0
    %3259 = vmatprep.subr.bf16.mxu0 0
    %3260 = vmatpush1.bf16.xpose.msra.mxu0 0
    %3261 = vmatprep.subr.bf16.mxu0 0
    %3262 = vmatpush1.bf16.xpose.msra.mxu0 0
    %3263 = vmatprep.subr.bf16.mxu0 0
    %3264 = vmatpush1.bf16.xpose.msra.mxu0 0
    %3265 = vmatprep.subr.bf16.mxu0 0
    %3266 = vmatpush1.bf16.xpose.msra.mxu0 0
    %3267 = vmatprep.subr.bf16.mxu0 0
    %3268 = vmatpush1.bf16.xpose.msra.mxu0 0
    %3269 = vmatprep.subr.bf16.mxu0 0
    %3270 = vmatpush1.bf16.xpose.msra.mxu0 0
    %3271 = vmatprep.mubr.bf16.mxu0 0
    %3272 = vmatmul.mubr.bf16.gmra.mrb[0].mxu0 %v3234
    %v3273 = vpop.f32.mrb[0].mxu0
    %v3274 = vadd.f32 0.0, %v3273
    %v3275 = vpop.f32.mrb[0].mxu0
    %v3276 = vpop.f32.mrb[0].mxu0
    %v3277 = vpop.f32.mrb[0].mxu0
    %3278 = vdwg.mxu0
    %v3279 = vmul.f32 %v3222, 0.17677669
    %v3280 = vmul.f32 %v3274, 0.17677669
    %v3281 = vsel %vm903, %v3279, -inf
    %3282 = vmax.xlane.f32.xlu0 %v3281
    %v3283 = vpop.xlane.xlu0 %3282
    %v3284 = vsel %vm903, %v3280, -inf
    %3285 = vmax.xlane.f32.xlu0 %v3284
    %v3286 = vpop.xlane.xlu0 %3285
    %v3287 = vsub.f32 %v3279, %v3283
    %v3288 = vsub.f32 %v3280, %v3286
    %v3289 = vmul.f32 %v3287, 1.442695
    %v3290 = vpow.pop %v3289
    %v3291 = vmul.f32 %v3288, 1.442695
    %v3292 = vpow.pop %v3291
    %v3293 = vsel %vm903, %v3290, 0.0
    %3294 = vadd.xlane.f32.xlu0 %v3293
    %v3295 = vpop.xlane.xlu0 %3294
    %v3296 = vsel %vm903, %v3292, 0.0
    %3297 = vadd.xlane.f32.xlu0 %v3296
    %v3298 = vpop.xlane.xlu0 %3297
    %v3299 = vrcp.pop %v3295
    %v3300 = vrcp.pop %v3298
    %v3301 = vmul.f32 %v3290, %v3299
    %v3302 = vmul.f32 %v3292, %v3300
    %v3303 = vpack.c.bf16 %v3301, %v3301
    %v3304 = vpack.c.bf16 %v3302, %v3302
    %3306 = vrot.lane.b32.xlu0 %v2943, 96
    %v3307 = vpop.permute.xlu0 %3306
    %v3309 = vsel %vm903, %v3303, 0
    %v3312 = vsel %vm931, %v3307, 0
    %3314 = vmatprep.subr.bf16.mxu0 0
    %3315 = vmatpush1.bf16.msra.mxu0 %v3312
    %3316 = vmatprep.subr.bf16.mxu0 0
    %3317 = vmatpush1.bf16.msra.mxu0 0
    %3318 = vmatprep.subr.bf16.mxu0 0
    %3319 = vmatpush1.bf16.msra.mxu0 0
    %3320 = vmatprep.subr.bf16.mxu0 0
    %3321 = vmatpush1.bf16.msra.mxu0 0
    %3322 = vmatprep.subr.bf16.mxu0 0
    %3323 = vmatpush1.bf16.msra.mxu0 0
    %3324 = vmatprep.subr.bf16.mxu0 0
    %3325 = vmatpush1.bf16.msra.mxu0 0
    %3326 = vmatprep.subr.bf16.mxu0 0
    %3327 = vmatpush1.bf16.msra.mxu0 0
    %3328 = vmatprep.subr.bf16.mxu0 0
    %3329 = vmatpush1.bf16.msra.mxu0 0
    %3330 = vmatprep.subr.bf16.mxu0 0
    %3331 = vmatpush1.bf16.msra.mxu0 0
    %3332 = vmatprep.subr.bf16.mxu0 0
    %3333 = vmatpush1.bf16.msra.mxu0 0
    %3334 = vmatprep.subr.bf16.mxu0 0
    %3335 = vmatpush1.bf16.msra.mxu0 0
    %3336 = vmatprep.subr.bf16.mxu0 0
    %3337 = vmatpush1.bf16.msra.mxu0 0
    %3338 = vmatprep.subr.bf16.mxu0 0
    %3339 = vmatpush1.bf16.msra.mxu0 0
    %3340 = vmatprep.subr.bf16.mxu0 0
    %3341 = vmatpush1.bf16.msra.mxu0 0
    %3342 = vmatprep.subr.bf16.mxu0 0
    %3343 = vmatpush1.bf16.msra.mxu0 0
    %3344 = vmatprep.subr.bf16.mxu0 0
    %3345 = vmatpush1.bf16.msra.mxu0 0
    %3346 = vmatprep.mubr.bf16.mxu0 0
    %3347 = vmatmul.mubr.bf16.gmra.mrb[0].mxu0 %v3309
    %v3348 = vpop.f32.mrb[0].mxu0
    %v3349 = vadd.f32 0.0, %v3348
    %v3350 = vpop.f32.mrb[0].mxu0
    %v3351 = vpop.f32.mrb[0].mxu0
    %v3352 = vpop.f32.mrb[0].mxu0
    %3353 = vdwg.mxu0
    %3355 = vrot.lane.b32.xlu0 %v2946, 96
    %v3356 = vpop.permute.xlu0 %3355
    %v3358 = vsel %vm903, %v3304, 0
    %v3361 = vsel %vm931, %v3356, 0
    %3363 = vmatprep.subr.bf16.mxu0 0
    %3364 = vmatpush1.bf16.msra.mxu0 %v3361
    %3365 = vmatprep.subr.bf16.mxu0 0
    %3366 = vmatpush1.bf16.msra.mxu0 0
    %3367 = vmatprep.subr.bf16.mxu0 0
    %3368 = vmatpush1.bf16.msra.mxu0 0
    %3369 = vmatprep.subr.bf16.mxu0 0
    %3370 = vmatpush1.bf16.msra.mxu0 0
    %3371 = vmatprep.subr.bf16.mxu0 0
    %3372 = vmatpush1.bf16.msra.mxu0 0
    %3373 = vmatprep.subr.bf16.mxu0 0
    %3374 = vmatpush1.bf16.msra.mxu0 0
    %3375 = vmatprep.subr.bf16.mxu0 0
    %3376 = vmatpush1.bf16.msra.mxu0 0
    %3377 = vmatprep.subr.bf16.mxu0 0
    %3378 = vmatpush1.bf16.msra.mxu0 0
    %3379 = vmatprep.subr.bf16.mxu0 0
    %3380 = vmatpush1.bf16.msra.mxu0 0
    %3381 = vmatprep.subr.bf16.mxu0 0
    %3382 = vmatpush1.bf16.msra.mxu0 0
    %3383 = vmatprep.subr.bf16.mxu0 0
    %3384 = vmatpush1.bf16.msra.mxu0 0
    %3385 = vmatprep.subr.bf16.mxu0 0
    %3386 = vmatpush1.bf16.msra.mxu0 0
    %3387 = vmatprep.subr.bf16.mxu0 0
    %3388 = vmatpush1.bf16.msra.mxu0 0
    %3389 = vmatprep.subr.bf16.mxu0 0
    %3390 = vmatpush1.bf16.msra.mxu0 0
    %3391 = vmatprep.subr.bf16.mxu0 0
    %3392 = vmatpush1.bf16.msra.mxu0 0
    %3393 = vmatprep.subr.bf16.mxu0 0
    %3394 = vmatpush1.bf16.msra.mxu0 0
    %3395 = vmatprep.mubr.bf16.mxu0 0
    %3396 = vmatmul.mubr.bf16.gmra.mrb[0].mxu0 %v3358
    %v3397 = vpop.f32.mrb[0].mxu0
    %v3398 = vadd.f32 0.0, %v3397
    %v3399 = vpop.f32.mrb[0].mxu0
    %v3400 = vpop.f32.mrb[0].mxu0
    %v3401 = vpop.f32.mrb[0].mxu0
    %3402 = vdwg.mxu0
    %v3403 = vpack.c.bf16 %v3398, %v3349
    %v3408 = vunpack.c.l.b16 %v2952
    %v3409 = vunpack.c.l.b16 %v2953
    %v3410 = vunpack.c.l.b16 %v2954
    %v3411 = vunpack.c.l.b16 %v2955
    %v3412 = vpack.c.b16 %v3409, %v3408
    %v3413 = vpack.c.b16 %v3411, %v3410
    %v3417 = vsel %vm808, %v3403, 0
    %3419 = vmatprep.subr.bf16.mxu0 0
    %3420 = vmatpush1.bf16.msra.mxu0 %v3412
    %3421 = vmatprep.subr.bf16.mxu0 0
    %3422 = vmatpush1.bf16.msra.mxu0 %v3413
    %3423 = vmatprep.subr.bf16.mxu0 0
    %3424 = vmatpush1.bf16.msra.mxu0 0
    %3425 = vmatprep.subr.bf16.mxu0 0
    %3426 = vmatpush1.bf16.msra.mxu0 0
    %3427 = vmatprep.subr.bf16.mxu0 0
    %3428 = vmatpush1.bf16.msra.mxu0 0
    %3429 = vmatprep.subr.bf16.mxu0 0
    %3430 = vmatpush1.bf16.msra.mxu0 0
    %3431 = vmatprep.subr.bf16.mxu0 0
    %3432 = vmatpush1.bf16.msra.mxu0 0
    %3433 = vmatprep.subr.bf16.mxu0 0
    %3434 = vmatpush1.bf16.msra.mxu0 0
    %3435 = vmatprep.subr.bf16.mxu0 0
    %3436 = vmatpush1.bf16.msra.mxu0 0
    %3437 = vmatprep.subr.bf16.mxu0 0
    %3438 = vmatpush1.bf16.msra.mxu0 0
    %3439 = vmatprep.subr.bf16.mxu0 0
    %3440 = vmatpush1.bf16.msra.mxu0 0
    %3441 = vmatprep.subr.bf16.mxu0 0
    %3442 = vmatpush1.bf16.msra.mxu0 0
    %3443 = vmatprep.subr.bf16.mxu0 0
    %3444 = vmatpush1.bf16.msra.mxu0 0
    %3445 = vmatprep.subr.bf16.mxu0 0
    %3446 = vmatpush1.bf16.msra.mxu0 0
    %3447 = vmatprep.subr.bf16.mxu0 0
    %3448 = vmatpush1.bf16.msra.mxu0 0
    %3449 = vmatprep.subr.bf16.mxu0 0
    %3450 = vmatpush1.bf16.msra.mxu0 0
    %3451 = vmatprep.mubr.bf16.mxu0 0
    %3452 = vmatmul.mubr.bf16.gmra.mrb[0].mxu0 %v3417
    %v3453 = vpop.f32.mrb[0].mxu0
    %v3454 = vadd.f32 0.0, %v3453
    %v3455 = vpop.f32.mrb[0].mxu0
    %v3456 = vpop.f32.mrb[0].mxu0
    %v3457 = vadd.f32 0.0, %v3456
    %v3458 = vpop.f32.mrb[0].mxu0
    %3459 = vdwg.mxu0
    %v3464 = vunpack.c.l.b16 %v2948
    %v3465 = vunpack.c.l.b16 %v2949
    %v3466 = vunpack.c.l.b16 %v2950
    %v3467 = vunpack.c.l.b16 %v2951
    %v3468 = vpack.c.b16 %v3465, %v3464
    %v3469 = vpack.c.b16 %v3467, %v3466
    %v3473 = vsel %vm808, %v3174, 0
    %3475 = vmatprep.subr.bf16.mxu0 0
    %3476 = vmatpush1.bf16.msra.mxu0 %v3468
    %3477 = vmatprep.subr.bf16.mxu0 0
    %3478 = vmatpush1.bf16.msra.mxu0 %v3469
    %3479 = vmatprep.subr.bf16.mxu0 0
    %3480 = vmatpush1.bf16.msra.mxu0 0
    %3481 = vmatprep.subr.bf16.mxu0 0
    %3482 = vmatpush1.bf16.msra.mxu0 0
    %3483 = vmatprep.subr.bf16.mxu0 0
    %3484 = vmatpush1.bf16.msra.mxu0 0
    %3485 = vmatprep.subr.bf16.mxu0 0
    %3486 = vmatpush1.bf16.msra.mxu0 0
    %3487 = vmatprep.subr.bf16.mxu0 0
    %3488 = vmatpush1.bf16.msra.mxu0 0
    %3489 = vmatprep.subr.bf16.mxu0 0
    %3490 = vmatpush1.bf16.msra.mxu0 0
    %3491 = vmatprep.subr.bf16.mxu0 0
    %3492 = vmatpush1.bf16.msra.mxu0 0
    %3493 = vmatprep.subr.bf16.mxu0 0
    %3494 = vmatpush1.bf16.msra.mxu0 0
    %3495 = vmatprep.subr.bf16.mxu0 0
    %3496 = vmatpush1.bf16.msra.mxu0 0
    %3497 = vmatprep.subr.bf16.mxu0 0
    %3498 = vmatpush1.bf16.msra.mxu0 0
    %3499 = vmatprep.subr.bf16.mxu0 0
    %3500 = vmatpush1.bf16.msra.mxu0 0
    %3501 = vmatprep.subr.bf16.mxu0 0
    %3502 = vmatpush1.bf16.msra.mxu0 0
    %3503 = vmatprep.subr.bf16.mxu0 0
    %3504 = vmatpush1.bf16.msra.mxu0 0
    %3505 = vmatprep.subr.bf16.mxu0 0
    %3506 = vmatpush1.bf16.msra.mxu0 0
    %3507 = vmatprep.mubr.bf16.mxu0 0
    %3508 = vmatmul.mubr.bf16.gmra.mrb[0].mxu0 %v3473
    %v3509 = vpop.f32.mrb[0].mxu0
    %v3510 = vadd.f32 %v3454, %v3509
    %v3511 = vpop.f32.mrb[0].mxu0
    %v3512 = vpop.f32.mrb[0].mxu0
    %v3513 = vadd.f32 %v3457, %v3512
    %v3514 = vpop.f32.mrb[0].mxu0
    %3515 = vdwg.mxu0
    %3516 = vrot.lane.b32.xlu0 %v2941, 64
    %v3517 = vpop.permute.xlu0 %3516
    %3518 = vrot.lane.b32.xlu0 %v2942, 64
    %v3519 = vpop.permute.xlu0 %3518
    %v3521 = vsel %vm808, %v3517, 0
    %v3524 = vsel %vm808, %v3519, 0
    %3526 = vmatprep.subr.bf16.mxu0 0
    %3527 = vmatpush1.bf16.xpose.msra.mxu0 %v3524
    %3528 = vmatprep.subr.bf16.mxu0 0
    %3529 = vmatpush1.bf16.xpose.msra.mxu0 0
    %3530 = vmatprep.subr.bf16.mxu0 0
    %3531 = vmatpush1.bf16.xpose.msra.mxu0 0
    %3532 = vmatprep.subr.bf16.mxu0 0
    %3533 = vmatpush1.bf16.xpose.msra.mxu0 0
    %3534 = vmatprep.subr.bf16.mxu0 0
    %3535 = vmatpush1.bf16.xpose.msra.mxu0 0
    %3536 = vmatprep.subr.bf16.mxu0 0
    %3537 = vmatpush1.bf16.xpose.msra.mxu0 0
    %3538 = vmatprep.subr.bf16.mxu0 0
    %3539 = vmatpush1.bf16.xpose.msra.mxu0 0
    %3540 = vmatprep.subr.bf16.mxu0 0
    %3541 = vmatpush1.bf16.xpose.msra.mxu0 0
    %3542 = vmatprep.subr.bf16.mxu0 0
    %3543 = vmatpush1.bf16.xpose.msra.mxu0 0
    %3544 = vmatprep.subr.bf16.mxu0 0
    %3545 = vmatpush1.bf16.xpose.msra.mxu0 0
    %3546 = vmatprep.subr.bf16.mxu0 0
    %3547 = vmatpush1.bf16.xpose.msra.mxu0 0
    %3548 = vmatprep.subr.bf16.mxu0 0
    %3549 = vmatpush1.bf16.xpose.msra.mxu0 0
    %3550 = vmatprep.subr.bf16.mxu0 0
    %3551 = vmatpush1.bf16.xpose.msra.mxu0 0
    %3552 = vmatprep.subr.bf16.mxu0 0
    %3553 = vmatpush1.bf16.xpose.msra.mxu0 0
    %3554 = vmatprep.subr.bf16.mxu0 0
    %3555 = vmatpush1.bf16.xpose.msra.mxu0 0
    %3556 = vmatprep.subr.bf16.mxu0 0
    %3557 = vmatpush1.bf16.xpose.msra.mxu0 0
    %3558 = vmatprep.mubr.bf16.mxu0 0
    %3559 = vmatmul.mubr.bf16.gmra.mrb[0].mxu0 %v3521
    %v3560 = vpop.f32.mrb[0].mxu0
    %v3561 = vadd.f32 0.0, %v3560
    %v3562 = vpop.f32.mrb[0].mxu0
    %v3563 = vpop.f32.mrb[0].mxu0
    %v3564 = vpop.f32.mrb[0].mxu0
    %3565 = vdwg.mxu0
    %3566 = vrot.lane.b32.xlu0 %v2944, 64
    %v3567 = vpop.permute.xlu0 %3566
    %3568 = vrot.lane.b32.xlu0 %v2945, 64
    %v3569 = vpop.permute.xlu0 %3568
    %v3571 = vsel %vm808, %v3567, 0
    %v3574 = vsel %vm808, %v3569, 0
    %3576 = vmatprep.subr.bf16.mxu0 0
    %3577 = vmatpush1.bf16.xpose.msra.mxu0 %v3574
    %3578 = vmatprep.subr.bf16.mxu0 0
    %3579 = vmatpush1.bf16.xpose.msra.mxu0 0
    %3580 = vmatprep.subr.bf16.mxu0 0
    %3581 = vmatpush1.bf16.xpose.msra.mxu0 0
    %3582 = vmatprep.subr.bf16.mxu0 0
    %3583 = vmatpush1.bf16.xpose.msra.mxu0 0
    %3584 = vmatprep.subr.bf16.mxu0 0
    %3585 = vmatpush1.bf16.xpose.msra.mxu0 0
    %3586 = vmatprep.subr.bf16.mxu0 0
    %3587 = vmatpush1.bf16.xpose.msra.mxu0 0
    %3588 = vmatprep.subr.bf16.mxu0 0
    %3589 = vmatpush1.bf16.xpose.msra.mxu0 0
    %3590 = vmatprep.subr.bf16.mxu0 0
    %3591 = vmatpush1.bf16.xpose.msra.mxu0 0
    %3592 = vmatprep.subr.bf16.mxu0 0
    %3593 = vmatpush1.bf16.xpose.msra.mxu0 0
    %3594 = vmatprep.subr.bf16.mxu0 0
    %3595 = vmatpush1.bf16.xpose.msra.mxu0 0
    %3596 = vmatprep.subr.bf16.mxu0 0
    %3597 = vmatpush1.bf16.xpose.msra.mxu0 0
    %3598 = vmatprep.subr.bf16.mxu0 0
    %3599 = vmatpush1.bf16.xpose.msra.mxu0 0
    %3600 = vmatprep.subr.bf16.mxu0 0
    %3601 = vmatpush1.bf16.xpose.msra.mxu0 0
    %3602 = vmatprep.subr.bf16.mxu0 0
    %3603 = vmatpush1.bf16.xpose.msra.mxu0 0
    %3604 = vmatprep.subr.bf16.mxu0 0
    %3605 = vmatpush1.bf16.xpose.msra.mxu0 0
    %3606 = vmatprep.subr.bf16.mxu0 0
    %3607 = vmatpush1.bf16.xpose.msra.mxu0 0
    %3608 = vmatprep.mubr.bf16.mxu0 0
    %3609 = vmatmul.mubr.bf16.gmra.mrb[0].mxu0 %v3571
    %v3610 = vpop.f32.mrb[0].mxu0
    %v3611 = vadd.f32 0.0, %v3610
    %v3612 = vpop.f32.mrb[0].mxu0
    %v3613 = vpop.f32.mrb[0].mxu0
    %v3614 = vpop.f32.mrb[0].mxu0
    %3615 = vdwg.mxu0
    %v3616 = vmul.f32 %v3561, 0.17677669
    %v3617 = vmul.f32 %v3611, 0.17677669
    %v3618 = vsel %vm903, %v3616, -inf
    %3619 = vmax.xlane.f32.xlu0 %v3618
    %v3620 = vpop.xlane.xlu0 %3619
    %v3621 = vsel %vm903, %v3617, -inf
    %3622 = vmax.xlane.f32.xlu0 %v3621
    %v3623 = vpop.xlane.xlu0 %3622
    %v3624 = vsub.f32 %v3616, %v3620
    %v3625 = vsub.f32 %v3617, %v3623
    %v3626 = vmul.f32 %v3624, 1.442695
    %v3627 = vpow.pop %v3626
    %v3628 = vmul.f32 %v3625, 1.442695
    %v3629 = vpow.pop %v3628
    %v3630 = vsel %vm903, %v3627, 0.0
    %3631 = vadd.xlane.f32.xlu0 %v3630
    %v3632 = vpop.xlane.xlu0 %3631
    %v3633 = vsel %vm903, %v3629, 0.0
    %3634 = vadd.xlane.f32.xlu0 %v3633
    %v3635 = vpop.xlane.xlu0 %3634
    %v3636 = vrcp.pop %v3632
    %v3637 = vrcp.pop %v3635
    %v3638 = vmul.f32 %v3627, %v3636
    %v3639 = vmul.f32 %v3629, %v3637
    %v3640 = vpack.c.bf16 %v3638, %v3638
    %v3641 = vpack.c.bf16 %v3639, %v3639
    %3642 = vrot.lane.b32.xlu0 %v2943, 64
    %v3643 = vpop.permute.xlu0 %3642
    %v3645 = vsel %vm903, %v3640, 0
    %v3648 = vsel %vm931, %v3643, 0
    %3650 = vmatprep.subr.bf16.mxu0 0
    %3651 = vmatpush1.bf16.msra.mxu0 %v3648
    %3652 = vmatprep.subr.bf16.mxu0 0
    %3653 = vmatpush1.bf16.msra.mxu0 0
    %3654 = vmatprep.subr.bf16.mxu0 0
    %3655 = vmatpush1.bf16.msra.mxu0 0
    %3656 = vmatprep.subr.bf16.mxu0 0
    %3657 = vmatpush1.bf16.msra.mxu0 0
    %3658 = vmatprep.subr.bf16.mxu0 0
    %3659 = vmatpush1.bf16.msra.mxu0 0
    %3660 = vmatprep.subr.bf16.mxu0 0
    %3661 = vmatpush1.bf16.msra.mxu0 0
    %3662 = vmatprep.subr.bf16.mxu0 0
    %3663 = vmatpush1.bf16.msra.mxu0 0
    %3664 = vmatprep.subr.bf16.mxu0 0
    %3665 = vmatpush1.bf16.msra.mxu0 0
    %3666 = vmatprep.subr.bf16.mxu0 0
    %3667 = vmatpush1.bf16.msra.mxu0 0
    %3668 = vmatprep.subr.bf16.mxu0 0
    %3669 = vmatpush1.bf16.msra.mxu0 0
    %3670 = vmatprep.subr.bf16.mxu0 0
    %3671 = vmatpush1.bf16.msra.mxu0 0
    %3672 = vmatprep.subr.bf16.mxu0 0
    %3673 = vmatpush1.bf16.msra.mxu0 0
    %3674 = vmatprep.subr.bf16.mxu0 0
    %3675 = vmatpush1.bf16.msra.mxu0 0
    %3676 = vmatprep.subr.bf16.mxu0 0
    %3677 = vmatpush1.bf16.msra.mxu0 0
    %3678 = vmatprep.subr.bf16.mxu0 0
    %3679 = vmatpush1.bf16.msra.mxu0 0
    %3680 = vmatprep.subr.bf16.mxu0 0
    %3681 = vmatpush1.bf16.msra.mxu0 0
    %3682 = vmatprep.mubr.bf16.mxu0 0
    %3683 = vmatmul.mubr.bf16.gmra.mrb[0].mxu0 %v3645
    %v3684 = vpop.f32.mrb[0].mxu0
    %v3685 = vadd.f32 0.0, %v3684
    %v3686 = vpop.f32.mrb[0].mxu0
    %v3687 = vpop.f32.mrb[0].mxu0
    %v3688 = vpop.f32.mrb[0].mxu0
    %3689 = vdwg.mxu0
    %3690 = vrot.lane.b32.xlu0 %v2946, 64
    %v3691 = vpop.permute.xlu0 %3690
    %v3693 = vsel %vm903, %v3641, 0
    %v3696 = vsel %vm931, %v3691, 0
    %3698 = vmatprep.subr.bf16.mxu0 0
    %3699 = vmatpush1.bf16.msra.mxu0 %v3696
    %3700 = vmatprep.subr.bf16.mxu0 0
    %3701 = vmatpush1.bf16.msra.mxu0 0
    %3702 = vmatprep.subr.bf16.mxu0 0
    %3703 = vmatpush1.bf16.msra.mxu0 0
    %3704 = vmatprep.subr.bf16.mxu0 0
    %3705 = vmatpush1.bf16.msra.mxu0 0
    %3706 = vmatprep.subr.bf16.mxu0 0
    %3707 = vmatpush1.bf16.msra.mxu0 0
    %3708 = vmatprep.subr.bf16.mxu0 0
    %3709 = vmatpush1.bf16.msra.mxu0 0
    %3710 = vmatprep.subr.bf16.mxu0 0
    %3711 = vmatpush1.bf16.msra.mxu0 0
    %3712 = vmatprep.subr.bf16.mxu0 0
    %3713 = vmatpush1.bf16.msra.mxu0 0
    %3714 = vmatprep.subr.bf16.mxu0 0
    %3715 = vmatpush1.bf16.msra.mxu0 0
    %3716 = vmatprep.subr.bf16.mxu0 0
    %3717 = vmatpush1.bf16.msra.mxu0 0
    %3718 = vmatprep.subr.bf16.mxu0 0
    %3719 = vmatpush1.bf16.msra.mxu0 0
    %3720 = vmatprep.subr.bf16.mxu0 0
    %3721 = vmatpush1.bf16.msra.mxu0 0
    %3722 = vmatprep.subr.bf16.mxu0 0
    %3723 = vmatpush1.bf16.msra.mxu0 0
    %3724 = vmatprep.subr.bf16.mxu0 0
    %3725 = vmatpush1.bf16.msra.mxu0 0
    %3726 = vmatprep.subr.bf16.mxu0 0
    %3727 = vmatpush1.bf16.msra.mxu0 0
    %3728 = vmatprep.subr.bf16.mxu0 0
    %3729 = vmatpush1.bf16.msra.mxu0 0
    %3730 = vmatprep.mubr.bf16.mxu0 0
    %3731 = vmatmul.mubr.bf16.gmra.mrb[0].mxu0 %v3693
    %v3732 = vpop.f32.mrb[0].mxu0
    %v3733 = vadd.f32 0.0, %v3732
    %v3734 = vpop.f32.mrb[0].mxu0
    %v3735 = vpop.f32.mrb[0].mxu0
    %v3736 = vpop.f32.mrb[0].mxu0
    %3737 = vdwg.mxu0
    %v3738 = vpack.c.bf16 %v3733, %v3685
    %v3743 = vunpack.c.l.b16 %v2956
    %v3744 = vunpack.c.l.b16 %v2957
    %v3745 = vunpack.c.l.b16 %v2958
    %v3746 = vunpack.c.l.b16 %v2959
    %v3747 = vpack.c.b16 %v3744, %v3743
    %v3748 = vpack.c.b16 %v3746, %v3745
    %v3752 = vsel %vm808, %v3738, 0
    %3754 = vmatprep.subr.bf16.mxu0 0
    %3755 = vmatpush1.bf16.msra.mxu0 %v3747
    %3756 = vmatprep.subr.bf16.mxu0 0
    %3757 = vmatpush1.bf16.msra.mxu0 %v3748
    %3758 = vmatprep.subr.bf16.mxu0 0
    %3759 = vmatpush1.bf16.msra.mxu0 0
    %3760 = vmatprep.subr.bf16.mxu0 0
    %3761 = vmatpush1.bf16.msra.mxu0 0
    %3762 = vmatprep.subr.bf16.mxu0 0
    %3763 = vmatpush1.bf16.msra.mxu0 0
    %3764 = vmatprep.subr.bf16.mxu0 0
    %3765 = vmatpush1.bf16.msra.mxu0 0
    %3766 = vmatprep.subr.bf16.mxu0 0
    %3767 = vmatpush1.bf16.msra.mxu0 0
    %3768 = vmatprep.subr.bf16.mxu0 0
    %3769 = vmatpush1.bf16.msra.mxu0 0
    %3770 = vmatprep.subr.bf16.mxu0 0
    %3771 = vmatpush1.bf16.msra.mxu0 0
    %3772 = vmatprep.subr.bf16.mxu0 0
    %3773 = vmatpush1.bf16.msra.mxu0 0
    %3774 = vmatprep.subr.bf16.mxu0 0
    %3775 = vmatpush1.bf16.msra.mxu0 0
    %3776 = vmatprep.subr.bf16.mxu0 0
    %3777 = vmatpush1.bf16.msra.mxu0 0
    %3778 = vmatprep.subr.bf16.mxu0 0
    %3779 = vmatpush1.bf16.msra.mxu0 0
    %3780 = vmatprep.subr.bf16.mxu0 0
    %3781 = vmatpush1.bf16.msra.mxu0 0
    %3782 = vmatprep.subr.bf16.mxu0 0
    %3783 = vmatpush1.bf16.msra.mxu0 0
    %3784 = vmatprep.subr.bf16.mxu0 0
    %3785 = vmatpush1.bf16.msra.mxu0 0
    %3786 = vmatprep.mubr.bf16.mxu0 0
    %3787 = vmatmul.mubr.bf16.gmra.mrb[0].mxu0 %v3752
    %v3788 = vpop.f32.mrb[0].mxu0
    %v3789 = vadd.f32 0.0, %v3788
    %v3790 = vpop.f32.mrb[0].mxu0
    %v3791 = vpop.f32.mrb[0].mxu0
    %v3792 = vadd.f32 0.0, %v3791
    %v3793 = vpop.f32.mrb[0].mxu0
    %3794 = vdwg.mxu0
    %v3795 = vadd.f32 %v3510, %v3789
    %v3796 = vadd.f32 %v3513, %v3792
    %3797 = vrot.lane.b32.xlu0 %v2941, 32
    %v3798 = vpop.permute.xlu0 %3797
    %3799 = vrot.lane.b32.xlu0 %v2942, 32
    %v3800 = vpop.permute.xlu0 %3799
    %v3802 = vsel %vm808, %v3798, 0
    %v3805 = vsel %vm808, %v3800, 0
    %3807 = vmatprep.subr.bf16.mxu0 0
    %3808 = vmatpush1.bf16.xpose.msra.mxu0 %v3805
    %3809 = vmatprep.subr.bf16.mxu0 0
    %3810 = vmatpush1.bf16.xpose.msra.mxu0 0
    %3811 = vmatprep.subr.bf16.mxu0 0
    %3812 = vmatpush1.bf16.xpose.msra.mxu0 0
    %3813 = vmatprep.subr.bf16.mxu0 0
    %3814 = vmatpush1.bf16.xpose.msra.mxu0 0
    %3815 = vmatprep.subr.bf16.mxu0 0
    %3816 = vmatpush1.bf16.xpose.msra.mxu0 0
    %3817 = vmatprep.subr.bf16.mxu0 0
    %3818 = vmatpush1.bf16.xpose.msra.mxu0 0
    %3819 = vmatprep.subr.bf16.mxu0 0
    %3820 = vmatpush1.bf16.xpose.msra.mxu0 0
    %3821 = vmatprep.subr.bf16.mxu0 0
    %3822 = vmatpush1.bf16.xpose.msra.mxu0 0
    %3823 = vmatprep.subr.bf16.mxu0 0
    %3824 = vmatpush1.bf16.xpose.msra.mxu0 0
    %3825 = vmatprep.subr.bf16.mxu0 0
    %3826 = vmatpush1.bf16.xpose.msra.mxu0 0
    %3827 = vmatprep.subr.bf16.mxu0 0
    %3828 = vmatpush1.bf16.xpose.msra.mxu0 0
    %3829 = vmatprep.subr.bf16.mxu0 0
    %3830 = vmatpush1.bf16.xpose.msra.mxu0 0
    %3831 = vmatprep.subr.bf16.mxu0 0
    %3832 = vmatpush1.bf16.xpose.msra.mxu0 0
    %3833 = vmatprep.subr.bf16.mxu0 0
    %3834 = vmatpush1.bf16.xpose.msra.mxu0 0
    %3835 = vmatprep.subr.bf16.mxu0 0
    %3836 = vmatpush1.bf16.xpose.msra.mxu0 0
    %3837 = vmatprep.subr.bf16.mxu0 0
    %3838 = vmatpush1.bf16.xpose.msra.mxu0 0
    %3839 = vmatprep.mubr.bf16.mxu0 0
    %3840 = vmatmul.mubr.bf16.gmra.mrb[0].mxu0 %v3802
    %v3841 = vpop.f32.mrb[0].mxu0
    %v3842 = vadd.f32 0.0, %v3841
    %v3843 = vpop.f32.mrb[0].mxu0
    %v3844 = vpop.f32.mrb[0].mxu0
    %v3845 = vpop.f32.mrb[0].mxu0
    %3846 = vdwg.mxu0
    %3847 = vrot.lane.b32.xlu0 %v2944, 32
    %v3848 = vpop.permute.xlu0 %3847
    %3849 = vrot.lane.b32.xlu0 %v2945, 32
    %v3850 = vpop.permute.xlu0 %3849
    %v3852 = vsel %vm808, %v3848, 0
    %v3855 = vsel %vm808, %v3850, 0
    %3857 = vmatprep.subr.bf16.mxu0 0
    %3858 = vmatpush1.bf16.xpose.msra.mxu0 %v3855
    %3859 = vmatprep.subr.bf16.mxu0 0
    %3860 = vmatpush1.bf16.xpose.msra.mxu0 0
    %3861 = vmatprep.subr.bf16.mxu0 0
    %3862 = vmatpush1.bf16.xpose.msra.mxu0 0
    %3863 = vmatprep.subr.bf16.mxu0 0
    %3864 = vmatpush1.bf16.xpose.msra.mxu0 0
    %3865 = vmatprep.subr.bf16.mxu0 0
    %3866 = vmatpush1.bf16.xpose.msra.mxu0 0
    %3867 = vmatprep.subr.bf16.mxu0 0
    %3868 = vmatpush1.bf16.xpose.msra.mxu0 0
    %3869 = vmatprep.subr.bf16.mxu0 0
    %3870 = vmatpush1.bf16.xpose.msra.mxu0 0
    %3871 = vmatprep.subr.bf16.mxu0 0
    %3872 = vmatpush1.bf16.xpose.msra.mxu0 0
    %3873 = vmatprep.subr.bf16.mxu0 0
    %3874 = vmatpush1.bf16.xpose.msra.mxu0 0
    %3875 = vmatprep.subr.bf16.mxu0 0
    %3876 = vmatpush1.bf16.xpose.msra.mxu0 0
    %3877 = vmatprep.subr.bf16.mxu0 0
    %3878 = vmatpush1.bf16.xpose.msra.mxu0 0
    %3879 = vmatprep.subr.bf16.mxu0 0
    %3880 = vmatpush1.bf16.xpose.msra.mxu0 0
    %3881 = vmatprep.subr.bf16.mxu0 0
    %3882 = vmatpush1.bf16.xpose.msra.mxu0 0
    %3883 = vmatprep.subr.bf16.mxu0 0
    %3884 = vmatpush1.bf16.xpose.msra.mxu0 0
    %3885 = vmatprep.subr.bf16.mxu0 0
    %3886 = vmatpush1.bf16.xpose.msra.mxu0 0
    %3887 = vmatprep.subr.bf16.mxu0 0
    %3888 = vmatpush1.bf16.xpose.msra.mxu0 0
    %3889 = vmatprep.mubr.bf16.mxu0 0
    %3890 = vmatmul.mubr.bf16.gmra.mrb[0].mxu0 %v3852
    %v3891 = vpop.f32.mrb[0].mxu0
    %v3892 = vadd.f32 0.0, %v3891
    %v3893 = vpop.f32.mrb[0].mxu0
    %v3894 = vpop.f32.mrb[0].mxu0
    %v3895 = vpop.f32.mrb[0].mxu0
    %3896 = vdwg.mxu0
    %v3897 = vmul.f32 %v3842, 0.17677669
    %v3898 = vmul.f32 %v3892, 0.17677669
    %v3899 = vsel %vm903, %v3897, -inf
    %3900 = vmax.xlane.f32.xlu0 %v3899
    %v3901 = vpop.xlane.xlu0 %3900
    %v3902 = vsel %vm903, %v3898, -inf
    %3903 = vmax.xlane.f32.xlu0 %v3902
    %v3904 = vpop.xlane.xlu0 %3903
    %v3905 = vsub.f32 %v3897, %v3901
    %v3906 = vsub.f32 %v3898, %v3904
    %v3907 = vmul.f32 %v3905, 1.442695
    %v3908 = vpow.pop %v3907
    %v3909 = vmul.f32 %v3906, 1.442695
    %v3910 = vpow.pop %v3909
    %v3911 = vsel %vm903, %v3908, 0.0
    %3912 = vadd.xlane.f32.xlu0 %v3911
    %v3913 = vpop.xlane.xlu0 %3912
    %v3914 = vsel %vm903, %v3910, 0.0
    %3915 = vadd.xlane.f32.xlu0 %v3914
    %v3916 = vpop.xlane.xlu0 %3915
    %v3917 = vrcp.pop %v3913
    %v3918 = vrcp.pop %v3916
    %v3919 = vmul.f32 %v3908, %v3917
    %v3920 = vmul.f32 %v3910, %v3918
    %v3921 = vpack.c.bf16 %v3919, %v3919
    %v3922 = vpack.c.bf16 %v3920, %v3920
    %3923 = vrot.lane.b32.xlu0 %v2943, 32
    %v3924 = vpop.permute.xlu0 %3923
    %v3926 = vsel %vm903, %v3921, 0
    %v3929 = vsel %vm931, %v3924, 0
    %3931 = vmatprep.subr.bf16.mxu0 0
    %3932 = vmatpush1.bf16.msra.mxu0 %v3929
    %3933 = vmatprep.subr.bf16.mxu0 0
    %3934 = vmatpush1.bf16.msra.mxu0 0
    %3935 = vmatprep.subr.bf16.mxu0 0
    %3936 = vmatpush1.bf16.msra.mxu0 0
    %3937 = vmatprep.subr.bf16.mxu0 0
    %3938 = vmatpush1.bf16.msra.mxu0 0
    %3939 = vmatprep.subr.bf16.mxu0 0
    %3940 = vmatpush1.bf16.msra.mxu0 0
    %3941 = vmatprep.subr.bf16.mxu0 0
    %3942 = vmatpush1.bf16.msra.mxu0 0
    %3943 = vmatprep.subr.bf16.mxu0 0
    %3944 = vmatpush1.bf16.msra.mxu0 0
    %3945 = vmatprep.subr.bf16.mxu0 0
    %3946 = vmatpush1.bf16.msra.mxu0 0
    %3947 = vmatprep.subr.bf16.mxu0 0
    %3948 = vmatpush1.bf16.msra.mxu0 0
    %3949 = vmatprep.subr.bf16.mxu0 0
    %3950 = vmatpush1.bf16.msra.mxu0 0
    %3951 = vmatprep.subr.bf16.mxu0 0
    %3952 = vmatpush1.bf16.msra.mxu0 0
    %3953 = vmatprep.subr.bf16.mxu0 0
    %3954 = vmatpush1.bf16.msra.mxu0 0
    %3955 = vmatprep.subr.bf16.mxu0 0
    %3956 = vmatpush1.bf16.msra.mxu0 0
    %3957 = vmatprep.subr.bf16.mxu0 0
    %3958 = vmatpush1.bf16.msra.mxu0 0
    %3959 = vmatprep.subr.bf16.mxu0 0
    %3960 = vmatpush1.bf16.msra.mxu0 0
    %3961 = vmatprep.subr.bf16.mxu0 0
    %3962 = vmatpush1.bf16.msra.mxu0 0
    %3963 = vmatprep.mubr.bf16.mxu0 0
    %3964 = vmatmul.mubr.bf16.gmra.mrb[0].mxu0 %v3926
    %v3965 = vpop.f32.mrb[0].mxu0
    %v3966 = vadd.f32 0.0, %v3965
    %v3967 = vpop.f32.mrb[0].mxu0
    %v3968 = vpop.f32.mrb[0].mxu0
    %v3969 = vpop.f32.mrb[0].mxu0
    %3970 = vdwg.mxu0
    %3971 = vrot.lane.b32.xlu0 %v2946, 32
    %v3972 = vpop.permute.xlu0 %3971
    %v3974 = vsel %vm903, %v3922, 0
    %v3977 = vsel %vm931, %v3972, 0
    %3979 = vmatprep.subr.bf16.mxu0 0
    %3980 = vmatpush1.bf16.msra.mxu0 %v3977
    %3981 = vmatprep.subr.bf16.mxu0 0
    %3982 = vmatpush1.bf16.msra.mxu0 0
    %3983 = vmatprep.subr.bf16.mxu0 0
    %3984 = vmatpush1.bf16.msra.mxu0 0
    %3985 = vmatprep.subr.bf16.mxu0 0
    %3986 = vmatpush1.bf16.msra.mxu0 0
    %3987 = vmatprep.subr.bf16.mxu0 0
    %3988 = vmatpush1.bf16.msra.mxu0 0
    %3989 = vmatprep.subr.bf16.mxu0 0
    %3990 = vmatpush1.bf16.msra.mxu0 0
    %3991 = vmatprep.subr.bf16.mxu0 0
    %3992 = vmatpush1.bf16.msra.mxu0 0
    %3993 = vmatprep.subr.bf16.mxu0 0
    %3994 = vmatpush1.bf16.msra.mxu0 0
    %3995 = vmatprep.subr.bf16.mxu0 0
    %3996 = vmatpush1.bf16.msra.mxu0 0
    %3997 = vmatprep.subr.bf16.mxu0 0
    %3998 = vmatpush1.bf16.msra.mxu0 0
    %3999 = vmatprep.subr.bf16.mxu0 0
    %4000 = vmatpush1.bf16.msra.mxu0 0
    %4001 = vmatprep.subr.bf16.mxu0 0
    %4002 = vmatpush1.bf16.msra.mxu0 0
    %4003 = vmatprep.subr.bf16.mxu0 0
    %4004 = vmatpush1.bf16.msra.mxu0 0
    %4005 = vmatprep.subr.bf16.mxu0 0
    %4006 = vmatpush1.bf16.msra.mxu0 0
    %4007 = vmatprep.subr.bf16.mxu0 0
    %4008 = vmatpush1.bf16.msra.mxu0 0
    %4009 = vmatprep.subr.bf16.mxu0 0
    %4010 = vmatpush1.bf16.msra.mxu0 0
    %4011 = vmatprep.mubr.bf16.mxu0 0
    %4012 = vmatmul.mubr.bf16.gmra.mrb[0].mxu0 %v3974
    %v4013 = vpop.f32.mrb[0].mxu0
    %v4014 = vadd.f32 0.0, %v4013
    %v4015 = vpop.f32.mrb[0].mxu0
    %v4016 = vpop.f32.mrb[0].mxu0
    %v4017 = vpop.f32.mrb[0].mxu0
    %4018 = vdwg.mxu0
    %v4019 = vpack.c.bf16 %v4014, %v3966
    %v4024 = vunpack.c.l.b16 %v2960
    %v4025 = vunpack.c.l.b16 %v2961
    %v4026 = vunpack.c.l.b16 %v2962
    %v4027 = vunpack.c.l.b16 %v2963
    %v4028 = vpack.c.b16 %v4025, %v4024
    %v4029 = vpack.c.b16 %v4027, %v4026
    %v4033 = vsel %vm808, %v4019, 0
    %4035 = vmatprep.subr.bf16.mxu0 0
    %4036 = vmatpush1.bf16.msra.mxu0 %v4028
    %4037 = vmatprep.subr.bf16.mxu0 0
    %4038 = vmatpush1.bf16.msra.mxu0 %v4029
    %4039 = vmatprep.subr.bf16.mxu0 0
    %4040 = vmatpush1.bf16.msra.mxu0 0
    %4041 = vmatprep.subr.bf16.mxu0 0
    %4042 = vmatpush1.bf16.msra.mxu0 0
    %4043 = vmatprep.subr.bf16.mxu0 0
    %4044 = vmatpush1.bf16.msra.mxu0 0
    %4045 = vmatprep.subr.bf16.mxu0 0
    %4046 = vmatpush1.bf16.msra.mxu0 0
    %4047 = vmatprep.subr.bf16.mxu0 0
    %4048 = vmatpush1.bf16.msra.mxu0 0
    %4049 = vmatprep.subr.bf16.mxu0 0
    %4050 = vmatpush1.bf16.msra.mxu0 0
    %4051 = vmatprep.subr.bf16.mxu0 0
    %4052 = vmatpush1.bf16.msra.mxu0 0
    %4053 = vmatprep.subr.bf16.mxu0 0
    %4054 = vmatpush1.bf16.msra.mxu0 0
    %4055 = vmatprep.subr.bf16.mxu0 0
    %4056 = vmatpush1.bf16.msra.mxu0 0
    %4057 = vmatprep.subr.bf16.mxu0 0
    %4058 = vmatpush1.bf16.msra.mxu0 0
    %4059 = vmatprep.subr.bf16.mxu0 0
    %4060 = vmatpush1.bf16.msra.mxu0 0
    %4061 = vmatprep.subr.bf16.mxu0 0
    %4062 = vmatpush1.bf16.msra.mxu0 0
    %4063 = vmatprep.subr.bf16.mxu0 0
    %4064 = vmatpush1.bf16.msra.mxu0 0
    %4065 = vmatprep.subr.bf16.mxu0 0
    %4066 = vmatpush1.bf16.msra.mxu0 0
    %4067 = vmatprep.mubr.bf16.mxu0 0
    %4068 = vmatmul.mubr.bf16.gmra.mrb[0].mxu0 %v4033
    %v4069 = vpop.f32.mrb[0].mxu0
    %v4070 = vadd.f32 0.0, %v4069
    %v4071 = vpop.f32.mrb[0].mxu0
    %v4072 = vpop.f32.mrb[0].mxu0
    %v4073 = vadd.f32 0.0, %v4072
    %v4074 = vpop.f32.mrb[0].mxu0
    %4075 = vdwg.mxu0
    %v4076 = vadd.f32 %v3795, %v4070
    %v4077 = vadd.f32 %v3796, %v4073
    %s4078 = scalar_lea.vmem [#allocation8], 1
    %v4079 = vld [vmem:[%s4078] sm:$0x1]
    %v4081 = vlaneseq
    %v4082 = vshrl.u32 %v4081, 7
    %v4083 = vsub.s32 0, %v4082
    %v4084 = vrot.slane %v4079, %v4083
    %v4086 = vadd.f32 %v4076, %v4084
    %v4087 = vadd.f32 %v4077, %v4084
    %v4088 = vadd.f32 %v2675, %v4086
    %v4089 = vadd.f32 %v2676, %v4087
    %s4090 = scalar_lea.vmem [#allocation9], 1
    %v4091 = vld [vmem:[%s4090] sm:$0x1]
    %s4092 = scalar_lea.vmem [#allocation11], 1
    %v4093 = vld [vmem:[%s4092] sm:$0x1]
    %4094 = vadd.xlane.f32.xlu0 %v4088
    %v4095 = vpop.xlane.xlu0 %4094
    %4096 = vadd.xlane.f32.xlu0 %v4089
    %v4097 = vpop.xlane.xlu0 %4096
    %v4098 = vmul.f32 %v4095, %v1942
    %v4099 = vmul.f32 %v4097, %v1942
    %v4100 = vsub.f32 %v4088, %v4098
    %v4101 = vsub.f32 %v4089, %v4099
    %v4102 = vmul.f32 %v4100, %v4100
    %v4103 = vmul.f32 %v4101, %v4101
    %4104 = vadd.xlane.f32.xlu0 %v4102
    %v4105 = vpop.xlane.xlu0 %4104
    %4106 = vadd.xlane.f32.xlu0 %v4103
    %v4107 = vpop.xlane.xlu0 %4106
    %v4108 = vmul.f32 %v4105, %v1942
    %v4109 = vmul.f32 %v4107, %v1942
    %v4110 = vadd.f32 %v4108, 1e-05
    %v4111 = vadd.f32 %v4109, 1e-05
    %v4112 = vrsqrt.pop %v4110
    %v4113 = vrsqrt.pop %v4111
    %v4114 = vmul.f32 %v4100, %v4112
    %v4115 = vmul.f32 %v4101, %v4113
    %v4117 = vlaneseq
    %v4118 = vshrl.u32 %v4117, 7
    %v4119 = vsub.s32 0, %v4118
    %v4120 = vrot.slane %v4091, %v4119
    %v4122 = vmul.f32 %v4114, %v4120
    %v4123 = vmul.f32 %v4115, %v4120
    %v4125 = vlaneseq
    %v4126 = vshrl.u32 %v4125, 7
    %v4127 = vsub.s32 0, %v4126
    %v4128 = vrot.slane %v4093, %v4127
    %v4130 = vadd.f32 %v4122, %v4128
    %v4131 = vadd.f32 %v4123, %v4128
    %v4132 = vpack.c.bf16 %v4131, %v4130
    %s4133 = scalar_lea.vmem %s27, 256
    %v4134 = vld [vmem:[%s4133] sm:$0xff]
    %v4135 = vld [vmem:[%s4133 + $0x8] sm:$0xff]
    %v4136 = vld [vmem:[%s4133 + $0x10] sm:$0xff]
    %v4137 = vld [vmem:[%s4133 + $0x18] sm:$0xff]
    %v4138 = vld [vmem:[%s4133 + $0x20] sm:$0xff]
    %v4139 = vld [vmem:[%s4133 + $0x28] sm:$0xff]
    %v4140 = vld [vmem:[%s4133 + $0x30] sm:$0xff]
    %v4141 = vld [vmem:[%s4133 + $0x38] sm:$0xff]
    %v4142 = vld [vmem:[%s4133 + $0x40] sm:$0xff]
    %v4143 = vld [vmem:[%s4133 + $0x48] sm:$0xff]
    %v4144 = vld [vmem:[%s4133 + $0x50] sm:$0xff]
    %v4145 = vld [vmem:[%s4133 + $0x58] sm:$0xff]
    %v4146 = vld [vmem:[%s4133 + $0x60] sm:$0xff]
    %v4147 = vld [vmem:[%s4133 + $0x68] sm:$0xff]
    %v4148 = vld [vmem:[%s4133 + $0x70] sm:$0xff]
    %v4149 = vld [vmem:[%s4133 + $0x78] sm:$0xff]
    %v4150 = vld [vmem:[%s4133 + $0x80] sm:$0xff]
    %v4151 = vld [vmem:[%s4133 + $0x88] sm:$0xff]
    %v4152 = vld [vmem:[%s4133 + $0x90] sm:$0xff]
    %v4153 = vld [vmem:[%s4133 + $0x98] sm:$0xff]
    %v4154 = vld [vmem:[%s4133 + $0xa0] sm:$0xff]
    %v4155 = vld [vmem:[%s4133 + $0xa8] sm:$0xff]
    %v4156 = vld [vmem:[%s4133 + $0xb0] sm:$0xff]
    %v4157 = vld [vmem:[%s4133 + $0xb8] sm:$0xff]
    %v4158 = vld [vmem:[%s4133 + $0xc0] sm:$0xff]
    %v4159 = vld [vmem:[%s4133 + $0xc8] sm:$0xff]
    %v4160 = vld [vmem:[%s4133 + $0xd0] sm:$0xff]
    %v4161 = vld [vmem:[%s4133 + $0xd8] sm:$0xff]
    %v4162 = vld [vmem:[%s4133 + $0xe0] sm:$0xff]
    %v4163 = vld [vmem:[%s4133 + $0xe8] sm:$0xff]
    %v4164 = vld [vmem:[%s4133 + $0xf0] sm:$0xff]
    %v4165 = vld [vmem:[%s4133 + $0xf8] sm:$0xff]
    %s4166 = scalar_lea.vmem [#allocation12], 4
    %v4167 = vld [vmem:[%s4166] sm:$0xf]
    %v4169 = vlaneseq
    %v4170 = vshrl.u32 %v4169, 7
    %v4171 = vsub.s32 0, %v4170
    %v4172 = vrot.slane %v4167, %v4171
    %v4173 = vlaneseq
    %v4174 = vshrl.u32 %v4173, 7
    %v4175 = vsub.s32 1, %v4174
    %v4176 = vrot.slane %v4167, %v4175
    %v4177 = vlaneseq
    %v4178 = vshrl.u32 %v4177, 7
    %v4179 = vsub.s32 2, %v4178
    %v4180 = vrot.slane %v4167, %v4179
    %v4181 = vlaneseq
    %v4182 = vshrl.u32 %v4181, 7
    %v4183 = vsub.s32 3, %v4182
    %v4184 = vrot.slane %v4167, %v4183
    %v4221 = vunpack.c.l.b16 %v4134
    %v4222 = vunpack.c.h.b16 %v4134
    %v4223 = vunpack.c.l.b16 %v4135
    %v4224 = vunpack.c.h.b16 %v4135
    %v4225 = vunpack.c.l.b16 %v4136
    %v4226 = vunpack.c.h.b16 %v4136
    %v4227 = vunpack.c.l.b16 %v4137
    %v4228 = vunpack.c.h.b16 %v4137
    %v4229 = vunpack.c.l.b16 %v4138
    %v4230 = vunpack.c.h.b16 %v4138
    %v4231 = vunpack.c.l.b16 %v4139
    %v4232 = vunpack.c.h.b16 %v4139
    %v4233 = vunpack.c.l.b16 %v4140
    %v4234 = vunpack.c.h.b16 %v4140
    %v4235 = vunpack.c.l.b16 %v4141
    %v4236 = vunpack.c.h.b16 %v4141
    %v4237 = vunpack.c.l.b16 %v4142
    %v4238 = vunpack.c.h.b16 %v4142
    %v4239 = vunpack.c.l.b16 %v4143
    %v4240 = vunpack.c.h.b16 %v4143
    %v4241 = vunpack.c.l.b16 %v4144
    %v4242 = vunpack.c.h.b16 %v4144
    %v4243 = vunpack.c.l.b16 %v4145
    %v4244 = vunpack.c.h.b16 %v4145
    %v4245 = vunpack.c.l.b16 %v4146
    %v4246 = vunpack.c.h.b16 %v4146
    %v4247 = vunpack.c.l.b16 %v4147
    %v4248 = vunpack.c.h.b16 %v4147
    %v4249 = vunpack.c.l.b16 %v4148
    %v4250 = vunpack.c.h.b16 %v4148
    %v4251 = vunpack.c.l.b16 %v4149
    %v4252 = vunpack.c.h.b16 %v4149
    %v4253 = vunpack.c.l.b16 %v4150
    %v4254 = vunpack.c.h.b16 %v4150
    %v4255 = vunpack.c.l.b16 %v4151
    %v4256 = vunpack.c.h.b16 %v4151
    %v4257 = vunpack.c.l.b16 %v4152
    %v4258 = vunpack.c.h.b16 %v4152
    %v4259 = vunpack.c.l.b16 %v4153
    %v4260 = vunpack.c.h.b16 %v4153
    %v4261 = vunpack.c.l.b16 %v4154
    %v4262 = vunpack.c.h.b16 %v4154
    %v4263 = vunpack.c.l.b16 %v4155
    %v4264 = vunpack.c.h.b16 %v4155
    %v4265 = vunpack.c.l.b16 %v4156
    %v4266 = vunpack.c.h.b16 %v4156
    %v4267 = vunpack.c.l.b16 %v4157
    %v4268 = vunpack.c.h.b16 %v4157
    %v4269 = vunpack.c.l.b16 %v4158
    %v4270 = vunpack.c.h.b16 %v4158
    %v4271 = vunpack.c.l.b16 %v4159
    %v4272 = vunpack.c.h.b16 %v4159
    %v4273 = vunpack.c.l.b16 %v4160
    %v4274 = vunpack.c.h.b16 %v4160
    %v4275 = vunpack.c.l.b16 %v4161
    %v4276 = vunpack.c.h.b16 %v4161
    %v4277 = vunpack.c.l.b16 %v4162
    %v4278 = vunpack.c.h.b16 %v4162
    %v4279 = vunpack.c.l.b16 %v4163
    %v4280 = vunpack.c.h.b16 %v4163
    %v4281 = vunpack.c.l.b16 %v4164
    %v4282 = vunpack.c.h.b16 %v4164
    %v4283 = vunpack.c.l.b16 %v4165
    %v4284 = vunpack.c.h.b16 %v4165
    %v4285 = vpack.c.b16 %v4225, %v4221
    %v4286 = vpack.c.b16 %v4226, %v4222
    %v4287 = vpack.c.b16 %v4227, %v4223
    %v4288 = vpack.c.b16 %v4228, %v4224
    %v4289 = vpack.c.b16 %v4233, %v4229
    %v4290 = vpack.c.b16 %v4234, %v4230
    %v4291 = vpack.c.b16 %v4235, %v4231
    %v4292 = vpack.c.b16 %v4236, %v4232
    %v4293 = vpack.c.b16 %v4241, %v4237
    %v4294 = vpack.c.b16 %v4242, %v4238
    %v4295 = vpack.c.b16 %v4243, %v4239
    %v4296 = vpack.c.b16 %v4244, %v4240
    %v4297 = vpack.c.b16 %v4249, %v4245
    %v4298 = vpack.c.b16 %v4250, %v4246
    %v4299 = vpack.c.b16 %v4251, %v4247
    %v4300 = vpack.c.b16 %v4252, %v4248
    %v4301 = vpack.c.b16 %v4257, %v4253
    %v4302 = vpack.c.b16 %v4258, %v4254
    %v4303 = vpack.c.b16 %v4259, %v4255
    %v4304 = vpack.c.b16 %v4260, %v4256
    %v4305 = vpack.c.b16 %v4265, %v4261
    %v4306 = vpack.c.b16 %v4266, %v4262
    %v4307 = vpack.c.b16 %v4267, %v4263
    %v4308 = vpack.c.b16 %v4268, %v4264
    %v4309 = vpack.c.b16 %v4273, %v4269
    %v4310 = vpack.c.b16 %v4274, %v4270
    %v4311 = vpack.c.b16 %v4275, %v4271
    %v4312 = vpack.c.b16 %v4276, %v4272
    %v4313 = vpack.c.b16 %v4281, %v4277
    %v4314 = vpack.c.b16 %v4282, %v4278
    %v4315 = vpack.c.b16 %v4283, %v4279
    %v4316 = vpack.c.b16 %v4284, %v4280
    %4349 = vmatprep.subr.bf16.mxu0 %v4286
    %4350 = vmatpush1.bf16.msra.mxu0 %v4285
    %4351 = vmatprep.subr.bf16.mxu0 %v4290
    %4352 = vmatpush1.bf16.msra.mxu0 %v4289
    %4353 = vmatprep.subr.bf16.mxu0 %v4294
    %4354 = vmatpush1.bf16.msra.mxu0 %v4293
    %4355 = vmatprep.subr.bf16.mxu0 %v4298
    %4356 = vmatpush1.bf16.msra.mxu0 %v4297
    %4357 = vmatprep.subr.bf16.mxu0 %v4302
    %4358 = vmatpush1.bf16.msra.mxu0 %v4301
    %4359 = vmatprep.subr.bf16.mxu0 %v4306
    %4360 = vmatpush1.bf16.msra.mxu0 %v4305
    %4361 = vmatprep.subr.bf16.mxu0 %v4310
    %4362 = vmatpush1.bf16.msra.mxu0 %v4309
    %4363 = vmatprep.subr.bf16.mxu0 %v4314
    %4364 = vmatpush1.bf16.msra.mxu0 %v4313
    %4365 = vmatprep.subr.bf16.mxu0 0
    %4366 = vmatpush1.bf16.msra.mxu0 0
    %4367 = vmatprep.subr.bf16.mxu0 0
    %4368 = vmatpush1.bf16.msra.mxu0 0
    %4369 = vmatprep.subr.bf16.mxu0 0
    %4370 = vmatpush1.bf16.msra.mxu0 0
    %4371 = vmatprep.subr.bf16.mxu0 0
    %4372 = vmatpush1.bf16.msra.mxu0 0
    %4373 = vmatprep.subr.bf16.mxu0 0
    %4374 = vmatpush1.bf16.msra.mxu0 0
    %4375 = vmatprep.subr.bf16.mxu0 0
    %4376 = vmatpush1.bf16.msra.mxu0 0
    %4377 = vmatprep.subr.bf16.mxu0 0
    %4378 = vmatpush1.bf16.msra.mxu0 0
    %4379 = vmatprep.subr.bf16.mxu0 0
    %4380 = vmatpush1.bf16.msra.mxu0 0
    %4381 = vmatprep.mubr.bf16.mxu0 0
    %4382 = vmatmul.mubr.bf16.gmra.mrb[0].mxu0 %v4132
    %v4383 = vpop.f32.mrb[0].mxu0
    %v4384 = vadd.f32 %v4172, %v4383
    %v4385 = vpop.f32.mrb[0].mxu0
    %v4386 = vadd.f32 %v4176, %v4385
    %v4387 = vpop.f32.mrb[0].mxu0
    %v4388 = vadd.f32 %v4172, %v4387
    %v4389 = vpop.f32.mrb[0].mxu0
    %v4390 = vadd.f32 %v4176, %v4389
    %4391 = vdwg.mxu0
    %4392 = vmatprep.subr.bf16.mxu0 %v4288
    %4393 = vmatpush1.bf16.msra.mxu0 %v4287
    %4394 = vmatprep.subr.bf16.mxu0 %v4292
    %4395 = vmatpush1.bf16.msra.mxu0 %v4291
    %4396 = vmatprep.subr.bf16.mxu0 %v4296
    %4397 = vmatpush1.bf16.msra.mxu0 %v4295
    %4398 = vmatprep.subr.bf16.mxu0 %v4300
    %4399 = vmatpush1.bf16.msra.mxu0 %v4299
    %4400 = vmatprep.subr.bf16.mxu0 %v4304
    %4401 = vmatpush1.bf16.msra.mxu0 %v4303
    %4402 = vmatprep.subr.bf16.mxu0 %v4308
    %4403 = vmatpush1.bf16.msra.mxu0 %v4307
    %4404 = vmatprep.subr.bf16.mxu0 %v4312
    %4405 = vmatpush1.bf16.msra.mxu0 %v4311
    %4406 = vmatprep.subr.bf16.mxu0 %v4316
    %4407 = vmatpush1.bf16.msra.mxu0 %v4315
    %4408 = vmatprep.subr.bf16.mxu0 0
    %4409 = vmatpush1.bf16.msra.mxu0 0
    %4410 = vmatprep.subr.bf16.mxu0 0
    %4411 = vmatpush1.bf16.msra.mxu0 0
    %4412 = vmatprep.subr.bf16.mxu0 0
    %4413 = vmatpush1.bf16.msra.mxu0 0
    %4414 = vmatprep.subr.bf16.mxu0 0
    %4415 = vmatpush1.bf16.msra.mxu0 0
    %4416 = vmatprep.subr.bf16.mxu0 0
    %4417 = vmatpush1.bf16.msra.mxu0 0
    %4418 = vmatprep.subr.bf16.mxu0 0
    %4419 = vmatpush1.bf16.msra.mxu0 0
    %4420 = vmatprep.subr.bf16.mxu0 0
    %4421 = vmatpush1.bf16.msra.mxu0 0
    %4422 = vmatprep.subr.bf16.mxu0 0
    %4423 = vmatpush1.bf16.msra.mxu0 0
    %4424 = vmatprep.mubr.bf16.mxu0 0
    %4425 = vmatmul.mubr.bf16.gmra.mrb[0].mxu0 %v4132
    %v4426 = vpop.f32.mrb[0].mxu0
    %v4427 = vadd.f32 %v4180, %v4426
    %v4428 = vpop.f32.mrb[0].mxu0
    %v4429 = vadd.f32 %v4184, %v4428
    %v4430 = vpop.f32.mrb[0].mxu0
    %v4431 = vadd.f32 %v4180, %v4430
    %v4432 = vpop.f32.mrb[0].mxu0
    %v4433 = vadd.f32 %v4184, %v4432
    %4434 = vdwg.mxu0
    %v4435 = vmax.f32 %v4384, 0.0
    %v4436 = vmax.f32 %v4386, 0.0
    %v4437 = vmax.f32 %v4427, 0.0
    %v4438 = vmax.f32 %v4429, 0.0
    %v4439 = vmax.f32 %v4388, 0.0
    %v4440 = vmax.f32 %v4390, 0.0
    %v4441 = vmax.f32 %v4431, 0.0
    %v4442 = vmax.f32 %v4433, 0.0
    %v4443 = vpack.c.bf16 %v4439, %v4435
    %v4444 = vpack.c.bf16 %v4440, %v4436
    %v4445 = vpack.c.bf16 %v4441, %v4437
    %v4446 = vpack.c.bf16 %v4442, %v4438
    %s4447 = scalar_lea.vmem [#allocation14], 256
    %v4448 = vld [vmem:[%s4447] sm:$0xf]
    %v4449 = vld [vmem:[%s4447 + $0x4] sm:$0xf]
    %v4450 = vld [vmem:[%s4447 + $0x8] sm:$0xf]
    %v4451 = vld [vmem:[%s4447 + $0xc] sm:$0xf]
    %v4452 = vld [vmem:[%s4447 + $0x10] sm:$0xf]
    %v4453 = vld [vmem:[%s4447 + $0x14] sm:$0xf]
    %v4454 = vld [vmem:[%s4447 + $0x18] sm:$0xf]
    %v4455 = vld [vmem:[%s4447 + $0x1c] sm:$0xf]
    %v4456 = vld [vmem:[%s4447 + $0x20] sm:$0xf]
    %v4457 = vld [vmem:[%s4447 + $0x24] sm:$0xf]
    %v4458 = vld [vmem:[%s4447 + $0x28] sm:$0xf]
    %v4459 = vld [vmem:[%s4447 + $0x2c] sm:$0xf]
    %v4460 = vld [vmem:[%s4447 + $0x30] sm:$0xf]
    %v4461 = vld [vmem:[%s4447 + $0x34] sm:$0xf]
    %v4462 = vld [vmem:[%s4447 + $0x38] sm:$0xf]
    %v4463 = vld [vmem:[%s4447 + $0x3c] sm:$0xf]
    %v4464 = vld [vmem:[%s4447 + $0x40] sm:$0xf]
    %v4465 = vld [vmem:[%s4447 + $0x44] sm:$0xf]
    %v4466 = vld [vmem:[%s4447 + $0x48] sm:$0xf]
    %v4467 = vld [vmem:[%s4447 + $0x4c] sm:$0xf]
    %v4468 = vld [vmem:[%s4447 + $0x50] sm:$0xf]
    %v4469 = vld [vmem:[%s4447 + $0x54] sm:$0xf]
    %v4470 = vld [vmem:[%s4447 + $0x58] sm:$0xf]
    %v4471 = vld [vmem:[%s4447 + $0x5c] sm:$0xf]
    %v4472 = vld [vmem:[%s4447 + $0x60] sm:$0xf]
    %v4473 = vld [vmem:[%s4447 + $0x64] sm:$0xf]
    %v4474 = vld [vmem:[%s4447 + $0x68] sm:$0xf]
    %v4475 = vld [vmem:[%s4447 + $0x6c] sm:$0xf]
    %v4476 = vld [vmem:[%s4447 + $0x70] sm:$0xf]
    %v4477 = vld [vmem:[%s4447 + $0x74] sm:$0xf]
    %v4478 = vld [vmem:[%s4447 + $0x78] sm:$0xf]
    %v4479 = vld [vmem:[%s4447 + $0x7c] sm:$0xf]
    %v4480 = vld [vmem:[%s4447 + $0x80] sm:$0xf]
    %v4481 = vld [vmem:[%s4447 + $0x84] sm:$0xf]
    %v4482 = vld [vmem:[%s4447 + $0x88] sm:$0xf]
    %v4483 = vld [vmem:[%s4447 + $0x8c] sm:$0xf]
    %v4484 = vld [vmem:[%s4447 + $0x90] sm:$0xf]
    %v4485 = vld [vmem:[%s4447 + $0x94] sm:$0xf]
    %v4486 = vld [vmem:[%s4447 + $0x98] sm:$0xf]
    %v4487 = vld [vmem:[%s4447 + $0x9c] sm:$0xf]
    %v4488 = vld [vmem:[%s4447 + $0xa0] sm:$0xf]
    %v4489 = vld [vmem:[%s4447 + $0xa4] sm:$0xf]
    %v4490 = vld [vmem:[%s4447 + $0xa8] sm:$0xf]
    %v4491 = vld [vmem:[%s4447 + $0xac] sm:$0xf]
    %v4492 = vld [vmem:[%s4447 + $0xb0] sm:$0xf]
    %v4493 = vld [vmem:[%s4447 + $0xb4] sm:$0xf]
    %v4494 = vld [vmem:[%s4447 + $0xb8] sm:$0xf]
    %v4495 = vld [vmem:[%s4447 + $0xbc] sm:$0xf]
    %v4496 = vld [vmem:[%s4447 + $0xc0] sm:$0xf]
    %v4497 = vld [vmem:[%s4447 + $0xc4] sm:$0xf]
    %v4498 = vld [vmem:[%s4447 + $0xc8] sm:$0xf]
    %v4499 = vld [vmem:[%s4447 + $0xcc] sm:$0xf]
    %v4500 = vld [vmem:[%s4447 + $0xd0] sm:$0xf]
    %v4501 = vld [vmem:[%s4447 + $0xd4] sm:$0xf]
    %v4502 = vld [vmem:[%s4447 + $0xd8] sm:$0xf]
    %v4503 = vld [vmem:[%s4447 + $0xdc] sm:$0xf]
    %v4504 = vld [vmem:[%s4447 + $0xe0] sm:$0xf]
    %v4505 = vld [vmem:[%s4447 + $0xe4] sm:$0xf]
    %v4506 = vld [vmem:[%s4447 + $0xe8] sm:$0xf]
    %v4507 = vld [vmem:[%s4447 + $0xec] sm:$0xf]
    %v4508 = vld [vmem:[%s4447 + $0xf0] sm:$0xf]
    %v4509 = vld [vmem:[%s4447 + $0xf4] sm:$0xf]
    %v4510 = vld [vmem:[%s4447 + $0xf8] sm:$0xf]
    %v4511 = vld [vmem:[%s4447 + $0xfc] sm:$0xf]
    %s4512 = scalar_lea.vmem [#allocation15], 1
    %v4513 = vld [vmem:[%s4512] sm:$0x1]
    %v4515 = vlaneseq
    %v4516 = vshrl.u32 %v4515, 7
    %v4517 = vsub.s32 0, %v4516
    %v4518 = vrot.slane %v4513, %v4517
    %v4584 = vunpack.c.l.b16 %v4448
    %v4585 = vunpack.c.l.b16 %v4449
    %v4586 = vunpack.c.l.b16 %v4450
    %v4587 = vunpack.c.l.b16 %v4451
    %v4588 = vunpack.c.l.b16 %v4452
    %v4589 = vunpack.c.l.b16 %v4453
    %v4590 = vunpack.c.l.b16 %v4454
    %v4591 = vunpack.c.l.b16 %v4455
    %v4592 = vunpack.c.l.b16 %v4456
    %v4593 = vunpack.c.l.b16 %v4457
    %v4594 = vunpack.c.l.b16 %v4458
    %v4595 = vunpack.c.l.b16 %v4459
    %v4596 = vunpack.c.l.b16 %v4460
    %v4597 = vunpack.c.l.b16 %v4461
    %v4598 = vunpack.c.l.b16 %v4462
    %v4599 = vunpack.c.l.b16 %v4463
    %v4600 = vunpack.c.l.b16 %v4464
    %v4601 = vunpack.c.l.b16 %v4465
    %v4602 = vunpack.c.l.b16 %v4466
    %v4603 = vunpack.c.l.b16 %v4467
    %v4604 = vunpack.c.l.b16 %v4468
    %v4605 = vunpack.c.l.b16 %v4469
    %v4606 = vunpack.c.l.b16 %v4470
    %v4607 = vunpack.c.l.b16 %v4471
    %v4608 = vunpack.c.l.b16 %v4472
    %v4609 = vunpack.c.l.b16 %v4473
    %v4610 = vunpack.c.l.b16 %v4474
    %v4611 = vunpack.c.l.b16 %v4475
    %v4612 = vunpack.c.l.b16 %v4476
    %v4613 = vunpack.c.l.b16 %v4477
    %v4614 = vunpack.c.l.b16 %v4478
    %v4615 = vunpack.c.l.b16 %v4479
    %v4616 = vunpack.c.l.b16 %v4480
    %v4617 = vunpack.c.l.b16 %v4481
    %v4618 = vunpack.c.l.b16 %v4482
    %v4619 = vunpack.c.l.b16 %v4483
    %v4620 = vunpack.c.l.b16 %v4484
    %v4621 = vunpack.c.l.b16 %v4485
    %v4622 = vunpack.c.l.b16 %v4486
    %v4623 = vunpack.c.l.b16 %v4487
    %v4624 = vunpack.c.l.b16 %v4488
    %v4625 = vunpack.c.l.b16 %v4489
    %v4626 = vunpack.c.l.b16 %v4490
    %v4627 = vunpack.c.l.b16 %v4491
    %v4628 = vunpack.c.l.b16 %v4492
    %v4629 = vunpack.c.l.b16 %v4493
    %v4630 = vunpack.c.l.b16 %v4494
    %v4631 = vunpack.c.l.b16 %v4495
    %v4632 = vunpack.c.l.b16 %v4496
    %v4633 = vunpack.c.l.b16 %v4497
    %v4634 = vunpack.c.l.b16 %v4498
    %v4635 = vunpack.c.l.b16 %v4499
    %v4636 = vunpack.c.l.b16 %v4500
    %v4637 = vunpack.c.l.b16 %v4501
    %v4638 = vunpack.c.l.b16 %v4502
    %v4639 = vunpack.c.l.b16 %v4503
    %v4640 = vunpack.c.l.b16 %v4504
    %v4641 = vunpack.c.l.b16 %v4505
    %v4642 = vunpack.c.l.b16 %v4506
    %v4643 = vunpack.c.l.b16 %v4507
    %v4644 = vunpack.c.l.b16 %v4508
    %v4645 = vunpack.c.l.b16 %v4509
    %v4646 = vunpack.c.l.b16 %v4510
    %v4647 = vunpack.c.l.b16 %v4511
    %v4648 = vpack.c.b16 %v4585, %v4584
    %v4649 = vpack.c.b16 %v4587, %v4586
    %v4650 = vpack.c.b16 %v4589, %v4588
    %v4651 = vpack.c.b16 %v4591, %v4590
    %v4652 = vpack.c.b16 %v4593, %v4592
    %v4653 = vpack.c.b16 %v4595, %v4594
    %v4654 = vpack.c.b16 %v4597, %v4596
    %v4655 = vpack.c.b16 %v4599, %v4598
    %v4656 = vpack.c.b16 %v4601, %v4600
    %v4657 = vpack.c.b16 %v4603, %v4602
    %v4658 = vpack.c.b16 %v4605, %v4604
    %v4659 = vpack.c.b16 %v4607, %v4606
    %v4660 = vpack.c.b16 %v4609, %v4608
    %v4661 = vpack.c.b16 %v4611, %v4610
    %v4662 = vpack.c.b16 %v4613, %v4612
    %v4663 = vpack.c.b16 %v4615, %v4614
    %v4664 = vpack.c.b16 %v4617, %v4616
    %v4665 = vpack.c.b16 %v4619, %v4618
    %v4666 = vpack.c.b16 %v4621, %v4620
    %v4667 = vpack.c.b16 %v4623, %v4622
    %v4668 = vpack.c.b16 %v4625, %v4624
    %v4669 = vpack.c.b16 %v4627, %v4626
    %v4670 = vpack.c.b16 %v4629, %v4628
    %v4671 = vpack.c.b16 %v4631, %v4630
    %v4672 = vpack.c.b16 %v4633, %v4632
    %v4673 = vpack.c.b16 %v4635, %v4634
    %v4674 = vpack.c.b16 %v4637, %v4636
    %v4675 = vpack.c.b16 %v4639, %v4638
    %v4676 = vpack.c.b16 %v4641, %v4640
    %v4677 = vpack.c.b16 %v4643, %v4642
    %v4678 = vpack.c.b16 %v4645, %v4644
    %v4679 = vpack.c.b16 %v4647, %v4646
    %4712 = vmatprep.subr.bf16.mxu0 0
    %4713 = vmatpush1.bf16.msra.mxu0 %v4648
    %4714 = vmatprep.subr.bf16.mxu0 0
    %4715 = vmatpush1.bf16.msra.mxu0 %v4649
    %4716 = vmatprep.subr.bf16.mxu0 0
    %4717 = vmatpush1.bf16.msra.mxu0 %v4650
    %4718 = vmatprep.subr.bf16.mxu0 0
    %4719 = vmatpush1.bf16.msra.mxu0 %v4651
    %4720 = vmatprep.subr.bf16.mxu0 0
    %4721 = vmatpush1.bf16.msra.mxu0 %v4652
    %4722 = vmatprep.subr.bf16.mxu0 0
    %4723 = vmatpush1.bf16.msra.mxu0 %v4653
    %4724 = vmatprep.subr.bf16.mxu0 0
    %4725 = vmatpush1.bf16.msra.mxu0 %v4654
    %4726 = vmatprep.subr.bf16.mxu0 0
    %4727 = vmatpush1.bf16.msra.mxu0 %v4655
    %4728 = vmatprep.subr.bf16.mxu0 0
    %4729 = vmatpush1.bf16.msra.mxu0 %v4656
    %4730 = vmatprep.subr.bf16.mxu0 0
    %4731 = vmatpush1.bf16.msra.mxu0 %v4657
    %4732 = vmatprep.subr.bf16.mxu0 0
    %4733 = vmatpush1.bf16.msra.mxu0 %v4658
    %4734 = vmatprep.subr.bf16.mxu0 0
    %4735 = vmatpush1.bf16.msra.mxu0 %v4659
    %4736 = vmatprep.subr.bf16.mxu0 0
    %4737 = vmatpush1.bf16.msra.mxu0 %v4660
    %4738 = vmatprep.subr.bf16.mxu0 0
    %4739 = vmatpush1.bf16.msra.mxu0 %v4661
    %4740 = vmatprep.subr.bf16.mxu0 0
    %4741 = vmatpush1.bf16.msra.mxu0 %v4662
    %4742 = vmatprep.subr.bf16.mxu0 0
    %4743 = vmatpush1.bf16.msra.mxu0 %v4663
    %4744 = vmatprep.mubr.bf16.mxu0 %v4444
    %4745 = vmatmul.mubr.bf16.gmra.mrb[0].mxu0 %v4443
    %v4746 = vpop.f32.mrb[0].mxu0
    %v4747 = vadd.f32 %v4518, %v4746
    %v4748 = vpop.f32.mrb[0].mxu0
    %v4749 = vpop.f32.mrb[0].mxu0
    %v4750 = vadd.f32 %v4518, %v4749
    %v4751 = vpop.f32.mrb[0].mxu0
    %4752 = vdwg.mxu0
    %4753 = vmatprep.subr.bf16.mxu0 0
    %4754 = vmatpush1.bf16.msra.mxu0 %v4664
    %4755 = vmatprep.subr.bf16.mxu0 0
    %4756 = vmatpush1.bf16.msra.mxu0 %v4665
    %4757 = vmatprep.subr.bf16.mxu0 0
    %4758 = vmatpush1.bf16.msra.mxu0 %v4666
    %4759 = vmatprep.subr.bf16.mxu0 0
    %4760 = vmatpush1.bf16.msra.mxu0 %v4667
    %4761 = vmatprep.subr.bf16.mxu0 0
    %4762 = vmatpush1.bf16.msra.mxu0 %v4668
    %4763 = vmatprep.subr.bf16.mxu0 0
    %4764 = vmatpush1.bf16.msra.mxu0 %v4669
    %4765 = vmatprep.subr.bf16.mxu0 0
    %4766 = vmatpush1.bf16.msra.mxu0 %v4670
    %4767 = vmatprep.subr.bf16.mxu0 0
    %4768 = vmatpush1.bf16.msra.mxu0 %v4671
    %4769 = vmatprep.subr.bf16.mxu0 0
    %4770 = vmatpush1.bf16.msra.mxu0 %v4672
    %4771 = vmatprep.subr.bf16.mxu0 0
    %4772 = vmatpush1.bf16.msra.mxu0 %v4673
    %4773 = vmatprep.subr.bf16.mxu0 0
    %4774 = vmatpush1.bf16.msra.mxu0 %v4674
    %4775 = vmatprep.subr.bf16.mxu0 0
    %4776 = vmatpush1.bf16.msra.mxu0 %v4675
    %4777 = vmatprep.subr.bf16.mxu0 0
    %4778 = vmatpush1.bf16.msra.mxu0 %v4676
    %4779 = vmatprep.subr.bf16.mxu0 0
    %4780 = vmatpush1.bf16.msra.mxu0 %v4677
    %4781 = vmatprep.subr.bf16.mxu0 0
    %4782 = vmatpush1.bf16.msra.mxu0 %v4678
    %4783 = vmatprep.subr.bf16.mxu0 0
    %4784 = vmatpush1.bf16.msra.mxu0 %v4679
    %4785 = vmatprep.mubr.bf16.mxu0 %v4446
    %4786 = vmatmul.mubr.bf16.gmra.mrb[0].mxu0 %v4445
    %v4787 = vpop.f32.mrb[0].mxu0
    %v4788 = vadd.f32 %v4747, %v4787
    %v4789 = vpop.f32.mrb[0].mxu0
    %v4790 = vpop.f32.mrb[0].mxu0
    %v4791 = vadd.f32 %v4750, %v4790
    %v4792 = vpop.f32.mrb[0].mxu0
    %4793 = vdwg.mxu0
    %v4794 = vadd.f32 %v4130, %v4788
    %v4795 = vadd.f32 %v4131, %v4791
    %s4796 = scalar_lea.vmem [#allocation17], 1
    %v4797 = vld [vmem:[%s4796] sm:$0x1]
    %s4798 = scalar_lea.vmem [#allocation18], 1
    %v4799 = vld [vmem:[%s4798] sm:$0x1]
    %4800 = vadd.xlane.f32.xlu0 %v4794
    %v4801 = vpop.xlane.xlu0 %4800
    %4802 = vadd.xlane.f32.xlu0 %v4795
    %v4803 = vpop.xlane.xlu0 %4802
    %v4804 = vmul.f32 %v4801, %v1942
    %v4805 = vmul.f32 %v4803, %v1942
    %v4806 = vsub.f32 %v4794, %v4804
    %v4807 = vsub.f32 %v4795, %v4805
    %v4808 = vmul.f32 %v4806, %v4806
    %v4809 = vmul.f32 %v4807, %v4807
    %4810 = vadd.xlane.f32.xlu0 %v4808
    %v4811 = vpop.xlane.xlu0 %4810
    %4812 = vadd.xlane.f32.xlu0 %v4809
    %v4813 = vpop.xlane.xlu0 %4812
    %v4814 = vmul.f32 %v4811, %v1942
    %v4815 = vmul.f32 %v4813, %v1942
    %v4816 = vadd.f32 %v4814, 1e-05
    %v4817 = vadd.f32 %v4815, 1e-05
    %v4818 = vrsqrt.pop %v4816
    %v4819 = vrsqrt.pop %v4817
    %v4820 = vmul.f32 %v4806, %v4818
    %v4821 = vmul.f32 %v4807, %v4819
    %v4823 = vlaneseq
    %v4824 = vshrl.u32 %v4823, 7
    %v4825 = vsub.s32 0, %v4824
    %v4826 = vrot.slane %v4797, %v4825
    %v4828 = vmul.f32 %v4820, %v4826
    %v4829 = vmul.f32 %v4821, %v4826
    %v4831 = vlaneseq
    %v4832 = vshrl.u32 %v4831, 7
    %v4833 = vsub.s32 0, %v4832
    %v4834 = vrot.slane %v4799, %v4833
    %v4836 = vadd.f32 %v4828, %v4834
    %v4837 = vadd.f32 %v4829, %v4834
    %4838 = vst [vmem:[#allocation33] sm:$0xff] %v4836
    %4839 = vst [vmem:[#allocation33 + $0x8] sm:$0xff] %v4837
    %v4840 = vpack.c.bf16 %v4837, %v4836
    %v4841 = vld [vmem:[#allocation20] sm:$0xff]
    %v4842 = vld [vmem:[#allocation20 + $0x8] sm:$0xff]
    %v4843 = vld [vmem:[#allocation20 + $0x10] sm:$0xff]
    %v4844 = vld [vmem:[#allocation20 + $0x18] sm:$0xff]
    %v4845 = vld [vmem:[#allocation20 + $0x20] sm:$0xff]
    %v4846 = vld [vmem:[#allocation20 + $0x28] sm:$0xff]
    %v4847 = vld [vmem:[#allocation20 + $0x30] sm:$0xff]
    %v4848 = vld [vmem:[#allocation20 + $0x38] sm:$0xff]
    %v4849 = vld [vmem:[#allocation20 + $0x40] sm:$0xff]
    %v4850 = vld [vmem:[#allocation20 + $0x48] sm:$0xff]
    %v4851 = vld [vmem:[#allocation20 + $0x50] sm:$0xff]
    %v4852 = vld [vmem:[#allocation20 + $0x58] sm:$0xff]
    %v4853 = vld [vmem:[#allocation20 + $0x60] sm:$0xff]
    %v4854 = vld [vmem:[#allocation20 + $0x68] sm:$0xff]
    %v4855 = vld [vmem:[#allocation20 + $0x70] sm:$0xff]
    %v4856 = vld [vmem:[#allocation20 + $0x78] sm:$0xff]
    %v4857 = vld [vmem:[#allocation20 + $0x80] sm:$0xff]
    %v4858 = vld [vmem:[#allocation20 + $0x88] sm:$0xff]
    %v4859 = vld [vmem:[#allocation20 + $0x90] sm:$0xff]
    %v4860 = vld [vmem:[#allocation20 + $0x98] sm:$0xff]
    %v4861 = vld [vmem:[#allocation20 + $0xa0] sm:$0xff]
    %v4862 = vld [vmem:[#allocation20 + $0xa8] sm:$0xff]
    %v4863 = vld [vmem:[#allocation20 + $0xb0] sm:$0xff]
    %v4864 = vld [vmem:[#allocation20 + $0xb8] sm:$0xff]
    %v4865 = vld [vmem:[#allocation20 + $0xc0] sm:$0xff]
    %v4866 = vld [vmem:[#allocation20 + $0xc8] sm:$0xff]
    %v4867 = vld [vmem:[#allocation20 + $0xd0] sm:$0xff]
    %v4868 = vld [vmem:[#allocation20 + $0xd8] sm:$0xff]
    %v4869 = vld [vmem:[#allocation20 + $0xe0] sm:$0xff]
    %v4870 = vld [vmem:[#allocation20 + $0xe8] sm:$0xff]
    %v4871 = vld [vmem:[#allocation20 + $0xf0] sm:$0xff]
    %v4872 = vld [vmem:[#allocation20 + $0xf8] sm:$0xff]
    %v4873 = vld [vmem:[#allocation21] sm:$0xf]
    %v4875 = vlaneseq
    %v4876 = vshrl.u32 %v4875, 7
    %v4877 = vsub.s32 0, %v4876
    %v4878 = vrot.slane %v4873, %v4877
    %v4879 = vlaneseq
    %v4880 = vshrl.u32 %v4879, 7
    %v4881 = vsub.s32 1, %v4880
    %v4882 = vrot.slane %v4873, %v4881
    %v4883 = vlaneseq
    %v4884 = vshrl.u32 %v4883, 7
    %v4885 = vsub.s32 2, %v4884
    %v4886 = vrot.slane %v4873, %v4885
    %v4887 = vlaneseq
    %v4888 = vshrl.u32 %v4887, 7
    %v4889 = vsub.s32 3, %v4888
    %v4890 = vrot.slane %v4873, %v4889
    %v4927 = vunpack.c.l.b16 %v4841
    %v4928 = vunpack.c.h.b16 %v4841
    %v4929 = vunpack.c.l.b16 %v4842
    %v4930 = vunpack.c.h.b16 %v4842
    %v4931 = vunpack.c.l.b16 %v4843
    %v4932 = vunpack.c.h.b16 %v4843
    %v4933 = vunpack.c.l.b16 %v4844
    %v4934 = vunpack.c.h.b16 %v4844
    %v4935 = vunpack.c.l.b16 %v4845
    %v4936 = vunpack.c.h.b16 %v4845
    %v4937 = vunpack.c.l.b16 %v4846
    %v4938 = vunpack.c.h.b16 %v4846
    %v4939 = vunpack.c.l.b16 %v4847
    %v4940 = vunpack.c.h.b16 %v4847
    %v4941 = vunpack.c.l.b16 %v4848
    %v4942 = vunpack.c.h.b16 %v4848
    %v4943 = vunpack.c.l.b16 %v4849
    %v4944 = vunpack.c.h.b16 %v4849
    %v4945 = vunpack.c.l.b16 %v4850
    %v4946 = vunpack.c.h.b16 %v4850
    %v4947 = vunpack.c.l.b16 %v4851
    %v4948 = vunpack.c.h.b16 %v4851
    %v4949 = vunpack.c.l.b16 %v4852
    %v4950 = vunpack.c.h.b16 %v4852
    %v4951 = vunpack.c.l.b16 %v4853
    %v4952 = vunpack.c.h.b16 %v4853
    %v4953 = vunpack.c.l.b16 %v4854
    %v4954 = vunpack.c.h.b16 %v4854
    %v4955 = vunpack.c.l.b16 %v4855
    %v4956 = vunpack.c.h.b16 %v4855
    %v4957 = vunpack.c.l.b16 %v4856
    %v4958 = vunpack.c.h.b16 %v4856
    %v4959 = vunpack.c.l.b16 %v4857
    %v4960 = vunpack.c.h.b16 %v4857
    %v4961 = vunpack.c.l.b16 %v4858
    %v4962 = vunpack.c.h.b16 %v4858
    %v4963 = vunpack.c.l.b16 %v4859
    %v4964 = vunpack.c.h.b16 %v4859
    %v4965 = vunpack.c.l.b16 %v4860
    %v4966 = vunpack.c.h.b16 %v4860
    %v4967 = vunpack.c.l.b16 %v4861
    %v4968 = vunpack.c.h.b16 %v4861
    %v4969 = vunpack.c.l.b16 %v4862
    %v4970 = vunpack.c.h.b16 %v4862
    %v4971 = vunpack.c.l.b16 %v4863
    %v4972 = vunpack.c.h.b16 %v4863
    %v4973 = vunpack.c.l.b16 %v4864
    %v4974 = vunpack.c.h.b16 %v4864
    %v4975 = vunpack.c.l.b16 %v4865
    %v4976 = vunpack.c.h.b16 %v4865
    %v4977 = vunpack.c.l.b16 %v4866
    %v4978 = vunpack.c.h.b16 %v4866
    %v4979 = vunpack.c.l.b16 %v4867
    %v4980 = vunpack.c.h.b16 %v4867
    %v4981 = vunpack.c.l.b16 %v4868
    %v4982 = vunpack.c.h.b16 %v4868
    %v4983 = vunpack.c.l.b16 %v4869
    %v4984 = vunpack.c.h.b16 %v4869
    %v4985 = vunpack.c.l.b16 %v4870
    %v4986 = vunpack.c.h.b16 %v4870
    %v4987 = vunpack.c.l.b16 %v4871
    %v4988 = vunpack.c.h.b16 %v4871
    %v4989 = vunpack.c.l.b16 %v4872
    %v4990 = vunpack.c.h.b16 %v4872
    %v4991 = vpack.c.b16 %v4931, %v4927
    %v4992 = vpack.c.b16 %v4932, %v4928
    %v4993 = vpack.c.b16 %v4933, %v4929
    %v4994 = vpack.c.b16 %v4934, %v4930
    %v4995 = vpack.c.b16 %v4939, %v4935
    %v4996 = vpack.c.b16 %v4940, %v4936
    %v4997 = vpack.c.b16 %v4941, %v4937
    %v4998 = vpack.c.b16 %v4942, %v4938
    %v4999 = vpack.c.b16 %v4947, %v4943
    %v5000 = vpack.c.b16 %v4948, %v4944
    %v5001 = vpack.c.b16 %v4949, %v4945
    %v5002 = vpack.c.b16 %v4950, %v4946
    %v5003 = vpack.c.b16 %v4955, %v4951
    %v5004 = vpack.c.b16 %v4956, %v4952
    %v5005 = vpack.c.b16 %v4957, %v4953
    %v5006 = vpack.c.b16 %v4958, %v4954
    %v5007 = vpack.c.b16 %v4963, %v4959
    %v5008 = vpack.c.b16 %v4964, %v4960
    %v5009 = vpack.c.b16 %v4965, %v4961
    %v5010 = vpack.c.b16 %v4966, %v4962
    %v5011 = vpack.c.b16 %v4971, %v4967
    %v5012 = vpack.c.b16 %v4972, %v4968
    %v5013 = vpack.c.b16 %v4973, %v4969
    %v5014 = vpack.c.b16 %v4974, %v4970
    %v5015 = vpack.c.b16 %v4979, %v4975
    %v5016 = vpack.c.b16 %v4980, %v4976
    %v5017 = vpack.c.b16 %v4981, %v4977
    %v5018 = vpack.c.b16 %v4982, %v4978
    %v5019 = vpack.c.b16 %v4987, %v4983
    %v5020 = vpack.c.b16 %v4988, %v4984
    %v5021 = vpack.c.b16 %v4989, %v4985
    %v5022 = vpack.c.b16 %v4990, %v4986
    %5055 = vmatprep.subr.bf16.mxu0 %v4992
    %5056 = vmatpush1.bf16.msra.mxu0 %v4991
    %5057 = vmatprep.subr.bf16.mxu0 %v4996
    %5058 = vmatpush1.bf16.msra.mxu0 %v4995
    %5059 = vmatprep.subr.bf16.mxu0 %v5000
    %5060 = vmatpush1.bf16.msra.mxu0 %v4999
    %5061 = vmatprep.subr.bf16.mxu0 %v5004
    %5062 = vmatpush1.bf16.msra.mxu0 %v5003
    %5063 = vmatprep.subr.bf16.mxu0 %v5008
    %5064 = vmatpush1.bf16.msra.mxu0 %v5007
    %5065 = vmatprep.subr.bf16.mxu0 %v5012
    %5066 = vmatpush1.bf16.msra.mxu0 %v5011
    %5067 = vmatprep.subr.bf16.mxu0 %v5016
    %5068 = vmatpush1.bf16.msra.mxu0 %v5015
    %5069 = vmatprep.subr.bf16.mxu0 %v5020
    %5070 = vmatpush1.bf16.msra.mxu0 %v5019
    %5071 = vmatprep.subr.bf16.mxu0 0
    %5072 = vmatpush1.bf16.msra.mxu0 0
    %5073 = vmatprep.subr.bf16.mxu0 0
    %5074 = vmatpush1.bf16.msra.mxu0 0
    %5075 = vmatprep.subr.bf16.mxu0 0
    %5076 = vmatpush1.bf16.msra.mxu0 0
    %5077 = vmatprep.subr.bf16.mxu0 0
    %5078 = vmatpush1.bf16.msra.mxu0 0
    %5079 = vmatprep.subr.bf16.mxu0 0
    %5080 = vmatpush1.bf16.msra.mxu0 0
    %5081 = vmatprep.subr.bf16.mxu0 0
    %5082 = vmatpush1.bf16.msra.mxu0 0
    %5083 = vmatprep.subr.bf16.mxu0 0
    %5084 = vmatpush1.bf16.msra.mxu0 0
    %5085 = vmatprep.subr.bf16.mxu0 0
    %5086 = vmatpush1.bf16.msra.mxu0 0
    %5087 = vmatprep.mubr.bf16.mxu0 0
    %5088 = vmatmul.mubr.bf16.gmra.mrb[0].mxu0 %v4840
    %v5089 = vpop.f32.mrb[0].mxu0
    %v5090 = vadd.f32 %v4878, %v5089
    %v5091 = vpop.f32.mrb[0].mxu0
    %v5092 = vadd.f32 %v4882, %v5091
    %v5093 = vpop.f32.mrb[0].mxu0
    %v5094 = vadd.f32 %v4878, %v5093
    %v5095 = vpop.f32.mrb[0].mxu0
    %v5096 = vadd.f32 %v4882, %v5095
    %5097 = vdwg.mxu0
    %5098 = vmatprep.subr.bf16.mxu0 %v4994
    %5099 = vmatpush1.bf16.msra.mxu0 %v4993
    %5100 = vmatprep.subr.bf16.mxu0 %v4998
    %5101 = vmatpush1.bf16.msra.mxu0 %v4997
    %5102 = vmatprep.subr.bf16.mxu0 %v5002
    %5103 = vmatpush1.bf16.msra.mxu0 %v5001
    %5104 = vmatprep.subr.bf16.mxu0 %v5006
    %5105 = vmatpush1.bf16.msra.mxu0 %v5005
    %5106 = vmatprep.subr.bf16.mxu0 %v5010
    %5107 = vmatpush1.bf16.msra.mxu0 %v5009
    %5108 = vmatprep.subr.bf16.mxu0 %v5014
    %5109 = vmatpush1.bf16.msra.mxu0 %v5013
    %5110 = vmatprep.subr.bf16.mxu0 %v5018
    %5111 = vmatpush1.bf16.msra.mxu0 %v5017
    %5112 = vmatprep.subr.bf16.mxu0 %v5022
    %5113 = vmatpush1.bf16.msra.mxu0 %v5021
    %5114 = vmatprep.subr.bf16.mxu0 0
    %5115 = vmatpush1.bf16.msra.mxu0 0
    %5116 = vmatprep.subr.bf16.mxu0 0
    %5117 = vmatpush1.bf16.msra.mxu0 0
    %5118 = vmatprep.subr.bf16.mxu0 0
    %5119 = vmatpush1.bf16.msra.mxu0 0
    %5120 = vmatprep.subr.bf16.mxu0 0
    %5121 = vmatpush1.bf16.msra.mxu0 0
    %5122 = vmatprep.subr.bf16.mxu0 0
    %5123 = vmatpush1.bf16.msra.mxu0 0
    %5124 = vmatprep.subr.bf16.mxu0 0
    %5125 = vmatpush1.bf16.msra.mxu0 0
    %5126 = vmatprep.subr.bf16.mxu0 0
    %5127 = vmatpush1.bf16.msra.mxu0 0
    %5128 = vmatprep.subr.bf16.mxu0 0
    %5129 = vmatpush1.bf16.msra.mxu0 0
    %5130 = vmatprep.mubr.bf16.mxu0 0
    %5131 = vmatmul.mubr.bf16.gmra.mrb[0].mxu0 %v4840
    %v5132 = vpop.f32.mrb[0].mxu0
    %v5133 = vadd.f32 %v4886, %v5132
    %v5134 = vpop.f32.mrb[0].mxu0
    %v5135 = vadd.f32 %v4890, %v5134
    %v5136 = vpop.f32.mrb[0].mxu0
    %v5137 = vadd.f32 %v4886, %v5136
    %v5138 = vpop.f32.mrb[0].mxu0
    %v5139 = vadd.f32 %v4890, %v5138
    %5140 = vdwg.mxu0
    %v5141 = vmax.f32 %v5090, 0.0
    %v5142 = vmax.f32 %v5092, 0.0
    %v5143 = vmax.f32 %v5133, 0.0
    %v5144 = vmax.f32 %v5135, 0.0
    %v5145 = vmax.f32 %v5094, 0.0
    %v5146 = vmax.f32 %v5096, 0.0
    %v5147 = vmax.f32 %v5137, 0.0
    %v5148 = vmax.f32 %v5139, 0.0
    %v5149 = vpack.c.bf16 %v5145, %v5141
    %v5150 = vpack.c.bf16 %v5146, %v5142
    %v5151 = vpack.c.bf16 %v5147, %v5143
    %v5152 = vpack.c.bf16 %v5148, %v5144
    %v5153 = vld [vmem:[#allocation23] sm:$0xf]
    %v5154 = vld [vmem:[#allocation23 + $0x4] sm:$0xf]
    %v5155 = vld [vmem:[#allocation23 + $0x8] sm:$0xf]
    %v5156 = vld [vmem:[#allocation23 + $0xc] sm:$0xf]
    %v5157 = vld [vmem:[#allocation23 + $0x10] sm:$0xf]
    %v5158 = vld [vmem:[#allocation23 + $0x14] sm:$0xf]
    %v5159 = vld [vmem:[#allocation23 + $0x18] sm:$0xf]
    %v5160 = vld [vmem:[#allocation23 + $0x1c] sm:$0xf]
    %v5161 = vld [vmem:[#allocation23 + $0x20] sm:$0xf]
    %v5162 = vld [vmem:[#allocation23 + $0x24] sm:$0xf]
    %v5163 = vld [vmem:[#allocation23 + $0x28] sm:$0xf]
    %v5164 = vld [vmem:[#allocation23 + $0x2c] sm:$0xf]
    %v5165 = vld [vmem:[#allocation23 + $0x30] sm:$0xf]
    %v5166 = vld [vmem:[#allocation23 + $0x34] sm:$0xf]
    %v5167 = vld [vmem:[#allocation23 + $0x38] sm:$0xf]
    %v5168 = vld [vmem:[#allocation23 + $0x3c] sm:$0xf]
    %v5169 = vld [vmem:[#allocation23 + $0x40] sm:$0xf]
    %v5170 = vld [vmem:[#allocation23 + $0x44] sm:$0xf]
    %v5171 = vld [vmem:[#allocation23 + $0x48] sm:$0xf]
    %v5172 = vld [vmem:[#allocation23 + $0x4c] sm:$0xf]
    %v5173 = vld [vmem:[#allocation23 + $0x50] sm:$0xf]
    %v5174 = vld [vmem:[#allocation23 + $0x54] sm:$0xf]
    %v5175 = vld [vmem:[#allocation23 + $0x58] sm:$0xf]
    %v5176 = vld [vmem:[#allocation23 + $0x5c] sm:$0xf]
    %v5177 = vld [vmem:[#allocation23 + $0x60] sm:$0xf]
    %v5178 = vld [vmem:[#allocation23 + $0x64] sm:$0xf]
    %v5179 = vld [vmem:[#allocation23 + $0x68] sm:$0xf]
    %v5180 = vld [vmem:[#allocation23 + $0x6c] sm:$0xf]
    %v5181 = vld [vmem:[#allocation23 + $0x70] sm:$0xf]
    %v5182 = vld [vmem:[#allocation23 + $0x74] sm:$0xf]
    %v5183 = vld [vmem:[#allocation23 + $0x78] sm:$0xf]
    %v5184 = vld [vmem:[#allocation23 + $0x7c] sm:$0xf]
    %v5185 = vld [vmem:[#allocation23 + $0x80] sm:$0xf]
    %v5186 = vld [vmem:[#allocation23 + $0x84] sm:$0xf]
    %v5187 = vld [vmem:[#allocation23 + $0x88] sm:$0xf]
    %v5188 = vld [vmem:[#allocation23 + $0x8c] sm:$0xf]
    %v5189 = vld [vmem:[#allocation23 + $0x90] sm:$0xf]
    %v5190 = vld [vmem:[#allocation23 + $0x94] sm:$0xf]
    %v5191 = vld [vmem:[#allocation23 + $0x98] sm:$0xf]
    %v5192 = vld [vmem:[#allocation23 + $0x9c] sm:$0xf]
    %v5193 = vld [vmem:[#allocation23 + $0xa0] sm:$0xf]
    %v5194 = vld [vmem:[#allocation23 + $0xa4] sm:$0xf]
    %v5195 = vld [vmem:[#allocation23 + $0xa8] sm:$0xf]
    %v5196 = vld [vmem:[#allocation23 + $0xac] sm:$0xf]
    %v5197 = vld [vmem:[#allocation23 + $0xb0] sm:$0xf]
    %v5198 = vld [vmem:[#allocation23 + $0xb4] sm:$0xf]
    %v5199 = vld [vmem:[#allocation23 + $0xb8] sm:$0xf]
    %v5200 = vld [vmem:[#allocation23 + $0xbc] sm:$0xf]
    %v5201 = vld [vmem:[#allocation23 + $0xc0] sm:$0xf]
    %v5202 = vld [vmem:[#allocation23 + $0xc4] sm:$0xf]
    %v5203 = vld [vmem:[#allocation23 + $0xc8] sm:$0xf]
    %v5204 = vld [vmem:[#allocation23 + $0xcc] sm:$0xf]
    %v5205 = vld [vmem:[#allocation23 + $0xd0] sm:$0xf]
    %v5206 = vld [vmem:[#allocation23 + $0xd4] sm:$0xf]
    %v5207 = vld [vmem:[#allocation23 + $0xd8] sm:$0xf]
    %v5208 = vld [vmem:[#allocation23 + $0xdc] sm:$0xf]
    %v5209 = vld [vmem:[#allocation23 + $0xe0] sm:$0xf]
    %v5210 = vld [vmem:[#allocation23 + $0xe4] sm:$0xf]
    %v5211 = vld [vmem:[#allocation23 + $0xe8] sm:$0xf]
    %v5212 = vld [vmem:[#allocation23 + $0xec] sm:$0xf]
    %v5213 = vld [vmem:[#allocation23 + $0xf0] sm:$0xf]
    %v5214 = vld [vmem:[#allocation23 + $0xf4] sm:$0xf]
    %v5215 = vld [vmem:[#allocation23 + $0xf8] sm:$0xf]
    %v5216 = vld [vmem:[#allocation23 + $0xfc] sm:$0xf]
    %v5217 = vld [vmem:[#allocation24] sm:$0x1]
    %v5219 = vlaneseq
    %v5220 = vshrl.u32 %v5219, 7
    %v5221 = vsub.s32 0, %v5220
    %v5222 = vrot.slane %v5217, %v5221
    %v5288 = vunpack.c.l.b16 %v5153
    %v5289 = vunpack.c.l.b16 %v5154
    %v5290 = vunpack.c.l.b16 %v5155
    %v5291 = vunpack.c.l.b16 %v5156
    %v5292 = vunpack.c.l.b16 %v5157
    %v5293 = vunpack.c.l.b16 %v5158
    %v5294 = vunpack.c.l.b16 %v5159
    %v5295 = vunpack.c.l.b16 %v5160
    %v5296 = vunpack.c.l.b16 %v5161
    %v5297 = vunpack.c.l.b16 %v5162
    %v5298 = vunpack.c.l.b16 %v5163
    %v5299 = vunpack.c.l.b16 %v5164
    %v5300 = vunpack.c.l.b16 %v5165
    %v5301 = vunpack.c.l.b16 %v5166
    %v5302 = vunpack.c.l.b16 %v5167
    %v5303 = vunpack.c.l.b16 %v5168
    %v5304 = vunpack.c.l.b16 %v5169
    %v5305 = vunpack.c.l.b16 %v5170
    %v5306 = vunpack.c.l.b16 %v5171
    %v5307 = vunpack.c.l.b16 %v5172
    %v5308 = vunpack.c.l.b16 %v5173
    %v5309 = vunpack.c.l.b16 %v5174
    %v5310 = vunpack.c.l.b16 %v5175
    %v5311 = vunpack.c.l.b16 %v5176
    %v5312 = vunpack.c.l.b16 %v5177
    %v5313 = vunpack.c.l.b16 %v5178
    %v5314 = vunpack.c.l.b16 %v5179
    %v5315 = vunpack.c.l.b16 %v5180
    %v5316 = vunpack.c.l.b16 %v5181
    %v5317 = vunpack.c.l.b16 %v5182
    %v5318 = vunpack.c.l.b16 %v5183
    %v5319 = vunpack.c.l.b16 %v5184
    %v5320 = vunpack.c.l.b16 %v5185
    %v5321 = vunpack.c.l.b16 %v5186
    %v5322 = vunpack.c.l.b16 %v5187
    %v5323 = vunpack.c.l.b16 %v5188
    %v5324 = vunpack.c.l.b16 %v5189
    %v5325 = vunpack.c.l.b16 %v5190
    %v5326 = vunpack.c.l.b16 %v5191
    %v5327 = vunpack.c.l.b16 %v5192
    %v5328 = vunpack.c.l.b16 %v5193
    %v5329 = vunpack.c.l.b16 %v5194
    %v5330 = vunpack.c.l.b16 %v5195
    %v5331 = vunpack.c.l.b16 %v5196
    %v5332 = vunpack.c.l.b16 %v5197
    %v5333 = vunpack.c.l.b16 %v5198
    %v5334 = vunpack.c.l.b16 %v5199
    %v5335 = vunpack.c.l.b16 %v5200
    %v5336 = vunpack.c.l.b16 %v5201
    %v5337 = vunpack.c.l.b16 %v5202
    %v5338 = vunpack.c.l.b16 %v5203
    %v5339 = vunpack.c.l.b16 %v5204
    %v5340 = vunpack.c.l.b16 %v5205
    %v5341 = vunpack.c.l.b16 %v5206
    %v5342 = vunpack.c.l.b16 %v5207
    %v5343 = vunpack.c.l.b16 %v5208
    %v5344 = vunpack.c.l.b16 %v5209
    %v5345 = vunpack.c.l.b16 %v5210
    %v5346 = vunpack.c.l.b16 %v5211
    %v5347 = vunpack.c.l.b16 %v5212
    %v5348 = vunpack.c.l.b16 %v5213
    %v5349 = vunpack.c.l.b16 %v5214
    %v5350 = vunpack.c.l.b16 %v5215
    %v5351 = vunpack.c.l.b16 %v5216
    %v5352 = vpack.c.b16 %v5289, %v5288
    %v5353 = vpack.c.b16 %v5291, %v5290
    %v5354 = vpack.c.b16 %v5293, %v5292
    %v5355 = vpack.c.b16 %v5295, %v5294
    %v5356 = vpack.c.b16 %v5297, %v5296
    %v5357 = vpack.c.b16 %v5299, %v5298
    %v5358 = vpack.c.b16 %v5301, %v5300
    %v5359 = vpack.c.b16 %v5303, %v5302
    %v5360 = vpack.c.b16 %v5305, %v5304
    %v5361 = vpack.c.b16 %v5307, %v5306
    %v5362 = vpack.c.b16 %v5309, %v5308
    %v5363 = vpack.c.b16 %v5311, %v5310
    %v5364 = vpack.c.b16 %v5313, %v5312
    %v5365 = vpack.c.b16 %v5315, %v5314
    %v5366 = vpack.c.b16 %v5317, %v5316
    %v5367 = vpack.c.b16 %v5319, %v5318
    %v5368 = vpack.c.b16 %v5321, %v5320
    %v5369 = vpack.c.b16 %v5323, %v5322
    %v5370 = vpack.c.b16 %v5325, %v5324
    %v5371 = vpack.c.b16 %v5327, %v5326
    %v5372 = vpack.c.b16 %v5329, %v5328
    %v5373 = vpack.c.b16 %v5331, %v5330
    %v5374 = vpack.c.b16 %v5333, %v5332
    %v5375 = vpack.c.b16 %v5335, %v5334
    %v5376 = vpack.c.b16 %v5337, %v5336
    %v5377 = vpack.c.b16 %v5339, %v5338
    %v5378 = vpack.c.b16 %v5341, %v5340
    %v5379 = vpack.c.b16 %v5343, %v5342
    %v5380 = vpack.c.b16 %v5345, %v5344
    %v5381 = vpack.c.b16 %v5347, %v5346
    %v5382 = vpack.c.b16 %v5349, %v5348
    %v5383 = vpack.c.b16 %v5351, %v5350
    %5416 = vmatprep.subr.bf16.mxu0 0
    %5417 = vmatpush1.bf16.msra.mxu0 %v5352
    %5418 = vmatprep.subr.bf16.mxu0 0
    %5419 = vmatpush1.bf16.msra.mxu0 %v5353
    %5420 = vmatprep.subr.bf16.mxu0 0
    %5421 = vmatpush1.bf16.msra.mxu0 %v5354
    %5422 = vmatprep.subr.bf16.mxu0 0
    %5423 = vmatpush1.bf16.msra.mxu0 %v5355
    %5424 = vmatprep.subr.bf16.mxu0 0
    %5425 = vmatpush1.bf16.msra.mxu0 %v5356
    %5426 = vmatprep.subr.bf16.mxu0 0
    %5427 = vmatpush1.bf16.msra.mxu0 %v5357
    %5428 = vmatprep.subr.bf16.mxu0 0
    %5429 = vmatpush1.bf16.msra.mxu0 %v5358
    %5430 = vmatprep.subr.bf16.mxu0 0
    %5431 = vmatpush1.bf16.msra.mxu0 %v5359
    %5432 = vmatprep.subr.bf16.mxu0 0
    %5433 = vmatpush1.bf16.msra.mxu0 %v5360
    %5434 = vmatprep.subr.bf16.mxu0 0
    %5435 = vmatpush1.bf16.msra.mxu0 %v5361
    %5436 = vmatprep.subr.bf16.mxu0 0
    %5437 = vmatpush1.bf16.msra.mxu0 %v5362
    %5438 = vmatprep.subr.bf16.mxu0 0
    %5439 = vmatpush1.bf16.msra.mxu0 %v5363
    %5440 = vmatprep.subr.bf16.mxu0 0
    %5441 = vmatpush1.bf16.msra.mxu0 %v5364
    %5442 = vmatprep.subr.bf16.mxu0 0
    %5443 = vmatpush1.bf16.msra.mxu0 %v5365
    %5444 = vmatprep.subr.bf16.mxu0 0
    %5445 = vmatpush1.bf16.msra.mxu0 %v5366
    %5446 = vmatprep.subr.bf16.mxu0 0
    %5447 = vmatpush1.bf16.msra.mxu0 %v5367
    %5448 = vmatprep.mubr.bf16.mxu0 %v5150
    %5449 = vmatmul.mubr.bf16.gmra.mrb[0].mxu0 %v5149
    %v5450 = vpop.f32.mrb[0].mxu0
    %v5451 = vadd.f32 %v5222, %v5450
    %v5452 = vpop.f32.mrb[0].mxu0
    %v5453 = vpop.f32.mrb[0].mxu0
    %v5454 = vadd.f32 %v5222, %v5453
    %v5455 = vpop.f32.mrb[0].mxu0
    %5456 = vdwg.mxu0
    %5457 = vmatprep.subr.bf16.mxu0 0
    %5458 = vmatpush1.bf16.msra.mxu0 %v5368
    %5459 = vmatprep.subr.bf16.mxu0 0
    %5460 = vmatpush1.bf16.msra.mxu0 %v5369
    %5461 = vmatprep.subr.bf16.mxu0 0
    %5462 = vmatpush1.bf16.msra.mxu0 %v5370
    %5463 = vmatprep.subr.bf16.mxu0 0
    %5464 = vmatpush1.bf16.msra.mxu0 %v5371
    %5465 = vmatprep.subr.bf16.mxu0 0
    %5466 = vmatpush1.bf16.msra.mxu0 %v5372
    %5467 = vmatprep.subr.bf16.mxu0 0
    %5468 = vmatpush1.bf16.msra.mxu0 %v5373
    %5469 = vmatprep.subr.bf16.mxu0 0
    %5470 = vmatpush1.bf16.msra.mxu0 %v5374
    %5471 = vmatprep.subr.bf16.mxu0 0
    %5472 = vmatpush1.bf16.msra.mxu0 %v5375
    %5473 = vmatprep.subr.bf16.mxu0 0
    %5474 = vmatpush1.bf16.msra.mxu0 %v5376
    %5475 = vmatprep.subr.bf16.mxu0 0
    %5476 = vmatpush1.bf16.msra.mxu0 %v5377
    %5477 = vmatprep.subr.bf16.mxu0 0
    %5478 = vmatpush1.bf16.msra.mxu0 %v5378
    %5479 = vmatprep.subr.bf16.mxu0 0
    %5480 = vmatpush1.bf16.msra.mxu0 %v5379
    %5481 = vmatprep.subr.bf16.mxu0 0
    %5482 = vmatpush1.bf16.msra.mxu0 %v5380
    %5483 = vmatprep.subr.bf16.mxu0 0
    %5484 = vmatpush1.bf16.msra.mxu0 %v5381
    %5485 = vmatprep.subr.bf16.mxu0 0
    %5486 = vmatpush1.bf16.msra.mxu0 %v5382
    %5487 = vmatprep.subr.bf16.mxu0 0
    %5488 = vmatpush1.bf16.msra.mxu0 %v5383
    %5489 = vmatprep.mubr.bf16.mxu0 %v5152
    %5490 = vmatmul.mubr.bf16.gmra.mrb[0].mxu0 %v5151
    %v5491 = vpop.f32.mrb[0].mxu0
    %v5492 = vadd.f32 %v5451, %v5491
    %v5493 = vpop.f32.mrb[0].mxu0
    %v5494 = vpop.f32.mrb[0].mxu0
    %v5495 = vadd.f32 %v5454, %v5494
    %v5496 = vpop.f32.mrb[0].mxu0
    %5497 = vdwg.mxu0
    %v5498 = vmul.f32 %v5492, %v5492
    %v5499 = vmul.f32 %v5495, %v5495
    %5500 = vadd.xlane.f32.xlu0 %v5498
    %v5501 = vpop.xlane.xlu0 %5500
    %5502 = vadd.xlane.f32.xlu0 %v5499
    %v5503 = vpop.xlane.xlu0 %5502
    %v5504 = vmul.f32 %v5501, %v1942
    %v5505 = vmul.f32 %v5503, %v1942
    %v5506 = vadd.f32 %v5504, %v5505
    %v5507 = vrot.slane %v5506, 4
    %v5508 = vadd.f32 %v5506, %v5507
    %v5509 = vrot.slane %v5508, 2
    %v5510 = vadd.f32 %v5508, %v5509
    %v5511 = vrot.slane %v5510, 1
    %v5512 = vadd.f32 %v5510, %v5511
    %v5513 = vrcp.pop 16.0
    %v5514 = vmul.f32 %v5512, %v5513
    %s5515 = sld [smem:[#allocation2]]
    %v5516 = vmul.f32 %v5514, 2.0
    %s5517 = smul.f32 %s5515, 2.0
    %v5518 = vstv %s5517
    %v5519 = vrcp.pop %v5518
    %v5520 = vmul.f32 %v5516, %v5519
    %v5521 = vrsqrt.pop %v5520
    %v5522 = vmul.f32 %v5520, %v5521
    %vm5523 = vcmp.eq.f32.partialorder %v5520, inf
    %v5524 = vsel %vm5523, %v5520, %v5522
    %vm5525 = vcmp.eq.f32.partialorder %v5520, 0.0
    %v5526 = vand.u32 %v5520, 2147483648
    %v5527 = vsel %vm5525, %v5526, %v5524
    %v5528 = vld [vmem:[%s13] sm:$0xff]
    %v5529 = vld [vmem:[%s13 + $0x8] sm:$0xff]
    %v5530 = vmul.f32 %v5527, %v5528
    %v5531 = vmul.f32 %v5527, %v5529
    %v5532 = vadd.f32 %v5492, %v5530
    %v5533 = vadd.f32 %v5495, %v5531
    %v5534 = vpack.c.bf16 %v5533, %v5532
    %v5535 = vld [vmem:[#allocation26] sm:$0xff]
    %v5536 = vld [vmem:[#allocation26 + $0x8] sm:$0xff]
    %v5537 = vld [vmem:[#allocation26 + $0x10] sm:$0xff]
    %v5538 = vld [vmem:[#allocation26 + $0x18] sm:$0xff]
    %v5539 = vld [vmem:[#allocation26 + $0x20] sm:$0xff]
    %v5540 = vld [vmem:[#allocation26 + $0x28] sm:$0xff]
    %v5541 = vld [vmem:[#allocation26 + $0x30] sm:$0xff]
    %v5542 = vld [vmem:[#allocation26 + $0x38] sm:$0xff]
    %v5543 = vld [vmem:[#allocation26 + $0x40] sm:$0xff]
    %v5544 = vld [vmem:[#allocation26 + $0x48] sm:$0xff]
    %v5545 = vld [vmem:[#allocation26 + $0x50] sm:$0xff]
    %v5546 = vld [vmem:[#allocation26 + $0x58] sm:$0xff]
    %v5547 = vld [vmem:[#allocation26 + $0x60] sm:$0xff]
    %v5548 = vld [vmem:[#allocation26 + $0x68] sm:$0xff]
    %v5549 = vld [vmem:[#allocation26 + $0x70] sm:$0xff]
    %v5550 = vld [vmem:[#allocation26 + $0x78] sm:$0xff]
    %v5551 = vld [vmem:[#allocation26 + $0x80] sm:$0xff]
    %v5552 = vld [vmem:[#allocation26 + $0x88] sm:$0xff]
    %v5553 = vld [vmem:[#allocation26 + $0x90] sm:$0xff]
    %v5554 = vld [vmem:[#allocation26 + $0x98] sm:$0xff]
    %v5555 = vld [vmem:[#allocation26 + $0xa0] sm:$0xff]
    %v5556 = vld [vmem:[#allocation26 + $0xa8] sm:$0xff]
    %v5557 = vld [vmem:[#allocation26 + $0xb0] sm:$0xff]
    %v5558 = vld [vmem:[#allocation26 + $0xb8] sm:$0xff]
    %v5559 = vld [vmem:[#allocation26 + $0xc0] sm:$0xff]
    %v5560 = vld [vmem:[#allocation26 + $0xc8] sm:$0xff]
    %v5561 = vld [vmem:[#allocation26 + $0xd0] sm:$0xff]
    %v5562 = vld [vmem:[#allocation26 + $0xd8] sm:$0xff]
    %v5563 = vld [vmem:[#allocation26 + $0xe0] sm:$0xff]
    %v5564 = vld [vmem:[#allocation26 + $0xe8] sm:$0xff]
    %v5565 = vld [vmem:[#allocation26 + $0xf0] sm:$0xff]
    %v5566 = vld [vmem:[#allocation26 + $0xf8] sm:$0xff]
    %v5567 = vld [vmem:[#allocation27] sm:$0xf]
    %v5569 = vlaneseq
    %v5570 = vshrl.u32 %v5569, 7
    %v5571 = vsub.s32 0, %v5570
    %v5572 = vrot.slane %v5567, %v5571
    %v5573 = vlaneseq
    %v5574 = vshrl.u32 %v5573, 7
    %v5575 = vsub.s32 1, %v5574
    %v5576 = vrot.slane %v5567, %v5575
    %v5577 = vlaneseq
    %v5578 = vshrl.u32 %v5577, 7
    %v5579 = vsub.s32 2, %v5578
    %v5580 = vrot.slane %v5567, %v5579
    %v5581 = vlaneseq
    %v5582 = vshrl.u32 %v5581, 7
    %v5583 = vsub.s32 3, %v5582
    %v5584 = vrot.slane %v5567, %v5583
    %v5621 = vunpack.c.l.b16 %v5535
    %v5622 = vunpack.c.h.b16 %v5535
    %v5623 = vunpack.c.l.b16 %v5536
    %v5624 = vunpack.c.h.b16 %v5536
    %v5625 = vunpack.c.l.b16 %v5537
    %v5626 = vunpack.c.h.b16 %v5537
    %v5627 = vunpack.c.l.b16 %v5538
    %v5628 = vunpack.c.h.b16 %v5538
    %v5629 = vunpack.c.l.b16 %v5539
    %v5630 = vunpack.c.h.b16 %v5539
    %v5631 = vunpack.c.l.b16 %v5540
    %v5632 = vunpack.c.h.b16 %v5540
    %v5633 = vunpack.c.l.b16 %v5541
    %v5634 = vunpack.c.h.b16 %v5541
    %v5635 = vunpack.c.l.b16 %v5542
    %v5636 = vunpack.c.h.b16 %v5542
    %v5637 = vunpack.c.l.b16 %v5543
    %v5638 = vunpack.c.h.b16 %v5543
    %v5639 = vunpack.c.l.b16 %v5544
    %v5640 = vunpack.c.h.b16 %v5544
    %v5641 = vunpack.c.l.b16 %v5545
    %v5642 = vunpack.c.h.b16 %v5545
    %v5643 = vunpack.c.l.b16 %v5546
    %v5644 = vunpack.c.h.b16 %v5546
    %v5645 = vunpack.c.l.b16 %v5547
    %v5646 = vunpack.c.h.b16 %v5547
    %v5647 = vunpack.c.l.b16 %v5548
    %v5648 = vunpack.c.h.b16 %v5548
    %v5649 = vunpack.c.l.b16 %v5549
    %v5650 = vunpack.c.h.b16 %v5549
    %v5651 = vunpack.c.l.b16 %v5550
    %v5652 = vunpack.c.h.b16 %v5550
    %v5653 = vunpack.c.l.b16 %v5551
    %v5654 = vunpack.c.h.b16 %v5551
    %v5655 = vunpack.c.l.b16 %v5552
    %v5656 = vunpack.c.h.b16 %v5552
    %v5657 = vunpack.c.l.b16 %v5553
    %v5658 = vunpack.c.h.b16 %v5553
    %v5659 = vunpack.c.l.b16 %v5554
    %v5660 = vunpack.c.h.b16 %v5554
    %v5661 = vunpack.c.l.b16 %v5555
    %v5662 = vunpack.c.h.b16 %v5555
    %v5663 = vunpack.c.l.b16 %v5556
    %v5664 = vunpack.c.h.b16 %v5556
    %v5665 = vunpack.c.l.b16 %v5557
    %v5666 = vunpack.c.h.b16 %v5557
    %v5667 = vunpack.c.l.b16 %v5558
    %v5668 = vunpack.c.h.b16 %v5558
    %v5669 = vunpack.c.l.b16 %v5559
    %v5670 = vunpack.c.h.b16 %v5559
    %v5671 = vunpack.c.l.b16 %v5560
    %v5672 = vunpack.c.h.b16 %v5560
    %v5673 = vunpack.c.l.b16 %v5561
    %v5674 = vunpack.c.h.b16 %v5561
    %v5675 = vunpack.c.l.b16 %v5562
    %v5676 = vunpack.c.h.b16 %v5562
    %v5677 = vunpack.c.l.b16 %v5563
    %v5678 = vunpack.c.h.b16 %v5563
    %v5679 = vunpack.c.l.b16 %v5564
    %v5680 = vunpack.c.h.b16 %v5564
    %v5681 = vunpack.c.l.b16 %v5565
    %v5682 = vunpack.c.h.b16 %v5565
    %v5683 = vunpack.c.l.b16 %v5566
    %v5684 = vunpack.c.h.b16 %v5566
    %v5685 = vpack.c.b16 %v5625, %v5621
    %v5686 = vpack.c.b16 %v5626, %v5622
    %v5687 = vpack.c.b16 %v5627, %v5623
    %v5688 = vpack.c.b16 %v5628, %v5624
    %v5689 = vpack.c.b16 %v5633, %v5629
    %v5690 = vpack.c.b16 %v5634, %v5630
    %v5691 = vpack.c.b16 %v5635, %v5631
    %v5692 = vpack.c.b16 %v5636, %v5632
    %v5693 = vpack.c.b16 %v5641, %v5637
    %v5694 = vpack.c.b16 %v5642, %v5638
    %v5695 = vpack.c.b16 %v5643, %v5639
    %v5696 = vpack.c.b16 %v5644, %v5640
    %v5697 = vpack.c.b16 %v5649, %v5645
    %v5698 = vpack.c.b16 %v5650, %v5646
    %v5699 = vpack.c.b16 %v5651, %v5647
    %v5700 = vpack.c.b16 %v5652, %v5648
    %v5701 = vpack.c.b16 %v5657, %v5653
    %v5702 = vpack.c.b16 %v5658, %v5654
    %v5703 = vpack.c.b16 %v5659, %v5655
    %v5704 = vpack.c.b16 %v5660, %v5656
    %v5705 = vpack.c.b16 %v5665, %v5661
    %v5706 = vpack.c.b16 %v5666, %v5662
    %v5707 = vpack.c.b16 %v5667, %v5663
    %v5708 = vpack.c.b16 %v5668, %v5664
    %v5709 = vpack.c.b16 %v5673, %v5669
    %v5710 = vpack.c.b16 %v5674, %v5670
    %v5711 = vpack.c.b16 %v5675, %v5671
    %v5712 = vpack.c.b16 %v5676, %v5672
    %v5713 = vpack.c.b16 %v5681, %v5677
    %v5714 = vpack.c.b16 %v5682, %v5678
    %v5715 = vpack.c.b16 %v5683, %v5679
    %v5716 = vpack.c.b16 %v5684, %v5680
    %5749 = vmatprep.subr.bf16.mxu0 %v5686
    %5750 = vmatpush1.bf16.msra.mxu0 %v5685
    %5751 = vmatprep.subr.bf16.mxu0 %v5690
    %5752 = vmatpush1.bf16.msra.mxu0 %v5689
    %5753 = vmatprep.subr.bf16.mxu0 %v5694
    %5754 = vmatpush1.bf16.msra.mxu0 %v5693
    %5755 = vmatprep.subr.bf16.mxu0 %v5698
    %5756 = vmatpush1.bf16.msra.mxu0 %v5697
    %5757 = vmatprep.subr.bf16.mxu0 %v5702
    %5758 = vmatpush1.bf16.msra.mxu0 %v5701
    %5759 = vmatprep.subr.bf16.mxu0 %v5706
    %5760 = vmatpush1.bf16.msra.mxu0 %v5705
    %5761 = vmatprep.subr.bf16.mxu0 %v5710
    %5762 = vmatpush1.bf16.msra.mxu0 %v5709
    %5763 = vmatprep.subr.bf16.mxu0 %v5714
    %5764 = vmatpush1.bf16.msra.mxu0 %v5713
    %5765 = vmatprep.subr.bf16.mxu0 0
    %5766 = vmatpush1.bf16.msra.mxu0 0
    %5767 = vmatprep.subr.bf16.mxu0 0
    %5768 = vmatpush1.bf16.msra.mxu0 0
    %5769 = vmatprep.subr.bf16.mxu0 0
    %5770 = vmatpush1.bf16.msra.mxu0 0
    %5771 = vmatprep.subr.bf16.mxu0 0
    %5772 = vmatpush1.bf16.msra.mxu0 0
    %5773 = vmatprep.subr.bf16.mxu0 0
    %5774 = vmatpush1.bf16.msra.mxu0 0
    %5775 = vmatprep.subr.bf16.mxu0 0
    %5776 = vmatpush1.bf16.msra.mxu0 0
    %5777 = vmatprep.subr.bf16.mxu0 0
    %5778 = vmatpush1.bf16.msra.mxu0 0
    %5779 = vmatprep.subr.bf16.mxu0 0
    %5780 = vmatpush1.bf16.msra.mxu0 0
    %5781 = vmatprep.mubr.bf16.mxu0 0
    %5782 = vmatmul.mubr.bf16.gmra.mrb[0].mxu0 %v5534
    %v5783 = vpop.f32.mrb[0].mxu0
    %v5784 = vadd.f32 %v5572, %v5783
    %v5785 = vpop.f32.mrb[0].mxu0
    %v5786 = vadd.f32 %v5576, %v5785
    %v5787 = vpop.f32.mrb[0].mxu0
    %v5788 = vadd.f32 %v5572, %v5787
    %v5789 = vpop.f32.mrb[0].mxu0
    %v5790 = vadd.f32 %v5576, %v5789
    %5791 = vdwg.mxu0
    %5792 = vmatprep.subr.bf16.mxu0 %v5688
    %5793 = vmatpush1.bf16.msra.mxu0 %v5687
    %5794 = vmatprep.subr.bf16.mxu0 %v5692
    %5795 = vmatpush1.bf16.msra.mxu0 %v5691
    %5796 = vmatprep.subr.bf16.mxu0 %v5696
    %5797 = vmatpush1.bf16.msra.mxu0 %v5695
    %5798 = vmatprep.subr.bf16.mxu0 %v5700
    %5799 = vmatpush1.bf16.msra.mxu0 %v5699
    %5800 = vmatprep.subr.bf16.mxu0 %v5704
    %5801 = vmatpush1.bf16.msra.mxu0 %v5703
    %5802 = vmatprep.subr.bf16.mxu0 %v5708
    %5803 = vmatpush1.bf16.msra.mxu0 %v5707
    %5804 = vmatprep.subr.bf16.mxu0 %v5712
    %5805 = vmatpush1.bf16.msra.mxu0 %v5711
    %5806 = vmatprep.subr.bf16.mxu0 %v5716
    %5807 = vmatpush1.bf16.msra.mxu0 %v5715
    %5808 = vmatprep.subr.bf16.mxu0 0
    %5809 = vmatpush1.bf16.msra.mxu0 0
    %5810 = vmatprep.subr.bf16.mxu0 0
    %5811 = vmatpush1.bf16.msra.mxu0 0
    %5812 = vmatprep.subr.bf16.mxu0 0
    %5813 = vmatpush1.bf16.msra.mxu0 0
    %5814 = vmatprep.subr.bf16.mxu0 0
    %5815 = vmatpush1.bf16.msra.mxu0 0
    %5816 = vmatprep.subr.bf16.mxu0 0
    %5817 = vmatpush1.bf16.msra.mxu0 0
    %5818 = vmatprep.subr.bf16.mxu0 0
    %5819 = vmatpush1.bf16.msra.mxu0 0
    %5820 = vmatprep.subr.bf16.mxu0 0
    %5821 = vmatpush1.bf16.msra.mxu0 0
    %5822 = vmatprep.subr.bf16.mxu0 0
    %5823 = vmatpush1.bf16.msra.mxu0 0
    %5824 = vmatprep.mubr.bf16.mxu0 0
    %5825 = vmatmul.mubr.bf16.gmra.mrb[0].mxu0 %v5534
    %v5826 = vpop.f32.mrb[0].mxu0
    %v5827 = vadd.f32 %v5580, %v5826
    %v5828 = vpop.f32.mrb[0].mxu0
    %v5829 = vadd.f32 %v5584, %v5828
    %v5830 = vpop.f32.mrb[0].mxu0
    %v5831 = vadd.f32 %v5580, %v5830
    %v5832 = vpop.f32.mrb[0].mxu0
    %v5833 = vadd.f32 %v5584, %v5832
    %5834 = vdwg.mxu0
    %v5835 = vmax.f32 %v5784, 0.0
    %v5836 = vmax.f32 %v5786, 0.0
    %v5837 = vmax.f32 %v5827, 0.0
    %v5838 = vmax.f32 %v5829, 0.0
    %v5839 = vmax.f32 %v5788, 0.0
    %v5840 = vmax.f32 %v5790, 0.0
    %v5841 = vmax.f32 %v5831, 0.0
    %v5842 = vmax.f32 %v5833, 0.0
    %v5843 = vpack.c.bf16 %v5839, %v5835
    %v5844 = vpack.c.bf16 %v5840, %v5836
    %v5845 = vpack.c.bf16 %v5841, %v5837
    %v5846 = vpack.c.bf16 %v5842, %v5838
    %v5847 = vld [vmem:[#allocation29] sm:$0xf]
    %v5848 = vld [vmem:[#allocation29 + $0x4] sm:$0xf]
    %v5849 = vld [vmem:[#allocation29 + $0x8] sm:$0xf]
    %v5850 = vld [vmem:[#allocation29 + $0xc] sm:$0xf]
    %v5851 = vld [vmem:[#allocation29 + $0x10] sm:$0xf]
    %v5852 = vld [vmem:[#allocation29 + $0x14] sm:$0xf]
    %v5853 = vld [vmem:[#allocation29 + $0x18] sm:$0xf]
    %v5854 = vld [vmem:[#allocation29 + $0x1c] sm:$0xf]
    %v5855 = vld [vmem:[#allocation29 + $0x20] sm:$0xf]
    %v5856 = vld [vmem:[#allocation29 + $0x24] sm:$0xf]
    %v5857 = vld [vmem:[#allocation29 + $0x28] sm:$0xf]
    %v5858 = vld [vmem:[#allocation29 + $0x2c] sm:$0xf]
    %v5859 = vld [vmem:[#allocation29 + $0x30] sm:$0xf]
    %v5860 = vld [vmem:[#allocation29 + $0x34] sm:$0xf]
    %v5861 = vld [vmem:[#allocation29 + $0x38] sm:$0xf]
    %v5862 = vld [vmem:[#allocation29 + $0x3c] sm:$0xf]
    %v5863 = vld [vmem:[#allocation29 + $0x40] sm:$0xf]
    %v5864 = vld [vmem:[#allocation29 + $0x44] sm:$0xf]
    %v5865 = vld [vmem:[#allocation29 + $0x48] sm:$0xf]
    %v5866 = vld [vmem:[#allocation29 + $0x4c] sm:$0xf]
    %v5867 = vld [vmem:[#allocation29 + $0x50] sm:$0xf]
    %v5868 = vld [vmem:[#allocation29 + $0x54] sm:$0xf]
    %v5869 = vld [vmem:[#allocation29 + $0x58] sm:$0xf]
    %v5870 = vld [vmem:[#allocation29 + $0x5c] sm:$0xf]
    %v5871 = vld [vmem:[#allocation29 + $0x60] sm:$0xf]
    %v5872 = vld [vmem:[#allocation29 + $0x64] sm:$0xf]
    %v5873 = vld [vmem:[#allocation29 + $0x68] sm:$0xf]
    %v5874 = vld [vmem:[#allocation29 + $0x6c] sm:$0xf]
    %v5875 = vld [vmem:[#allocation29 + $0x70] sm:$0xf]
    %v5876 = vld [vmem:[#allocation29 + $0x74] sm:$0xf]
    %v5877 = vld [vmem:[#allocation29 + $0x78] sm:$0xf]
    %v5878 = vld [vmem:[#allocation29 + $0x7c] sm:$0xf]
    %v5879 = vld [vmem:[#allocation29 + $0x80] sm:$0xf]
    %v5880 = vld [vmem:[#allocation29 + $0x84] sm:$0xf]
    %v5881 = vld [vmem:[#allocation29 + $0x88] sm:$0xf]
    %v5882 = vld [vmem:[#allocation29 + $0x8c] sm:$0xf]
    %v5883 = vld [vmem:[#allocation29 + $0x90] sm:$0xf]
    %v5884 = vld [vmem:[#allocation29 + $0x94] sm:$0xf]
    %v5885 = vld [vmem:[#allocation29 + $0x98] sm:$0xf]
    %v5886 = vld [vmem:[#allocation29 + $0x9c] sm:$0xf]
    %v5887 = vld [vmem:[#allocation29 + $0xa0] sm:$0xf]
    %v5888 = vld [vmem:[#allocation29 + $0xa4] sm:$0xf]
    %v5889 = vld [vmem:[#allocation29 + $0xa8] sm:$0xf]
    %v5890 = vld [vmem:[#allocation29 + $0xac] sm:$0xf]
    %v5891 = vld [vmem:[#allocation29 + $0xb0] sm:$0xf]
    %v5892 = vld [vmem:[#allocation29 + $0xb4] sm:$0xf]
    %v5893 = vld [vmem:[#allocation29 + $0xb8] sm:$0xf]
    %v5894 = vld [vmem:[#allocation29 + $0xbc] sm:$0xf]
    %v5895 = vld [vmem:[#allocation29 + $0xc0] sm:$0xf]
    %v5896 = vld [vmem:[#allocation29 + $0xc4] sm:$0xf]
    %v5897 = vld [vmem:[#allocation29 + $0xc8] sm:$0xf]
    %v5898 = vld [vmem:[#allocation29 + $0xcc] sm:$0xf]
    %v5899 = vld [vmem:[#allocation29 + $0xd0] sm:$0xf]
    %v5900 = vld [vmem:[#allocation29 + $0xd4] sm:$0xf]
    %v5901 = vld [vmem:[#allocation29 + $0xd8] sm:$0xf]
    %v5902 = vld [vmem:[#allocation29 + $0xdc] sm:$0xf]
    %v5903 = vld [vmem:[#allocation29 + $0xe0] sm:$0xf]
    %v5904 = vld [vmem:[#allocation29 + $0xe4] sm:$0xf]
    %v5905 = vld [vmem:[#allocation29 + $0xe8] sm:$0xf]
    %v5906 = vld [vmem:[#allocation29 + $0xec] sm:$0xf]
    %v5907 = vld [vmem:[#allocation29 + $0xf0] sm:$0xf]
    %v5908 = vld [vmem:[#allocation29 + $0xf4] sm:$0xf]
    %v5909 = vld [vmem:[#allocation29 + $0xf8] sm:$0xf]
    %v5910 = vld [vmem:[#allocation29 + $0xfc] sm:$0xf]
    %v5911 = vld [vmem:[#allocation30] sm:$0x1]
    %v5913 = vlaneseq
    %v5914 = vshrl.u32 %v5913, 7
    %v5915 = vsub.s32 0, %v5914
    %v5916 = vrot.slane %v5911, %v5915
    %v5982 = vunpack.c.l.b16 %v5847
    %v5983 = vunpack.c.l.b16 %v5848
    %v5984 = vunpack.c.l.b16 %v5849
    %v5985 = vunpack.c.l.b16 %v5850
    %v5986 = vunpack.c.l.b16 %v5851
    %v5987 = vunpack.c.l.b16 %v5852
    %v5988 = vunpack.c.l.b16 %v5853
    %v5989 = vunpack.c.l.b16 %v5854
    %v5990 = vunpack.c.l.b16 %v5855
    %v5991 = vunpack.c.l.b16 %v5856
    %v5992 = vunpack.c.l.b16 %v5857
    %v5993 = vunpack.c.l.b16 %v5858
    %v5994 = vunpack.c.l.b16 %v5859
    %v5995 = vunpack.c.l.b16 %v5860
    %v5996 = vunpack.c.l.b16 %v5861
    %v5997 = vunpack.c.l.b16 %v5862
    %v5998 = vunpack.c.l.b16 %v5863
    %v5999 = vunpack.c.l.b16 %v5864
    %v6000 = vunpack.c.l.b16 %v5865
    %v6001 = vunpack.c.l.b16 %v5866
    %v6002 = vunpack.c.l.b16 %v5867
    %v6003 = vunpack.c.l.b16 %v5868
    %v6004 = vunpack.c.l.b16 %v5869
    %v6005 = vunpack.c.l.b16 %v5870
    %v6006 = vunpack.c.l.b16 %v5871
    %v6007 = vunpack.c.l.b16 %v5872
    %v6008 = vunpack.c.l.b16 %v5873
    %v6009 = vunpack.c.l.b16 %v5874
    %v6010 = vunpack.c.l.b16 %v5875
    %v6011 = vunpack.c.l.b16 %v5876
    %v6012 = vunpack.c.l.b16 %v5877
    %v6013 = vunpack.c.l.b16 %v5878
    %v6014 = vunpack.c.l.b16 %v5879
    %v6015 = vunpack.c.l.b16 %v5880
    %v6016 = vunpack.c.l.b16 %v5881
    %v6017 = vunpack.c.l.b16 %v5882
    %v6018 = vunpack.c.l.b16 %v5883
    %v6019 = vunpack.c.l.b16 %v5884
    %v6020 = vunpack.c.l.b16 %v5885
    %v6021 = vunpack.c.l.b16 %v5886
    %v6022 = vunpack.c.l.b16 %v5887
    %v6023 = vunpack.c.l.b16 %v5888
    %v6024 = vunpack.c.l.b16 %v5889
    %v6025 = vunpack.c.l.b16 %v5890
    %v6026 = vunpack.c.l.b16 %v5891
    %v6027 = vunpack.c.l.b16 %v5892
    %v6028 = vunpack.c.l.b16 %v5893
    %v6029 = vunpack.c.l.b16 %v5894
    %v6030 = vunpack.c.l.b16 %v5895
    %v6031 = vunpack.c.l.b16 %v5896
    %v6032 = vunpack.c.l.b16 %v5897
    %v6033 = vunpack.c.l.b16 %v5898
    %v6034 = vunpack.c.l.b16 %v5899
    %v6035 = vunpack.c.l.b16 %v5900
    %v6036 = vunpack.c.l.b16 %v5901
    %v6037 = vunpack.c.l.b16 %v5902
    %v6038 = vunpack.c.l.b16 %v5903
    %v6039 = vunpack.c.l.b16 %v5904
    %v6040 = vunpack.c.l.b16 %v5905
    %v6041 = vunpack.c.l.b16 %v5906
    %v6042 = vunpack.c.l.b16 %v5907
    %v6043 = vunpack.c.l.b16 %v5908
    %v6044 = vunpack.c.l.b16 %v5909
    %v6045 = vunpack.c.l.b16 %v5910
    %v6046 = vpack.c.b16 %v5983, %v5982
    %v6047 = vpack.c.b16 %v5985, %v5984
    %v6048 = vpack.c.b16 %v5987, %v5986
    %v6049 = vpack.c.b16 %v5989, %v5988
    %v6050 = vpack.c.b16 %v5991, %v5990
    %v6051 = vpack.c.b16 %v5993, %v5992
    %v6052 = vpack.c.b16 %v5995, %v5994
    %v6053 = vpack.c.b16 %v5997, %v5996
    %v6054 = vpack.c.b16 %v5999, %v5998
    %v6055 = vpack.c.b16 %v6001, %v6000
    %v6056 = vpack.c.b16 %v6003, %v6002
    %v6057 = vpack.c.b16 %v6005, %v6004
    %v6058 = vpack.c.b16 %v6007, %v6006
    %v6059 = vpack.c.b16 %v6009, %v6008
    %v6060 = vpack.c.b16 %v6011, %v6010
    %v6061 = vpack.c.b16 %v6013, %v6012
    %v6062 = vpack.c.b16 %v6015, %v6014
    %v6063 = vpack.c.b16 %v6017, %v6016
    %v6064 = vpack.c.b16 %v6019, %v6018
    %v6065 = vpack.c.b16 %v6021, %v6020
    %v6066 = vpack.c.b16 %v6023, %v6022
    %v6067 = vpack.c.b16 %v6025, %v6024
    %v6068 = vpack.c.b16 %v6027, %v6026
    %v6069 = vpack.c.b16 %v6029, %v6028
    %v6070 = vpack.c.b16 %v6031, %v6030
    %v6071 = vpack.c.b16 %v6033, %v6032
    %v6072 = vpack.c.b16 %v6035, %v6034
    %v6073 = vpack.c.b16 %v6037, %v6036
    %v6074 = vpack.c.b16 %v6039, %v6038
    %v6075 = vpack.c.b16 %v6041, %v6040
    %v6076 = vpack.c.b16 %v6043, %v6042
    %v6077 = vpack.c.b16 %v6045, %v6044
    %6110 = vmatprep.subr.bf16.mxu0 0
    %6111 = vmatpush1.bf16.msra.mxu0 %v6046
    %6112 = vmatprep.subr.bf16.mxu0 0
    %6113 = vmatpush1.bf16.msra.mxu0 %v6047
    %6114 = vmatprep.subr.bf16.mxu0 0
    %6115 = vmatpush1.bf16.msra.mxu0 %v6048
    %6116 = vmatprep.subr.bf16.mxu0 0
    %6117 = vmatpush1.bf16.msra.mxu0 %v6049
    %6118 = vmatprep.subr.bf16.mxu0 0
    %6119 = vmatpush1.bf16.msra.mxu0 %v6050
    %6120 = vmatprep.subr.bf16.mxu0 0
    %6121 = vmatpush1.bf16.msra.mxu0 %v6051
    %6122 = vmatprep.subr.bf16.mxu0 0
    %6123 = vmatpush1.bf16.msra.mxu0 %v6052
    %6124 = vmatprep.subr.bf16.mxu0 0
    %6125 = vmatpush1.bf16.msra.mxu0 %v6053
    %6126 = vmatprep.subr.bf16.mxu0 0
    %6127 = vmatpush1.bf16.msra.mxu0 %v6054
    %6128 = vmatprep.subr.bf16.mxu0 0
    %6129 = vmatpush1.bf16.msra.mxu0 %v6055
    %6130 = vmatprep.subr.bf16.mxu0 0
    %6131 = vmatpush1.bf16.msra.mxu0 %v6056
    %6132 = vmatprep.subr.bf16.mxu0 0
    %6133 = vmatpush1.bf16.msra.mxu0 %v6057
    %6134 = vmatprep.subr.bf16.mxu0 0
    %6135 = vmatpush1.bf16.msra.mxu0 %v6058
    %6136 = vmatprep.subr.bf16.mxu0 0
    %6137 = vmatpush1.bf16.msra.mxu0 %v6059
    %6138 = vmatprep.subr.bf16.mxu0 0
    %6139 = vmatpush1.bf16.msra.mxu0 %v6060
    %6140 = vmatprep.subr.bf16.mxu0 0
    %6141 = vmatpush1.bf16.msra.mxu0 %v6061
    %6142 = vmatprep.mubr.bf16.mxu0 %v5844
    %6143 = vmatmul.mubr.bf16.gmra.mrb[0].mxu0 %v5843
    %v6144 = vpop.f32.mrb[0].mxu0
    %v6145 = vadd.f32 %v5916, %v6144
    %v6146 = vpop.f32.mrb[0].mxu0
    %v6147 = vpop.f32.mrb[0].mxu0
    %v6148 = vadd.f32 %v5916, %v6147
    %v6149 = vpop.f32.mrb[0].mxu0
    %6150 = vdwg.mxu0
    %6151 = vmatprep.subr.bf16.mxu0 0
    %6152 = vmatpush1.bf16.msra.mxu0 %v6062
    %6153 = vmatprep.subr.bf16.mxu0 0
    %6154 = vmatpush1.bf16.msra.mxu0 %v6063
    %6155 = vmatprep.subr.bf16.mxu0 0
    %6156 = vmatpush1.bf16.msra.mxu0 %v6064
    %6157 = vmatprep.subr.bf16.mxu0 0
    %6158 = vmatpush1.bf16.msra.mxu0 %v6065
    %6159 = vmatprep.subr.bf16.mxu0 0
    %6160 = vmatpush1.bf16.msra.mxu0 %v6066
    %6161 = vmatprep.subr.bf16.mxu0 0
    %6162 = vmatpush1.bf16.msra.mxu0 %v6067
    %6163 = vmatprep.subr.bf16.mxu0 0
    %6164 = vmatpush1.bf16.msra.mxu0 %v6068
    %6165 = vmatprep.subr.bf16.mxu0 0
    %6166 = vmatpush1.bf16.msra.mxu0 %v6069
    %6167 = vmatprep.subr.bf16.mxu0 0
    %6168 = vmatpush1.bf16.msra.mxu0 %v6070
    %6169 = vmatprep.subr.bf16.mxu0 0
    %6170 = vmatpush1.bf16.msra.mxu0 %v6071
    %6171 = vmatprep.subr.bf16.mxu0 0
    %6172 = vmatpush1.bf16.msra.mxu0 %v6072
    %6173 = vmatprep.subr.bf16.mxu0 0
    %6174 = vmatpush1.bf16.msra.mxu0 %v6073
    %6175 = vmatprep.subr.bf16.mxu0 0
    %6176 = vmatpush1.bf16.msra.mxu0 %v6074
    %6177 = vmatprep.subr.bf16.mxu0 0
    %6178 = vmatpush1.bf16.msra.mxu0 %v6075
    %6179 = vmatprep.subr.bf16.mxu0 0
    %6180 = vmatpush1.bf16.msra.mxu0 %v6076
    %6181 = vmatprep.subr.bf16.mxu0 0
    %6182 = vmatpush1.bf16.msra.mxu0 %v6077
    %6183 = vmatprep.mubr.bf16.mxu0 %v5846
    %6184 = vmatmul.mubr.bf16.gmra.mrb[0].mxu0 %v5845
    %v6185 = vpop.f32.mrb[0].mxu0
    %v6186 = vadd.f32 %v6145, %v6185
    %v6187 = vpop.f32.mrb[0].mxu0
    %v6188 = vpop.f32.mrb[0].mxu0
    %v6189 = vadd.f32 %v6148, %v6188
    %v6190 = vpop.f32.mrb[0].mxu0
    %6191 = vdwg.mxu0
    %v6192 = vpack.c.bf16 %v6189, %v6186
    %s6193 = scalar_lea.vmem [#allocation3], 384
    %v6194 = vld [vmem:[%s6193] sm:$0xff]
    %v6195 = vld [vmem:[%s6193 + $0x8] sm:$0xf]
    %v6196 = vld [vmem:[%s6193 + $0xc] sm:$0xff]
    %v6197 = vld [vmem:[%s6193 + $0x14] sm:$0xf]
    %v6198 = vld [vmem:[%s6193 + $0x18] sm:$0xff]
    %v6199 = vld [vmem:[%s6193 + $0x20] sm:$0xf]
    %v6200 = vld [vmem:[%s6193 + $0x24] sm:$0xff]
    %v6201 = vld [vmem:[%s6193 + $0x2c] sm:$0xf]
    %v6202 = vld [vmem:[%s6193 + $0x30] sm:$0xff]
    %v6203 = vld [vmem:[%s6193 + $0x38] sm:$0xf]
    %v6204 = vld [vmem:[%s6193 + $0x3c] sm:$0xff]
    %v6205 = vld [vmem:[%s6193 + $0x44] sm:$0xf]
    %v6206 = vld [vmem:[%s6193 + $0x48] sm:$0xff]
    %v6207 = vld [vmem:[%s6193 + $0x50] sm:$0xf]
    %v6208 = vld [vmem:[%s6193 + $0x54] sm:$0xff]
    %v6209 = vld [vmem:[%s6193 + $0x5c] sm:$0xf]
    %v6210 = vld [vmem:[%s6193 + $0x60] sm:$0xff]
    %v6211 = vld [vmem:[%s6193 + $0x68] sm:$0xf]
    %v6212 = vld [vmem:[%s6193 + $0x6c] sm:$0xff]
    %v6213 = vld [vmem:[%s6193 + $0x74] sm:$0xf]
    %v6214 = vld [vmem:[%s6193 + $0x78] sm:$0xff]
    %v6215 = vld [vmem:[%s6193 + $0x80] sm:$0xf]
    %v6216 = vld [vmem:[%s6193 + $0x84] sm:$0xff]
    %v6217 = vld [vmem:[%s6193 + $0x8c] sm:$0xf]
    %v6218 = vld [vmem:[%s6193 + $0x90] sm:$0xff]
    %v6219 = vld [vmem:[%s6193 + $0x98] sm:$0xf]
    %v6220 = vld [vmem:[%s6193 + $0x9c] sm:$0xff]
    %v6221 = vld [vmem:[%s6193 + $0xa4] sm:$0xf]
    %v6222 = vld [vmem:[%s6193 + $0xa8] sm:$0xff]
    %v6223 = vld [vmem:[%s6193 + $0xb0] sm:$0xf]
    %v6224 = vld [vmem:[%s6193 + $0xb4] sm:$0xff]
    %v6225 = vld [vmem:[%s6193 + $0xbc] sm:$0xf]
    %s6226 = scalar_lea.vmem %s17, 6
    %v6227 = vld [vmem:[%s6226] sm:$0x7]
    %v6229 = vlaneseq
    %v6230 = vshrl.u32 %v6229, 7
    %v6231 = vsub.s32 0, %v6230
    %v6232 = vrot.slane %v6227, %v6231
    %v6233 = vlaneseq
    %v6234 = vshrl.u32 %v6233, 7
    %v6235 = vsub.s32 1, %v6234
    %v6236 = vrot.slane %v6227, %v6235
    %v6237 = vlaneseq
    %v6238 = vshrl.u32 %v6237, 7
    %v6239 = vsub.s32 2, %v6238
    %v6240 = vrot.slane %v6227, %v6239
    %v6276 = vunpack.c.l.b16 %v6194
    %v6277 = vunpack.c.h.b16 %v6194
    %v6278 = vunpack.c.l.b16 %v6195
    %v6279 = vunpack.c.l.b16 %v6196
    %v6280 = vunpack.c.h.b16 %v6196
    %v6281 = vunpack.c.l.b16 %v6197
    %v6282 = vunpack.c.l.b16 %v6198
    %v6283 = vunpack.c.h.b16 %v6198
    %v6284 = vunpack.c.l.b16 %v6199
    %v6285 = vunpack.c.l.b16 %v6200
    %v6286 = vunpack.c.h.b16 %v6200
    %v6287 = vunpack.c.l.b16 %v6201
    %v6288 = vunpack.c.l.b16 %v6202
    %v6289 = vunpack.c.h.b16 %v6202
    %v6290 = vunpack.c.l.b16 %v6203
    %v6291 = vunpack.c.l.b16 %v6204
    %v6292 = vunpack.c.h.b16 %v6204
    %v6293 = vunpack.c.l.b16 %v6205
    %v6294 = vunpack.c.l.b16 %v6206
    %v6295 = vunpack.c.h.b16 %v6206
    %v6296 = vunpack.c.l.b16 %v6207
    %v6297 = vunpack.c.l.b16 %v6208
    %v6298 = vunpack.c.h.b16 %v6208
    %v6299 = vunpack.c.l.b16 %v6209
    %v6300 = vunpack.c.l.b16 %v6210
    %v6301 = vunpack.c.h.b16 %v6210
    %v6302 = vunpack.c.l.b16 %v6211
    %v6303 = vunpack.c.l.b16 %v6212
    %v6304 = vunpack.c.h.b16 %v6212
    %v6305 = vunpack.c.l.b16 %v6213
    %v6306 = vunpack.c.l.b16 %v6214
    %v6307 = vunpack.c.h.b16 %v6214
    %v6308 = vunpack.c.l.b16 %v6215
    %v6309 = vunpack.c.l.b16 %v6216
    %v6310 = vunpack.c.h.b16 %v6216
    %v6311 = vunpack.c.l.b16 %v6217
    %v6312 = vunpack.c.l.b16 %v6218
    %v6313 = vunpack.c.h.b16 %v6218
    %v6314 = vunpack.c.l.b16 %v6219
    %v6315 = vunpack.c.l.b16 %v6220
    %v6316 = vunpack.c.h.b16 %v6220
    %v6317 = vunpack.c.l.b16 %v6221
    %v6318 = vunpack.c.l.b16 %v6222
    %v6319 = vunpack.c.h.b16 %v6222
    %v6320 = vunpack.c.l.b16 %v6223
    %v6321 = vunpack.c.l.b16 %v6224
    %v6322 = vunpack.c.h.b16 %v6224
    %v6323 = vunpack.c.l.b16 %v6225
    %v6324 = vpack.c.b16 %v6279, %v6276
    %v6325 = vpack.c.b16 %v6280, %v6277
    %v6326 = vpack.c.b16 %v6281, %v6278
    %v6327 = vpack.c.b16 %v6285, %v6282
    %v6328 = vpack.c.b16 %v6286, %v6283
    %v6329 = vpack.c.b16 %v6287, %v6284
    %v6330 = vpack.c.b16 %v6291, %v6288
    %v6331 = vpack.c.b16 %v6292, %v6289
    %v6332 = vpack.c.b16 %v6293, %v6290
    %v6333 = vpack.c.b16 %v6297, %v6294
    %v6334 = vpack.c.b16 %v6298, %v6295
    %v6335 = vpack.c.b16 %v6299, %v6296
    %v6336 = vpack.c.b16 %v6303, %v6300
    %v6337 = vpack.c.b16 %v6304, %v6301
    %v6338 = vpack.c.b16 %v6305, %v6302
    %v6339 = vpack.c.b16 %v6309, %v6306
    %v6340 = vpack.c.b16 %v6310, %v6307
    %v6341 = vpack.c.b16 %v6311, %v6308
    %v6342 = vpack.c.b16 %v6315, %v6312
    %v6343 = vpack.c.b16 %v6316, %v6313
    %v6344 = vpack.c.b16 %v6317, %v6314
    %v6345 = vpack.c.b16 %v6321, %v6318
    %v6346 = vpack.c.b16 %v6322, %v6319
    %v6347 = vpack.c.b16 %v6323, %v6320
    %6372 = vmatprep.subr.bf16.mxu0 %v6325
    %6373 = vmatpush1.bf16.msra.mxu0 %v6324
    %6374 = vmatprep.subr.bf16.mxu0 %v6328
    %6375 = vmatpush1.bf16.msra.mxu0 %v6327
    %6376 = vmatprep.subr.bf16.mxu0 %v6331
    %6377 = vmatpush1.bf16.msra.mxu0 %v6330
    %6378 = vmatprep.subr.bf16.mxu0 %v6334
    %6379 = vmatpush1.bf16.msra.mxu0 %v6333
    %6380 = vmatprep.subr.bf16.mxu0 %v6337
    %6381 = vmatpush1.bf16.msra.mxu0 %v6336
    %6382 = vmatprep.subr.bf16.mxu0 %v6340
    %6383 = vmatpush1.bf16.msra.mxu0 %v6339
    %6384 = vmatprep.subr.bf16.mxu0 %v6343
    %6385 = vmatpush1.bf16.msra.mxu0 %v6342
    %6386 = vmatprep.subr.bf16.mxu0 %v6346
    %6387 = vmatpush1.bf16.msra.mxu0 %v6345
    %6388 = vmatprep.subr.bf16.mxu0 0
    %6389 = vmatpush1.bf16.msra.mxu0 0
    %6390 = vmatprep.subr.bf16.mxu0 0
    %6391 = vmatpush1.bf16.msra.mxu0 0
    %6392 = vmatprep.subr.bf16.mxu0 0
    %6393 = vmatpush1.bf16.msra.mxu0 0
    %6394 = vmatprep.subr.bf16.mxu0 0
    %6395 = vmatpush1.bf16.msra.mxu0 0
    %6396 = vmatprep.subr.bf16.mxu0 0
    %6397 = vmatpush1.bf16.msra.mxu0 0
    %6398 = vmatprep.subr.bf16.mxu0 0
    %6399 = vmatpush1.bf16.msra.mxu0 0
    %6400 = vmatprep.subr.bf16.mxu0 0
    %6401 = vmatpush1.bf16.msra.mxu0 0
    %6402 = vmatprep.subr.bf16.mxu0 0
    %6403 = vmatpush1.bf16.msra.mxu0 0
    %6404 = vmatprep.mubr.bf16.mxu0 0
    %6405 = vmatmul.mubr.bf16.gmra.mrb[0].mxu0 %v6192
    %v6406 = vpop.f32.mrb[0].mxu0
    %v6407 = vadd.f32 %v6232, %v6406
    %v6408 = vpop.f32.mrb[0].mxu0
    %v6409 = vadd.f32 %v6236, %v6408
    %v6410 = vpop.f32.mrb[0].mxu0
    %v6411 = vadd.f32 %v6232, %v6410
    %v6412 = vpop.f32.mrb[0].mxu0
    %v6413 = vadd.f32 %v6236, %v6412
    %6414 = vdwg.mxu0
    %6415 = vmatprep.subr.bf16.mxu0 0
    %6416 = vmatpush1.bf16.msra.mxu0 %v6326
    %6417 = vmatprep.subr.bf16.mxu0 0
    %6418 = vmatpush1.bf16.msra.mxu0 %v6329
    %6419 = vmatprep.subr.bf16.mxu0 0
    %6420 = vmatpush1.bf16.msra.mxu0 %v6332
    %6421 = vmatprep.subr.bf16.mxu0 0
    %6422 = vmatpush1.bf16.msra.mxu0 %v6335
    %6423 = vmatprep.subr.bf16.mxu0 0
    %6424 = vmatpush1.bf16.msra.mxu0 %v6338
    %6425 = vmatprep.subr.bf16.mxu0 0
    %6426 = vmatpush1.bf16.msra.mxu0 %v6341
    %6427 = vmatprep.subr.bf16.mxu0 0
    %6428 = vmatpush1.bf16.msra.mxu0 %v6344
    %6429 = vmatprep.subr.bf16.mxu0 0
    %6430 = vmatpush1.bf16.msra.mxu0 %v6347
    %6431 = vmatprep.subr.bf16.mxu0 0
    %6432 = vmatpush1.bf16.msra.mxu0 0
    %6433 = vmatprep.subr.bf16.mxu0 0
    %6434 = vmatpush1.bf16.msra.mxu0 0
    %6435 = vmatprep.subr.bf16.mxu0 0
    %6436 = vmatpush1.bf16.msra.mxu0 0
    %6437 = vmatprep.subr.bf16.mxu0 0
    %6438 = vmatpush1.bf16.msra.mxu0 0
    %6439 = vmatprep.subr.bf16.mxu0 0
    %6440 = vmatpush1.bf16.msra.mxu0 0
    %6441 = vmatprep.subr.bf16.mxu0 0
    %6442 = vmatpush1.bf16.msra.mxu0 0
    %6443 = vmatprep.subr.bf16.mxu0 0
    %6444 = vmatpush1.bf16.msra.mxu0 0
    %6445 = vmatprep.subr.bf16.mxu0 0
    %6446 = vmatpush1.bf16.msra.mxu0 0
    %6447 = vmatprep.mubr.bf16.mxu0 0
    %6448 = vmatmul.mubr.bf16.gmra.mrb[0].mxu0 %v6192
    %v6449 = vpop.f32.mrb[0].mxu0
    %v6450 = vadd.f32 %v6240, %v6449
    %v6451 = vpop.f32.mrb[0].mxu0
    %v6452 = vpop.f32.mrb[0].mxu0
    %v6453 = vadd.f32 %v6240, %v6452
    %v6454 = vpop.f32.mrb[0].mxu0
    %6455 = vdwg.mxu0
    %v6456 = vpack.c.bf16 %v6407, %v6407
    %v6457 = vpack.c.bf16 %v6409, %v6409
    %v6458 = vpack.c.bf16 %v6450, %v6450
    %v6459 = vpack.c.bf16 %v6411, %v6411
    %v6460 = vpack.c.bf16 %v6413, %v6413
    %v6461 = vpack.c.bf16 %v6453, %v6453
    %s6462 = scalar_lea.vmem [#allocation6], 128
    %v6463 = vld [vmem:[%s6462] sm:$0xf]
    %v6464 = vld [vmem:[%s6462 + $0x4] sm:$0xf]
    %v6465 = vld [vmem:[%s6462 + $0x8] sm:$0xf]
    %v6466 = vld [vmem:[%s6462 + $0xc] sm:$0xf]
    %v6467 = vld [vmem:[%s6462 + $0x10] sm:$0xf]
    %v6468 = vld [vmem:[%s6462 + $0x14] sm:$0xf]
    %v6469 = vld [vmem:[%s6462 + $0x18] sm:$0xf]
    %v6470 = vld [vmem:[%s6462 + $0x1c] sm:$0xf]
    %v6471 = vld [vmem:[%s6462 + $0x20] sm:$0xf]
    %v6472 = vld [vmem:[%s6462 + $0x24] sm:$0xf]
    %v6473 = vld [vmem:[%s6462 + $0x28] sm:$0xf]
    %v6474 = vld [vmem:[%s6462 + $0x2c] sm:$0xf]
    %v6475 = vld [vmem:[%s6462 + $0x30] sm:$0xf]
    %v6476 = vld [vmem:[%s6462 + $0x34] sm:$0xf]
    %v6477 = vld [vmem:[%s6462 + $0x38] sm:$0xf]
    %v6478 = vld [vmem:[%s6462 + $0x3c] sm:$0xf]
    %v6480 = vsel %vm808, %v6456, 0
    %v6483 = vsel %vm808, %v6457, 0
    %6485 = vmatprep.subr.bf16.mxu0 0
    %6486 = vmatpush1.bf16.xpose.msra.mxu0 %v6483
    %6487 = vmatprep.subr.bf16.mxu0 0
    %6488 = vmatpush1.bf16.xpose.msra.mxu0 0
    %6489 = vmatprep.subr.bf16.mxu0 0
    %6490 = vmatpush1.bf16.xpose.msra.mxu0 0
    %6491 = vmatprep.subr.bf16.mxu0 0
    %6492 = vmatpush1.bf16.xpose.msra.mxu0 0
    %6493 = vmatprep.subr.bf16.mxu0 0
    %6494 = vmatpush1.bf16.xpose.msra.mxu0 0
    %6495 = vmatprep.subr.bf16.mxu0 0
    %6496 = vmatpush1.bf16.xpose.msra.mxu0 0
    %6497 = vmatprep.subr.bf16.mxu0 0
    %6498 = vmatpush1.bf16.xpose.msra.mxu0 0
    %6499 = vmatprep.subr.bf16.mxu0 0
    %6500 = vmatpush1.bf16.xpose.msra.mxu0 0
    %6501 = vmatprep.subr.bf16.mxu0 0
    %6502 = vmatpush1.bf16.xpose.msra.mxu0 0
    %6503 = vmatprep.subr.bf16.mxu0 0
    %6504 = vmatpush1.bf16.xpose.msra.mxu0 0
    %6505 = vmatprep.subr.bf16.mxu0 0
    %6506 = vmatpush1.bf16.xpose.msra.mxu0 0
    %6507 = vmatprep.subr.bf16.mxu0 0
    %6508 = vmatpush1.bf16.xpose.msra.mxu0 0
    %6509 = vmatprep.subr.bf16.mxu0 0
    %6510 = vmatpush1.bf16.xpose.msra.mxu0 0
    %6511 = vmatprep.subr.bf16.mxu0 0
    %6512 = vmatpush1.bf16.xpose.msra.mxu0 0
    %6513 = vmatprep.subr.bf16.mxu0 0
    %6514 = vmatpush1.bf16.xpose.msra.mxu0 0
    %6515 = vmatprep.subr.bf16.mxu0 0
    %6516 = vmatpush1.bf16.xpose.msra.mxu0 0
    %6517 = vmatprep.mubr.bf16.mxu0 0
    %6518 = vmatmul.mubr.bf16.gmra.mrb[0].mxu0 %v6480
    %v6519 = vpop.f32.mrb[0].mxu0
    %v6520 = vadd.f32 0.0, %v6519
    %v6521 = vpop.f32.mrb[0].mxu0
    %v6522 = vpop.f32.mrb[0].mxu0
    %v6523 = vpop.f32.mrb[0].mxu0
    %6524 = vdwg.mxu0
    %v6526 = vsel %vm808, %v6459, 0
    %v6529 = vsel %vm808, %v6460, 0
    %6531 = vmatprep.subr.bf16.mxu0 0
    %6532 = vmatpush1.bf16.xpose.msra.mxu0 %v6529
    %6533 = vmatprep.subr.bf16.mxu0 0
    %6534 = vmatpush1.bf16.xpose.msra.mxu0 0
    %6535 = vmatprep.subr.bf16.mxu0 0
    %6536 = vmatpush1.bf16.xpose.msra.mxu0 0
    %6537 = vmatprep.subr.bf16.mxu0 0
    %6538 = vmatpush1.bf16.xpose.msra.mxu0 0
    %6539 = vmatprep.subr.bf16.mxu0 0
    %6540 = vmatpush1.bf16.xpose.msra.mxu0 0
    %6541 = vmatprep.subr.bf16.mxu0 0
    %6542 = vmatpush1.bf16.xpose.msra.mxu0 0
    %6543 = vmatprep.subr.bf16.mxu0 0
    %6544 = vmatpush1.bf16.xpose.msra.mxu0 0
    %6545 = vmatprep.subr.bf16.mxu0 0
    %6546 = vmatpush1.bf16.xpose.msra.mxu0 0
    %6547 = vmatprep.subr.bf16.mxu0 0
    %6548 = vmatpush1.bf16.xpose.msra.mxu0 0
    %6549 = vmatprep.subr.bf16.mxu0 0
    %6550 = vmatpush1.bf16.xpose.msra.mxu0 0
    %6551 = vmatprep.subr.bf16.mxu0 0
    %6552 = vmatpush1.bf16.xpose.msra.mxu0 0
    %6553 = vmatprep.subr.bf16.mxu0 0
    %6554 = vmatpush1.bf16.xpose.msra.mxu0 0
    %6555 = vmatprep.subr.bf16.mxu0 0
    %6556 = vmatpush1.bf16.xpose.msra.mxu0 0
    %6557 = vmatprep.subr.bf16.mxu0 0
    %6558 = vmatpush1.bf16.xpose.msra.mxu0 0
    %6559 = vmatprep.subr.bf16.mxu0 0
    %6560 = vmatpush1.bf16.xpose.msra.mxu0 0
    %6561 = vmatprep.subr.bf16.mxu0 0
    %6562 = vmatpush1.bf16.xpose.msra.mxu0 0
    %6563 = vmatprep.mubr.bf16.mxu0 0
    %6564 = vmatmul.mubr.bf16.gmra.mrb[0].mxu0 %v6526
    %v6565 = vpop.f32.mrb[0].mxu0
    %v6566 = vadd.f32 0.0, %v6565
    %v6567 = vpop.f32.mrb[0].mxu0
    %v6568 = vpop.f32.mrb[0].mxu0
    %v6569 = vpop.f32.mrb[0].mxu0
    %6570 = vdwg.mxu0
    %v6571 = vmul.f32 %v6520, 0.17677669
    %v6572 = vmul.f32 %v6566, 0.17677669
    %v6573 = vsel %vm903, %v6571, -inf
    %6574 = vmax.xlane.f32.xlu0 %v6573
    %v6575 = vpop.xlane.xlu0 %6574
    %v6576 = vsel %vm903, %v6572, -inf
    %6577 = vmax.xlane.f32.xlu0 %v6576
    %v6578 = vpop.xlane.xlu0 %6577
    %v6579 = vsub.f32 %v6571, %v6575
    %v6580 = vsub.f32 %v6572, %v6578
    %v6581 = vmul.f32 %v6579, 1.442695
    %v6582 = vpow.pop %v6581
    %v6583 = vmul.f32 %v6580, 1.442695
    %v6584 = vpow.pop %v6583
    %v6585 = vsel %vm903, %v6582, 0.0
    %6586 = vadd.xlane.f32.xlu0 %v6585
    %v6587 = vpop.xlane.xlu0 %6586
    %v6588 = vsel %vm903, %v6584, 0.0
    %6589 = vadd.xlane.f32.xlu0 %v6588
    %v6590 = vpop.xlane.xlu0 %6589
    %v6591 = vrcp.pop %v6587
    %v6592 = vrcp.pop %v6590
    %v6593 = vmul.f32 %v6582, %v6591
    %v6594 = vmul.f32 %v6584, %v6592
    %v6595 = vpack.c.bf16 %v6593, %v6593
    %v6596 = vpack.c.bf16 %v6594, %v6594
    %v6598 = vsel %vm903, %v6595, 0
    %v6601 = vsel %vm931, %v6458, 0
    %6603 = vmatprep.subr.bf16.mxu0 0
    %6604 = vmatpush1.bf16.msra.mxu0 %v6601
    %6605 = vmatprep.subr.bf16.mxu0 0
    %6606 = vmatpush1.bf16.msra.mxu0 0
    %6607 = vmatprep.subr.bf16.mxu0 0
    %6608 = vmatpush1.bf16.msra.mxu0 0
    %6609 = vmatprep.subr.bf16.mxu0 0
    %6610 = vmatpush1.bf16.msra.mxu0 0
    %6611 = vmatprep.subr.bf16.mxu0 0
    %6612 = vmatpush1.bf16.msra.mxu0 0
    %6613 = vmatprep.subr.bf16.mxu0 0
    %6614 = vmatpush1.bf16.msra.mxu0 0
    %6615 = vmatprep.subr.bf16.mxu0 0
    %6616 = vmatpush1.bf16.msra.mxu0 0
    %6617 = vmatprep.subr.bf16.mxu0 0
    %6618 = vmatpush1.bf16.msra.mxu0 0
    %6619 = vmatprep.subr.bf16.mxu0 0
    %6620 = vmatpush1.bf16.msra.mxu0 0
    %6621 = vmatprep.subr.bf16.mxu0 0
    %6622 = vmatpush1.bf16.msra.mxu0 0
    %6623 = vmatprep.subr.bf16.mxu0 0
    %6624 = vmatpush1.bf16.msra.mxu0 0
    %6625 = vmatprep.subr.bf16.mxu0 0
    %6626 = vmatpush1.bf16.msra.mxu0 0
    %6627 = vmatprep.subr.bf16.mxu0 0
    %6628 = vmatpush1.bf16.msra.mxu0 0
    %6629 = vmatprep.subr.bf16.mxu0 0
    %6630 = vmatpush1.bf16.msra.mxu0 0
    %6631 = vmatprep.subr.bf16.mxu0 0
    %6632 = vmatpush1.bf16.msra.mxu0 0
    %6633 = vmatprep.subr.bf16.mxu0 0
    %6634 = vmatpush1.bf16.msra.mxu0 0
    %6635 = vmatprep.mubr.bf16.mxu0 0
    %6636 = vmatmul.mubr.bf16.gmra.mrb[0].mxu0 %v6598
    %v6637 = vpop.f32.mrb[0].mxu0
    %v6638 = vadd.f32 0.0, %v6637
    %v6639 = vpop.f32.mrb[0].mxu0
    %v6640 = vpop.f32.mrb[0].mxu0
    %v6641 = vpop.f32.mrb[0].mxu0
    %6642 = vdwg.mxu0
    %v6644 = vsel %vm903, %v6596, 0
    %v6647 = vsel %vm931, %v6461, 0
    %6649 = vmatprep.subr.bf16.mxu0 0
    %6650 = vmatpush1.bf16.msra.mxu0 %v6647
    %6651 = vmatprep.subr.bf16.mxu0 0
    %6652 = vmatpush1.bf16.msra.mxu0 0
    %6653 = vmatprep.subr.bf16.mxu0 0
    %6654 = vmatpush1.bf16.msra.mxu0 0
    %6655 = vmatprep.subr.bf16.mxu0 0
    %6656 = vmatpush1.bf16.msra.mxu0 0
    %6657 = vmatprep.subr.bf16.mxu0 0
    %6658 = vmatpush1.bf16.msra.mxu0 0
    %6659 = vmatprep.subr.bf16.mxu0 0
    %6660 = vmatpush1.bf16.msra.mxu0 0
    %6661 = vmatprep.subr.bf16.mxu0 0
    %6662 = vmatpush1.bf16.msra.mxu0 0
    %6663 = vmatprep.subr.bf16.mxu0 0
    %6664 = vmatpush1.bf16.msra.mxu0 0
    %6665 = vmatprep.subr.bf16.mxu0 0
    %6666 = vmatpush1.bf16.msra.mxu0 0
    %6667 = vmatprep.subr.bf16.mxu0 0
    %6668 = vmatpush1.bf16.msra.mxu0 0
    %6669 = vmatprep.subr.bf16.mxu0 0
    %6670 = vmatpush1.bf16.msra.mxu0 0
    %6671 = vmatprep.subr.bf16.mxu0 0
    %6672 = vmatpush1.bf16.msra.mxu0 0
    %6673 = vmatprep.subr.bf16.mxu0 0
    %6674 = vmatpush1.bf16.msra.mxu0 0
    %6675 = vmatprep.subr.bf16.mxu0 0
    %6676 = vmatpush1.bf16.msra.mxu0 0
    %6677 = vmatprep.subr.bf16.mxu0 0
    %6678 = vmatpush1.bf16.msra.mxu0 0
    %6679 = vmatprep.subr.bf16.mxu0 0
    %6680 = vmatpush1.bf16.msra.mxu0 0
    %6681 = vmatprep.mubr.bf16.mxu0 0
    %6682 = vmatmul.mubr.bf16.gmra.mrb[0].mxu0 %v6644
    %v6683 = vpop.f32.mrb[0].mxu0
    %v6684 = vadd.f32 0.0, %v6683
    %v6685 = vpop.f32.mrb[0].mxu0
    %v6686 = vpop.f32.mrb[0].mxu0
    %v6687 = vpop.f32.mrb[0].mxu0
    %6688 = vdwg.mxu0
    %v6689 = vpack.c.bf16 %v6684, %v6638
    %6691 = vrot.lane.b32.xlu0 %v6456, 96
    %v6692 = vpop.permute.xlu0 %6691
    %6694 = vrot.lane.b32.xlu0 %v6457, 96
    %v6695 = vpop.permute.xlu0 %6694
    %v6697 = vsel %vm808, %v6692, 0
    %v6700 = vsel %vm808, %v6695, 0
    %6702 = vmatprep.subr.bf16.mxu0 0
    %6703 = vmatpush1.bf16.xpose.msra.mxu0 %v6700
    %6704 = vmatprep.subr.bf16.mxu0 0
    %6705 = vmatpush1.bf16.xpose.msra.mxu0 0
    %6706 = vmatprep.subr.bf16.mxu0 0
    %6707 = vmatpush1.bf16.xpose.msra.mxu0 0
    %6708 = vmatprep.subr.bf16.mxu0 0
    %6709 = vmatpush1.bf16.xpose.msra.mxu0 0
    %6710 = vmatprep.subr.bf16.mxu0 0
    %6711 = vmatpush1.bf16.xpose.msra.mxu0 0
    %6712 = vmatprep.subr.bf16.mxu0 0
    %6713 = vmatpush1.bf16.xpose.msra.mxu0 0
    %6714 = vmatprep.subr.bf16.mxu0 0
    %6715 = vmatpush1.bf16.xpose.msra.mxu0 0
    %6716 = vmatprep.subr.bf16.mxu0 0
    %6717 = vmatpush1.bf16.xpose.msra.mxu0 0
    %6718 = vmatprep.subr.bf16.mxu0 0
    %6719 = vmatpush1.bf16.xpose.msra.mxu0 0
    %6720 = vmatprep.subr.bf16.mxu0 0
    %6721 = vmatpush1.bf16.xpose.msra.mxu0 0
    %6722 = vmatprep.subr.bf16.mxu0 0
    %6723 = vmatpush1.bf16.xpose.msra.mxu0 0
    %6724 = vmatprep.subr.bf16.mxu0 0
    %6725 = vmatpush1.bf16.xpose.msra.mxu0 0
    %6726 = vmatprep.subr.bf16.mxu0 0
    %6727 = vmatpush1.bf16.xpose.msra.mxu0 0
    %6728 = vmatprep.subr.bf16.mxu0 0
    %6729 = vmatpush1.bf16.xpose.msra.mxu0 0
    %6730 = vmatprep.subr.bf16.mxu0 0
    %6731 = vmatpush1.bf16.xpose.msra.mxu0 0
    %6732 = vmatprep.subr.bf16.mxu0 0
    %6733 = vmatpush1.bf16.xpose.msra.mxu0 0
    %6734 = vmatprep.mubr.bf16.mxu0 0
    %6735 = vmatmul.mubr.bf16.gmra.mrb[0].mxu0 %v6697
    %v6736 = vpop.f32.mrb[0].mxu0
    %v6737 = vadd.f32 0.0, %v6736
    %v6738 = vpop.f32.mrb[0].mxu0
    %v6739 = vpop.f32.mrb[0].mxu0
    %v6740 = vpop.f32.mrb[0].mxu0
    %6741 = vdwg.mxu0
    %6743 = vrot.lane.b32.xlu0 %v6459, 96
    %v6744 = vpop.permute.xlu0 %6743
    %6746 = vrot.lane.b32.xlu0 %v6460, 96
    %v6747 = vpop.permute.xlu0 %6746
    %v6749 = vsel %vm808, %v6744, 0
    %v6752 = vsel %vm808, %v6747, 0
    %6754 = vmatprep.subr.bf16.mxu0 0
    %6755 = vmatpush1.bf16.xpose.msra.mxu0 %v6752
    %6756 = vmatprep.subr.bf16.mxu0 0
    %6757 = vmatpush1.bf16.xpose.msra.mxu0 0
    %6758 = vmatprep.subr.bf16.mxu0 0
    %6759 = vmatpush1.bf16.xpose.msra.mxu0 0
    %6760 = vmatprep.subr.bf16.mxu0 0
    %6761 = vmatpush1.bf16.xpose.msra.mxu0 0
    %6762 = vmatprep.subr.bf16.mxu0 0
    %6763 = vmatpush1.bf16.xpose.msra.mxu0 0
    %6764 = vmatprep.subr.bf16.mxu0 0
    %6765 = vmatpush1.bf16.xpose.msra.mxu0 0
    %6766 = vmatprep.subr.bf16.mxu0 0
    %6767 = vmatpush1.bf16.xpose.msra.mxu0 0
    %6768 = vmatprep.subr.bf16.mxu0 0
    %6769 = vmatpush1.bf16.xpose.msra.mxu0 0
    %6770 = vmatprep.subr.bf16.mxu0 0
    %6771 = vmatpush1.bf16.xpose.msra.mxu0 0
    %6772 = vmatprep.subr.bf16.mxu0 0
    %6773 = vmatpush1.bf16.xpose.msra.mxu0 0
    %6774 = vmatprep.subr.bf16.mxu0 0
    %6775 = vmatpush1.bf16.xpose.msra.mxu0 0
    %6776 = vmatprep.subr.bf16.mxu0 0
    %6777 = vmatpush1.bf16.xpose.msra.mxu0 0
    %6778 = vmatprep.subr.bf16.mxu0 0
    %6779 = vmatpush1.bf16.xpose.msra.mxu0 0
    %6780 = vmatprep.subr.bf16.mxu0 0
    %6781 = vmatpush1.bf16.xpose.msra.mxu0 0
    %6782 = vmatprep.subr.bf16.mxu0 0
    %6783 = vmatpush1.bf16.xpose.msra.mxu0 0
    %6784 = vmatprep.subr.bf16.mxu0 0
    %6785 = vmatpush1.bf16.xpose.msra.mxu0 0
    %6786 = vmatprep.mubr.bf16.mxu0 0
    %6787 = vmatmul.mubr.bf16.gmra.mrb[0].mxu0 %v6749
    %v6788 = vpop.f32.mrb[0].mxu0
    %v6789 = vadd.f32 0.0, %v6788
    %v6790 = vpop.f32.mrb[0].mxu0
    %v6791 = vpop.f32.mrb[0].mxu0
    %v6792 = vpop.f32.mrb[0].mxu0
    %6793 = vdwg.mxu0
    %v6794 = vmul.f32 %v6737, 0.17677669
    %v6795 = vmul.f32 %v6789, 0.17677669
    %v6796 = vsel %vm903, %v6794, -inf
    %6797 = vmax.xlane.f32.xlu0 %v6796
    %v6798 = vpop.xlane.xlu0 %6797
    %v6799 = vsel %vm903, %v6795, -inf
    %6800 = vmax.xlane.f32.xlu0 %v6799
    %v6801 = vpop.xlane.xlu0 %6800
    %v6802 = vsub.f32 %v6794, %v6798
    %v6803 = vsub.f32 %v6795, %v6801
    %v6804 = vmul.f32 %v6802, 1.442695
    %v6805 = vpow.pop %v6804
    %v6806 = vmul.f32 %v6803, 1.442695
    %v6807 = vpow.pop %v6806
    %v6808 = vsel %vm903, %v6805, 0.0
    %6809 = vadd.xlane.f32.xlu0 %v6808
    %v6810 = vpop.xlane.xlu0 %6809
    %v6811 = vsel %vm903, %v6807, 0.0
    %6812 = vadd.xlane.f32.xlu0 %v6811
    %v6813 = vpop.xlane.xlu0 %6812
    %v6814 = vrcp.pop %v6810
    %v6815 = vrcp.pop %v6813
    %v6816 = vmul.f32 %v6805, %v6814
    %v6817 = vmul.f32 %v6807, %v6815
    %v6818 = vpack.c.bf16 %v6816, %v6816
    %v6819 = vpack.c.bf16 %v6817, %v6817
    %6821 = vrot.lane.b32.xlu0 %v6458, 96
    %v6822 = vpop.permute.xlu0 %6821
    %v6824 = vsel %vm903, %v6818, 0
    %v6827 = vsel %vm931, %v6822, 0
    %6829 = vmatprep.subr.bf16.mxu0 0
    %6830 = vmatpush1.bf16.msra.mxu0 %v6827
    %6831 = vmatprep.subr.bf16.mxu0 0
    %6832 = vmatpush1.bf16.msra.mxu0 0
    %6833 = vmatprep.subr.bf16.mxu0 0
    %6834 = vmatpush1.bf16.msra.mxu0 0
    %6835 = vmatprep.subr.bf16.mxu0 0
    %6836 = vmatpush1.bf16.msra.mxu0 0
    %6837 = vmatprep.subr.bf16.mxu0 0
    %6838 = vmatpush1.bf16.msra.mxu0 0
    %6839 = vmatprep.subr.bf16.mxu0 0
    %6840 = vmatpush1.bf16.msra.mxu0 0
    %6841 = vmatprep.subr.bf16.mxu0 0
    %6842 = vmatpush1.bf16.msra.mxu0 0
    %6843 = vmatprep.subr.bf16.mxu0 0
    %6844 = vmatpush1.bf16.msra.mxu0 0
    %6845 = vmatprep.subr.bf16.mxu0 0
    %6846 = vmatpush1.bf16.msra.mxu0 0
    %6847 = vmatprep.subr.bf16.mxu0 0
    %6848 = vmatpush1.bf16.msra.mxu0 0
    %6849 = vmatprep.subr.bf16.mxu0 0
    %6850 = vmatpush1.bf16.msra.mxu0 0
    %6851 = vmatprep.subr.bf16.mxu0 0
    %6852 = vmatpush1.bf16.msra.mxu0 0
    %6853 = vmatprep.subr.bf16.mxu0 0
    %6854 = vmatpush1.bf16.msra.mxu0 0
    %6855 = vmatprep.subr.bf16.mxu0 0
    %6856 = vmatpush1.bf16.msra.mxu0 0
    %6857 = vmatprep.subr.bf16.mxu0 0
    %6858 = vmatpush1.bf16.msra.mxu0 0
    %6859 = vmatprep.subr.bf16.mxu0 0
    %6860 = vmatpush1.bf16.msra.mxu0 0
    %6861 = vmatprep.mubr.bf16.mxu0 0
    %6862 = vmatmul.mubr.bf16.gmra.mrb[0].mxu0 %v6824
    %v6863 = vpop.f32.mrb[0].mxu0
    %v6864 = vadd.f32 0.0, %v6863
    %v6865 = vpop.f32.mrb[0].mxu0
    %v6866 = vpop.f32.mrb[0].mxu0
    %v6867 = vpop.f32.mrb[0].mxu0
    %6868 = vdwg.mxu0
    %6870 = vrot.lane.b32.xlu0 %v6461, 96
    %v6871 = vpop.permute.xlu0 %6870
    %v6873 = vsel %vm903, %v6819, 0
    %v6876 = vsel %vm931, %v6871, 0
    %6878 = vmatprep.subr.bf16.mxu0 0
    %6879 = vmatpush1.bf16.msra.mxu0 %v6876
    %6880 = vmatprep.subr.bf16.mxu0 0
    %6881 = vmatpush1.bf16.msra.mxu0 0
    %6882 = vmatprep.subr.bf16.mxu0 0
    %6883 = vmatpush1.bf16.msra.mxu0 0
    %6884 = vmatprep.subr.bf16.mxu0 0
    %6885 = vmatpush1.bf16.msra.mxu0 0
    %6886 = vmatprep.subr.bf16.mxu0 0
    %6887 = vmatpush1.bf16.msra.mxu0 0
    %6888 = vmatprep.subr.bf16.mxu0 0
    %6889 = vmatpush1.bf16.msra.mxu0 0
    %6890 = vmatprep.subr.bf16.mxu0 0
    %6891 = vmatpush1.bf16.msra.mxu0 0
    %6892 = vmatprep.subr.bf16.mxu0 0
    %6893 = vmatpush1.bf16.msra.mxu0 0
    %6894 = vmatprep.subr.bf16.mxu0 0
    %6895 = vmatpush1.bf16.msra.mxu0 0
    %6896 = vmatprep.subr.bf16.mxu0 0
    %6897 = vmatpush1.bf16.msra.mxu0 0
    %6898 = vmatprep.subr.bf16.mxu0 0
    %6899 = vmatpush1.bf16.msra.mxu0 0
    %6900 = vmatprep.subr.bf16.mxu0 0
    %6901 = vmatpush1.bf16.msra.mxu0 0
    %6902 = vmatprep.subr.bf16.mxu0 0
    %6903 = vmatpush1.bf16.msra.mxu0 0
    %6904 = vmatprep.subr.bf16.mxu0 0
    %6905 = vmatpush1.bf16.msra.mxu0 0
    %6906 = vmatprep.subr.bf16.mxu0 0
    %6907 = vmatpush1.bf16.msra.mxu0 0
    %6908 = vmatprep.subr.bf16.mxu0 0
    %6909 = vmatpush1.bf16.msra.mxu0 0
    %6910 = vmatprep.mubr.bf16.mxu0 0
    %6911 = vmatmul.mubr.bf16.gmra.mrb[0].mxu0 %v6873
    %v6912 = vpop.f32.mrb[0].mxu0
    %v6913 = vadd.f32 0.0, %v6912
    %v6914 = vpop.f32.mrb[0].mxu0
    %v6915 = vpop.f32.mrb[0].mxu0
    %v6916 = vpop.f32.mrb[0].mxu0
    %6917 = vdwg.mxu0
    %v6918 = vpack.c.bf16 %v6913, %v6864
    %v6923 = vunpack.c.l.b16 %v6467
    %v6924 = vunpack.c.l.b16 %v6468
    %v6925 = vunpack.c.l.b16 %v6469
    %v6926 = vunpack.c.l.b16 %v6470
    %v6927 = vpack.c.b16 %v6924, %v6923
    %v6928 = vpack.c.b16 %v6926, %v6925
    %v6932 = vsel %vm808, %v6918, 0
    %6934 = vmatprep.subr.bf16.mxu0 0
    %6935 = vmatpush1.bf16.msra.mxu0 %v6927
    %6936 = vmatprep.subr.bf16.mxu0 0
    %6937 = vmatpush1.bf16.msra.mxu0 %v6928
    %6938 = vmatprep.subr.bf16.mxu0 0
    %6939 = vmatpush1.bf16.msra.mxu0 0
    %6940 = vmatprep.subr.bf16.mxu0 0
    %6941 = vmatpush1.bf16.msra.mxu0 0
    %6942 = vmatprep.subr.bf16.mxu0 0
    %6943 = vmatpush1.bf16.msra.mxu0 0
    %6944 = vmatprep.subr.bf16.mxu0 0
    %6945 = vmatpush1.bf16.msra.mxu0 0
    %6946 = vmatprep.subr.bf16.mxu0 0
    %6947 = vmatpush1.bf16.msra.mxu0 0
    %6948 = vmatprep.subr.bf16.mxu0 0
    %6949 = vmatpush1.bf16.msra.mxu0 0
    %6950 = vmatprep.subr.bf16.mxu0 0
    %6951 = vmatpush1.bf16.msra.mxu0 0
    %6952 = vmatprep.subr.bf16.mxu0 0
    %6953 = vmatpush1.bf16.msra.mxu0 0
    %6954 = vmatprep.subr.bf16.mxu0 0
    %6955 = vmatpush1.bf16.msra.mxu0 0
    %6956 = vmatprep.subr.bf16.mxu0 0
    %6957 = vmatpush1.bf16.msra.mxu0 0
    %6958 = vmatprep.subr.bf16.mxu0 0
    %6959 = vmatpush1.bf16.msra.mxu0 0
    %6960 = vmatprep.subr.bf16.mxu0 0
    %6961 = vmatpush1.bf16.msra.mxu0 0
    %6962 = vmatprep.subr.bf16.mxu0 0
    %6963 = vmatpush1.bf16.msra.mxu0 0
    %6964 = vmatprep.subr.bf16.mxu0 0
    %6965 = vmatpush1.bf16.msra.mxu0 0
    %6966 = vmatprep.mubr.bf16.mxu0 0
    %6967 = vmatmul.mubr.bf16.gmra.mrb[0].mxu0 %v6932
    %v6968 = vpop.f32.mrb[0].mxu0
    %v6969 = vadd.f32 0.0, %v6968
    %v6970 = vpop.f32.mrb[0].mxu0
    %v6971 = vpop.f32.mrb[0].mxu0
    %v6972 = vadd.f32 0.0, %v6971
    %v6973 = vpop.f32.mrb[0].mxu0
    %6974 = vdwg.mxu0
    %v6979 = vunpack.c.l.b16 %v6463
    %v6980 = vunpack.c.l.b16 %v6464
    %v6981 = vunpack.c.l.b16 %v6465
    %v6982 = vunpack.c.l.b16 %v6466
    %v6983 = vpack.c.b16 %v6980, %v6979
    %v6984 = vpack.c.b16 %v6982, %v6981
    %v6988 = vsel %vm808, %v6689, 0
    %6990 = vmatprep.subr.bf16.mxu0 0
    %6991 = vmatpush1.bf16.msra.mxu0 %v6983
    %6992 = vmatprep.subr.bf16.mxu0 0
    %6993 = vmatpush1.bf16.msra.mxu0 %v6984
    %6994 = vmatprep.subr.bf16.mxu0 0
    %6995 = vmatpush1.bf16.msra.mxu0 0
    %6996 = vmatprep.subr.bf16.mxu0 0
    %6997 = vmatpush1.bf16.msra.mxu0 0
    %6998 = vmatprep.subr.bf16.mxu0 0
    %6999 = vmatpush1.bf16.msra.mxu0 0
    %7000 = vmatprep.subr.bf16.mxu0 0
    %7001 = vmatpush1.bf16.msra.mxu0 0
    %7002 = vmatprep.subr.bf16.mxu0 0
    %7003 = vmatpush1.bf16.msra.mxu0 0
    %7004 = vmatprep.subr.bf16.mxu0 0
    %7005 = vmatpush1.bf16.msra.mxu0 0
    %7006 = vmatprep.subr.bf16.mxu0 0
    %7007 = vmatpush1.bf16.msra.mxu0 0
    %7008 = vmatprep.subr.bf16.mxu0 0
    %7009 = vmatpush1.bf16.msra.mxu0 0
    %7010 = vmatprep.subr.bf16.mxu0 0
    %7011 = vmatpush1.bf16.msra.mxu0 0
    %7012 = vmatprep.subr.bf16.mxu0 0
    %7013 = vmatpush1.bf16.msra.mxu0 0
    %7014 = vmatprep.subr.bf16.mxu0 0
    %7015 = vmatpush1.bf16.msra.mxu0 0
    %7016 = vmatprep.subr.bf16.mxu0 0
    %7017 = vmatpush1.bf16.msra.mxu0 0
    %7018 = vmatprep.subr.bf16.mxu0 0
    %7019 = vmatpush1.bf16.msra.mxu0 0
    %7020 = vmatprep.subr.bf16.mxu0 0
    %7021 = vmatpush1.bf16.msra.mxu0 0
    %7022 = vmatprep.mubr.bf16.mxu0 0
    %7023 = vmatmul.mubr.bf16.gmra.mrb[0].mxu0 %v6988
    %v7024 = vpop.f32.mrb[0].mxu0
    %v7025 = vadd.f32 %v6969, %v7024
    %v7026 = vpop.f32.mrb[0].mxu0
    %v7027 = vpop.f32.mrb[0].mxu0
    %v7028 = vadd.f32 %v6972, %v7027
    %v7029 = vpop.f32.mrb[0].mxu0
    %7030 = vdwg.mxu0
    %7031 = vrot.lane.b32.xlu0 %v6456, 64
    %v7032 = vpop.permute.xlu0 %7031
    %7033 = vrot.lane.b32.xlu0 %v6457, 64
    %v7034 = vpop.permute.xlu0 %7033
    %v7036 = vsel %vm808, %v7032, 0
    %v7039 = vsel %vm808, %v7034, 0
    %7041 = vmatprep.subr.bf16.mxu0 0
    %7042 = vmatpush1.bf16.xpose.msra.mxu0 %v7039
    %7043 = vmatprep.subr.bf16.mxu0 0
    %7044 = vmatpush1.bf16.xpose.msra.mxu0 0
    %7045 = vmatprep.subr.bf16.mxu0 0
    %7046 = vmatpush1.bf16.xpose.msra.mxu0 0
    %7047 = vmatprep.subr.bf16.mxu0 0
    %7048 = vmatpush1.bf16.xpose.msra.mxu0 0
    %7049 = vmatprep.subr.bf16.mxu0 0
    %7050 = vmatpush1.bf16.xpose.msra.mxu0 0
    %7051 = vmatprep.subr.bf16.mxu0 0
    %7052 = vmatpush1.bf16.xpose.msra.mxu0 0
    %7053 = vmatprep.subr.bf16.mxu0 0
    %7054 = vmatpush1.bf16.xpose.msra.mxu0 0
    %7055 = vmatprep.subr.bf16.mxu0 0
    %7056 = vmatpush1.bf16.xpose.msra.mxu0 0
    %7057 = vmatprep.subr.bf16.mxu0 0
    %7058 = vmatpush1.bf16.xpose.msra.mxu0 0
    %7059 = vmatprep.subr.bf16.mxu0 0
    %7060 = vmatpush1.bf16.xpose.msra.mxu0 0
    %7061 = vmatprep.subr.bf16.mxu0 0
    %7062 = vmatpush1.bf16.xpose.msra.mxu0 0
    %7063 = vmatprep.subr.bf16.mxu0 0
    %7064 = vmatpush1.bf16.xpose.msra.mxu0 0
    %7065 = vmatprep.subr.bf16.mxu0 0
    %7066 = vmatpush1.bf16.xpose.msra.mxu0 0
    %7067 = vmatprep.subr.bf16.mxu0 0
    %7068 = vmatpush1.bf16.xpose.msra.mxu0 0
    %7069 = vmatprep.subr.bf16.mxu0 0
    %7070 = vmatpush1.bf16.xpose.msra.mxu0 0
    %7071 = vmatprep.subr.bf16.mxu0 0
    %7072 = vmatpush1.bf16.xpose.msra.mxu0 0
    %7073 = vmatprep.mubr.bf16.mxu0 0
    %7074 = vmatmul.mubr.bf16.gmra.mrb[0].mxu0 %v7036
    %v7075 = vpop.f32.mrb[0].mxu0
    %v7076 = vadd.f32 0.0, %v7075
    %v7077 = vpop.f32.mrb[0].mxu0
    %v7078 = vpop.f32.mrb[0].mxu0
    %v7079 = vpop.f32.mrb[0].mxu0
    %7080 = vdwg.mxu0
    %7081 = vrot.lane.b32.xlu0 %v6459, 64
    %v7082 = vpop.permute.xlu0 %7081
    %7083 = vrot.lane.b32.xlu0 %v6460, 64
    %v7084 = vpop.permute.xlu0 %7083
    %v7086 = vsel %vm808, %v7082, 0
    %v7089 = vsel %vm808, %v7084, 0
    %7091 = vmatprep.subr.bf16.mxu0 0
    %7092 = vmatpush1.bf16.xpose.msra.mxu0 %v7089
    %7093 = vmatprep.subr.bf16.mxu0 0
    %7094 = vmatpush1.bf16.xpose.msra.mxu0 0
    %7095 = vmatprep.subr.bf16.mxu0 0
    %7096 = vmatpush1.bf16.xpose.msra.mxu0 0
    %7097 = vmatprep.subr.bf16.mxu0 0
    %7098 = vmatpush1.bf16.xpose.msra.mxu0 0
    %7099 = vmatprep.subr.bf16.mxu0 0
    %7100 = vmatpush1.bf16.xpose.msra.mxu0 0
    %7101 = vmatprep.subr.bf16.mxu0 0
    %7102 = vmatpush1.bf16.xpose.msra.mxu0 0
    %7103 = vmatprep.subr.bf16.mxu0 0
    %7104 = vmatpush1.bf16.xpose.msra.mxu0 0
    %7105 = vmatprep.subr.bf16.mxu0 0
    %7106 = vmatpush1.bf16.xpose.msra.mxu0 0
    %7107 = vmatprep.subr.bf16.mxu0 0
    %7108 = vmatpush1.bf16.xpose.msra.mxu0 0
    %7109 = vmatprep.subr.bf16.mxu0 0
    %7110 = vmatpush1.bf16.xpose.msra.mxu0 0
    %7111 = vmatprep.subr.bf16.mxu0 0
    %7112 = vmatpush1.bf16.xpose.msra.mxu0 0
    %7113 = vmatprep.subr.bf16.mxu0 0
    %7114 = vmatpush1.bf16.xpose.msra.mxu0 0
    %7115 = vmatprep.subr.bf16.mxu0 0
    %7116 = vmatpush1.bf16.xpose.msra.mxu0 0
    %7117 = vmatprep.subr.bf16.mxu0 0
    %7118 = vmatpush1.bf16.xpose.msra.mxu0 0
    %7119 = vmatprep.subr.bf16.mxu0 0
    %7120 = vmatpush1.bf16.xpose.msra.mxu0 0
    %7121 = vmatprep.subr.bf16.mxu0 0
    %7122 = vmatpush1.bf16.xpose.msra.mxu0 0
    %7123 = vmatprep.mubr.bf16.mxu0 0
    %7124 = vmatmul.mubr.bf16.gmra.mrb[0].mxu0 %v7086
    %v7125 = vpop.f32.mrb[0].mxu0
    %v7126 = vadd.f32 0.0, %v7125
    %v7127 = vpop.f32.mrb[0].mxu0
    %v7128 = vpop.f32.mrb[0].mxu0
    %v7129 = vpop.f32.mrb[0].mxu0
    %7130 = vdwg.mxu0
    %v7131 = vmul.f32 %v7076, 0.17677669
    %v7132 = vmul.f32 %v7126, 0.17677669
    %v7133 = vsel %vm903, %v7131, -inf
    %7134 = vmax.xlane.f32.xlu0 %v7133
    %v7135 = vpop.xlane.xlu0 %7134
    %v7136 = vsel %vm903, %v7132, -inf
    %7137 = vmax.xlane.f32.xlu0 %v7136
    %v7138 = vpop.xlane.xlu0 %7137
    %v7139 = vsub.f32 %v7131, %v7135
    %v7140 = vsub.f32 %v7132, %v7138
    %v7141 = vmul.f32 %v7139, 1.442695
    %v7142 = vpow.pop %v7141
    %v7143 = vmul.f32 %v7140, 1.442695
    %v7144 = vpow.pop %v7143
    %v7145 = vsel %vm903, %v7142, 0.0
    %7146 = vadd.xlane.f32.xlu0 %v7145
    %v7147 = vpop.xlane.xlu0 %7146
    %v7148 = vsel %vm903, %v7144, 0.0
    %7149 = vadd.xlane.f32.xlu0 %v7148
    %v7150 = vpop.xlane.xlu0 %7149
    %v7151 = vrcp.pop %v7147
    %v7152 = vrcp.pop %v7150
    %v7153 = vmul.f32 %v7142, %v7151
    %v7154 = vmul.f32 %v7144, %v7152
    %v7155 = vpack.c.bf16 %v7153, %v7153
    %v7156 = vpack.c.bf16 %v7154, %v7154
    %7157 = vrot.lane.b32.xlu0 %v6458, 64
    %v7158 = vpop.permute.xlu0 %7157
    %v7160 = vsel %vm903, %v7155, 0
    %v7163 = vsel %vm931, %v7158, 0
    %7165 = vmatprep.subr.bf16.mxu0 0
    %7166 = vmatpush1.bf16.msra.mxu0 %v7163
    %7167 = vmatprep.subr.bf16.mxu0 0
    %7168 = vmatpush1.bf16.msra.mxu0 0
    %7169 = vmatprep.subr.bf16.mxu0 0
    %7170 = vmatpush1.bf16.msra.mxu0 0
    %7171 = vmatprep.subr.bf16.mxu0 0
    %7172 = vmatpush1.bf16.msra.mxu0 0
    %7173 = vmatprep.subr.bf16.mxu0 0
    %7174 = vmatpush1.bf16.msra.mxu0 0
    %7175 = vmatprep.subr.bf16.mxu0 0
    %7176 = vmatpush1.bf16.msra.mxu0 0
    %7177 = vmatprep.subr.bf16.mxu0 0
    %7178 = vmatpush1.bf16.msra.mxu0 0
    %7179 = vmatprep.subr.bf16.mxu0 0
    %7180 = vmatpush1.bf16.msra.mxu0 0
    %7181 = vmatprep.subr.bf16.mxu0 0
    %7182 = vmatpush1.bf16.msra.mxu0 0
    %7183 = vmatprep.subr.bf16.mxu0 0
    %7184 = vmatpush1.bf16.msra.mxu0 0
    %7185 = vmatprep.subr.bf16.mxu0 0
    %7186 = vmatpush1.bf16.msra.mxu0 0
    %7187 = vmatprep.subr.bf16.mxu0 0
    %7188 = vmatpush1.bf16.msra.mxu0 0
    %7189 = vmatprep.subr.bf16.mxu0 0
    %7190 = vmatpush1.bf16.msra.mxu0 0
    %7191 = vmatprep.subr.bf16.mxu0 0
    %7192 = vmatpush1.bf16.msra.mxu0 0
    %7193 = vmatprep.subr.bf16.mxu0 0
    %7194 = vmatpush1.bf16.msra.mxu0 0
    %7195 = vmatprep.subr.bf16.mxu0 0
    %7196 = vmatpush1.bf16.msra.mxu0 0
    %7197 = vmatprep.mubr.bf16.mxu0 0
    %7198 = vmatmul.mubr.bf16.gmra.mrb[0].mxu0 %v7160
    %v7199 = vpop.f32.mrb[0].mxu0
    %v7200 = vadd.f32 0.0, %v7199
    %v7201 = vpop.f32.mrb[0].mxu0
    %v7202 = vpop.f32.mrb[0].mxu0
    %v7203 = vpop.f32.mrb[0].mxu0
    %7204 = vdwg.mxu0
    %7205 = vrot.lane.b32.xlu0 %v6461, 64
    %v7206 = vpop.permute.xlu0 %7205
    %v7208 = vsel %vm903, %v7156, 0
    %v7211 = vsel %vm931, %v7206, 0
    %7213 = vmatprep.subr.bf16.mxu0 0
    %7214 = vmatpush1.bf16.msra.mxu0 %v7211
    %7215 = vmatprep.subr.bf16.mxu0 0
    %7216 = vmatpush1.bf16.msra.mxu0 0
    %7217 = vmatprep.subr.bf16.mxu0 0
    %7218 = vmatpush1.bf16.msra.mxu0 0
    %7219 = vmatprep.subr.bf16.mxu0 0
    %7220 = vmatpush1.bf16.msra.mxu0 0
    %7221 = vmatprep.subr.bf16.mxu0 0
    %7222 = vmatpush1.bf16.msra.mxu0 0
    %7223 = vmatprep.subr.bf16.mxu0 0
    %7224 = vmatpush1.bf16.msra.mxu0 0
    %7225 = vmatprep.subr.bf16.mxu0 0
    %7226 = vmatpush1.bf16.msra.mxu0 0
    %7227 = vmatprep.subr.bf16.mxu0 0
    %7228 = vmatpush1.bf16.msra.mxu0 0
    %7229 = vmatprep.subr.bf16.mxu0 0
    %7230 = vmatpush1.bf16.msra.mxu0 0
    %7231 = vmatprep.subr.bf16.mxu0 0
    %7232 = vmatpush1.bf16.msra.mxu0 0
    %7233 = vmatprep.subr.bf16.mxu0 0
    %7234 = vmatpush1.bf16.msra.mxu0 0
    %7235 = vmatprep.subr.bf16.mxu0 0
    %7236 = vmatpush1.bf16.msra.mxu0 0
    %7237 = vmatprep.subr.bf16.mxu0 0
    %7238 = vmatpush1.bf16.msra.mxu0 0
    %7239 = vmatprep.subr.bf16.mxu0 0
    %7240 = vmatpush1.bf16.msra.mxu0 0
    %7241 = vmatprep.subr.bf16.mxu0 0
    %7242 = vmatpush1.bf16.msra.mxu0 0
    %7243 = vmatprep.subr.bf16.mxu0 0
    %7244 = vmatpush1.bf16.msra.mxu0 0
    %7245 = vmatprep.mubr.bf16.mxu0 0
    %7246 = vmatmul.mubr.bf16.gmra.mrb[0].mxu0 %v7208
    %v7247 = vpop.f32.mrb[0].mxu0
    %v7248 = vadd.f32 0.0, %v7247
    %v7249 = vpop.f32.mrb[0].mxu0
    %v7250 = vpop.f32.mrb[0].mxu0
    %v7251 = vpop.f32.mrb[0].mxu0
    %7252 = vdwg.mxu0
    %v7253 = vpack.c.bf16 %v7248, %v7200
    %v7258 = vunpack.c.l.b16 %v6471
    %v7259 = vunpack.c.l.b16 %v6472
    %v7260 = vunpack.c.l.b16 %v6473
    %v7261 = vunpack.c.l.b16 %v6474
    %v7262 = vpack.c.b16 %v7259, %v7258
    %v7263 = vpack.c.b16 %v7261, %v7260
    %v7267 = vsel %vm808, %v7253, 0
    %7269 = vmatprep.subr.bf16.mxu0 0
    %7270 = vmatpush1.bf16.msra.mxu0 %v7262
    %7271 = vmatprep.subr.bf16.mxu0 0
    %7272 = vmatpush1.bf16.msra.mxu0 %v7263
    %7273 = vmatprep.subr.bf16.mxu0 0
    %7274 = vmatpush1.bf16.msra.mxu0 0
    %7275 = vmatprep.subr.bf16.mxu0 0
    %7276 = vmatpush1.bf16.msra.mxu0 0
    %7277 = vmatprep.subr.bf16.mxu0 0
    %7278 = vmatpush1.bf16.msra.mxu0 0
    %7279 = vmatprep.subr.bf16.mxu0 0
    %7280 = vmatpush1.bf16.msra.mxu0 0
    %7281 = vmatprep.subr.bf16.mxu0 0
    %7282 = vmatpush1.bf16.msra.mxu0 0
    %7283 = vmatprep.subr.bf16.mxu0 0
    %7284 = vmatpush1.bf16.msra.mxu0 0
    %7285 = vmatprep.subr.bf16.mxu0 0
    %7286 = vmatpush1.bf16.msra.mxu0 0
    %7287 = vmatprep.subr.bf16.mxu0 0
    %7288 = vmatpush1.bf16.msra.mxu0 0
    %7289 = vmatprep.subr.bf16.mxu0 0
    %7290 = vmatpush1.bf16.msra.mxu0 0
    %7291 = vmatprep.subr.bf16.mxu0 0
    %7292 = vmatpush1.bf16.msra.mxu0 0
    %7293 = vmatprep.subr.bf16.mxu0 0
    %7294 = vmatpush1.bf16.msra.mxu0 0
    %7295 = vmatprep.subr.bf16.mxu0 0
    %7296 = vmatpush1.bf16.msra.mxu0 0
    %7297 = vmatprep.subr.bf16.mxu0 0
    %7298 = vmatpush1.bf16.msra.mxu0 0
    %7299 = vmatprep.subr.bf16.mxu0 0
    %7300 = vmatpush1.bf16.msra.mxu0 0
    %7301 = vmatprep.mubr.bf16.mxu0 0
    %7302 = vmatmul.mubr.bf16.gmra.mrb[0].mxu0 %v7267
    %v7303 = vpop.f32.mrb[0].mxu0
    %v7304 = vadd.f32 0.0, %v7303
    %v7305 = vpop.f32.mrb[0].mxu0
    %v7306 = vpop.f32.mrb[0].mxu0
    %v7307 = vadd.f32 0.0, %v7306
    %v7308 = vpop.f32.mrb[0].mxu0
    %7309 = vdwg.mxu0
    %v7310 = vadd.f32 %v7025, %v7304
    %v7311 = vadd.f32 %v7028, %v7307
    %7312 = vrot.lane.b32.xlu0 %v6456, 32
    %v7313 = vpop.permute.xlu0 %7312
    %7314 = vrot.lane.b32.xlu0 %v6457, 32
    %v7315 = vpop.permute.xlu0 %7314
    %v7317 = vsel %vm808, %v7313, 0
    %v7320 = vsel %vm808, %v7315, 0
    %7322 = vmatprep.subr.bf16.mxu0 0
    %7323 = vmatpush1.bf16.xpose.msra.mxu0 %v7320
    %7324 = vmatprep.subr.bf16.mxu0 0
    %7325 = vmatpush1.bf16.xpose.msra.mxu0 0
    %7326 = vmatprep.subr.bf16.mxu0 0
    %7327 = vmatpush1.bf16.xpose.msra.mxu0 0
    %7328 = vmatprep.subr.bf16.mxu0 0
    %7329 = vmatpush1.bf16.xpose.msra.mxu0 0
    %7330 = vmatprep.subr.bf16.mxu0 0
    %7331 = vmatpush1.bf16.xpose.msra.mxu0 0
    %7332 = vmatprep.subr.bf16.mxu0 0
    %7333 = vmatpush1.bf16.xpose.msra.mxu0 0
    %7334 = vmatprep.subr.bf16.mxu0 0
    %7335 = vmatpush1.bf16.xpose.msra.mxu0 0
    %7336 = vmatprep.subr.bf16.mxu0 0
    %7337 = vmatpush1.bf16.xpose.msra.mxu0 0
    %7338 = vmatprep.subr.bf16.mxu0 0
    %7339 = vmatpush1.bf16.xpose.msra.mxu0 0
    %7340 = vmatprep.subr.bf16.mxu0 0
    %7341 = vmatpush1.bf16.xpose.msra.mxu0 0
    %7342 = vmatprep.subr.bf16.mxu0 0
    %7343 = vmatpush1.bf16.xpose.msra.mxu0 0
    %7344 = vmatprep.subr.bf16.mxu0 0
    %7345 = vmatpush1.bf16.xpose.msra.mxu0 0
    %7346 = vmatprep.subr.bf16.mxu0 0
    %7347 = vmatpush1.bf16.xpose.msra.mxu0 0
    %7348 = vmatprep.subr.bf16.mxu0 0
    %7349 = vmatpush1.bf16.xpose.msra.mxu0 0
    %7350 = vmatprep.subr.bf16.mxu0 0
    %7351 = vmatpush1.bf16.xpose.msra.mxu0 0
    %7352 = vmatprep.subr.bf16.mxu0 0
    %7353 = vmatpush1.bf16.xpose.msra.mxu0 0
    %7354 = vmatprep.mubr.bf16.mxu0 0
    %7355 = vmatmul.mubr.bf16.gmra.mrb[0].mxu0 %v7317
    %v7356 = vpop.f32.mrb[0].mxu0
    %v7357 = vadd.f32 0.0, %v7356
    %v7358 = vpop.f32.mrb[0].mxu0
    %v7359 = vpop.f32.mrb[0].mxu0
    %v7360 = vpop.f32.mrb[0].mxu0
    %7361 = vdwg.mxu0
    %7362 = vrot.lane.b32.xlu0 %v6459, 32
    %v7363 = vpop.permute.xlu0 %7362
    %7364 = vrot.lane.b32.xlu0 %v6460, 32
    %v7365 = vpop.permute.xlu0 %7364
    %v7367 = vsel %vm808, %v7363, 0
    %v7370 = vsel %vm808, %v7365, 0
    %7372 = vmatprep.subr.bf16.mxu0 0
    %7373 = vmatpush1.bf16.xpose.msra.mxu0 %v7370
    %7374 = vmatprep.subr.bf16.mxu0 0
    %7375 = vmatpush1.bf16.xpose.msra.mxu0 0
    %7376 = vmatprep.subr.bf16.mxu0 0
    %7377 = vmatpush1.bf16.xpose.msra.mxu0 0
    %7378 = vmatprep.subr.bf16.mxu0 0
    %7379 = vmatpush1.bf16.xpose.msra.mxu0 0
    %7380 = vmatprep.subr.bf16.mxu0 0
    %7381 = vmatpush1.bf16.xpose.msra.mxu0 0
    %7382 = vmatprep.subr.bf16.mxu0 0
    %7383 = vmatpush1.bf16.xpose.msra.mxu0 0
    %7384 = vmatprep.subr.bf16.mxu0 0
    %7385 = vmatpush1.bf16.xpose.msra.mxu0 0
    %7386 = vmatprep.subr.bf16.mxu0 0
    %7387 = vmatpush1.bf16.xpose.msra.mxu0 0
    %7388 = vmatprep.subr.bf16.mxu0 0
    %7389 = vmatpush1.bf16.xpose.msra.mxu0 0
    %7390 = vmatprep.subr.bf16.mxu0 0
    %7391 = vmatpush1.bf16.xpose.msra.mxu0 0
    %7392 = vmatprep.subr.bf16.mxu0 0
    %7393 = vmatpush1.bf16.xpose.msra.mxu0 0
    %7394 = vmatprep.subr.bf16.mxu0 0
    %7395 = vmatpush1.bf16.xpose.msra.mxu0 0
    %7396 = vmatprep.subr.bf16.mxu0 0
    %7397 = vmatpush1.bf16.xpose.msra.mxu0 0
    %7398 = vmatprep.subr.bf16.mxu0 0
    %7399 = vmatpush1.bf16.xpose.msra.mxu0 0
    %7400 = vmatprep.subr.bf16.mxu0 0
    %7401 = vmatpush1.bf16.xpose.msra.mxu0 0
    %7402 = vmatprep.subr.bf16.mxu0 0
    %7403 = vmatpush1.bf16.xpose.msra.mxu0 0
    %7404 = vmatprep.mubr.bf16.mxu0 0
    %7405 = vmatmul.mubr.bf16.gmra.mrb[0].mxu0 %v7367
    %v7406 = vpop.f32.mrb[0].mxu0
    %v7407 = vadd.f32 0.0, %v7406
    %v7408 = vpop.f32.mrb[0].mxu0
    %v7409 = vpop.f32.mrb[0].mxu0
    %v7410 = vpop.f32.mrb[0].mxu0
    %7411 = vdwg.mxu0
    %v7412 = vmul.f32 %v7357, 0.17677669
    %v7413 = vmul.f32 %v7407, 0.17677669
    %v7414 = vsel %vm903, %v7412, -inf
    %7415 = vmax.xlane.f32.xlu0 %v7414
    %v7416 = vpop.xlane.xlu0 %7415
    %v7417 = vsel %vm903, %v7413, -inf
    %7418 = vmax.xlane.f32.xlu0 %v7417
    %v7419 = vpop.xlane.xlu0 %7418
    %v7420 = vsub.f32 %v7412, %v7416
    %v7421 = vsub.f32 %v7413, %v7419
    %v7422 = vmul.f32 %v7420, 1.442695
    %v7423 = vpow.pop %v7422
    %v7424 = vmul.f32 %v7421, 1.442695
    %v7425 = vpow.pop %v7424
    %v7426 = vsel %vm903, %v7423, 0.0
    %7427 = vadd.xlane.f32.xlu0 %v7426
    %v7428 = vpop.xlane.xlu0 %7427
    %v7429 = vsel %vm903, %v7425, 0.0
    %7430 = vadd.xlane.f32.xlu0 %v7429
    %v7431 = vpop.xlane.xlu0 %7430
    %v7432 = vrcp.pop %v7428
    %v7433 = vrcp.pop %v7431
    %v7434 = vmul.f32 %v7423, %v7432
    %v7435 = vmul.f32 %v7425, %v7433
    %v7436 = vpack.c.bf16 %v7434, %v7434
    %v7437 = vpack.c.bf16 %v7435, %v7435
    %7438 = vrot.lane.b32.xlu0 %v6458, 32
    %v7439 = vpop.permute.xlu0 %7438
    %v7441 = vsel %vm903, %v7436, 0
    %v7444 = vsel %vm931, %v7439, 0
    %7446 = vmatprep.subr.bf16.mxu0 0
    %7447 = vmatpush1.bf16.msra.mxu0 %v7444
    %7448 = vmatprep.subr.bf16.mxu0 0
    %7449 = vmatpush1.bf16.msra.mxu0 0
    %7450 = vmatprep.subr.bf16.mxu0 0
    %7451 = vmatpush1.bf16.msra.mxu0 0
    %7452 = vmatprep.subr.bf16.mxu0 0
    %7453 = vmatpush1.bf16.msra.mxu0 0
    %7454 = vmatprep.subr.bf16.mxu0 0
    %7455 = vmatpush1.bf16.msra.mxu0 0
    %7456 = vmatprep.subr.bf16.mxu0 0
    %7457 = vmatpush1.bf16.msra.mxu0 0
    %7458 = vmatprep.subr.bf16.mxu0 0
    %7459 = vmatpush1.bf16.msra.mxu0 0
    %7460 = vmatprep.subr.bf16.mxu0 0
    %7461 = vmatpush1.bf16.msra.mxu0 0
    %7462 = vmatprep.subr.bf16.mxu0 0
    %7463 = vmatpush1.bf16.msra.mxu0 0
    %7464 = vmatprep.subr.bf16.mxu0 0
    %7465 = vmatpush1.bf16.msra.mxu0 0
    %7466 = vmatprep.subr.bf16.mxu0 0
    %7467 = vmatpush1.bf16.msra.mxu0 0
    %7468 = vmatprep.subr.bf16.mxu0 0
    %7469 = vmatpush1.bf16.msra.mxu0 0
    %7470 = vmatprep.subr.bf16.mxu0 0
    %7471 = vmatpush1.bf16.msra.mxu0 0
    %7472 = vmatprep.subr.bf16.mxu0 0
    %7473 = vmatpush1.bf16.msra.mxu0 0
    %7474 = vmatprep.subr.bf16.mxu0 0
    %7475 = vmatpush1.bf16.msra.mxu0 0
    %7476 = vmatprep.subr.bf16.mxu0 0
    %7477 = vmatpush1.bf16.msra.mxu0 0
    %7478 = vmatprep.mubr.bf16.mxu0 0
    %7479 = vmatmul.mubr.bf16.gmra.mrb[0].mxu0 %v7441
    %v7480 = vpop.f32.mrb[0].mxu0
    %v7481 = vadd.f32 0.0, %v7480
    %v7482 = vpop.f32.mrb[0].mxu0
    %v7483 = vpop.f32.mrb[0].mxu0
    %v7484 = vpop.f32.mrb[0].mxu0
    %7485 = vdwg.mxu0
    %7486 = vrot.lane.b32.xlu0 %v6461, 32
    %v7487 = vpop.permute.xlu0 %7486
    %v7489 = vsel %vm903, %v7437, 0
    %v7492 = vsel %vm931, %v7487, 0
    %7494 = vmatprep.subr.bf16.mxu0 0
    %7495 = vmatpush1.bf16.msra.mxu0 %v7492
    %7496 = vmatprep.subr.bf16.mxu0 0
    %7497 = vmatpush1.bf16.msra.mxu0 0
    %7498 = vmatprep.subr.bf16.mxu0 0
    %7499 = vmatpush1.bf16.msra.mxu0 0
    %7500 = vmatprep.subr.bf16.mxu0 0
    %7501 = vmatpush1.bf16.msra.mxu0 0
    %7502 = vmatprep.subr.bf16.mxu0 0
    %7503 = vmatpush1.bf16.msra.mxu0 0
    %7504 = vmatprep.subr.bf16.mxu0 0
    %7505 = vmatpush1.bf16.msra.mxu0 0
    %7506 = vmatprep.subr.bf16.mxu0 0
    %7507 = vmatpush1.bf16.msra.mxu0 0
    %7508 = vmatprep.subr.bf16.mxu0 0
    %7509 = vmatpush1.bf16.msra.mxu0 0
    %7510 = vmatprep.subr.bf16.mxu0 0
    %7511 = vmatpush1.bf16.msra.mxu0 0
    %7512 = vmatprep.subr.bf16.mxu0 0
    %7513 = vmatpush1.bf16.msra.mxu0 0
    %7514 = vmatprep.subr.bf16.mxu0 0
    %7515 = vmatpush1.bf16.msra.mxu0 0
    %7516 = vmatprep.subr.bf16.mxu0 0
    %7517 = vmatpush1.bf16.msra.mxu0 0
    %7518 = vmatprep.subr.bf16.mxu0 0
    %7519 = vmatpush1.bf16.msra.mxu0 0
    %7520 = vmatprep.subr.bf16.mxu0 0
    %7521 = vmatpush1.bf16.msra.mxu0 0
    %7522 = vmatprep.subr.bf16.mxu0 0
    %7523 = vmatpush1.bf16.msra.mxu0 0
    %7524 = vmatprep.subr.bf16.mxu0 0
    %7525 = vmatpush1.bf16.msra.mxu0 0
    %7526 = vmatprep.mubr.bf16.mxu0 0
    %7527 = vmatmul.mubr.bf16.gmra.mrb[0].mxu0 %v7489
    %v7528 = vpop.f32.mrb[0].mxu0
    %v7529 = vadd.f32 0.0, %v7528
    %v7530 = vpop.f32.mrb[0].mxu0
    %v7531 = vpop.f32.mrb[0].mxu0
    %v7532 = vpop.f32.mrb[0].mxu0
    %7533 = vdwg.mxu0
    %v7534 = vpack.c.bf16 %v7529, %v7481
    %v7539 = vunpack.c.l.b16 %v6475
    %v7540 = vunpack.c.l.b16 %v6476
    %v7541 = vunpack.c.l.b16 %v6477
    %v7542 = vunpack.c.l.b16 %v6478
    %v7543 = vpack.c.b16 %v7540, %v7539
    %v7544 = vpack.c.b16 %v7542, %v7541
    %v7548 = vsel %vm808, %v7534, 0
    %7550 = vmatprep.subr.bf16.mxu0 0
    %7551 = vmatpush1.bf16.msra.mxu0 %v7543
    %7552 = vmatprep.subr.bf16.mxu0 0
    %7553 = vmatpush1.bf16.msra.mxu0 %v7544
    %7554 = vmatprep.subr.bf16.mxu0 0
    %7555 = vmatpush1.bf16.msra.mxu0 0
    %7556 = vmatprep.subr.bf16.mxu0 0
    %7557 = vmatpush1.bf16.msra.mxu0 0
    %7558 = vmatprep.subr.bf16.mxu0 0
    %7559 = vmatpush1.bf16.msra.mxu0 0
    %7560 = vmatprep.subr.bf16.mxu0 0
    %7561 = vmatpush1.bf16.msra.mxu0 0
    %7562 = vmatprep.subr.bf16.mxu0 0
    %7563 = vmatpush1.bf16.msra.mxu0 0
    %7564 = vmatprep.subr.bf16.mxu0 0
    %7565 = vmatpush1.bf16.msra.mxu0 0
    %7566 = vmatprep.subr.bf16.mxu0 0
    %7567 = vmatpush1.bf16.msra.mxu0 0
    %7568 = vmatprep.subr.bf16.mxu0 0
    %7569 = vmatpush1.bf16.msra.mxu0 0
    %7570 = vmatprep.subr.bf16.mxu0 0
    %7571 = vmatpush1.bf16.msra.mxu0 0
    %7572 = vmatprep.subr.bf16.mxu0 0
    %7573 = vmatpush1.bf16.msra.mxu0 0
    %7574 = vmatprep.subr.bf16.mxu0 0
    %7575 = vmatpush1.bf16.msra.mxu0 0
    %7576 = vmatprep.subr.bf16.mxu0 0
    %7577 = vmatpush1.bf16.msra.mxu0 0
    %7578 = vmatprep.subr.bf16.mxu0 0
    %7579 = vmatpush1.bf16.msra.mxu0 0
    %7580 = vmatprep.subr.bf16.mxu0 0
    %7581 = vmatpush1.bf16.msra.mxu0 0
    %7582 = vmatprep.mubr.bf16.mxu0 0
    %7583 = vmatmul.mubr.bf16.gmra.mrb[0].mxu0 %v7548
    %v7584 = vpop.f32.mrb[0].mxu0
    %v7585 = vadd.f32 0.0, %v7584
    %v7586 = vpop.f32.mrb[0].mxu0
    %v7587 = vpop.f32.mrb[0].mxu0
    %v7588 = vadd.f32 0.0, %v7587
    %v7589 = vpop.f32.mrb[0].mxu0
    %7590 = vdwg.mxu0
    %v7591 = vadd.f32 %v7310, %v7585
    %v7592 = vadd.f32 %v7311, %v7588
    %s7593 = scalar_lea.vmem [#allocation8], 2
    %v7594 = vld [vmem:[%s7593] sm:$0x1]
    %v7596 = vlaneseq
    %v7597 = vshrl.u32 %v7596, 7
    %v7598 = vsub.s32 0, %v7597
    %v7599 = vrot.slane %v7594, %v7598
    %v7601 = vadd.f32 %v7591, %v7599
    %v7602 = vadd.f32 %v7592, %v7599
    %v7603 = vadd.f32 %v6186, %v7601
    %v7604 = vadd.f32 %v6189, %v7602
    %s7605 = scalar_lea.vmem [#allocation9], 2
    %v7606 = vld [vmem:[%s7605] sm:$0x1]
    %s7607 = scalar_lea.vmem [#allocation11], 2
    %v7608 = vld [vmem:[%s7607] sm:$0x1]
    %7609 = vadd.xlane.f32.xlu0 %v7603
    %v7610 = vpop.xlane.xlu0 %7609
    %7611 = vadd.xlane.f32.xlu0 %v7604
    %v7612 = vpop.xlane.xlu0 %7611
    %v7613 = vmul.f32 %v7610, %v1942
    %v7614 = vmul.f32 %v7612, %v1942
    %v7615 = vsub.f32 %v7603, %v7613
    %v7616 = vsub.f32 %v7604, %v7614
    %v7617 = vmul.f32 %v7615, %v7615
    %v7618 = vmul.f32 %v7616, %v7616
    %7619 = vadd.xlane.f32.xlu0 %v7617
    %v7620 = vpop.xlane.xlu0 %7619
    %7621 = vadd.xlane.f32.xlu0 %v7618
    %v7622 = vpop.xlane.xlu0 %7621
    %v7623 = vmul.f32 %v7620, %v1942
    %v7624 = vmul.f32 %v7622, %v1942
    %v7625 = vadd.f32 %v7623, 1e-05
    %v7626 = vadd.f32 %v7624, 1e-05
    %v7627 = vrsqrt.pop %v7625
    %v7628 = vrsqrt.pop %v7626
    %v7629 = vmul.f32 %v7615, %v7627
    %v7630 = vmul.f32 %v7616, %v7628
    %v7632 = vlaneseq
    %v7633 = vshrl.u32 %v7632, 7
    %v7634 = vsub.s32 0, %v7633
    %v7635 = vrot.slane %v7606, %v7634
    %v7637 = vmul.f32 %v7629, %v7635
    %v7638 = vmul.f32 %v7630, %v7635
    %v7640 = vlaneseq
    %v7641 = vshrl.u32 %v7640, 7
    %v7642 = vsub.s32 0, %v7641
    %v7643 = vrot.slane %v7608, %v7642
    %v7645 = vadd.f32 %v7637, %v7643
    %v7646 = vadd.f32 %v7638, %v7643
    %v7647 = vpack.c.bf16 %v7646, %v7645
    %s7648 = scalar_lea.vmem %s27, 512
    %v7649 = vld [vmem:[%s7648] sm:$0xff]
    %v7650 = vld [vmem:[%s7648 + $0x8] sm:$0xff]
    %v7651 = vld [vmem:[%s7648 + $0x10] sm:$0xff]
    %v7652 = vld [vmem:[%s7648 + $0x18] sm:$0xff]
    %v7653 = vld [vmem:[%s7648 + $0x20] sm:$0xff]
    %v7654 = vld [vmem:[%s7648 + $0x28] sm:$0xff]
    %v7655 = vld [vmem:[%s7648 + $0x30] sm:$0xff]
    %v7656 = vld [vmem:[%s7648 + $0x38] sm:$0xff]
    %v7657 = vld [vmem:[%s7648 + $0x40] sm:$0xff]
    %v7658 = vld [vmem:[%s7648 + $0x48] sm:$0xff]
    %v7659 = vld [vmem:[%s7648 + $0x50] sm:$0xff]
    %v7660 = vld [vmem:[%s7648 + $0x58] sm:$0xff]
    %v7661 = vld [vmem:[%s7648 + $0x60] sm:$0xff]
    %v7662 = vld [vmem:[%s7648 + $0x68] sm:$0xff]
    %v7663 = vld [vmem:[%s7648 + $0x70] sm:$0xff]
    %v7664 = vld [vmem:[%s7648 + $0x78] sm:$0xff]
    %v7665 = vld [vmem:[%s7648 + $0x80] sm:$0xff]
    %v7666 = vld [vmem:[%s7648 + $0x88] sm:$0xff]
    %v7667 = vld [vmem:[%s7648 + $0x90] sm:$0xff]
    %v7668 = vld [vmem:[%s7648 + $0x98] sm:$0xff]
    %v7669 = vld [vmem:[%s7648 + $0xa0] sm:$0xff]
    %v7670 = vld [vmem:[%s7648 + $0xa8] sm:$0xff]
    %v7671 = vld [vmem:[%s7648 + $0xb0] sm:$0xff]
    %v7672 = vld [vmem:[%s7648 + $0xb8] sm:$0xff]
    %v7673 = vld [vmem:[%s7648 + $0xc0] sm:$0xff]
    %v7674 = vld [vmem:[%s7648 + $0xc8] sm:$0xff]
    %v7675 = vld [vmem:[%s7648 + $0xd0] sm:$0xff]
    %v7676 = vld [vmem:[%s7648 + $0xd8] sm:$0xff]
    %v7677 = vld [vmem:[%s7648 + $0xe0] sm:$0xff]
    %v7678 = vld [vmem:[%s7648 + $0xe8] sm:$0xff]
    %v7679 = vld [vmem:[%s7648 + $0xf0] sm:$0xff]
    %v7680 = vld [vmem:[%s7648 + $0xf8] sm:$0xff]
    %s7681 = scalar_lea.vmem [#allocation12], 8
    %v7682 = vld [vmem:[%s7681] sm:$0xf]
    %v7684 = vlaneseq
    %v7685 = vshrl.u32 %v7684, 7
    %v7686 = vsub.s32 0, %v7685
    %v7687 = vrot.slane %v7682, %v7686
    %v7688 = vlaneseq
    %v7689 = vshrl.u32 %v7688, 7
    %v7690 = vsub.s32 1, %v7689
    %v7691 = vrot.slane %v7682, %v7690
    %v7692 = vlaneseq
    %v7693 = vshrl.u32 %v7692, 7
    %v7694 = vsub.s32 2, %v7693
    %v7695 = vrot.slane %v7682, %v7694
    %v7696 = vlaneseq
    %v7697 = vshrl.u32 %v7696, 7
    %v7698 = vsub.s32 3, %v7697
    %v7699 = vrot.slane %v7682, %v7698
    %v7736 = vunpack.c.l.b16 %v7649
    %v7737 = vunpack.c.h.b16 %v7649
    %v7738 = vunpack.c.l.b16 %v7650
    %v7739 = vunpack.c.h.b16 %v7650
    %v7740 = vunpack.c.l.b16 %v7651
    %v7741 = vunpack.c.h.b16 %v7651
    %v7742 = vunpack.c.l.b16 %v7652
    %v7743 = vunpack.c.h.b16 %v7652
    %v7744 = vunpack.c.l.b16 %v7653
    %v7745 = vunpack.c.h.b16 %v7653
    %v7746 = vunpack.c.l.b16 %v7654
    %v7747 = vunpack.c.h.b16 %v7654
    %v7748 = vunpack.c.l.b16 %v7655
    %v7749 = vunpack.c.h.b16 %v7655
    %v7750 = vunpack.c.l.b16 %v7656
    %v7751 = vunpack.c.h.b16 %v7656
    %v7752 = vunpack.c.l.b16 %v7657
    %v7753 = vunpack.c.h.b16 %v7657
    %v7754 = vunpack.c.l.b16 %v7658
    %v7755 = vunpack.c.h.b16 %v7658
    %v7756 = vunpack.c.l.b16 %v7659
    %v7757 = vunpack.c.h.b16 %v7659
    %v7758 = vunpack.c.l.b16 %v7660
    %v7759 = vunpack.c.h.b16 %v7660
    %v7760 = vunpack.c.l.b16 %v7661
    %v7761 = vunpack.c.h.b16 %v7661
    %v7762 = vunpack.c.l.b16 %v7662
    %v7763 = vunpack.c.h.b16 %v7662
    %v7764 = vunpack.c.l.b16 %v7663
    %v7765 = vunpack.c.h.b16 %v7663
    %v7766 = vunpack.c.l.b16 %v7664
    %v7767 = vunpack.c.h.b16 %v7664
    %v7768 = vunpack.c.l.b16 %v7665
    %v7769 = vunpack.c.h.b16 %v7665
    %v7770 = vunpack.c.l.b16 %v7666
    %v7771 = vunpack.c.h.b16 %v7666
    %v7772 = vunpack.c.l.b16 %v7667
    %v7773 = vunpack.c.h.b16 %v7667
    %v7774 = vunpack.c.l.b16 %v7668
    %v7775 = vunpack.c.h.b16 %v7668
    %v7776 = vunpack.c.l.b16 %v7669
    %v7777 = vunpack.c.h.b16 %v7669
    %v7778 = vunpack.c.l.b16 %v7670
    %v7779 = vunpack.c.h.b16 %v7670
    %v7780 = vunpack.c.l.b16 %v7671
    %v7781 = vunpack.c.h.b16 %v7671
    %v7782 = vunpack.c.l.b16 %v7672
    %v7783 = vunpack.c.h.b16 %v7672
    %v7784 = vunpack.c.l.b16 %v7673
    %v7785 = vunpack.c.h.b16 %v7673
    %v7786 = vunpack.c.l.b16 %v7674
    %v7787 = vunpack.c.h.b16 %v7674
    %v7788 = vunpack.c.l.b16 %v7675
    %v7789 = vunpack.c.h.b16 %v7675
    %v7790 = vunpack.c.l.b16 %v7676
    %v7791 = vunpack.c.h.b16 %v7676
    %v7792 = vunpack.c.l.b16 %v7677
    %v7793 = vunpack.c.h.b16 %v7677
    %v7794 = vunpack.c.l.b16 %v7678
    %v7795 = vunpack.c.h.b16 %v7678
    %v7796 = vunpack.c.l.b16 %v7679
    %v7797 = vunpack.c.h.b16 %v7679
    %v7798 = vunpack.c.l.b16 %v7680
    %v7799 = vunpack.c.h.b16 %v7680
    %v7800 = vpack.c.b16 %v7740, %v7736
    %v7801 = vpack.c.b16 %v7741, %v7737
    %v7802 = vpack.c.b16 %v7742, %v7738
    %v7803 = vpack.c.b16 %v7743, %v7739
    %v7804 = vpack.c.b16 %v7748, %v7744
    %v7805 = vpack.c.b16 %v7749, %v7745
    %v7806 = vpack.c.b16 %v7750, %v7746
    %v7807 = vpack.c.b16 %v7751, %v7747
    %v7808 = vpack.c.b16 %v7756, %v7752
    %v7809 = vpack.c.b16 %v7757, %v7753
    %v7810 = vpack.c.b16 %v7758, %v7754
    %v7811 = vpack.c.b16 %v7759, %v7755
    %v7812 = vpack.c.b16 %v7764, %v7760
    %v7813 = vpack.c.b16 %v7765, %v7761
    %v7814 = vpack.c.b16 %v7766, %v7762
    %v7815 = vpack.c.b16 %v7767, %v7763
    %v7816 = vpack.c.b16 %v7772, %v7768
    %v7817 = vpack.c.b16 %v7773, %v7769
    %v7818 = vpack.c.b16 %v7774, %v7770
    %v7819 = vpack.c.b16 %v7775, %v7771
    %v7820 = vpack.c.b16 %v7780, %v7776
    %v7821 = vpack.c.b16 %v7781, %v7777
    %v7822 = vpack.c.b16 %v7782, %v7778
    %v7823 = vpack.c.b16 %v7783, %v7779
    %v7824 = vpack.c.b16 %v7788, %v7784
    %v7825 = vpack.c.b16 %v7789, %v7785
    %v7826 = vpack.c.b16 %v7790, %v7786
    %v7827 = vpack.c.b16 %v7791, %v7787
    %v7828 = vpack.c.b16 %v7796, %v7792
    %v7829 = vpack.c.b16 %v7797, %v7793
    %v7830 = vpack.c.b16 %v7798, %v7794
    %v7831 = vpack.c.b16 %v7799, %v7795
    %7864 = vmatprep.subr.bf16.mxu0 %v7801
    %7865 = vmatpush1.bf16.msra.mxu0 %v7800
    %7866 = vmatprep.subr.bf16.mxu0 %v7805
    %7867 = vmatpush1.bf16.msra.mxu0 %v7804
    %7868 = vmatprep.subr.bf16.mxu0 %v7809
    %7869 = vmatpush1.bf16.msra.mxu0 %v7808
    %7870 = vmatprep.subr.bf16.mxu0 %v7813
    %7871 = vmatpush1.bf16.msra.mxu0 %v7812
    %7872 = vmatprep.subr.bf16.mxu0 %v7817
    %7873 = vmatpush1.bf16.msra.mxu0 %v7816
    %7874 = vmatprep.subr.bf16.mxu0 %v7821
    %7875 = vmatpush1.bf16.msra.mxu0 %v7820
    %7876 = vmatprep.subr.bf16.mxu0 %v7825
    %7877 = vmatpush1.bf16.msra.mxu0 %v7824
    %7878 = vmatprep.subr.bf16.mxu0 %v7829
    %7879 = vmatpush1.bf16.msra.mxu0 %v7828
    %7880 = vmatprep.subr.bf16.mxu0 0
    %7881 = vmatpush1.bf16.msra.mxu0 0
    %7882 = vmatprep.subr.bf16.mxu0 0
    %7883 = vmatpush1.bf16.msra.mxu0 0
    %7884 = vmatprep.subr.bf16.mxu0 0
    %7885 = vmatpush1.bf16.msra.mxu0 0
    %7886 = vmatprep.subr.bf16.mxu0 0
    %7887 = vmatpush1.bf16.msra.mxu0 0
    %7888 = vmatprep.subr.bf16.mxu0 0
    %7889 = vmatpush1.bf16.msra.mxu0 0
    %7890 = vmatprep.subr.bf16.mxu0 0
    %7891 = vmatpush1.bf16.msra.mxu0 0
    %7892 = vmatprep.subr.bf16.mxu0 0
    %7893 = vmatpush1.bf16.msra.mxu0 0
    %7894 = vmatprep.subr.bf16.mxu0 0
    %7895 = vmatpush1.bf16.msra.mxu0 0
    %7896 = vmatprep.mubr.bf16.mxu0 0
    %7897 = vmatmul.mubr.bf16.gmra.mrb[0].mxu0 %v7647
    %v7898 = vpop.f32.mrb[0].mxu0
    %v7899 = vadd.f32 %v7687, %v7898
    %v7900 = vpop.f32.mrb[0].mxu0
    %v7901 = vadd.f32 %v7691, %v7900
    %v7902 = vpop.f32.mrb[0].mxu0
    %v7903 = vadd.f32 %v7687, %v7902
    %v7904 = vpop.f32.mrb[0].mxu0
    %v7905 = vadd.f32 %v7691, %v7904
    %7906 = vdwg.mxu0
    %7907 = vmatprep.subr.bf16.mxu0 %v7803
    %7908 = vmatpush1.bf16.msra.mxu0 %v7802
    %7909 = vmatprep.subr.bf16.mxu0 %v7807
    %7910 = vmatpush1.bf16.msra.mxu0 %v7806
    %7911 = vmatprep.subr.bf16.mxu0 %v7811
    %7912 = vmatpush1.bf16.msra.mxu0 %v7810
    %7913 = vmatprep.subr.bf16.mxu0 %v7815
    %7914 = vmatpush1.bf16.msra.mxu0 %v7814
    %7915 = vmatprep.subr.bf16.mxu0 %v7819
    %7916 = vmatpush1.bf16.msra.mxu0 %v7818
    %7917 = vmatprep.subr.bf16.mxu0 %v7823
    %7918 = vmatpush1.bf16.msra.mxu0 %v7822
    %7919 = vmatprep.subr.bf16.mxu0 %v7827
    %7920 = vmatpush1.bf16.msra.mxu0 %v7826
    %7921 = vmatprep.subr.bf16.mxu0 %v7831
    %7922 = vmatpush1.bf16.msra.mxu0 %v7830
    %7923 = vmatprep.subr.bf16.mxu0 0
    %7924 = vmatpush1.bf16.msra.mxu0 0
    %7925 = vmatprep.subr.bf16.mxu0 0
    %7926 = vmatpush1.bf16.msra.mxu0 0
    %7927 = vmatprep.subr.bf16.mxu0 0
    %7928 = vmatpush1.bf16.msra.mxu0 0
    %7929 = vmatprep.subr.bf16.mxu0 0
    %7930 = vmatpush1.bf16.msra.mxu0 0
    %7931 = vmatprep.subr.bf16.mxu0 0
    %7932 = vmatpush1.bf16.msra.mxu0 0
    %7933 = vmatprep.subr.bf16.mxu0 0
    %7934 = vmatpush1.bf16.msra.mxu0 0
    %7935 = vmatprep.subr.bf16.mxu0 0
    %7936 = vmatpush1.bf16.msra.mxu0 0
    %7937 = vmatprep.subr.bf16.mxu0 0
    %7938 = vmatpush1.bf16.msra.mxu0 0
    %7939 = vmatprep.mubr.bf16.mxu0 0
    %7940 = vmatmul.mubr.bf16.gmra.mrb[0].mxu0 %v7647
    %v7941 = vpop.f32.mrb[0].mxu0
    %v7942 = vadd.f32 %v7695, %v7941
    %v7943 = vpop.f32.mrb[0].mxu0
    %v7944 = vadd.f32 %v7699, %v7943
    %v7945 = vpop.f32.mrb[0].mxu0
    %v7946 = vadd.f32 %v7695, %v7945
    %v7947 = vpop.f32.mrb[0].mxu0
    %v7948 = vadd.f32 %v7699, %v7947
    %7949 = vdwg.mxu0
    %v7950 = vmax.f32 %v7899, 0.0
    %v7951 = vmax.f32 %v7901, 0.0
    %v7952 = vmax.f32 %v7942, 0.0
    %v7953 = vmax.f32 %v7944, 0.0
    %v7954 = vmax.f32 %v7903, 0.0
    %v7955 = vmax.f32 %v7905, 0.0
    %v7956 = vmax.f32 %v7946, 0.0
    %v7957 = vmax.f32 %v7948, 0.0
    %v7958 = vpack.c.bf16 %v7954, %v7950
    %v7959 = vpack.c.bf16 %v7955, %v7951
    %v7960 = vpack.c.bf16 %v7956, %v7952
    %v7961 = vpack.c.bf16 %v7957, %v7953
    %s7962 = scalar_lea.vmem [#allocation14], 512
    %v7963 = vld [vmem:[%s7962] sm:$0xf]
    %v7964 = vld [vmem:[%s7962 + $0x4] sm:$0xf]
    %v7965 = vld [vmem:[%s7962 + $0x8] sm:$0xf]
    %v7966 = vld [vmem:[%s7962 + $0xc] sm:$0xf]
    %v7967 = vld [vmem:[%s7962 + $0x10] sm:$0xf]
    %v7968 = vld [vmem:[%s7962 + $0x14] sm:$0xf]
    %v7969 = vld [vmem:[%s7962 + $0x18] sm:$0xf]
    %v7970 = vld [vmem:[%s7962 + $0x1c] sm:$0xf]
    %v7971 = vld [vmem:[%s7962 + $0x20] sm:$0xf]
    %v7972 = vld [vmem:[%s7962 + $0x24] sm:$0xf]
    %v7973 = vld [vmem:[%s7962 + $0x28] sm:$0xf]
    %v7974 = vld [vmem:[%s7962 + $0x2c] sm:$0xf]
    %v7975 = vld [vmem:[%s7962 + $0x30] sm:$0xf]
    %v7976 = vld [vmem:[%s7962 + $0x34] sm:$0xf]
    %v7977 = vld [vmem:[%s7962 + $0x38] sm:$0xf]
    %v7978 = vld [vmem:[%s7962 + $0x3c] sm:$0xf]
    %v7979 = vld [vmem:[%s7962 + $0x40] sm:$0xf]
    %v7980 = vld [vmem:[%s7962 + $0x44] sm:$0xf]
    %v7981 = vld [vmem:[%s7962 + $0x48] sm:$0xf]
    %v7982 = vld [vmem:[%s7962 + $0x4c] sm:$0xf]
    %v7983 = vld [vmem:[%s7962 + $0x50] sm:$0xf]
    %v7984 = vld [vmem:[%s7962 + $0x54] sm:$0xf]
    %v7985 = vld [vmem:[%s7962 + $0x58] sm:$0xf]
    %v7986 = vld [vmem:[%s7962 + $0x5c] sm:$0xf]
    %v7987 = vld [vmem:[%s7962 + $0x60] sm:$0xf]
    %v7988 = vld [vmem:[%s7962 + $0x64] sm:$0xf]
    %v7989 = vld [vmem:[%s7962 + $0x68] sm:$0xf]
    %v7990 = vld [vmem:[%s7962 + $0x6c] sm:$0xf]
    %v7991 = vld [vmem:[%s7962 + $0x70] sm:$0xf]
    %v7992 = vld [vmem:[%s7962 + $0x74] sm:$0xf]
    %v7993 = vld [vmem:[%s7962 + $0x78] sm:$0xf]
    %v7994 = vld [vmem:[%s7962 + $0x7c] sm:$0xf]
    %v7995 = vld [vmem:[%s7962 + $0x80] sm:$0xf]
    %v7996 = vld [vmem:[%s7962 + $0x84] sm:$0xf]
    %v7997 = vld [vmem:[%s7962 + $0x88] sm:$0xf]
    %v7998 = vld [vmem:[%s7962 + $0x8c] sm:$0xf]
    %v7999 = vld [vmem:[%s7962 + $0x90] sm:$0xf]
    %v8000 = vld [vmem:[%s7962 + $0x94] sm:$0xf]
    %v8001 = vld [vmem:[%s7962 + $0x98] sm:$0xf]
    %v8002 = vld [vmem:[%s7962 + $0x9c] sm:$0xf]
    %v8003 = vld [vmem:[%s7962 + $0xa0] sm:$0xf]
    %v8004 = vld [vmem:[%s7962 + $0xa4] sm:$0xf]
    %v8005 = vld [vmem:[%s7962 + $0xa8] sm:$0xf]
    %v8006 = vld [vmem:[%s7962 + $0xac] sm:$0xf]
    %v8007 = vld [vmem:[%s7962 + $0xb0] sm:$0xf]
    %v8008 = vld [vmem:[%s7962 + $0xb4] sm:$0xf]
    %v8009 = vld [vmem:[%s7962 + $0xb8] sm:$0xf]
    %v8010 = vld [vmem:[%s7962 + $0xbc] sm:$0xf]
    %v8011 = vld [vmem:[%s7962 + $0xc0] sm:$0xf]
    %v8012 = vld [vmem:[%s7962 + $0xc4] sm:$0xf]
    %v8013 = vld [vmem:[%s7962 + $0xc8] sm:$0xf]
    %v8014 = vld [vmem:[%s7962 + $0xcc] sm:$0xf]
    %v8015 = vld [vmem:[%s7962 + $0xd0] sm:$0xf]
    %v8016 = vld [vmem:[%s7962 + $0xd4] sm:$0xf]
    %v8017 = vld [vmem:[%s7962 + $0xd8] sm:$0xf]
    %v8018 = vld [vmem:[%s7962 + $0xdc] sm:$0xf]
    %v8019 = vld [vmem:[%s7962 + $0xe0] sm:$0xf]
    %v8020 = vld [vmem:[%s7962 + $0xe4] sm:$0xf]
    %v8021 = vld [vmem:[%s7962 + $0xe8] sm:$0xf]
    %v8022 = vld [vmem:[%s7962 + $0xec] sm:$0xf]
    %v8023 = vld [vmem:[%s7962 + $0xf0] sm:$0xf]
    %v8024 = vld [vmem:[%s7962 + $0xf4] sm:$0xf]
    %v8025 = vld [vmem:[%s7962 + $0xf8] sm:$0xf]
    %v8026 = vld [vmem:[%s7962 + $0xfc] sm:$0xf]
    %s8027 = scalar_lea.vmem [#allocation15], 2
    %v8028 = vld [vmem:[%s8027] sm:$0x1]
    %v8030 = vlaneseq
    %v8031 = vshrl.u32 %v8030, 7
    %v8032 = vsub.s32 0, %v8031
    %v8033 = vrot.slane %v8028, %v8032
    %v8099 = vunpack.c.l.b16 %v7963
    %v8100 = vunpack.c.l.b16 %v7964
    %v8101 = vunpack.c.l.b16 %v7965
    %v8102 = vunpack.c.l.b16 %v7966
    %v8103 = vunpack.c.l.b16 %v7967
    %v8104 = vunpack.c.l.b16 %v7968
    %v8105 = vunpack.c.l.b16 %v7969
    %v8106 = vunpack.c.l.b16 %v7970
    %v8107 = vunpack.c.l.b16 %v7971
    %v8108 = vunpack.c.l.b16 %v7972
    %v8109 = vunpack.c.l.b16 %v7973
    %v8110 = vunpack.c.l.b16 %v7974
    %v8111 = vunpack.c.l.b16 %v7975
    %v8112 = vunpack.c.l.b16 %v7976
    %v8113 = vunpack.c.l.b16 %v7977
    %v8114 = vunpack.c.l.b16 %v7978
    %v8115 = vunpack.c.l.b16 %v7979
    %v8116 = vunpack.c.l.b16 %v7980
    %v8117 = vunpack.c.l.b16 %v7981
    %v8118 = vunpack.c.l.b16 %v7982
    %v8119 = vunpack.c.l.b16 %v7983
    %v8120 = vunpack.c.l.b16 %v7984
    %v8121 = vunpack.c.l.b16 %v7985
    %v8122 = vunpack.c.l.b16 %v7986
    %v8123 = vunpack.c.l.b16 %v7987
    %v8124 = vunpack.c.l.b16 %v7988
    %v8125 = vunpack.c.l.b16 %v7989
    %v8126 = vunpack.c.l.b16 %v7990
    %v8127 = vunpack.c.l.b16 %v7991
    %v8128 = vunpack.c.l.b16 %v7992
    %v8129 = vunpack.c.l.b16 %v7993
    %v8130 = vunpack.c.l.b16 %v7994
    %v8131 = vunpack.c.l.b16 %v7995
    %v8132 = vunpack.c.l.b16 %v7996
    %v8133 = vunpack.c.l.b16 %v7997
    %v8134 = vunpack.c.l.b16 %v7998
    %v8135 = vunpack.c.l.b16 %v7999
    %v8136 = vunpack.c.l.b16 %v8000
    %v8137 = vunpack.c.l.b16 %v8001
    %v8138 = vunpack.c.l.b16 %v8002
    %v8139 = vunpack.c.l.b16 %v8003
    %v8140 = vunpack.c.l.b16 %v8004
    %v8141 = vunpack.c.l.b16 %v8005
    %v8142 = vunpack.c.l.b16 %v8006
    %v8143 = vunpack.c.l.b16 %v8007
    %v8144 = vunpack.c.l.b16 %v8008
    %v8145 = vunpack.c.l.b16 %v8009
    %v8146 = vunpack.c.l.b16 %v8010
    %v8147 = vunpack.c.l.b16 %v8011
    %v8148 = vunpack.c.l.b16 %v8012
    %v8149 = vunpack.c.l.b16 %v8013
    %v8150 = vunpack.c.l.b16 %v8014
    %v8151 = vunpack.c.l.b16 %v8015
    %v8152 = vunpack.c.l.b16 %v8016
    %v8153 = vunpack.c.l.b16 %v8017
    %v8154 = vunpack.c.l.b16 %v8018
    %v8155 = vunpack.c.l.b16 %v8019
    %v8156 = vunpack.c.l.b16 %v8020
    %v8157 = vunpack.c.l.b16 %v8021
    %v8158 = vunpack.c.l.b16 %v8022
    %v8159 = vunpack.c.l.b16 %v8023
    %v8160 = vunpack.c.l.b16 %v8024
    %v8161 = vunpack.c.l.b16 %v8025
    %v8162 = vunpack.c.l.b16 %v8026
    %v8163 = vpack.c.b16 %v8100, %v8099
    %v8164 = vpack.c.b16 %v8102, %v8101
    %v8165 = vpack.c.b16 %v8104, %v8103
    %v8166 = vpack.c.b16 %v8106, %v8105
    %v8167 = vpack.c.b16 %v8108, %v8107
    %v8168 = vpack.c.b16 %v8110, %v8109
    %v8169 = vpack.c.b16 %v8112, %v8111
    %v8170 = vpack.c.b16 %v8114, %v8113
    %v8171 = vpack.c.b16 %v8116, %v8115
    %v8172 = vpack.c.b16 %v8118, %v8117
    %v8173 = vpack.c.b16 %v8120, %v8119
    %v8174 = vpack.c.b16 %v8122, %v8121
    %v8175 = vpack.c.b16 %v8124, %v8123
    %v8176 = vpack.c.b16 %v8126, %v8125
    %v8177 = vpack.c.b16 %v8128, %v8127
    %v8178 = vpack.c.b16 %v8130, %v8129
    %v8179 = vpack.c.b16 %v8132, %v8131
    %v8180 = vpack.c.b16 %v8134, %v8133
    %v8181 = vpack.c.b16 %v8136, %v8135
    %v8182 = vpack.c.b16 %v8138, %v8137
    %v8183 = vpack.c.b16 %v8140, %v8139
    %v8184 = vpack.c.b16 %v8142, %v8141
    %v8185 = vpack.c.b16 %v8144, %v8143
    %v8186 = vpack.c.b16 %v8146, %v8145
    %v8187 = vpack.c.b16 %v8148, %v8147
    %v8188 = vpack.c.b16 %v8150, %v8149
    %v8189 = vpack.c.b16 %v8152, %v8151
    %v8190 = vpack.c.b16 %v8154, %v8153
    %v8191 = vpack.c.b16 %v8156, %v8155
    %v8192 = vpack.c.b16 %v8158, %v8157
    %v8193 = vpack.c.b16 %v8160, %v8159
    %v8194 = vpack.c.b16 %v8162, %v8161
    %8227 = vmatprep.subr.bf16.mxu0 0
    %8228 = vmatpush1.bf16.msra.mxu0 %v8163
    %8229 = vmatprep.subr.bf16.mxu0 0
    %8230 = vmatpush1.bf16.msra.mxu0 %v8164
    %8231 = vmatprep.subr.bf16.mxu0 0
    %8232 = vmatpush1.bf16.msra.mxu0 %v8165
    %8233 = vmatprep.subr.bf16.mxu0 0
    %8234 = vmatpush1.bf16.msra.mxu0 %v8166
    %8235 = vmatprep.subr.bf16.mxu0 0
    %8236 = vmatpush1.bf16.msra.mxu0 %v8167
    %8237 = vmatprep.subr.bf16.mxu0 0
    %8238 = vmatpush1.bf16.msra.mxu0 %v8168
    %8239 = vmatprep.subr.bf16.mxu0 0
    %8240 = vmatpush1.bf16.msra.mxu0 %v8169
    %8241 = vmatprep.subr.bf16.mxu0 0
    %8242 = vmatpush1.bf16.msra.mxu0 %v8170
    %8243 = vmatprep.subr.bf16.mxu0 0
    %8244 = vmatpush1.bf16.msra.mxu0 %v8171
    %8245 = vmatprep.subr.bf16.mxu0 0
    %8246 = vmatpush1.bf16.msra.mxu0 %v8172
    %8247 = vmatprep.subr.bf16.mxu0 0
    %8248 = vmatpush1.bf16.msra.mxu0 %v8173
    %8249 = vmatprep.subr.bf16.mxu0 0
    %8250 = vmatpush1.bf16.msra.mxu0 %v8174
    %8251 = vmatprep.subr.bf16.mxu0 0
    %8252 = vmatpush1.bf16.msra.mxu0 %v8175
    %8253 = vmatprep.subr.bf16.mxu0 0
    %8254 = vmatpush1.bf16.msra.mxu0 %v8176
    %8255 = vmatprep.subr.bf16.mxu0 0
    %8256 = vmatpush1.bf16.msra.mxu0 %v8177
    %8257 = vmatprep.subr.bf16.mxu0 0
    %8258 = vmatpush1.bf16.msra.mxu0 %v8178
    %8259 = vmatprep.mubr.bf16.mxu0 %v7959
    %8260 = vmatmul.mubr.bf16.gmra.mrb[0].mxu0 %v7958
    %v8261 = vpop.f32.mrb[0].mxu0
    %v8262 = vadd.f32 %v8033, %v8261
    %v8263 = vpop.f32.mrb[0].mxu0
    %v8264 = vpop.f32.mrb[0].mxu0
    %v8265 = vadd.f32 %v8033, %v8264
    %v8266 = vpop.f32.mrb[0].mxu0
    %8267 = vdwg.mxu0
    %8268 = vmatprep.subr.bf16.mxu0 0
    %8269 = vmatpush1.bf16.msra.mxu0 %v8179
    %8270 = vmatprep.subr.bf16.mxu0 0
    %8271 = vmatpush1.bf16.msra.mxu0 %v8180
    %8272 = vmatprep.subr.bf16.mxu0 0
    %8273 = vmatpush1.bf16.msra.mxu0 %v8181
    %8274 = vmatprep.subr.bf16.mxu0 0
    %8275 = vmatpush1.bf16.msra.mxu0 %v8182
    %8276 = vmatprep.subr.bf16.mxu0 0
    %8277 = vmatpush1.bf16.msra.mxu0 %v8183
    %8278 = vmatprep.subr.bf16.mxu0 0
    %8279 = vmatpush1.bf16.msra.mxu0 %v8184
    %8280 = vmatprep.subr.bf16.mxu0 0
    %8281 = vmatpush1.bf16.msra.mxu0 %v8185
    %8282 = vmatprep.subr.bf16.mxu0 0
    %8283 = vmatpush1.bf16.msra.mxu0 %v8186
    %8284 = vmatprep.subr.bf16.mxu0 0
    %8285 = vmatpush1.bf16.msra.mxu0 %v8187
    %8286 = vmatprep.subr.bf16.mxu0 0
    %8287 = vmatpush1.bf16.msra.mxu0 %v8188
    %8288 = vmatprep.subr.bf16.mxu0 0
    %8289 = vmatpush1.bf16.msra.mxu0 %v8189
    %8290 = vmatprep.subr.bf16.mxu0 0
    %8291 = vmatpush1.bf16.msra.mxu0 %v8190
    %8292 = vmatprep.subr.bf16.mxu0 0
    %8293 = vmatpush1.bf16.msra.mxu0 %v8191
    %8294 = vmatprep.subr.bf16.mxu0 0
    %8295 = vmatpush1.bf16.msra.mxu0 %v8192
    %8296 = vmatprep.subr.bf16.mxu0 0
    %8297 = vmatpush1.bf16.msra.mxu0 %v8193
    %8298 = vmatprep.subr.bf16.mxu0 0
    %8299 = vmatpush1.bf16.msra.mxu0 %v8194
    %8300 = vmatprep.mubr.bf16.mxu0 %v7961
    %8301 = vmatmul.mubr.bf16.gmra.mrb[0].mxu0 %v7960
    %v8302 = vpop.f32.mrb[0].mxu0
    %v8303 = vadd.f32 %v8262, %v8302
    %v8304 = vpop.f32.mrb[0].mxu0
    %v8305 = vpop.f32.mrb[0].mxu0
    %v8306 = vadd.f32 %v8265, %v8305
    %v8307 = vpop.f32.mrb[0].mxu0
    %8308 = vdwg.mxu0
    %v8309 = vadd.f32 %v7645, %v8303
    %v8310 = vadd.f32 %v7646, %v8306
    %s8311 = scalar_lea.vmem [#allocation17], 2
    %v8312 = vld [vmem:[%s8311] sm:$0x1]
    %s8313 = scalar_lea.vmem [#allocation18], 2
    %v8314 = vld [vmem:[%s8313] sm:$0x1]
    %8315 = vadd.xlane.f32.xlu0 %v8309
    %v8316 = vpop.xlane.xlu0 %8315
    %8317 = vadd.xlane.f32.xlu0 %v8310
    %v8318 = vpop.xlane.xlu0 %8317
    %v8319 = vmul.f32 %v8316, %v1942
    %v8320 = vmul.f32 %v8318, %v1942
    %v8321 = vsub.f32 %v8309, %v8319
    %v8322 = vsub.f32 %v8310, %v8320
    %v8323 = vmul.f32 %v8321, %v8321
    %v8324 = vmul.f32 %v8322, %v8322
    %8325 = vadd.xlane.f32.xlu0 %v8323
    %v8326 = vpop.xlane.xlu0 %8325
    %8327 = vadd.xlane.f32.xlu0 %v8324
    %v8328 = vpop.xlane.xlu0 %8327
    %v8329 = vmul.f32 %v8326, %v1942
    %v8330 = vmul.f32 %v8328, %v1942
    %v8331 = vadd.f32 %v8329, 1e-05
    %v8332 = vadd.f32 %v8330, 1e-05
    %v8333 = vrsqrt.pop %v8331
    %v8334 = vrsqrt.pop %v8332
    %v8335 = vmul.f32 %v8321, %v8333
    %v8336 = vmul.f32 %v8322, %v8334
    %v8338 = vlaneseq
    %v8339 = vshrl.u32 %v8338, 7
    %v8340 = vsub.s32 0, %v8339
    %v8341 = vrot.slane %v8312, %v8340
    %v8343 = vmul.f32 %v8335, %v8341
    %v8344 = vmul.f32 %v8336, %v8341
    %v8346 = vlaneseq
    %v8347 = vshrl.u32 %v8346, 7
    %v8348 = vsub.s32 0, %v8347
    %v8349 = vrot.slane %v8314, %v8348
    %v8351 = vadd.f32 %v8343, %v8349
    %v8352 = vadd.f32 %v8344, %v8349
    %v8353 = vpack.c.bf16 %v8352, %v8351
    %s8354 = scalar_lea.vmem [#allocation3], 576
    %v8355 = vld [vmem:[%s8354] sm:$0xff]
    %v8356 = vld [vmem:[%s8354 + $0x8] sm:$0xf]
    %v8357 = vld [vmem:[%s8354 + $0xc] sm:$0xff]
    %v8358 = vld [vmem:[%s8354 + $0x14] sm:$0xf]
    %v8359 = vld [vmem:[%s8354 + $0x18] sm:$0xff]
    %v8360 = vld [vmem:[%s8354 + $0x20] sm:$0xf]
    %v8361 = vld [vmem:[%s8354 + $0x24] sm:$0xff]
    %v8362 = vld [vmem:[%s8354 + $0x2c] sm:$0xf]
    %v8363 = vld [vmem:[%s8354 + $0x30] sm:$0xff]
    %v8364 = vld [vmem:[%s8354 + $0x38] sm:$0xf]
    %v8365 = vld [vmem:[%s8354 + $0x3c] sm:$0xff]
    %v8366 = vld [vmem:[%s8354 + $0x44] sm:$0xf]
    %v8367 = vld [vmem:[%s8354 + $0x48] sm:$0xff]
    %v8368 = vld [vmem:[%s8354 + $0x50] sm:$0xf]
    %v8369 = vld [vmem:[%s8354 + $0x54] sm:$0xff]
    %v8370 = vld [vmem:[%s8354 + $0x5c] sm:$0xf]
    %v8371 = vld [vmem:[%s8354 + $0x60] sm:$0xff]
    %v8372 = vld [vmem:[%s8354 + $0x68] sm:$0xf]
    %v8373 = vld [vmem:[%s8354 + $0x6c] sm:$0xff]
    %v8374 = vld [vmem:[%s8354 + $0x74] sm:$0xf]
    %v8375 = vld [vmem:[%s8354 + $0x78] sm:$0xff]
    %v8376 = vld [vmem:[%s8354 + $0x80] sm:$0xf]
    %v8377 = vld [vmem:[%s8354 + $0x84] sm:$0xff]
    %v8378 = vld [vmem:[%s8354 + $0x8c] sm:$0xf]
    %v8379 = vld [vmem:[%s8354 + $0x90] sm:$0xff]
    %v8380 = vld [vmem:[%s8354 + $0x98] sm:$0xf]
    %v8381 = vld [vmem:[%s8354 + $0x9c] sm:$0xff]
    %v8382 = vld [vmem:[%s8354 + $0xa4] sm:$0xf]
    %v8383 = vld [vmem:[%s8354 + $0xa8] sm:$0xff]
    %v8384 = vld [vmem:[%s8354 + $0xb0] sm:$0xf]
    %v8385 = vld [vmem:[%s8354 + $0xb4] sm:$0xff]
    %v8386 = vld [vmem:[%s8354 + $0xbc] sm:$0xf]
    %s8387 = scalar_lea.vmem %s17, 9
    %v8388 = vld [vmem:[%s8387] sm:$0x7]
    %v8390 = vlaneseq
    %v8391 = vshrl.u32 %v8390, 7
    %v8392 = vsub.s32 0, %v8391
    %v8393 = vrot.slane %v8388, %v8392
    %v8394 = vlaneseq
    %v8395 = vshrl.u32 %v8394, 7
    %v8396 = vsub.s32 1, %v8395
    %v8397 = vrot.slane %v8388, %v8396
    %v8398 = vlaneseq
    %v8399 = vshrl.u32 %v8398, 7
    %v8400 = vsub.s32 2, %v8399
    %v8401 = vrot.slane %v8388, %v8400
    %v8437 = vunpack.c.l.b16 %v8355
    %v8438 = vunpack.c.h.b16 %v8355
    %v8439 = vunpack.c.l.b16 %v8356
    %v8440 = vunpack.c.l.b16 %v8357
    %v8441 = vunpack.c.h.b16 %v8357
    %v8442 = vunpack.c.l.b16 %v8358
    %v8443 = vunpack.c.l.b16 %v8359
    %v8444 = vunpack.c.h.b16 %v8359
    %v8445 = vunpack.c.l.b16 %v8360
    %v8446 = vunpack.c.l.b16 %v8361
    %v8447 = vunpack.c.h.b16 %v8361
    %v8448 = vunpack.c.l.b16 %v8362
    %v8449 = vunpack.c.l.b16 %v8363
    %v8450 = vunpack.c.h.b16 %v8363
    %v8451 = vunpack.c.l.b16 %v8364
    %v8452 = vunpack.c.l.b16 %v8365
    %v8453 = vunpack.c.h.b16 %v8365
    %v8454 = vunpack.c.l.b16 %v8366
    %v8455 = vunpack.c.l.b16 %v8367
    %v8456 = vunpack.c.h.b16 %v8367
    %v8457 = vunpack.c.l.b16 %v8368
    %v8458 = vunpack.c.l.b16 %v8369
    %v8459 = vunpack.c.h.b16 %v8369
    %v8460 = vunpack.c.l.b16 %v8370
    %v8461 = vunpack.c.l.b16 %v8371
    %v8462 = vunpack.c.h.b16 %v8371
    %v8463 = vunpack.c.l.b16 %v8372
    %v8464 = vunpack.c.l.b16 %v8373
    %v8465 = vunpack.c.h.b16 %v8373
    %v8466 = vunpack.c.l.b16 %v8374
    %v8467 = vunpack.c.l.b16 %v8375
    %v8468 = vunpack.c.h.b16 %v8375
    %v8469 = vunpack.c.l.b16 %v8376
    %v8470 = vunpack.c.l.b16 %v8377
    %v8471 = vunpack.c.h.b16 %v8377
    %v8472 = vunpack.c.l.b16 %v8378
    %v8473 = vunpack.c.l.b16 %v8379
    %v8474 = vunpack.c.h.b16 %v8379
    %v8475 = vunpack.c.l.b16 %v8380
    %v8476 = vunpack.c.l.b16 %v8381
    %v8477 = vunpack.c.h.b16 %v8381
    %v8478 = vunpack.c.l.b16 %v8382
    %v8479 = vunpack.c.l.b16 %v8383
    %v8480 = vunpack.c.h.b16 %v8383
    %v8481 = vunpack.c.l.b16 %v8384
    %v8482 = vunpack.c.l.b16 %v8385
    %v8483 = vunpack.c.h.b16 %v8385
    %v8484 = vunpack.c.l.b16 %v8386
    %v8485 = vpack.c.b16 %v8440, %v8437
    %v8486 = vpack.c.b16 %v8441, %v8438
    %v8487 = vpack.c.b16 %v8442, %v8439
    %v8488 = vpack.c.b16 %v8446, %v8443
    %v8489 = vpack.c.b16 %v8447, %v8444
    %v8490 = vpack.c.b16 %v8448, %v8445
    %v8491 = vpack.c.b16 %v8452, %v8449
    %v8492 = vpack.c.b16 %v8453, %v8450
    %v8493 = vpack.c.b16 %v8454, %v8451
    %v8494 = vpack.c.b16 %v8458, %v8455
    %v8495 = vpack.c.b16 %v8459, %v8456
    %v8496 = vpack.c.b16 %v8460, %v8457
    %v8497 = vpack.c.b16 %v8464, %v8461
    %v8498 = vpack.c.b16 %v8465, %v8462
    %v8499 = vpack.c.b16 %v8466, %v8463
    %v8500 = vpack.c.b16 %v8470, %v8467
    %v8501 = vpack.c.b16 %v8471, %v8468
    %v8502 = vpack.c.b16 %v8472, %v8469
    %v8503 = vpack.c.b16 %v8476, %v8473
    %v8504 = vpack.c.b16 %v8477, %v8474
    %v8505 = vpack.c.b16 %v8478, %v8475
    %v8506 = vpack.c.b16 %v8482, %v8479
    %v8507 = vpack.c.b16 %v8483, %v8480
    %v8508 = vpack.c.b16 %v8484, %v8481
    %8533 = vmatprep.subr.bf16.mxu0 %v8486
    %8534 = vmatpush1.bf16.msra.mxu0 %v8485
    %8535 = vmatprep.subr.bf16.mxu0 %v8489
    %8536 = vmatpush1.bf16.msra.mxu0 %v8488
    %8537 = vmatprep.subr.bf16.mxu0 %v8492
    %8538 = vmatpush1.bf16.msra.mxu0 %v8491
    %8539 = vmatprep.subr.bf16.mxu0 %v8495
    %8540 = vmatpush1.bf16.msra.mxu0 %v8494
    %8541 = vmatprep.subr.bf16.mxu0 %v8498
    %8542 = vmatpush1.bf16.msra.mxu0 %v8497
    %8543 = vmatprep.subr.bf16.mxu0 %v8501
    %8544 = vmatpush1.bf16.msra.mxu0 %v8500
    %8545 = vmatprep.subr.bf16.mxu0 %v8504
    %8546 = vmatpush1.bf16.msra.mxu0 %v8503
    %8547 = vmatprep.subr.bf16.mxu0 %v8507
    %8548 = vmatpush1.bf16.msra.mxu0 %v8506
    %8549 = vmatprep.subr.bf16.mxu0 0
    %8550 = vmatpush1.bf16.msra.mxu0 0
    %8551 = vmatprep.subr.bf16.mxu0 0
    %8552 = vmatpush1.bf16.msra.mxu0 0
    %8553 = vmatprep.subr.bf16.mxu0 0
    %8554 = vmatpush1.bf16.msra.mxu0 0
    %8555 = vmatprep.subr.bf16.mxu0 0
    %8556 = vmatpush1.bf16.msra.mxu0 0
    %8557 = vmatprep.subr.bf16.mxu0 0
    %8558 = vmatpush1.bf16.msra.mxu0 0
    %8559 = vmatprep.subr.bf16.mxu0 0
    %8560 = vmatpush1.bf16.msra.mxu0 0
    %8561 = vmatprep.subr.bf16.mxu0 0
    %8562 = vmatpush1.bf16.msra.mxu0 0
    %8563 = vmatprep.subr.bf16.mxu0 0
    %8564 = vmatpush1.bf16.msra.mxu0 0
    %8565 = vmatprep.mubr.bf16.mxu0 0
    %8566 = vmatmul.mubr.bf16.gmra.mrb[0].mxu0 %v8353
    %v8567 = vpop.f32.mrb[0].mxu0
    %v8568 = vadd.f32 %v8393, %v8567
    %v8569 = vpop.f32.mrb[0].mxu0
    %v8570 = vadd.f32 %v8397, %v8569
    %v8571 = vpop.f32.mrb[0].mxu0
    %v8572 = vadd.f32 %v8393, %v8571
    %v8573 = vpop.f32.mrb[0].mxu0
    %v8574 = vadd.f32 %v8397, %v8573
    %8575 = vdwg.mxu0
    %8576 = vmatprep.subr.bf16.mxu0 0
    %8577 = vmatpush1.bf16.msra.mxu0 %v8487
    %8578 = vmatprep.subr.bf16.mxu0 0
    %8579 = vmatpush1.bf16.msra.mxu0 %v8490
    %8580 = vmatprep.subr.bf16.mxu0 0
    %8581 = vmatpush1.bf16.msra.mxu0 %v8493
    %8582 = vmatprep.subr.bf16.mxu0 0
    %8583 = vmatpush1.bf16.msra.mxu0 %v8496
    %8584 = vmatprep.subr.bf16.mxu0 0
    %8585 = vmatpush1.bf16.msra.mxu0 %v8499
    %8586 = vmatprep.subr.bf16.mxu0 0
    %8587 = vmatpush1.bf16.msra.mxu0 %v8502
    %8588 = vmatprep.subr.bf16.mxu0 0
    %8589 = vmatpush1.bf16.msra.mxu0 %v8505
    %8590 = vmatprep.subr.bf16.mxu0 0
    %8591 = vmatpush1.bf16.msra.mxu0 %v8508
    %8592 = vmatprep.subr.bf16.mxu0 0
    %8593 = vmatpush1.bf16.msra.mxu0 0
    %8594 = vmatprep.subr.bf16.mxu0 0
    %8595 = vmatpush1.bf16.msra.mxu0 0
    %8596 = vmatprep.subr.bf16.mxu0 0
    %8597 = vmatpush1.bf16.msra.mxu0 0
    %8598 = vmatprep.subr.bf16.mxu0 0
    %8599 = vmatpush1.bf16.msra.mxu0 0
    %8600 = vmatprep.subr.bf16.mxu0 0
    %8601 = vmatpush1.bf16.msra.mxu0 0
    %8602 = vmatprep.subr.bf16.mxu0 0
    %8603 = vmatpush1.bf16.msra.mxu0 0
    %8604 = vmatprep.subr.bf16.mxu0 0
    %8605 = vmatpush1.bf16.msra.mxu0 0
    %8606 = vmatprep.subr.bf16.mxu0 0
    %8607 = vmatpush1.bf16.msra.mxu0 0
    %8608 = vmatprep.mubr.bf16.mxu0 0
    %8609 = vmatmul.mubr.bf16.gmra.mrb[0].mxu0 %v8353
    %v8610 = vpop.f32.mrb[0].mxu0
    %v8611 = vadd.f32 %v8401, %v8610
    %v8612 = vpop.f32.mrb[0].mxu0
    %v8613 = vpop.f32.mrb[0].mxu0
    %v8614 = vadd.f32 %v8401, %v8613
    %v8615 = vpop.f32.mrb[0].mxu0
    %8616 = vdwg.mxu0
    %v8617 = vpack.c.bf16 %v8568, %v8568
    %v8618 = vpack.c.bf16 %v8570, %v8570
    %v8619 = vpack.c.bf16 %v8611, %v8611
    %v8620 = vpack.c.bf16 %v8572, %v8572
    %v8621 = vpack.c.bf16 %v8574, %v8574
    %v8622 = vpack.c.bf16 %v8614, %v8614
    %s8623 = scalar_lea.vmem [#allocation6], 192
    %v8624 = vld [vmem:[%s8623] sm:$0xf]
    %v8625 = vld [vmem:[%s8623 + $0x4] sm:$0xf]
    %v8626 = vld [vmem:[%s8623 + $0x8] sm:$0xf]
    %v8627 = vld [vmem:[%s8623 + $0xc] sm:$0xf]
    %v8628 = vld [vmem:[%s8623 + $0x10] sm:$0xf]
    %v8629 = vld [vmem:[%s8623 + $0x14] sm:$0xf]
    %v8630 = vld [vmem:[%s8623 + $0x18] sm:$0xf]
    %v8631 = vld [vmem:[%s8623 + $0x1c] sm:$0xf]
    %v8632 = vld [vmem:[%s8623 + $0x20] sm:$0xf]
    %v8633 = vld [vmem:[%s8623 + $0x24] sm:$0xf]
    %v8634 = vld [vmem:[%s8623 + $0x28] sm:$0xf]
    %v8635 = vld [vmem:[%s8623 + $0x2c] sm:$0xf]
    %v8636 = vld [vmem:[%s8623 + $0x30] sm:$0xf]
    %v8637 = vld [vmem:[%s8623 + $0x34] sm:$0xf]
    %v8638 = vld [vmem:[%s8623 + $0x38] sm:$0xf]
    %v8639 = vld [vmem:[%s8623 + $0x3c] sm:$0xf]
    %v8641 = vsel %vm808, %v8617, 0
    %v8644 = vsel %vm808, %v8618, 0
    %8646 = vmatprep.subr.bf16.mxu0 0
    %8647 = vmatpush1.bf16.xpose.msra.mxu0 %v8644
    %8648 = vmatprep.subr.bf16.mxu0 0
    %8649 = vmatpush1.bf16.xpose.msra.mxu0 0
    %8650 = vmatprep.subr.bf16.mxu0 0
    %8651 = vmatpush1.bf16.xpose.msra.mxu0 0
    %8652 = vmatprep.subr.bf16.mxu0 0
    %8653 = vmatpush1.bf16.xpose.msra.mxu0 0
    %8654 = vmatprep.subr.bf16.mxu0 0
    %8655 = vmatpush1.bf16.xpose.msra.mxu0 0
    %8656 = vmatprep.subr.bf16.mxu0 0
    %8657 = vmatpush1.bf16.xpose.msra.mxu0 0
    %8658 = vmatprep.subr.bf16.mxu0 0
    %8659 = vmatpush1.bf16.xpose.msra.mxu0 0
    %8660 = vmatprep.subr.bf16.mxu0 0
    %8661 = vmatpush1.bf16.xpose.msra.mxu0 0
    %8662 = vmatprep.subr.bf16.mxu0 0
    %8663 = vmatpush1.bf16.xpose.msra.mxu0 0
    %8664 = vmatprep.subr.bf16.mxu0 0
    %8665 = vmatpush1.bf16.xpose.msra.mxu0 0
    %8666 = vmatprep.subr.bf16.mxu0 0
    %8667 = vmatpush1.bf16.xpose.msra.mxu0 0
    %8668 = vmatprep.subr.bf16.mxu0 0
    %8669 = vmatpush1.bf16.xpose.msra.mxu0 0
    %8670 = vmatprep.subr.bf16.mxu0 0
    %8671 = vmatpush1.bf16.xpose.msra.mxu0 0
    %8672 = vmatprep.subr.bf16.mxu0 0
    %8673 = vmatpush1.bf16.xpose.msra.mxu0 0
    %8674 = vmatprep.subr.bf16.mxu0 0
    %8675 = vmatpush1.bf16.xpose.msra.mxu0 0
    %8676 = vmatprep.subr.bf16.mxu0 0
    %8677 = vmatpush1.bf16.xpose.msra.mxu0 0
    %8678 = vmatprep.mubr.bf16.mxu0 0
    %8679 = vmatmul.mubr.bf16.gmra.mrb[0].mxu0 %v8641
    %v8680 = vpop.f32.mrb[0].mxu0
    %v8681 = vadd.f32 0.0, %v8680
    %v8682 = vpop.f32.mrb[0].mxu0
    %v8683 = vpop.f32.mrb[0].mxu0
    %v8684 = vpop.f32.mrb[0].mxu0
    %8685 = vdwg.mxu0
    %v8687 = vsel %vm808, %v8620, 0
    %v8690 = vsel %vm808, %v8621, 0
    %8692 = vmatprep.subr.bf16.mxu0 0
    %8693 = vmatpush1.bf16.xpose.msra.mxu0 %v8690
    %8694 = vmatprep.subr.bf16.mxu0 0
    %8695 = vmatpush1.bf16.xpose.msra.mxu0 0
    %8696 = vmatprep.subr.bf16.mxu0 0
    %8697 = vmatpush1.bf16.xpose.msra.mxu0 0
    %8698 = vmatprep.subr.bf16.mxu0 0
    %8699 = vmatpush1.bf16.xpose.msra.mxu0 0
    %8700 = vmatprep.subr.bf16.mxu0 0
    %8701 = vmatpush1.bf16.xpose.msra.mxu0 0
    %8702 = vmatprep.subr.bf16.mxu0 0
    %8703 = vmatpush1.bf16.xpose.msra.mxu0 0
    %8704 = vmatprep.subr.bf16.mxu0 0
    %8705 = vmatpush1.bf16.xpose.msra.mxu0 0
    %8706 = vmatprep.subr.bf16.mxu0 0
    %8707 = vmatpush1.bf16.xpose.msra.mxu0 0
    %8708 = vmatprep.subr.bf16.mxu0 0
    %8709 = vmatpush1.bf16.xpose.msra.mxu0 0
    %8710 = vmatprep.subr.bf16.mxu0 0
    %8711 = vmatpush1.bf16.xpose.msra.mxu0 0
    %8712 = vmatprep.subr.bf16.mxu0 0
    %8713 = vmatpush1.bf16.xpose.msra.mxu0 0
    %8714 = vmatprep.subr.bf16.mxu0 0
    %8715 = vmatpush1.bf16.xpose.msra.mxu0 0
    %8716 = vmatprep.subr.bf16.mxu0 0
    %8717 = vmatpush1.bf16.xpose.msra.mxu0 0
    %8718 = vmatprep.subr.bf16.mxu0 0
    %8719 = vmatpush1.bf16.xpose.msra.mxu0 0
    %8720 = vmatprep.subr.bf16.mxu0 0
    %8721 = vmatpush1.bf16.xpose.msra.mxu0 0
    %8722 = vmatprep.subr.bf16.mxu0 0
    %8723 = vmatpush1.bf16.xpose.msra.mxu0 0
    %8724 = vmatprep.mubr.bf16.mxu0 0
    %8725 = vmatmul.mubr.bf16.gmra.mrb[0].mxu0 %v8687
    %v8726 = vpop.f32.mrb[0].mxu0
    %v8727 = vadd.f32 0.0, %v8726
    %v8728 = vpop.f32.mrb[0].mxu0
    %v8729 = vpop.f32.mrb[0].mxu0
    %v8730 = vpop.f32.mrb[0].mxu0
    %8731 = vdwg.mxu0
    %v8732 = vmul.f32 %v8681, 0.17677669
    %v8733 = vmul.f32 %v8727, 0.17677669
    %v8734 = vsel %vm903, %v8732, -inf
    %8735 = vmax.xlane.f32.xlu0 %v8734
    %v8736 = vpop.xlane.xlu0 %8735
    %v8737 = vsel %vm903, %v8733, -inf
    %8738 = vmax.xlane.f32.xlu0 %v8737
    %v8739 = vpop.xlane.xlu0 %8738
    %v8740 = vsub.f32 %v8732, %v8736
    %v8741 = vsub.f32 %v8733, %v8739
    %v8742 = vmul.f32 %v8740, 1.442695
    %v8743 = vpow.pop %v8742
    %v8744 = vmul.f32 %v8741, 1.442695
    %v8745 = vpow.pop %v8744
    %v8746 = vsel %vm903, %v8743, 0.0
    %8747 = vadd.xlane.f32.xlu0 %v8746
    %v8748 = vpop.xlane.xlu0 %8747
    %v8749 = vsel %vm903, %v8745, 0.0
    %8750 = vadd.xlane.f32.xlu0 %v8749
    %v8751 = vpop.xlane.xlu0 %8750
    %v8752 = vrcp.pop %v8748
    %v8753 = vrcp.pop %v8751
    %v8754 = vmul.f32 %v8743, %v8752
    %v8755 = vmul.f32 %v8745, %v8753
    %v8756 = vpack.c.bf16 %v8754, %v8754
    %v8757 = vpack.c.bf16 %v8755, %v8755
    %v8759 = vsel %vm903, %v8756, 0
    %v8762 = vsel %vm931, %v8619, 0
    %8764 = vmatprep.subr.bf16.mxu0 0
    %8765 = vmatpush1.bf16.msra.mxu0 %v8762
    %8766 = vmatprep.subr.bf16.mxu0 0
    %8767 = vmatpush1.bf16.msra.mxu0 0
    %8768 = vmatprep.subr.bf16.mxu0 0
    %8769 = vmatpush1.bf16.msra.mxu0 0
    %8770 = vmatprep.subr.bf16.mxu0 0
    %8771 = vmatpush1.bf16.msra.mxu0 0
    %8772 = vmatprep.subr.bf16.mxu0 0
    %8773 = vmatpush1.bf16.msra.mxu0 0
    %8774 = vmatprep.subr.bf16.mxu0 0
    %8775 = vmatpush1.bf16.msra.mxu0 0
    %8776 = vmatprep.subr.bf16.mxu0 0
    %8777 = vmatpush1.bf16.msra.mxu0 0
    %8778 = vmatprep.subr.bf16.mxu0 0
    %8779 = vmatpush1.bf16.msra.mxu0 0
    %8780 = vmatprep.subr.bf16.mxu0 0
    %8781 = vmatpush1.bf16.msra.mxu0 0
    %8782 = vmatprep.subr.bf16.mxu0 0
    %8783 = vmatpush1.bf16.msra.mxu0 0
    %8784 = vmatprep.subr.bf16.mxu0 0
    %8785 = vmatpush1.bf16.msra.mxu0 0
    %8786 = vmatprep.subr.bf16.mxu0 0
    %8787 = vmatpush1.bf16.msra.mxu0 0
    %8788 = vmatprep.subr.bf16.mxu0 0
    %8789 = vmatpush1.bf16.msra.mxu0 0
    %8790 = vmatprep.subr.bf16.mxu0 0
    %8791 = vmatpush1.bf16.msra.mxu0 0
    %8792 = vmatprep.subr.bf16.mxu0 0
    %8793 = vmatpush1.bf16.msra.mxu0 0
    %8794 = vmatprep.subr.bf16.mxu0 0
    %8795 = vmatpush1.bf16.msra.mxu0 0
    %8796 = vmatprep.mubr.bf16.mxu0 0
    %8797 = vmatmul.mubr.bf16.gmra.mrb[0].mxu0 %v8759
    %v8798 = vpop.f32.mrb[0].mxu0
    %v8799 = vadd.f32 0.0, %v8798
    %v8800 = vpop.f32.mrb[0].mxu0
    %v8801 = vpop.f32.mrb[0].mxu0
    %v8802 = vpop.f32.mrb[0].mxu0
    %8803 = vdwg.mxu0
    %v8805 = vsel %vm903, %v8757, 0
    %v8808 = vsel %vm931, %v8622, 0
    %8810 = vmatprep.subr.bf16.mxu0 0
    %8811 = vmatpush1.bf16.msra.mxu0 %v8808
    %8812 = vmatprep.subr.bf16.mxu0 0
    %8813 = vmatpush1.bf16.msra.mxu0 0
    %8814 = vmatprep.subr.bf16.mxu0 0
    %8815 = vmatpush1.bf16.msra.mxu0 0
    %8816 = vmatprep.subr.bf16.mxu0 0
    %8817 = vmatpush1.bf16.msra.mxu0 0
    %8818 = vmatprep.subr.bf16.mxu0 0
    %8819 = vmatpush1.bf16.msra.mxu0 0
    %8820 = vmatprep.subr.bf16.mxu0 0
    %8821 = vmatpush1.bf16.msra.mxu0 0
    %8822 = vmatprep.subr.bf16.mxu0 0
    %8823 = vmatpush1.bf16.msra.mxu0 0
    %8824 = vmatprep.subr.bf16.mxu0 0
    %8825 = vmatpush1.bf16.msra.mxu0 0
    %8826 = vmatprep.subr.bf16.mxu0 0
    %8827 = vmatpush1.bf16.msra.mxu0 0
    %8828 = vmatprep.subr.bf16.mxu0 0
    %8829 = vmatpush1.bf16.msra.mxu0 0
    %8830 = vmatprep.subr.bf16.mxu0 0
    %8831 = vmatpush1.bf16.msra.mxu0 0
    %8832 = vmatprep.subr.bf16.mxu0 0
    %8833 = vmatpush1.bf16.msra.mxu0 0
    %8834 = vmatprep.subr.bf16.mxu0 0
    %8835 = vmatpush1.bf16.msra.mxu0 0
    %8836 = vmatprep.subr.bf16.mxu0 0
    %8837 = vmatpush1.bf16.msra.mxu0 0
    %8838 = vmatprep.subr.bf16.mxu0 0
    %8839 = vmatpush1.bf16.msra.mxu0 0
    %8840 = vmatprep.subr.bf16.mxu0 0
    %8841 = vmatpush1.bf16.msra.mxu0 0
    %8842 = vmatprep.mubr.bf16.mxu0 0
    %8843 = vmatmul.mubr.bf16.gmra.mrb[0].mxu0 %v8805
    %v8844 = vpop.f32.mrb[0].mxu0
    %v8845 = vadd.f32 0.0, %v8844
    %v8846 = vpop.f32.mrb[0].mxu0
    %v8847 = vpop.f32.mrb[0].mxu0
    %v8848 = vpop.f32.mrb[0].mxu0
    %8849 = vdwg.mxu0
    %v8850 = vpack.c.bf16 %v8845, %v8799
    %8852 = vrot.lane.b32.xlu0 %v8617, 96
    %v8853 = vpop.permute.xlu0 %8852
    %8855 = vrot.lane.b32.xlu0 %v8618, 96
    %v8856 = vpop.permute.xlu0 %8855
    %v8858 = vsel %vm808, %v8853, 0
    %v8861 = vsel %vm808, %v8856, 0
    %8863 = vmatprep.subr.bf16.mxu0 0
    %8864 = vmatpush1.bf16.xpose.msra.mxu0 %v8861
    %8865 = vmatprep.subr.bf16.mxu0 0
    %8866 = vmatpush1.bf16.xpose.msra.mxu0 0
    %8867 = vmatprep.subr.bf16.mxu0 0
    %8868 = vmatpush1.bf16.xpose.msra.mxu0 0
    %8869 = vmatprep.subr.bf16.mxu0 0
    %8870 = vmatpush1.bf16.xpose.msra.mxu0 0
    %8871 = vmatprep.subr.bf16.mxu0 0
    %8872 = vmatpush1.bf16.xpose.msra.mxu0 0
    %8873 = vmatprep.subr.bf16.mxu0 0
    %8874 = vmatpush1.bf16.xpose.msra.mxu0 0
    %8875 = vmatprep.subr.bf16.mxu0 0
    %8876 = vmatpush1.bf16.xpose.msra.mxu0 0
    %8877 = vmatprep.subr.bf16.mxu0 0
    %8878 = vmatpush1.bf16.xpose.msra.mxu0 0
    %8879 = vmatprep.subr.bf16.mxu0 0
    %8880 = vmatpush1.bf16.xpose.msra.mxu0 0
    %8881 = vmatprep.subr.bf16.mxu0 0
    %8882 = vmatpush1.bf16.xpose.msra.mxu0 0
    %8883 = vmatprep.subr.bf16.mxu0 0
    %8884 = vmatpush1.bf16.xpose.msra.mxu0 0
    %8885 = vmatprep.subr.bf16.mxu0 0
    %8886 = vmatpush1.bf16.xpose.msra.mxu0 0
    %8887 = vmatprep.subr.bf16.mxu0 0
    %8888 = vmatpush1.bf16.xpose.msra.mxu0 0
    %8889 = vmatprep.subr.bf16.mxu0 0
    %8890 = vmatpush1.bf16.xpose.msra.mxu0 0
    %8891 = vmatprep.subr.bf16.mxu0 0
    %8892 = vmatpush1.bf16.xpose.msra.mxu0 0
    %8893 = vmatprep.subr.bf16.mxu0 0
    %8894 = vmatpush1.bf16.xpose.msra.mxu0 0
    %8895 = vmatprep.mubr.bf16.mxu0 0
    %8896 = vmatmul.mubr.bf16.gmra.mrb[0].mxu0 %v8858
    %v8897 = vpop.f32.mrb[0].mxu0
    %v8898 = vadd.f32 0.0, %v8897
    %v8899 = vpop.f32.mrb[0].mxu0
    %v8900 = vpop.f32.mrb[0].mxu0
    %v8901 = vpop.f32.mrb[0].mxu0
    %8902 = vdwg.mxu0
    %8904 = vrot.lane.b32.xlu0 %v8620, 96
    %v8905 = vpop.permute.xlu0 %8904
    %8907 = vrot.lane.b32.xlu0 %v8621, 96
    %v8908 = vpop.permute.xlu0 %8907
    %v8910 = vsel %vm808, %v8905, 0
    %v8913 = vsel %vm808, %v8908, 0
    %8915 = vmatprep.subr.bf16.mxu0 0
    %8916 = vmatpush1.bf16.xpose.msra.mxu0 %v8913
    %8917 = vmatprep.subr.bf16.mxu0 0
    %8918 = vmatpush1.bf16.xpose.msra.mxu0 0
    %8919 = vmatprep.subr.bf16.mxu0 0
    %8920 = vmatpush1.bf16.xpose.msra.mxu0 0
    %8921 = vmatprep.subr.bf16.mxu0 0
    %8922 = vmatpush1.bf16.xpose.msra.mxu0 0
    %8923 = vmatprep.subr.bf16.mxu0 0
    %8924 = vmatpush1.bf16.xpose.msra.mxu0 0
    %8925 = vmatprep.subr.bf16.mxu0 0
    %8926 = vmatpush1.bf16.xpose.msra.mxu0 0
    %8927 = vmatprep.subr.bf16.mxu0 0
    %8928 = vmatpush1.bf16.xpose.msra.mxu0 0
    %8929 = vmatprep.subr.bf16.mxu0 0
    %8930 = vmatpush1.bf16.xpose.msra.mxu0 0
    %8931 = vmatprep.subr.bf16.mxu0 0
    %8932 = vmatpush1.bf16.xpose.msra.mxu0 0
    %8933 = vmatprep.subr.bf16.mxu0 0
    %8934 = vmatpush1.bf16.xpose.msra.mxu0 0
    %8935 = vmatprep.subr.bf16.mxu0 0
    %8936 = vmatpush1.bf16.xpose.msra.mxu0 0
    %8937 = vmatprep.subr.bf16.mxu0 0
    %8938 = vmatpush1.bf16.xpose.msra.mxu0 0
    %8939 = vmatprep.subr.bf16.mxu0 0
    %8940 = vmatpush1.bf16.xpose.msra.mxu0 0
    %8941 = vmatprep.subr.bf16.mxu0 0
    %8942 = vmatpush1.bf16.xpose.msra.mxu0 0
    %8943 = vmatprep.subr.bf16.mxu0 0
    %8944 = vmatpush1.bf16.xpose.msra.mxu0 0
    %8945 = vmatprep.subr.bf16.mxu0 0
    %8946 = vmatpush1.bf16.xpose.msra.mxu0 0
    %8947 = vmatprep.mubr.bf16.mxu0 0
    %8948 = vmatmul.mubr.bf16.gmra.mrb[0].mxu0 %v8910
    %v8949 = vpop.f32.mrb[0].mxu0
    %v8950 = vadd.f32 0.0, %v8949
    %v8951 = vpop.f32.mrb[0].mxu0
    %v8952 = vpop.f32.mrb[0].mxu0
    %v8953 = vpop.f32.mrb[0].mxu0
    %8954 = vdwg.mxu0
    %v8955 = vmul.f32 %v8898, 0.17677669
    %v8956 = vmul.f32 %v8950, 0.17677669
    %v8957 = vsel %vm903, %v8955, -inf
    %8958 = vmax.xlane.f32.xlu0 %v8957
    %v8959 = vpop.xlane.xlu0 %8958
    %v8960 = vsel %vm903, %v8956, -inf
    %8961 = vmax.xlane.f32.xlu0 %v8960
    %v8962 = vpop.xlane.xlu0 %8961
    %v8963 = vsub.f32 %v8955, %v8959
    %v8964 = vsub.f32 %v8956, %v8962
    %v8965 = vmul.f32 %v8963, 1.442695
    %v8966 = vpow.pop %v8965
    %v8967 = vmul.f32 %v8964, 1.442695
    %v8968 = vpow.pop %v8967
    %v8969 = vsel %vm903, %v8966, 0.0
    %8970 = vadd.xlane.f32.xlu0 %v8969
    %v8971 = vpop.xlane.xlu0 %8970
    %v8972 = vsel %vm903, %v8968, 0.0
    %8973 = vadd.xlane.f32.xlu0 %v8972
    %v8974 = vpop.xlane.xlu0 %8973
    %v8975 = vrcp.pop %v8971
    %v8976 = vrcp.pop %v8974
    %v8977 = vmul.f32 %v8966, %v8975
    %v8978 = vmul.f32 %v8968, %v8976
    %v8979 = vpack.c.bf16 %v8977, %v8977
    %v8980 = vpack.c.bf16 %v8978, %v8978
    %8982 = vrot.lane.b32.xlu0 %v8619, 96
    %v8983 = vpop.permute.xlu0 %8982
    %v8985 = vsel %vm903, %v8979, 0
    %v8988 = vsel %vm931, %v8983, 0
    %8990 = vmatprep.subr.bf16.mxu0 0
    %8991 = vmatpush1.bf16.msra.mxu0 %v8988
    %8992 = vmatprep.subr.bf16.mxu0 0
    %8993 = vmatpush1.bf16.msra.mxu0 0
    %8994 = vmatprep.subr.bf16.mxu0 0
    %8995 = vmatpush1.bf16.msra.mxu0 0
    %8996 = vmatprep.subr.bf16.mxu0 0
    %8997 = vmatpush1.bf16.msra.mxu0 0
    %8998 = vmatprep.subr.bf16.mxu0 0
    %8999 = vmatpush1.bf16.msra.mxu0 0
    %9000 = vmatprep.subr.bf16.mxu0 0
    %9001 = vmatpush1.bf16.msra.mxu0 0
    %9002 = vmatprep.subr.bf16.mxu0 0
    %9003 = vmatpush1.bf16.msra.mxu0 0
    %9004 = vmatprep.subr.bf16.mxu0 0
    %9005 = vmatpush1.bf16.msra.mxu0 0
    %9006 = vmatprep.subr.bf16.mxu0 0
    %9007 = vmatpush1.bf16.msra.mxu0 0
    %9008 = vmatprep.subr.bf16.mxu0 0
    %9009 = vmatpush1.bf16.msra.mxu0 0
    %9010 = vmatprep.subr.bf16.mxu0 0
    %9011 = vmatpush1.bf16.msra.mxu0 0
    %9012 = vmatprep.subr.bf16.mxu0 0
    %9013 = vmatpush1.bf16.msra.mxu0 0
    %9014 = vmatprep.subr.bf16.mxu0 0
    %9015 = vmatpush1.bf16.msra.mxu0 0
    %9016 = vmatprep.subr.bf16.mxu0 0
    %9017 = vmatpush1.bf16.msra.mxu0 0
    %9018 = vmatprep.subr.bf16.mxu0 0
    %9019 = vmatpush1.bf16.msra.mxu0 0
    %9020 = vmatprep.subr.bf16.mxu0 0
    %9021 = vmatpush1.bf16.msra.mxu0 0
    %9022 = vmatprep.mubr.bf16.mxu0 0
    %9023 = vmatmul.mubr.bf16.gmra.mrb[0].mxu0 %v8985
    %v9024 = vpop.f32.mrb[0].mxu0
    %v9025 = vadd.f32 0.0, %v9024
    %v9026 = vpop.f32.mrb[0].mxu0
    %v9027 = vpop.f32.mrb[0].mxu0
    %v9028 = vpop.f32.mrb[0].mxu0
    %9029 = vdwg.mxu0
    %9031 = vrot.lane.b32.xlu0 %v8622, 96
    %v9032 = vpop.permute.xlu0 %9031
    %v9034 = vsel %vm903, %v8980, 0
    %v9037 = vsel %vm931, %v9032, 0
    %9039 = vmatprep.subr.bf16.mxu0 0
    %9040 = vmatpush1.bf16.msra.mxu0 %v9037
    %9041 = vmatprep.subr.bf16.mxu0 0
    %9042 = vmatpush1.bf16.msra.mxu0 0
    %9043 = vmatprep.subr.bf16.mxu0 0
    %9044 = vmatpush1.bf16.msra.mxu0 0
    %9045 = vmatprep.subr.bf16.mxu0 0
    %9046 = vmatpush1.bf16.msra.mxu0 0
    %9047 = vmatprep.subr.bf16.mxu0 0
    %9048 = vmatpush1.bf16.msra.mxu0 0
    %9049 = vmatprep.subr.bf16.mxu0 0
    %9050 = vmatpush1.bf16.msra.mxu0 0
    %9051 = vmatprep.subr.bf16.mxu0 0
    %9052 = vmatpush1.bf16.msra.mxu0 0
    %9053 = vmatprep.subr.bf16.mxu0 0
    %9054 = vmatpush1.bf16.msra.mxu0 0
    %9055 = vmatprep.subr.bf16.mxu0 0
    %9056 = vmatpush1.bf16.msra.mxu0 0
    %9057 = vmatprep.subr.bf16.mxu0 0
    %9058 = vmatpush1.bf16.msra.mxu0 0
    %9059 = vmatprep.subr.bf16.mxu0 0
    %9060 = vmatpush1.bf16.msra.mxu0 0
    %9061 = vmatprep.subr.bf16.mxu0 0
    %9062 = vmatpush1.bf16.msra.mxu0 0
    %9063 = vmatprep.subr.bf16.mxu0 0
    %9064 = vmatpush1.bf16.msra.mxu0 0
    %9065 = vmatprep.subr.bf16.mxu0 0
    %9066 = vmatpush1.bf16.msra.mxu0 0
    %9067 = vmatprep.subr.bf16.mxu0 0
    %9068 = vmatpush1.bf16.msra.mxu0 0
    %9069 = vmatprep.subr.bf16.mxu0 0
    %9070 = vmatpush1.bf16.msra.mxu0 0
    %9071 = vmatprep.mubr.bf16.mxu0 0
    %9072 = vmatmul.mubr.bf16.gmra.mrb[0].mxu0 %v9034
    %v9073 = vpop.f32.mrb[0].mxu0
    %v9074 = vadd.f32 0.0, %v9073
    %v9075 = vpop.f32.mrb[0].mxu0
    %v9076 = vpop.f32.mrb[0].mxu0
    %v9077 = vpop.f32.mrb[0].mxu0
    %9078 = vdwg.mxu0
    %v9079 = vpack.c.bf16 %v9074, %v9025
    %v9084 = vunpack.c.l.b16 %v8628
    %v9085 = vunpack.c.l.b16 %v8629
    %v9086 = vunpack.c.l.b16 %v8630
    %v9087 = vunpack.c.l.b16 %v8631
    %v9088 = vpack.c.b16 %v9085, %v9084
    %v9089 = vpack.c.b16 %v9087, %v9086
    %v9093 = vsel %vm808, %v9079, 0
    %9095 = vmatprep.subr.bf16.mxu0 0
    %9096 = vmatpush1.bf16.msra.mxu0 %v9088
    %9097 = vmatprep.subr.bf16.mxu0 0
    %9098 = vmatpush1.bf16.msra.mxu0 %v9089
    %9099 = vmatprep.subr.bf16.mxu0 0
    %9100 = vmatpush1.bf16.msra.mxu0 0
    %9101 = vmatprep.subr.bf16.mxu0 0
    %9102 = vmatpush1.bf16.msra.mxu0 0
    %9103 = vmatprep.subr.bf16.mxu0 0
    %9104 = vmatpush1.bf16.msra.mxu0 0
    %9105 = vmatprep.subr.bf16.mxu0 0
    %9106 = vmatpush1.bf16.msra.mxu0 0
    %9107 = vmatprep.subr.bf16.mxu0 0
    %9108 = vmatpush1.bf16.msra.mxu0 0
    %9109 = vmatprep.subr.bf16.mxu0 0
    %9110 = vmatpush1.bf16.msra.mxu0 0
    %9111 = vmatprep.subr.bf16.mxu0 0
    %9112 = vmatpush1.bf16.msra.mxu0 0
    %9113 = vmatprep.subr.bf16.mxu0 0
    %9114 = vmatpush1.bf16.msra.mxu0 0
    %9115 = vmatprep.subr.bf16.mxu0 0
    %9116 = vmatpush1.bf16.msra.mxu0 0
    %9117 = vmatprep.subr.bf16.mxu0 0
    %9118 = vmatpush1.bf16.msra.mxu0 0
    %9119 = vmatprep.subr.bf16.mxu0 0
    %9120 = vmatpush1.bf16.msra.mxu0 0
    %9121 = vmatprep.subr.bf16.mxu0 0
    %9122 = vmatpush1.bf16.msra.mxu0 0
    %9123 = vmatprep.subr.bf16.mxu0 0
    %9124 = vmatpush1.bf16.msra.mxu0 0
    %9125 = vmatprep.subr.bf16.mxu0 0
    %9126 = vmatpush1.bf16.msra.mxu0 0
    %9127 = vmatprep.mubr.bf16.mxu0 0
    %9128 = vmatmul.mubr.bf16.gmra.mrb[0].mxu0 %v9093
    %v9129 = vpop.f32.mrb[0].mxu0
    %v9130 = vadd.f32 0.0, %v9129
    %v9131 = vpop.f32.mrb[0].mxu0
    %v9132 = vpop.f32.mrb[0].mxu0
    %v9133 = vadd.f32 0.0, %v9132
    %v9134 = vpop.f32.mrb[0].mxu0
    %9135 = vdwg.mxu0
    %v9140 = vunpack.c.l.b16 %v8624
    %v9141 = vunpack.c.l.b16 %v8625
    %v9142 = vunpack.c.l.b16 %v8626
    %v9143 = vunpack.c.l.b16 %v8627
    %v9144 = vpack.c.b16 %v9141, %v9140
    %v9145 = vpack.c.b16 %v9143, %v9142
    %v9149 = vsel %vm808, %v8850, 0
    %9151 = vmatprep.subr.bf16.mxu0 0
    %9152 = vmatpush1.bf16.msra.mxu0 %v9144
    %9153 = vmatprep.subr.bf16.mxu0 0
    %9154 = vmatpush1.bf16.msra.mxu0 %v9145
    %9155 = vmatprep.subr.bf16.mxu0 0
    %9156 = vmatpush1.bf16.msra.mxu0 0
    %9157 = vmatprep.subr.bf16.mxu0 0
    %9158 = vmatpush1.bf16.msra.mxu0 0
    %9159 = vmatprep.subr.bf16.mxu0 0
    %9160 = vmatpush1.bf16.msra.mxu0 0
    %9161 = vmatprep.subr.bf16.mxu0 0
    %9162 = vmatpush1.bf16.msra.mxu0 0
    %9163 = vmatprep.subr.bf16.mxu0 0
    %9164 = vmatpush1.bf16.msra.mxu0 0
    %9165 = vmatprep.subr.bf16.mxu0 0
    %9166 = vmatpush1.bf16.msra.mxu0 0
    %9167 = vmatprep.subr.bf16.mxu0 0
    %9168 = vmatpush1.bf16.msra.mxu0 0
    %9169 = vmatprep.subr.bf16.mxu0 0
    %9170 = vmatpush1.bf16.msra.mxu0 0
    %9171 = vmatprep.subr.bf16.mxu0 0
    %9172 = vmatpush1.bf16.msra.mxu0 0
    %9173 = vmatprep.subr.bf16.mxu0 0
    %9174 = vmatpush1.bf16.msra.mxu0 0
    %9175 = vmatprep.subr.bf16.mxu0 0
    %9176 = vmatpush1.bf16.msra.mxu0 0
    %9177 = vmatprep.subr.bf16.mxu0 0
    %9178 = vmatpush1.bf16.msra.mxu0 0
    %9179 = vmatprep.subr.bf16.mxu0 0
    %9180 = vmatpush1.bf16.msra.mxu0 0
    %9181 = vmatprep.subr.bf16.mxu0 0
    %9182 = vmatpush1.bf16.msra.mxu0 0
    %9183 = vmatprep.mubr.bf16.mxu0 0
    %9184 = vmatmul.mubr.bf16.gmra.mrb[0].mxu0 %v9149
    %v9185 = vpop.f32.mrb[0].mxu0
    %v9186 = vadd.f32 %v9130, %v9185
    %v9187 = vpop.f32.mrb[0].mxu0
    %v9188 = vpop.f32.mrb[0].mxu0
    %v9189 = vadd.f32 %v9133, %v9188
    %v9190 = vpop.f32.mrb[0].mxu0
    %9191 = vdwg.mxu0
    %9192 = vrot.lane.b32.xlu0 %v8617, 64
    %v9193 = vpop.permute.xlu0 %9192
    %9194 = vrot.lane.b32.xlu0 %v8618, 64
    %v9195 = vpop.permute.xlu0 %9194
    %v9197 = vsel %vm808, %v9193, 0
    %v9200 = vsel %vm808, %v9195, 0
    %9202 = vmatprep.subr.bf16.mxu0 0
    %9203 = vmatpush1.bf16.xpose.msra.mxu0 %v9200
    %9204 = vmatprep.subr.bf16.mxu0 0
    %9205 = vmatpush1.bf16.xpose.msra.mxu0 0
    %9206 = vmatprep.subr.bf16.mxu0 0
    %9207 = vmatpush1.bf16.xpose.msra.mxu0 0
    %9208 = vmatprep.subr.bf16.mxu0 0
    %9209 = vmatpush1.bf16.xpose.msra.mxu0 0
    %9210 = vmatprep.subr.bf16.mxu0 0
    %9211 = vmatpush1.bf16.xpose.msra.mxu0 0
    %9212 = vmatprep.subr.bf16.mxu0 0
    %9213 = vmatpush1.bf16.xpose.msra.mxu0 0
    %9214 = vmatprep.subr.bf16.mxu0 0
    %9215 = vmatpush1.bf16.xpose.msra.mxu0 0
    %9216 = vmatprep.subr.bf16.mxu0 0
    %9217 = vmatpush1.bf16.xpose.msra.mxu0 0
    %9218 = vmatprep.subr.bf16.mxu0 0
    %9219 = vmatpush1.bf16.xpose.msra.mxu0 0
    %9220 = vmatprep.subr.bf16.mxu0 0
    %9221 = vmatpush1.bf16.xpose.msra.mxu0 0
    %9222 = vmatprep.subr.bf16.mxu0 0
    %9223 = vmatpush1.bf16.xpose.msra.mxu0 0
    %9224 = vmatprep.subr.bf16.mxu0 0
    %9225 = vmatpush1.bf16.xpose.msra.mxu0 0
    %9226 = vmatprep.subr.bf16.mxu0 0
    %9227 = vmatpush1.bf16.xpose.msra.mxu0 0
    %9228 = vmatprep.subr.bf16.mxu0 0
    %9229 = vmatpush1.bf16.xpose.msra.mxu0 0
    %9230 = vmatprep.subr.bf16.mxu0 0
    %9231 = vmatpush1.bf16.xpose.msra.mxu0 0
    %9232 = vmatprep.subr.bf16.mxu0 0
    %9233 = vmatpush1.bf16.xpose.msra.mxu0 0
    %9234 = vmatprep.mubr.bf16.mxu0 0
    %9235 = vmatmul.mubr.bf16.gmra.mrb[0].mxu0 %v9197
    %v9236 = vpop.f32.mrb[0].mxu0
    %v9237 = vadd.f32 0.0, %v9236
    %v9238 = vpop.f32.mrb[0].mxu0
    %v9239 = vpop.f32.mrb[0].mxu0
    %v9240 = vpop.f32.mrb[0].mxu0
    %9241 = vdwg.mxu0
    %9242 = vrot.lane.b32.xlu0 %v8620, 64
    %v9243 = vpop.permute.xlu0 %9242
    %9244 = vrot.lane.b32.xlu0 %v8621, 64
    %v9245 = vpop.permute.xlu0 %9244
    %v9247 = vsel %vm808, %v9243, 0
    %v9250 = vsel %vm808, %v9245, 0
    %9252 = vmatprep.subr.bf16.mxu0 0
    %9253 = vmatpush1.bf16.xpose.msra.mxu0 %v9250
    %9254 = vmatprep.subr.bf16.mxu0 0
    %9255 = vmatpush1.bf16.xpose.msra.mxu0 0
    %9256 = vmatprep.subr.bf16.mxu0 0
    %9257 = vmatpush1.bf16.xpose.msra.mxu0 0
    %9258 = vmatprep.subr.bf16.mxu0 0
    %9259 = vmatpush1.bf16.xpose.msra.mxu0 0
    %9260 = vmatprep.subr.bf16.mxu0 0
    %9261 = vmatpush1.bf16.xpose.msra.mxu0 0
    %9262 = vmatprep.subr.bf16.mxu0 0
    %9263 = vmatpush1.bf16.xpose.msra.mxu0 0
    %9264 = vmatprep.subr.bf16.mxu0 0
    %9265 = vmatpush1.bf16.xpose.msra.mxu0 0
    %9266 = vmatprep.subr.bf16.mxu0 0
    %9267 = vmatpush1.bf16.xpose.msra.mxu0 0
    %9268 = vmatprep.subr.bf16.mxu0 0
    %9269 = vmatpush1.bf16.xpose.msra.mxu0 0
    %9270 = vmatprep.subr.bf16.mxu0 0
    %9271 = vmatpush1.bf16.xpose.msra.mxu0 0
    %9272 = vmatprep.subr.bf16.mxu0 0
    %9273 = vmatpush1.bf16.xpose.msra.mxu0 0
    %9274 = vmatprep.subr.bf16.mxu0 0
    %9275 = vmatpush1.bf16.xpose.msra.mxu0 0
    %9276 = vmatprep.subr.bf16.mxu0 0
    %9277 = vmatpush1.bf16.xpose.msra.mxu0 0
    %9278 = vmatprep.subr.bf16.mxu0 0
    %9279 = vmatpush1.bf16.xpose.msra.mxu0 0
    %9280 = vmatprep.subr.bf16.mxu0 0
    %9281 = vmatpush1.bf16.xpose.msra.mxu0 0
    %9282 = vmatprep.subr.bf16.mxu0 0
    %9283 = vmatpush1.bf16.xpose.msra.mxu0 0
    %9284 = vmatprep.mubr.bf16.mxu0 0
    %9285 = vmatmul.mubr.bf16.gmra.mrb[0].mxu0 %v9247
    %v9286 = vpop.f32.mrb[0].mxu0
    %v9287 = vadd.f32 0.0, %v9286
    %v9288 = vpop.f32.mrb[0].mxu0
    %v9289 = vpop.f32.mrb[0].mxu0
    %v9290 = vpop.f32.mrb[0].mxu0
    %9291 = vdwg.mxu0
    %v9292 = vmul.f32 %v9237, 0.17677669
    %v9293 = vmul.f32 %v9287, 0.17677669
    %v9294 = vsel %vm903, %v9292, -inf
    %9295 = vmax.xlane.f32.xlu0 %v9294
    %v9296 = vpop.xlane.xlu0 %9295
    %v9297 = vsel %vm903, %v9293, -inf
    %9298 = vmax.xlane.f32.xlu0 %v9297
    %v9299 = vpop.xlane.xlu0 %9298
    %v9300 = vsub.f32 %v9292, %v9296
    %v9301 = vsub.f32 %v9293, %v9299
    %v9302 = vmul.f32 %v9300, 1.442695
    %v9303 = vpow.pop %v9302
    %v9304 = vmul.f32 %v9301, 1.442695
    %v9305 = vpow.pop %v9304
    %v9306 = vsel %vm903, %v9303, 0.0
    %9307 = vadd.xlane.f32.xlu0 %v9306
    %v9308 = vpop.xlane.xlu0 %9307
    %v9309 = vsel %vm903, %v9305, 0.0
    %9310 = vadd.xlane.f32.xlu0 %v9309
    %v9311 = vpop.xlane.xlu0 %9310
    %v9312 = vrcp.pop %v9308
    %v9313 = vrcp.pop %v9311
    %v9314 = vmul.f32 %v9303, %v9312
    %v9315 = vmul.f32 %v9305, %v9313
    %v9316 = vpack.c.bf16 %v9314, %v9314
    %v9317 = vpack.c.bf16 %v9315, %v9315
    %9318 = vrot.lane.b32.xlu0 %v8619, 64
    %v9319 = vpop.permute.xlu0 %9318
    %v9321 = vsel %vm903, %v9316, 0
    %v9324 = vsel %vm931, %v9319, 0
    %9326 = vmatprep.subr.bf16.mxu0 0
    %9327 = vmatpush1.bf16.msra.mxu0 %v9324
    %9328 = vmatprep.subr.bf16.mxu0 0
    %9329 = vmatpush1.bf16.msra.mxu0 0
    %9330 = vmatprep.subr.bf16.mxu0 0
    %9331 = vmatpush1.bf16.msra.mxu0 0
    %9332 = vmatprep.subr.bf16.mxu0 0
    %9333 = vmatpush1.bf16.msra.mxu0 0
    %9334 = vmatprep.subr.bf16.mxu0 0
    %9335 = vmatpush1.bf16.msra.mxu0 0
    %9336 = vmatprep.subr.bf16.mxu0 0
    %9337 = vmatpush1.bf16.msra.mxu0 0
    %9338 = vmatprep.subr.bf16.mxu0 0
    %9339 = vmatpush1.bf16.msra.mxu0 0
    %9340 = vmatprep.subr.bf16.mxu0 0
    %9341 = vmatpush1.bf16.msra.mxu0 0
    %9342 = vmatprep.subr.bf16.mxu0 0
    %9343 = vmatpush1.bf16.msra.mxu0 0
    %9344 = vmatprep.subr.bf16.mxu0 0
    %9345 = vmatpush1.bf16.msra.mxu0 0
    %9346 = vmatprep.subr.bf16.mxu0 0
    %9347 = vmatpush1.bf16.msra.mxu0 0
    %9348 = vmatprep.subr.bf16.mxu0 0
    %9349 = vmatpush1.bf16.msra.mxu0 0
    %9350 = vmatprep.subr.bf16.mxu0 0
    %9351 = vmatpush1.bf16.msra.mxu0 0
    %9352 = vmatprep.subr.bf16.mxu0 0
    %9353 = vmatpush1.bf16.msra.mxu0 0
    %9354 = vmatprep.subr.bf16.mxu0 0
    %9355 = vmatpush1.bf16.msra.mxu0 0
    %9356 = vmatprep.subr.bf16.mxu0 0
    %9357 = vmatpush1.bf16.msra.mxu0 0
    %9358 = vmatprep.mubr.bf16.mxu0 0
    %9359 = vmatmul.mubr.bf16.gmra.mrb[0].mxu0 %v9321
    %v9360 = vpop.f32.mrb[0].mxu0
    %v9361 = vadd.f32 0.0, %v9360
    %v9362 = vpop.f32.mrb[0].mxu0
    %v9363 = vpop.f32.mrb[0].mxu0
    %v9364 = vpop.f32.mrb[0].mxu0
    %9365 = vdwg.mxu0
    %9366 = vrot.lane.b32.xlu0 %v8622, 64
    %v9367 = vpop.permute.xlu0 %9366
    %v9369 = vsel %vm903, %v9317, 0
    %v9372 = vsel %vm931, %v9367, 0
    %9374 = vmatprep.subr.bf16.mxu0 0
    %9375 = vmatpush1.bf16.msra.mxu0 %v9372
    %9376 = vmatprep.subr.bf16.mxu0 0
    %9377 = vmatpush1.bf16.msra.mxu0 0
    %9378 = vmatprep.subr.bf16.mxu0 0
    %9379 = vmatpush1.bf16.msra.mxu0 0
    %9380 = vmatprep.subr.bf16.mxu0 0
    %9381 = vmatpush1.bf16.msra.mxu0 0
    %9382 = vmatprep.subr.bf16.mxu0 0
    %9383 = vmatpush1.bf16.msra.mxu0 0
    %9384 = vmatprep.subr.bf16.mxu0 0
    %9385 = vmatpush1.bf16.msra.mxu0 0
    %9386 = vmatprep.subr.bf16.mxu0 0
    %9387 = vmatpush1.bf16.msra.mxu0 0
    %9388 = vmatprep.subr.bf16.mxu0 0
    %9389 = vmatpush1.bf16.msra.mxu0 0
    %9390 = vmatprep.subr.bf16.mxu0 0
    %9391 = vmatpush1.bf16.msra.mxu0 0
    %9392 = vmatprep.subr.bf16.mxu0 0
    %9393 = vmatpush1.bf16.msra.mxu0 0
    %9394 = vmatprep.subr.bf16.mxu0 0
    %9395 = vmatpush1.bf16.msra.mxu0 0
    %9396 = vmatprep.subr.bf16.mxu0 0
    %9397 = vmatpush1.bf16.msra.mxu0 0
    %9398 = vmatprep.subr.bf16.mxu0 0
    %9399 = vmatpush1.bf16.msra.mxu0 0
    %9400 = vmatprep.subr.bf16.mxu0 0
    %9401 = vmatpush1.bf16.msra.mxu0 0
    %9402 = vmatprep.subr.bf16.mxu0 0
    %9403 = vmatpush1.bf16.msra.mxu0 0
    %9404 = vmatprep.subr.bf16.mxu0 0
    %9405 = vmatpush1.bf16.msra.mxu0 0
    %9406 = vmatprep.mubr.bf16.mxu0 0
    %9407 = vmatmul.mubr.bf16.gmra.mrb[0].mxu0 %v9369
    %v9408 = vpop.f32.mrb[0].mxu0
    %v9409 = vadd.f32 0.0, %v9408
    %v9410 = vpop.f32.mrb[0].mxu0
    %v9411 = vpop.f32.mrb[0].mxu0
    %v9412 = vpop.f32.mrb[0].mxu0
    %9413 = vdwg.mxu0
    %v9414 = vpack.c.bf16 %v9409, %v9361
    %v9419 = vunpack.c.l.b16 %v8632
    %v9420 = vunpack.c.l.b16 %v8633
    %v9421 = vunpack.c.l.b16 %v8634
    %v9422 = vunpack.c.l.b16 %v8635
    %v9423 = vpack.c.b16 %v9420, %v9419
    %v9424 = vpack.c.b16 %v9422, %v9421
    %v9428 = vsel %vm808, %v9414, 0
    %9430 = vmatprep.subr.bf16.mxu0 0
    %9431 = vmatpush1.bf16.msra.mxu0 %v9423
    %9432 = vmatprep.subr.bf16.mxu0 0
    %9433 = vmatpush1.bf16.msra.mxu0 %v9424
    %9434 = vmatprep.subr.bf16.mxu0 0
    %9435 = vmatpush1.bf16.msra.mxu0 0
    %9436 = vmatprep.subr.bf16.mxu0 0
    %9437 = vmatpush1.bf16.msra.mxu0 0
    %9438 = vmatprep.subr.bf16.mxu0 0
    %9439 = vmatpush1.bf16.msra.mxu0 0
    %9440 = vmatprep.subr.bf16.mxu0 0
    %9441 = vmatpush1.bf16.msra.mxu0 0
    %9442 = vmatprep.subr.bf16.mxu0 0
    %9443 = vmatpush1.bf16.msra.mxu0 0
    %9444 = vmatprep.subr.bf16.mxu0 0
    %9445 = vmatpush1.bf16.msra.mxu0 0
    %9446 = vmatprep.subr.bf16.mxu0 0
    %9447 = vmatpush1.bf16.msra.mxu0 0
    %9448 = vmatprep.subr.bf16.mxu0 0
    %9449 = vmatpush1.bf16.msra.mxu0 0
    %9450 = vmatprep.subr.bf16.mxu0 0
    %9451 = vmatpush1.bf16.msra.mxu0 0
    %9452 = vmatprep.subr.bf16.mxu0 0
    %9453 = vmatpush1.bf16.msra.mxu0 0
    %9454 = vmatprep.subr.bf16.mxu0 0
    %9455 = vmatpush1.bf16.msra.mxu0 0
    %9456 = vmatprep.subr.bf16.mxu0 0
    %9457 = vmatpush1.bf16.msra.mxu0 0
    %9458 = vmatprep.subr.bf16.mxu0 0
    %9459 = vmatpush1.bf16.msra.mxu0 0
    %9460 = vmatprep.subr.bf16.mxu0 0
    %9461 = vmatpush1.bf16.msra.mxu0 0
    %9462 = vmatprep.mubr.bf16.mxu0 0
    %9463 = vmatmul.mubr.bf16.gmra.mrb[0].mxu0 %v9428
    %v9464 = vpop.f32.mrb[0].mxu0
    %v9465 = vadd.f32 0.0, %v9464
    %v9466 = vpop.f32.mrb[0].mxu0
    %v9467 = vpop.f32.mrb[0].mxu0
    %v9468 = vadd.f32 0.0, %v9467
    %v9469 = vpop.f32.mrb[0].mxu0
    %9470 = vdwg.mxu0
    %v9471 = vadd.f32 %v9186, %v9465
    %v9472 = vadd.f32 %v9189, %v9468
    %9473 = vrot.lane.b32.xlu0 %v8617, 32
    %v9474 = vpop.permute.xlu0 %9473
    %9475 = vrot.lane.b32.xlu0 %v8618, 32
    %v9476 = vpop.permute.xlu0 %9475
    %v9478 = vsel %vm808, %v9474, 0
    %v9481 = vsel %vm808, %v9476, 0
    %9483 = vmatprep.subr.bf16.mxu0 0
    %9484 = vmatpush1.bf16.xpose.msra.mxu0 %v9481
    %9485 = vmatprep.subr.bf16.mxu0 0
    %9486 = vmatpush1.bf16.xpose.msra.mxu0 0
    %9487 = vmatprep.subr.bf16.mxu0 0
    %9488 = vmatpush1.bf16.xpose.msra.mxu0 0
    %9489 = vmatprep.subr.bf16.mxu0 0
    %9490 = vmatpush1.bf16.xpose.msra.mxu0 0
    %9491 = vmatprep.subr.bf16.mxu0 0
    %9492 = vmatpush1.bf16.xpose.msra.mxu0 0
    %9493 = vmatprep.subr.bf16.mxu0 0
    %9494 = vmatpush1.bf16.xpose.msra.mxu0 0
    %9495 = vmatprep.subr.bf16.mxu0 0
    %9496 = vmatpush1.bf16.xpose.msra.mxu0 0
    %9497 = vmatprep.subr.bf16.mxu0 0
    %9498 = vmatpush1.bf16.xpose.msra.mxu0 0
    %9499 = vmatprep.subr.bf16.mxu0 0
    %9500 = vmatpush1.bf16.xpose.msra.mxu0 0
    %9501 = vmatprep.subr.bf16.mxu0 0
    %9502 = vmatpush1.bf16.xpose.msra.mxu0 0
    %9503 = vmatprep.subr.bf16.mxu0 0
    %9504 = vmatpush1.bf16.xpose.msra.mxu0 0
    %9505 = vmatprep.subr.bf16.mxu0 0
    %9506 = vmatpush1.bf16.xpose.msra.mxu0 0
    %9507 = vmatprep.subr.bf16.mxu0 0
    %9508 = vmatpush1.bf16.xpose.msra.mxu0 0
    %9509 = vmatprep.subr.bf16.mxu0 0
    %9510 = vmatpush1.bf16.xpose.msra.mxu0 0
    %9511 = vmatprep.subr.bf16.mxu0 0
    %9512 = vmatpush1.bf16.xpose.msra.mxu0 0
    %9513 = vmatprep.subr.bf16.mxu0 0
    %9514 = vmatpush1.bf16.xpose.msra.mxu0 0
    %9515 = vmatprep.mubr.bf16.mxu0 0
    %9516 = vmatmul.mubr.bf16.gmra.mrb[0].mxu0 %v9478
    %v9517 = vpop.f32.mrb[0].mxu0
    %v9518 = vadd.f32 0.0, %v9517
    %v9519 = vpop.f32.mrb[0].mxu0
    %v9520 = vpop.f32.mrb[0].mxu0
    %v9521 = vpop.f32.mrb[0].mxu0
    %9522 = vdwg.mxu0
    %9523 = vrot.lane.b32.xlu0 %v8620, 32
    %v9524 = vpop.permute.xlu0 %9523
    %9525 = vrot.lane.b32.xlu0 %v8621, 32
    %v9526 = vpop.permute.xlu0 %9525
    %v9528 = vsel %vm808, %v9524, 0
    %v9531 = vsel %vm808, %v9526, 0
    %9533 = vmatprep.subr.bf16.mxu0 0
    %9534 = vmatpush1.bf16.xpose.msra.mxu0 %v9531
    %9535 = vmatprep.subr.bf16.mxu0 0
    %9536 = vmatpush1.bf16.xpose.msra.mxu0 0
    %9537 = vmatprep.subr.bf16.mxu0 0
    %9538 = vmatpush1.bf16.xpose.msra.mxu0 0
    %9539 = vmatprep.subr.bf16.mxu0 0
    %9540 = vmatpush1.bf16.xpose.msra.mxu0 0
    %9541 = vmatprep.subr.bf16.mxu0 0
    %9542 = vmatpush1.bf16.xpose.msra.mxu0 0
    %9543 = vmatprep.subr.bf16.mxu0 0
    %9544 = vmatpush1.bf16.xpose.msra.mxu0 0
    %9545 = vmatprep.subr.bf16.mxu0 0
    %9546 = vmatpush1.bf16.xpose.msra.mxu0 0
    %9547 = vmatprep.subr.bf16.mxu0 0
    %9548 = vmatpush1.bf16.xpose.msra.mxu0 0
    %9549 = vmatprep.subr.bf16.mxu0 0
    %9550 = vmatpush1.bf16.xpose.msra.mxu0 0
    %9551 = vmatprep.subr.bf16.mxu0 0
    %9552 = vmatpush1.bf16.xpose.msra.mxu0 0
    %9553 = vmatprep.subr.bf16.mxu0 0
    %9554 = vmatpush1.bf16.xpose.msra.mxu0 0
    %9555 = vmatprep.subr.bf16.mxu0 0
    %9556 = vmatpush1.bf16.xpose.msra.mxu0 0
    %9557 = vmatprep.subr.bf16.mxu0 0
    %9558 = vmatpush1.bf16.xpose.msra.mxu0 0
    %9559 = vmatprep.subr.bf16.mxu0 0
    %9560 = vmatpush1.bf16.xpose.msra.mxu0 0
    %9561 = vmatprep.subr.bf16.mxu0 0
    %9562 = vmatpush1.bf16.xpose.msra.mxu0 0
    %9563 = vmatprep.subr.bf16.mxu0 0
    %9564 = vmatpush1.bf16.xpose.msra.mxu0 0
    %9565 = vmatprep.mubr.bf16.mxu0 0
    %9566 = vmatmul.mubr.bf16.gmra.mrb[0].mxu0 %v9528
    %v9567 = vpop.f32.mrb[0].mxu0
    %v9568 = vadd.f32 0.0, %v9567
    %v9569 = vpop.f32.mrb[0].mxu0
    %v9570 = vpop.f32.mrb[0].mxu0
    %v9571 = vpop.f32.mrb[0].mxu0
    %9572 = vdwg.mxu0
    %v9573 = vmul.f32 %v9518, 0.17677669
    %v9574 = vmul.f32 %v9568, 0.17677669
    %v9575 = vsel %vm903, %v9573, -inf
    %9576 = vmax.xlane.f32.xlu0 %v9575
    %v9577 = vpop.xlane.xlu0 %9576
    %v9578 = vsel %vm903, %v9574, -inf
    %9579 = vmax.xlane.f32.xlu0 %v9578
    %v9580 = vpop.xlane.xlu0 %9579
    %v9581 = vsub.f32 %v9573, %v9577
    %v9582 = vsub.f32 %v9574, %v9580
    %v9583 = vmul.f32 %v9581, 1.442695
    %v9584 = vpow.pop %v9583
    %v9585 = vmul.f32 %v9582, 1.442695
    %v9586 = vpow.pop %v9585
    %v9587 = vsel %vm903, %v9584, 0.0
    %9588 = vadd.xlane.f32.xlu0 %v9587
    %v9589 = vpop.xlane.xlu0 %9588
    %v9590 = vsel %vm903, %v9586, 0.0
    %9591 = vadd.xlane.f32.xlu0 %v9590
    %v9592 = vpop.xlane.xlu0 %9591
    %v9593 = vrcp.pop %v9589
    %v9594 = vrcp.pop %v9592
    %v9595 = vmul.f32 %v9584, %v9593
    %v9596 = vmul.f32 %v9586, %v9594
    %v9597 = vpack.c.bf16 %v9595, %v9595
    %v9598 = vpack.c.bf16 %v9596, %v9596
    %9599 = vrot.lane.b32.xlu0 %v8619, 32
    %v9600 = vpop.permute.xlu0 %9599
    %v9602 = vsel %vm903, %v9597, 0
    %v9605 = vsel %vm931, %v9600, 0
    %9607 = vmatprep.subr.bf16.mxu0 0
    %9608 = vmatpush1.bf16.msra.mxu0 %v9605
    %9609 = vmatprep.subr.bf16.mxu0 0
    %9610 = vmatpush1.bf16.msra.mxu0 0
    %9611 = vmatprep.subr.bf16.mxu0 0
    %9612 = vmatpush1.bf16.msra.mxu0 0
    %9613 = vmatprep.subr.bf16.mxu0 0
    %9614 = vmatpush1.bf16.msra.mxu0 0
    %9615 = vmatprep.subr.bf16.mxu0 0
    %9616 = vmatpush1.bf16.msra.mxu0 0
    %9617 = vmatprep.subr.bf16.mxu0 0
    %9618 = vmatpush1.bf16.msra.mxu0 0
    %9619 = vmatprep.subr.bf16.mxu0 0
    %9620 = vmatpush1.bf16.msra.mxu0 0
    %9621 = vmatprep.subr.bf16.mxu0 0
    %9622 = vmatpush1.bf16.msra.mxu0 0
    %9623 = vmatprep.subr.bf16.mxu0 0
    %9624 = vmatpush1.bf16.msra.mxu0 0
    %9625 = vmatprep.subr.bf16.mxu0 0
    %9626 = vmatpush1.bf16.msra.mxu0 0
    %9627 = vmatprep.subr.bf16.mxu0 0
    %9628 = vmatpush1.bf16.msra.mxu0 0
    %9629 = vmatprep.subr.bf16.mxu0 0
    %9630 = vmatpush1.bf16.msra.mxu0 0
    %9631 = vmatprep.subr.bf16.mxu0 0
    %9632 = vmatpush1.bf16.msra.mxu0 0
    %9633 = vmatprep.subr.bf16.mxu0 0
    %9634 = vmatpush1.bf16.msra.mxu0 0
    %9635 = vmatprep.subr.bf16.mxu0 0
    %9636 = vmatpush1.bf16.msra.mxu0 0
    %9637 = vmatprep.subr.bf16.mxu0 0
    %9638 = vmatpush1.bf16.msra.mxu0 0
    %9639 = vmatprep.mubr.bf16.mxu0 0
    %9640 = vmatmul.mubr.bf16.gmra.mrb[0].mxu0 %v9602
    %v9641 = vpop.f32.mrb[0].mxu0
    %v9642 = vadd.f32 0.0, %v9641
    %v9643 = vpop.f32.mrb[0].mxu0
    %v9644 = vpop.f32.mrb[0].mxu0
    %v9645 = vpop.f32.mrb[0].mxu0
    %9646 = vdwg.mxu0
    %9647 = vrot.lane.b32.xlu0 %v8622, 32
    %v9648 = vpop.permute.xlu0 %9647
    %v9650 = vsel %vm903, %v9598, 0
    %v9653 = vsel %vm931, %v9648, 0
    %9655 = vmatprep.subr.bf16.mxu0 0
    %9656 = vmatpush1.bf16.msra.mxu0 %v9653
    %9657 = vmatprep.subr.bf16.mxu0 0
    %9658 = vmatpush1.bf16.msra.mxu0 0
    %9659 = vmatprep.subr.bf16.mxu0 0
    %9660 = vmatpush1.bf16.msra.mxu0 0
    %9661 = vmatprep.subr.bf16.mxu0 0
    %9662 = vmatpush1.bf16.msra.mxu0 0
    %9663 = vmatprep.subr.bf16.mxu0 0
    %9664 = vmatpush1.bf16.msra.mxu0 0
    %9665 = vmatprep.subr.bf16.mxu0 0
    %9666 = vmatpush1.bf16.msra.mxu0 0
    %9667 = vmatprep.subr.bf16.mxu0 0
    %9668 = vmatpush1.bf16.msra.mxu0 0
    %9669 = vmatprep.subr.bf16.mxu0 0
    %9670 = vmatpush1.bf16.msra.mxu0 0
    %9671 = vmatprep.subr.bf16.mxu0 0
    %9672 = vmatpush1.bf16.msra.mxu0 0
    %9673 = vmatprep.subr.bf16.mxu0 0
    %9674 = vmatpush1.bf16.msra.mxu0 0
    %9675 = vmatprep.subr.bf16.mxu0 0
    %9676 = vmatpush1.bf16.msra.mxu0 0
    %9677 = vmatprep.subr.bf16.mxu0 0
    %9678 = vmatpush1.bf16.msra.mxu0 0
    %9679 = vmatprep.subr.bf16.mxu0 0
    %9680 = vmatpush1.bf16.msra.mxu0 0
    %9681 = vmatprep.subr.bf16.mxu0 0
    %9682 = vmatpush1.bf16.msra.mxu0 0
    %9683 = vmatprep.subr.bf16.mxu0 0
    %9684 = vmatpush1.bf16.msra.mxu0 0
    %9685 = vmatprep.subr.bf16.mxu0 0
    %9686 = vmatpush1.bf16.msra.mxu0 0
    %9687 = vmatprep.mubr.bf16.mxu0 0
    %9688 = vmatmul.mubr.bf16.gmra.mrb[0].mxu0 %v9650
    %v9689 = vpop.f32.mrb[0].mxu0
    %v9690 = vadd.f32 0.0, %v9689
    %v9691 = vpop.f32.mrb[0].mxu0
    %v9692 = vpop.f32.mrb[0].mxu0
    %v9693 = vpop.f32.mrb[0].mxu0
    %9694 = vdwg.mxu0
    %v9695 = vpack.c.bf16 %v9690, %v9642
    %v9700 = vunpack.c.l.b16 %v8636
    %v9701 = vunpack.c.l.b16 %v8637
    %v9702 = vunpack.c.l.b16 %v8638
    %v9703 = vunpack.c.l.b16 %v8639
    %v9704 = vpack.c.b16 %v9701, %v9700
    %v9705 = vpack.c.b16 %v9703, %v9702
    %v9709 = vsel %vm808, %v9695, 0
    %9711 = vmatprep.subr.bf16.mxu0 0
    %9712 = vmatpush1.bf16.msra.mxu0 %v9704
    %9713 = vmatprep.subr.bf16.mxu0 0
    %9714 = vmatpush1.bf16.msra.mxu0 %v9705
    %9715 = vmatprep.subr.bf16.mxu0 0
    %9716 = vmatpush1.bf16.msra.mxu0 0
    %9717 = vmatprep.subr.bf16.mxu0 0
    %9718 = vmatpush1.bf16.msra.mxu0 0
    %9719 = vmatprep.subr.bf16.mxu0 0
    %9720 = vmatpush1.bf16.msra.mxu0 0
    %9721 = vmatprep.subr.bf16.mxu0 0
    %9722 = vmatpush1.bf16.msra.mxu0 0
    %9723 = vmatprep.subr.bf16.mxu0 0
    %9724 = vmatpush1.bf16.msra.mxu0 0
    %9725 = vmatprep.subr.bf16.mxu0 0
    %9726 = vmatpush1.bf16.msra.mxu0 0
    %9727 = vmatprep.subr.bf16.mxu0 0
    %9728 = vmatpush1.bf16.msra.mxu0 0
    %9729 = vmatprep.subr.bf16.mxu0 0
    %9730 = vmatpush1.bf16.msra.mxu0 0
    %9731 = vmatprep.subr.bf16.mxu0 0
    %9732 = vmatpush1.bf16.msra.mxu0 0
    %9733 = vmatprep.subr.bf16.mxu0 0
    %9734 = vmatpush1.bf16.msra.mxu0 0
    %9735 = vmatprep.subr.bf16.mxu0 0
    %9736 = vmatpush1.bf16.msra.mxu0 0
    %9737 = vmatprep.subr.bf16.mxu0 0
    %9738 = vmatpush1.bf16.msra.mxu0 0
    %9739 = vmatprep.subr.bf16.mxu0 0
    %9740 = vmatpush1.bf16.msra.mxu0 0
    %9741 = vmatprep.subr.bf16.mxu0 0
    %9742 = vmatpush1.bf16.msra.mxu0 0
    %9743 = vmatprep.mubr.bf16.mxu0 0
    %9744 = vmatmul.mubr.bf16.gmra.mrb[0].mxu0 %v9709
    %v9745 = vpop.f32.mrb[0].mxu0
    %v9746 = vadd.f32 0.0, %v9745
    %v9747 = vpop.f32.mrb[0].mxu0
    %v9748 = vpop.f32.mrb[0].mxu0
    %v9749 = vadd.f32 0.0, %v9748
    %v9750 = vpop.f32.mrb[0].mxu0
    %9751 = vdwg.mxu0
    %v9752 = vadd.f32 %v9471, %v9746
    %v9753 = vadd.f32 %v9472, %v9749
    %s9754 = scalar_lea.vmem [#allocation8], 3
    %v9755 = vld [vmem:[%s9754] sm:$0x1]
    %v9757 = vlaneseq
    %v9758 = vshrl.u32 %v9757, 7
    %v9759 = vsub.s32 0, %v9758
    %v9760 = vrot.slane %v9755, %v9759
    %v9762 = vadd.f32 %v9752, %v9760
    %v9763 = vadd.f32 %v9753, %v9760
    %v9764 = vadd.f32 %v8351, %v9762
    %v9765 = vadd.f32 %v8352, %v9763
    %s9766 = scalar_lea.vmem [#allocation9], 3
    %v9767 = vld [vmem:[%s9766] sm:$0x1]
    %s9768 = scalar_lea.vmem [#allocation11], 3
    %v9769 = vld [vmem:[%s9768] sm:$0x1]
    %9770 = vadd.xlane.f32.xlu0 %v9764
    %v9771 = vpop.xlane.xlu0 %9770
    %9772 = vadd.xlane.f32.xlu0 %v9765
    %v9773 = vpop.xlane.xlu0 %9772
    %v9774 = vmul.f32 %v9771, %v1942
    %v9775 = vmul.f32 %v9773, %v1942
    %v9776 = vsub.f32 %v9764, %v9774
    %v9777 = vsub.f32 %v9765, %v9775
    %v9778 = vmul.f32 %v9776, %v9776
    %v9779 = vmul.f32 %v9777, %v9777
    %9780 = vadd.xlane.f32.xlu0 %v9778
    %v9781 = vpop.xlane.xlu0 %9780
    %9782 = vadd.xlane.f32.xlu0 %v9779
    %v9783 = vpop.xlane.xlu0 %9782
    %v9784 = vmul.f32 %v9781, %v1942
    %v9785 = vmul.f32 %v9783, %v1942
    %v9786 = vadd.f32 %v9784, 1e-05
    %v9787 = vadd.f32 %v9785, 1e-05
    %v9788 = vrsqrt.pop %v9786
    %v9789 = vrsqrt.pop %v9787
    %v9790 = vmul.f32 %v9776, %v9788
    %v9791 = vmul.f32 %v9777, %v9789
    %v9793 = vlaneseq
    %v9794 = vshrl.u32 %v9793, 7
    %v9795 = vsub.s32 0, %v9794
    %v9796 = vrot.slane %v9767, %v9795
    %v9798 = vmul.f32 %v9790, %v9796
    %v9799 = vmul.f32 %v9791, %v9796
    %v9801 = vlaneseq
    %v9802 = vshrl.u32 %v9801, 7
    %v9803 = vsub.s32 0, %v9802
    %v9804 = vrot.slane %v9769, %v9803
    %v9806 = vadd.f32 %v9798, %v9804
    %v9807 = vadd.f32 %v9799, %v9804
    %v9808 = vpack.c.bf16 %v9807, %v9806
    %s9809 = scalar_lea.vmem %s27, 768
    %v9810 = vld [vmem:[%s9809] sm:$0xff]
    %v9811 = vld [vmem:[%s9809 + $0x8] sm:$0xff]
    %v9812 = vld [vmem:[%s9809 + $0x10] sm:$0xff]
    %v9813 = vld [vmem:[%s9809 + $0x18] sm:$0xff]
    %v9814 = vld [vmem:[%s9809 + $0x20] sm:$0xff]
    %v9815 = vld [vmem:[%s9809 + $0x28] sm:$0xff]
    %v9816 = vld [vmem:[%s9809 + $0x30] sm:$0xff]
    %v9817 = vld [vmem:[%s9809 + $0x38] sm:$0xff]
    %v9818 = vld [vmem:[%s9809 + $0x40] sm:$0xff]
    %v9819 = vld [vmem:[%s9809 + $0x48] sm:$0xff]
    %v9820 = vld [vmem:[%s9809 + $0x50] sm:$0xff]
    %v9821 = vld [vmem:[%s9809 + $0x58] sm:$0xff]
    %v9822 = vld [vmem:[%s9809 + $0x60] sm:$0xff]
    %v9823 = vld [vmem:[%s9809 + $0x68] sm:$0xff]
    %v9824 = vld [vmem:[%s9809 + $0x70] sm:$0xff]
    %v9825 = vld [vmem:[%s9809 + $0x78] sm:$0xff]
    %v9826 = vld [vmem:[%s9809 + $0x80] sm:$0xff]
    %v9827 = vld [vmem:[%s9809 + $0x88] sm:$0xff]
    %v9828 = vld [vmem:[%s9809 + $0x90] sm:$0xff]
    %v9829 = vld [vmem:[%s9809 + $0x98] sm:$0xff]
    %v9830 = vld [vmem:[%s9809 + $0xa0] sm:$0xff]
    %v9831 = vld [vmem:[%s9809 + $0xa8] sm:$0xff]
    %v9832 = vld [vmem:[%s9809 + $0xb0] sm:$0xff]
    %v9833 = vld [vmem:[%s9809 + $0xb8] sm:$0xff]
    %v9834 = vld [vmem:[%s9809 + $0xc0] sm:$0xff]
    %v9835 = vld [vmem:[%s9809 + $0xc8] sm:$0xff]
    %v9836 = vld [vmem:[%s9809 + $0xd0] sm:$0xff]
    %v9837 = vld [vmem:[%s9809 + $0xd8] sm:$0xff]
    %v9838 = vld [vmem:[%s9809 + $0xe0] sm:$0xff]
    %v9839 = vld [vmem:[%s9809 + $0xe8] sm:$0xff]
    %v9840 = vld [vmem:[%s9809 + $0xf0] sm:$0xff]
    %v9841 = vld [vmem:[%s9809 + $0xf8] sm:$0xff]
    %s9842 = scalar_lea.vmem [#allocation12], 12
    %v9843 = vld [vmem:[%s9842] sm:$0xf]
    %v9845 = vlaneseq
    %v9846 = vshrl.u32 %v9845, 7
    %v9847 = vsub.s32 0, %v9846
    %v9848 = vrot.slane %v9843, %v9847
    %v9849 = vlaneseq
    %v9850 = vshrl.u32 %v9849, 7
    %v9851 = vsub.s32 1, %v9850
    %v9852 = vrot.slane %v9843, %v9851
    %v9853 = vlaneseq
    %v9854 = vshrl.u32 %v9853, 7
    %v9855 = vsub.s32 2, %v9854
    %v9856 = vrot.slane %v9843, %v9855
    %v9857 = vlaneseq
    %v9858 = vshrl.u32 %v9857, 7
    %v9859 = vsub.s32 3, %v9858
    %v9860 = vrot.slane %v9843, %v9859
    %v9897 = vunpack.c.l.b16 %v9810
    %v9898 = vunpack.c.h.b16 %v9810
    %v9899 = vunpack.c.l.b16 %v9811
    %v9900 = vunpack.c.h.b16 %v9811
    %v9901 = vunpack.c.l.b16 %v9812
    %v9902 = vunpack.c.h.b16 %v9812
    %v9903 = vunpack.c.l.b16 %v9813
    %v9904 = vunpack.c.h.b16 %v9813
    %v9905 = vunpack.c.l.b16 %v9814
    %v9906 = vunpack.c.h.b16 %v9814
    %v9907 = vunpack.c.l.b16 %v9815
    %v9908 = vunpack.c.h.b16 %v9815
    %v9909 = vunpack.c.l.b16 %v9816
    %v9910 = vunpack.c.h.b16 %v9816
    %v9911 = vunpack.c.l.b16 %v9817
    %v9912 = vunpack.c.h.b16 %v9817
    %v9913 = vunpack.c.l.b16 %v9818
    %v9914 = vunpack.c.h.b16 %v9818
    %v9915 = vunpack.c.l.b16 %v9819
    %v9916 = vunpack.c.h.b16 %v9819
    %v9917 = vunpack.c.l.b16 %v9820
    %v9918 = vunpack.c.h.b16 %v9820
    %v9919 = vunpack.c.l.b16 %v9821
    %v9920 = vunpack.c.h.b16 %v9821
    %v9921 = vunpack.c.l.b16 %v9822
    %v9922 = vunpack.c.h.b16 %v9822
    %v9923 = vunpack.c.l.b16 %v9823
    %v9924 = vunpack.c.h.b16 %v9823
    %v9925 = vunpack.c.l.b16 %v9824
    %v9926 = vunpack.c.h.b16 %v9824
    %v9927 = vunpack.c.l.b16 %v9825
    %v9928 = vunpack.c.h.b16 %v9825
    %v9929 = vunpack.c.l.b16 %v9826
    %v9930 = vunpack.c.h.b16 %v9826
    %v9931 = vunpack.c.l.b16 %v9827
    %v9932 = vunpack.c.h.b16 %v9827
    %v9933 = vunpack.c.l.b16 %v9828
    %v9934 = vunpack.c.h.b16 %v9828
    %v9935 = vunpack.c.l.b16 %v9829
    %v9936 = vunpack.c.h.b16 %v9829
    %v9937 = vunpack.c.l.b16 %v9830
    %v9938 = vunpack.c.h.b16 %v9830
    %v9939 = vunpack.c.l.b16 %v9831
    %v9940 = vunpack.c.h.b16 %v9831
    %v9941 = vunpack.c.l.b16 %v9832
    %v9942 = vunpack.c.h.b16 %v9832
    %v9943 = vunpack.c.l.b16 %v9833
    %v9944 = vunpack.c.h.b16 %v9833
    %v9945 = vunpack.c.l.b16 %v9834
    %v9946 = vunpack.c.h.b16 %v9834
    %v9947 = vunpack.c.l.b16 %v9835
    %v9948 = vunpack.c.h.b16 %v9835
    %v9949 = vunpack.c.l.b16 %v9836
    %v9950 = vunpack.c.h.b16 %v9836
    %v9951 = vunpack.c.l.b16 %v9837
    %v9952 = vunpack.c.h.b16 %v9837
    %v9953 = vunpack.c.l.b16 %v9838
    %v9954 = vunpack.c.h.b16 %v9838
    %v9955 = vunpack.c.l.b16 %v9839
    %v9956 = vunpack.c.h.b16 %v9839
    %v9957 = vunpack.c.l.b16 %v9840
    %v9958 = vunpack.c.h.b16 %v9840
    %v9959 = vunpack.c.l.b16 %v9841
    %v9960 = vunpack.c.h.b16 %v9841
    %v9961 = vpack.c.b16 %v9901, %v9897
    %v9962 = vpack.c.b16 %v9902, %v9898
    %v9963 = vpack.c.b16 %v9903, %v9899
    %v9964 = vpack.c.b16 %v9904, %v9900
    %v9965 = vpack.c.b16 %v9909, %v9905
    %v9966 = vpack.c.b16 %v9910, %v9906
    %v9967 = vpack.c.b16 %v9911, %v9907
    %v9968 = vpack.c.b16 %v9912, %v9908
    %v9969 = vpack.c.b16 %v9917, %v9913
    %v9970 = vpack.c.b16 %v9918, %v9914
    %v9971 = vpack.c.b16 %v9919, %v9915
    %v9972 = vpack.c.b16 %v9920, %v9916
    %v9973 = vpack.c.b16 %v9925, %v9921
    %v9974 = vpack.c.b16 %v9926, %v9922
    %v9975 = vpack.c.b16 %v9927, %v9923
    %v9976 = vpack.c.b16 %v9928, %v9924
    %v9977 = vpack.c.b16 %v9933, %v9929
    %v9978 = vpack.c.b16 %v9934, %v9930
    %v9979 = vpack.c.b16 %v9935, %v9931
    %v9980 = vpack.c.b16 %v9936, %v9932
    %v9981 = vpack.c.b16 %v9941, %v9937
    %v9982 = vpack.c.b16 %v9942, %v9938
    %v9983 = vpack.c.b16 %v9943, %v9939
    %v9984 = vpack.c.b16 %v9944, %v9940
    %v9985 = vpack.c.b16 %v9949, %v9945
    %v9986 = vpack.c.b16 %v9950, %v9946
    %v9987 = vpack.c.b16 %v9951, %v9947
    %v9988 = vpack.c.b16 %v9952, %v9948
    %v9989 = vpack.c.b16 %v9957, %v9953
    %v9990 = vpack.c.b16 %v9958, %v9954
    %v9991 = vpack.c.b16 %v9959, %v9955
    %v9992 = vpack.c.b16 %v9960, %v9956
    %10025 = vmatprep.subr.bf16.mxu0 %v9962
    %10026 = vmatpush1.bf16.msra.mxu0 %v9961
    %10027 = vmatprep.subr.bf16.mxu0 %v9966
    %10028 = vmatpush1.bf16.msra.mxu0 %v9965
    %10029 = vmatprep.subr.bf16.mxu0 %v9970
    %10030 = vmatpush1.bf16.msra.mxu0 %v9969
    %10031 = vmatprep.subr.bf16.mxu0 %v9974
    %10032 = vmatpush1.bf16.msra.mxu0 %v9973
    %10033 = vmatprep.subr.bf16.mxu0 %v9978
    %10034 = vmatpush1.bf16.msra.mxu0 %v9977
    %10035 = vmatprep.subr.bf16.mxu0 %v9982
    %10036 = vmatpush1.bf16.msra.mxu0 %v9981
    %10037 = vmatprep.subr.bf16.mxu0 %v9986
    %10038 = vmatpush1.bf16.msra.mxu0 %v9985
    %10039 = vmatprep.subr.bf16.mxu0 %v9990
    %10040 = vmatpush1.bf16.msra.mxu0 %v9989
    %10041 = vmatprep.subr.bf16.mxu0 0
    %10042 = vmatpush1.bf16.msra.mxu0 0
    %10043 = vmatprep.subr.bf16.mxu0 0
    %10044 = vmatpush1.bf16.msra.mxu0 0
    %10045 = vmatprep.subr.bf16.mxu0 0
    %10046 = vmatpush1.bf16.msra.mxu0 0
    %10047 = vmatprep.subr.bf16.mxu0 0
    %10048 = vmatpush1.bf16.msra.mxu0 0
    %10049 = vmatprep.subr.bf16.mxu0 0
    %10050 = vmatpush1.bf16.msra.mxu0 0
    %10051 = vmatprep.subr.bf16.mxu0 0
    %10052 = vmatpush1.bf16.msra.mxu0 0
    %10053 = vmatprep.subr.bf16.mxu0 0
    %10054 = vmatpush1.bf16.msra.mxu0 0
    %10055 = vmatprep.subr.bf16.mxu0 0
    %10056 = vmatpush1.bf16.msra.mxu0 0
    %10057 = vmatprep.mubr.bf16.mxu0 0
    %10058 = vmatmul.mubr.bf16.gmra.mrb[0].mxu0 %v9808
    %v10059 = vpop.f32.mrb[0].mxu0
    %v10060 = vadd.f32 %v9848, %v10059
    %v10061 = vpop.f32.mrb[0].mxu0
    %v10062 = vadd.f32 %v9852, %v10061
    %v10063 = vpop.f32.mrb[0].mxu0
    %v10064 = vadd.f32 %v9848, %v10063
    %v10065 = vpop.f32.mrb[0].mxu0
    %v10066 = vadd.f32 %v9852, %v10065
    %10067 = vdwg.mxu0
    %10068 = vmatprep.subr.bf16.mxu0 %v9964
    %10069 = vmatpush1.bf16.msra.mxu0 %v9963
    %10070 = vmatprep.subr.bf16.mxu0 %v9968
    %10071 = vmatpush1.bf16.msra.mxu0 %v9967
    %10072 = vmatprep.subr.bf16.mxu0 %v9972
    %10073 = vmatpush1.bf16.msra.mxu0 %v9971
    %10074 = vmatprep.subr.bf16.mxu0 %v9976
    %10075 = vmatpush1.bf16.msra.mxu0 %v9975
    %10076 = vmatprep.subr.bf16.mxu0 %v9980
    %10077 = vmatpush1.bf16.msra.mxu0 %v9979
    %10078 = vmatprep.subr.bf16.mxu0 %v9984
    %10079 = vmatpush1.bf16.msra.mxu0 %v9983
    %10080 = vmatprep.subr.bf16.mxu0 %v9988
    %10081 = vmatpush1.bf16.msra.mxu0 %v9987
    %10082 = vmatprep.subr.bf16.mxu0 %v9992
    %10083 = vmatpush1.bf16.msra.mxu0 %v9991
    %10084 = vmatprep.subr.bf16.mxu0 0
    %10085 = vmatpush1.bf16.msra.mxu0 0
    %10086 = vmatprep.subr.bf16.mxu0 0
    %10087 = vmatpush1.bf16.msra.mxu0 0
    %10088 = vmatprep.subr.bf16.mxu0 0
    %10089 = vmatpush1.bf16.msra.mxu0 0
    %10090 = vmatprep.subr.bf16.mxu0 0
    %10091 = vmatpush1.bf16.msra.mxu0 0
    %10092 = vmatprep.subr.bf16.mxu0 0
    %10093 = vmatpush1.bf16.msra.mxu0 0
    %10094 = vmatprep.subr.bf16.mxu0 0
    %10095 = vmatpush1.bf16.msra.mxu0 0
    %10096 = vmatprep.subr.bf16.mxu0 0
    %10097 = vmatpush1.bf16.msra.mxu0 0
    %10098 = vmatprep.subr.bf16.mxu0 0
    %10099 = vmatpush1.bf16.msra.mxu0 0
    %10100 = vmatprep.mubr.bf16.mxu0 0
    %10101 = vmatmul.mubr.bf16.gmra.mrb[0].mxu0 %v9808
    %v10102 = vpop.f32.mrb[0].mxu0
    %v10103 = vadd.f32 %v9856, %v10102
    %v10104 = vpop.f32.mrb[0].mxu0
    %v10105 = vadd.f32 %v9860, %v10104
    %v10106 = vpop.f32.mrb[0].mxu0
    %v10107 = vadd.f32 %v9856, %v10106
    %v10108 = vpop.f32.mrb[0].mxu0
    %v10109 = vadd.f32 %v9860, %v10108
    %10110 = vdwg.mxu0
    %v10111 = vmax.f32 %v10060, 0.0
    %v10112 = vmax.f32 %v10062, 0.0
    %v10113 = vmax.f32 %v10103, 0.0
    %v10114 = vmax.f32 %v10105, 0.0
    %v10115 = vmax.f32 %v10064, 0.0
    %v10116 = vmax.f32 %v10066, 0.0
    %v10117 = vmax.f32 %v10107, 0.0
    %v10118 = vmax.f32 %v10109, 0.0
    %v10119 = vpack.c.bf16 %v10115, %v10111
    %v10120 = vpack.c.bf16 %v10116, %v10112
    %v10121 = vpack.c.bf16 %v10117, %v10113
    %v10122 = vpack.c.bf16 %v10118, %v10114
    %s10123 = scalar_lea.vmem [#allocation14], 768
    %v10124 = vld [vmem:[%s10123] sm:$0xf]
    %v10125 = vld [vmem:[%s10123 + $0x4] sm:$0xf]
    %v10126 = vld [vmem:[%s10123 + $0x8] sm:$0xf]
    %v10127 = vld [vmem:[%s10123 + $0xc] sm:$0xf]
    %v10128 = vld [vmem:[%s10123 + $0x10] sm:$0xf]
    %v10129 = vld [vmem:[%s10123 + $0x14] sm:$0xf]
    %v10130 = vld [vmem:[%s10123 + $0x18] sm:$0xf]
    %v10131 = vld [vmem:[%s10123 + $0x1c] sm:$0xf]
    %v10132 = vld [vmem:[%s10123 + $0x20] sm:$0xf]
    %v10133 = vld [vmem:[%s10123 + $0x24] sm:$0xf]
    %v10134 = vld [vmem:[%s10123 + $0x28] sm:$0xf]
    %v10135 = vld [vmem:[%s10123 + $0x2c] sm:$0xf]
    %v10136 = vld [vmem:[%s10123 + $0x30] sm:$0xf]
    %v10137 = vld [vmem:[%s10123 + $0x34] sm:$0xf]
    %v10138 = vld [vmem:[%s10123 + $0x38] sm:$0xf]
    %v10139 = vld [vmem:[%s10123 + $0x3c] sm:$0xf]
    %v10140 = vld [vmem:[%s10123 + $0x40] sm:$0xf]
    %v10141 = vld [vmem:[%s10123 + $0x44] sm:$0xf]
    %v10142 = vld [vmem:[%s10123 + $0x48] sm:$0xf]
    %v10143 = vld [vmem:[%s10123 + $0x4c] sm:$0xf]
    %v10144 = vld [vmem:[%s10123 + $0x50] sm:$0xf]
    %v10145 = vld [vmem:[%s10123 + $0x54] sm:$0xf]
    %v10146 = vld [vmem:[%s10123 + $0x58] sm:$0xf]
    %v10147 = vld [vmem:[%s10123 + $0x5c] sm:$0xf]
    %v10148 = vld [vmem:[%s10123 + $0x60] sm:$0xf]
    %v10149 = vld [vmem:[%s10123 + $0x64] sm:$0xf]
    %v10150 = vld [vmem:[%s10123 + $0x68] sm:$0xf]
    %v10151 = vld [vmem:[%s10123 + $0x6c] sm:$0xf]
    %v10152 = vld [vmem:[%s10123 + $0x70] sm:$0xf]
    %v10153 = vld [vmem:[%s10123 + $0x74] sm:$0xf]
    %v10154 = vld [vmem:[%s10123 + $0x78] sm:$0xf]
    %v10155 = vld [vmem:[%s10123 + $0x7c] sm:$0xf]
    %v10156 = vld [vmem:[%s10123 + $0x80] sm:$0xf]
    %v10157 = vld [vmem:[%s10123 + $0x84] sm:$0xf]
    %v10158 = vld [vmem:[%s10123 + $0x88] sm:$0xf]
    %v10159 = vld [vmem:[%s10123 + $0x8c] sm:$0xf]
    %v10160 = vld [vmem:[%s10123 + $0x90] sm:$0xf]
    %v10161 = vld [vmem:[%s10123 + $0x94] sm:$0xf]
    %v10162 = vld [vmem:[%s10123 + $0x98] sm:$0xf]
    %v10163 = vld [vmem:[%s10123 + $0x9c] sm:$0xf]
    %v10164 = vld [vmem:[%s10123 + $0xa0] sm:$0xf]
    %v10165 = vld [vmem:[%s10123 + $0xa4] sm:$0xf]
    %v10166 = vld [vmem:[%s10123 + $0xa8] sm:$0xf]
    %v10167 = vld [vmem:[%s10123 + $0xac] sm:$0xf]
    %v10168 = vld [vmem:[%s10123 + $0xb0] sm:$0xf]
    %v10169 = vld [vmem:[%s10123 + $0xb4] sm:$0xf]
    %v10170 = vld [vmem:[%s10123 + $0xb8] sm:$0xf]
    %v10171 = vld [vmem:[%s10123 + $0xbc] sm:$0xf]
    %v10172 = vld [vmem:[%s10123 + $0xc0] sm:$0xf]
    %v10173 = vld [vmem:[%s10123 + $0xc4] sm:$0xf]
    %v10174 = vld [vmem:[%s10123 + $0xc8] sm:$0xf]
    %v10175 = vld [vmem:[%s10123 + $0xcc] sm:$0xf]
    %v10176 = vld [vmem:[%s10123 + $0xd0] sm:$0xf]
    %v10177 = vld [vmem:[%s10123 + $0xd4] sm:$0xf]
    %v10178 = vld [vmem:[%s10123 + $0xd8] sm:$0xf]
    %v10179 = vld [vmem:[%s10123 + $0xdc] sm:$0xf]
    %v10180 = vld [vmem:[%s10123 + $0xe0] sm:$0xf]
    %v10181 = vld [vmem:[%s10123 + $0xe4] sm:$0xf]
    %v10182 = vld [vmem:[%s10123 + $0xe8] sm:$0xf]
    %v10183 = vld [vmem:[%s10123 + $0xec] sm:$0xf]
    %v10184 = vld [vmem:[%s10123 + $0xf0] sm:$0xf]
    %v10185 = vld [vmem:[%s10123 + $0xf4] sm:$0xf]
    %v10186 = vld [vmem:[%s10123 + $0xf8] sm:$0xf]
    %v10187 = vld [vmem:[%s10123 + $0xfc] sm:$0xf]
    %s10188 = scalar_lea.vmem [#allocation15], 3
    %v10189 = vld [vmem:[%s10188] sm:$0x1]
    %v10191 = vlaneseq
    %v10192 = vshrl.u32 %v10191, 7
    %v10193 = vsub.s32 0, %v10192
    %v10194 = vrot.slane %v10189, %v10193
    %v10260 = vunpack.c.l.b16 %v10124
    %v10261 = vunpack.c.l.b16 %v10125
    %v10262 = vunpack.c.l.b16 %v10126
    %v10263 = vunpack.c.l.b16 %v10127
    %v10264 = vunpack.c.l.b16 %v10128
    %v10265 = vunpack.c.l.b16 %v10129
    %v10266 = vunpack.c.l.b16 %v10130
    %v10267 = vunpack.c.l.b16 %v10131
    %v10268 = vunpack.c.l.b16 %v10132
    %v10269 = vunpack.c.l.b16 %v10133
    %v10270 = vunpack.c.l.b16 %v10134
    %v10271 = vunpack.c.l.b16 %v10135
    %v10272 = vunpack.c.l.b16 %v10136
    %v10273 = vunpack.c.l.b16 %v10137
    %v10274 = vunpack.c.l.b16 %v10138
    %v10275 = vunpack.c.l.b16 %v10139
    %v10276 = vunpack.c.l.b16 %v10140
    %v10277 = vunpack.c.l.b16 %v10141
    %v10278 = vunpack.c.l.b16 %v10142
    %v10279 = vunpack.c.l.b16 %v10143
    %v10280 = vunpack.c.l.b16 %v10144
    %v10281 = vunpack.c.l.b16 %v10145
    %v10282 = vunpack.c.l.b16 %v10146
    %v10283 = vunpack.c.l.b16 %v10147
    %v10284 = vunpack.c.l.b16 %v10148
    %v10285 = vunpack.c.l.b16 %v10149
    %v10286 = vunpack.c.l.b16 %v10150
    %v10287 = vunpack.c.l.b16 %v10151
    %v10288 = vunpack.c.l.b16 %v10152
    %v10289 = vunpack.c.l.b16 %v10153
    %v10290 = vunpack.c.l.b16 %v10154
    %v10291 = vunpack.c.l.b16 %v10155
    %v10292 = vunpack.c.l.b16 %v10156
    %v10293 = vunpack.c.l.b16 %v10157
    %v10294 = vunpack.c.l.b16 %v10158
    %v10295 = vunpack.c.l.b16 %v10159
    %v10296 = vunpack.c.l.b16 %v10160
    %v10297 = vunpack.c.l.b16 %v10161
    %v10298 = vunpack.c.l.b16 %v10162
    %v10299 = vunpack.c.l.b16 %v10163
    %v10300 = vunpack.c.l.b16 %v10164
    %v10301 = vunpack.c.l.b16 %v10165
    %v10302 = vunpack.c.l.b16 %v10166
    %v10303 = vunpack.c.l.b16 %v10167
    %v10304 = vunpack.c.l.b16 %v10168
    %v10305 = vunpack.c.l.b16 %v10169
    %v10306 = vunpack.c.l.b16 %v10170
    %v10307 = vunpack.c.l.b16 %v10171
    %v10308 = vunpack.c.l.b16 %v10172
    %v10309 = vunpack.c.l.b16 %v10173
    %v10310 = vunpack.c.l.b16 %v10174
    %v10311 = vunpack.c.l.b16 %v10175
    %v10312 = vunpack.c.l.b16 %v10176
    %v10313 = vunpack.c.l.b16 %v10177
    %v10314 = vunpack.c.l.b16 %v10178
    %v10315 = vunpack.c.l.b16 %v10179
    %v10316 = vunpack.c.l.b16 %v10180
    %v10317 = vunpack.c.l.b16 %v10181
    %v10318 = vunpack.c.l.b16 %v10182
    %v10319 = vunpack.c.l.b16 %v10183
    %v10320 = vunpack.c.l.b16 %v10184
    %v10321 = vunpack.c.l.b16 %v10185
    %v10322 = vunpack.c.l.b16 %v10186
    %v10323 = vunpack.c.l.b16 %v10187
    %v10324 = vpack.c.b16 %v10261, %v10260
    %v10325 = vpack.c.b16 %v10263, %v10262
    %v10326 = vpack.c.b16 %v10265, %v10264
    %v10327 = vpack.c.b16 %v10267, %v10266
    %v10328 = vpack.c.b16 %v10269, %v10268
    %v10329 = vpack.c.b16 %v10271, %v10270
    %v10330 = vpack.c.b16 %v10273, %v10272
    %v10331 = vpack.c.b16 %v10275, %v10274
    %v10332 = vpack.c.b16 %v10277, %v10276
    %v10333 = vpack.c.b16 %v10279, %v10278
    %v10334 = vpack.c.b16 %v10281, %v10280
    %v10335 = vpack.c.b16 %v10283, %v10282
    %v10336 = vpack.c.b16 %v10285, %v10284
    %v10337 = vpack.c.b16 %v10287, %v10286
    %v10338 = vpack.c.b16 %v10289, %v10288
    %v10339 = vpack.c.b16 %v10291, %v10290
    %v10340 = vpack.c.b16 %v10293, %v10292
    %v10341 = vpack.c.b16 %v10295, %v10294
    %v10342 = vpack.c.b16 %v10297, %v10296
    %v10343 = vpack.c.b16 %v10299, %v10298
    %v10344 = vpack.c.b16 %v10301, %v10300
    %v10345 = vpack.c.b16 %v10303, %v10302
    %v10346 = vpack.c.b16 %v10305, %v10304
    %v10347 = vpack.c.b16 %v10307, %v10306
    %v10348 = vpack.c.b16 %v10309, %v10308
    %v10349 = vpack.c.b16 %v10311, %v10310
    %v10350 = vpack.c.b16 %v10313, %v10312
    %v10351 = vpack.c.b16 %v10315, %v10314
    %v10352 = vpack.c.b16 %v10317, %v10316
    %v10353 = vpack.c.b16 %v10319, %v10318
    %v10354 = vpack.c.b16 %v10321, %v10320
    %v10355 = vpack.c.b16 %v10323, %v10322
    %10388 = vmatprep.subr.bf16.mxu0 0
    %10389 = vmatpush1.bf16.msra.mxu0 %v10324
    %10390 = vmatprep.subr.bf16.mxu0 0
    %10391 = vmatpush1.bf16.msra.mxu0 %v10325
    %10392 = vmatprep.subr.bf16.mxu0 0
    %10393 = vmatpush1.bf16.msra.mxu0 %v10326
    %10394 = vmatprep.subr.bf16.mxu0 0
    %10395 = vmatpush1.bf16.msra.mxu0 %v10327
    %10396 = vmatprep.subr.bf16.mxu0 0
    %10397 = vmatpush1.bf16.msra.mxu0 %v10328
    %10398 = vmatprep.subr.bf16.mxu0 0
    %10399 = vmatpush1.bf16.msra.mxu0 %v10329
    %10400 = vmatprep.subr.bf16.mxu0 0
    %10401 = vmatpush1.bf16.msra.mxu0 %v10330
    %10402 = vmatprep.subr.bf16.mxu0 0
    %10403 = vmatpush1.bf16.msra.mxu0 %v10331
    %10404 = vmatprep.subr.bf16.mxu0 0
    %10405 = vmatpush1.bf16.msra.mxu0 %v10332
    %10406 = vmatprep.subr.bf16.mxu0 0
    %10407 = vmatpush1.bf16.msra.mxu0 %v10333
    %10408 = vmatprep.subr.bf16.mxu0 0
    %10409 = vmatpush1.bf16.msra.mxu0 %v10334
    %10410 = vmatprep.subr.bf16.mxu0 0
    %10411 = vmatpush1.bf16.msra.mxu0 %v10335
    %10412 = vmatprep.subr.bf16.mxu0 0
    %10413 = vmatpush1.bf16.msra.mxu0 %v10336
    %10414 = vmatprep.subr.bf16.mxu0 0
    %10415 = vmatpush1.bf16.msra.mxu0 %v10337
    %10416 = vmatprep.subr.bf16.mxu0 0
    %10417 = vmatpush1.bf16.msra.mxu0 %v10338
    %10418 = vmatprep.subr.bf16.mxu0 0
    %10419 = vmatpush1.bf16.msra.mxu0 %v10339
    %10420 = vmatprep.mubr.bf16.mxu0 %v10120
    %10421 = vmatmul.mubr.bf16.gmra.mrb[0].mxu0 %v10119
    %v10422 = vpop.f32.mrb[0].mxu0
    %v10423 = vadd.f32 %v10194, %v10422
    %v10424 = vpop.f32.mrb[0].mxu0
    %v10425 = vpop.f32.mrb[0].mxu0
    %v10426 = vadd.f32 %v10194, %v10425
    %v10427 = vpop.f32.mrb[0].mxu0
    %10428 = vdwg.mxu0
    %10429 = vmatprep.subr.bf16.mxu0 0
    %10430 = vmatpush1.bf16.msra.mxu0 %v10340
    %10431 = vmatprep.subr.bf16.mxu0 0
    %10432 = vmatpush1.bf16.msra.mxu0 %v10341
    %10433 = vmatprep.subr.bf16.mxu0 0
    %10434 = vmatpush1.bf16.msra.mxu0 %v10342
    %10435 = vmatprep.subr.bf16.mxu0 0
    %10436 = vmatpush1.bf16.msra.mxu0 %v10343
    %10437 = vmatprep.subr.bf16.mxu0 0
    %10438 = vmatpush1.bf16.msra.mxu0 %v10344
    %10439 = vmatprep.subr.bf16.mxu0 0
    %10440 = vmatpush1.bf16.msra.mxu0 %v10345
    %10441 = vmatprep.subr.bf16.mxu0 0
    %10442 = vmatpush1.bf16.msra.mxu0 %v10346
    %10443 = vmatprep.subr.bf16.mxu0 0
    %10444 = vmatpush1.bf16.msra.mxu0 %v10347
    %10445 = vmatprep.subr.bf16.mxu0 0
    %10446 = vmatpush1.bf16.msra.mxu0 %v10348
    %10447 = vmatprep.subr.bf16.mxu0 0
    %10448 = vmatpush1.bf16.msra.mxu0 %v10349
    %10449 = vmatprep.subr.bf16.mxu0 0
    %10450 = vmatpush1.bf16.msra.mxu0 %v10350
    %10451 = vmatprep.subr.bf16.mxu0 0
    %10452 = vmatpush1.bf16.msra.mxu0 %v10351
    %10453 = vmatprep.subr.bf16.mxu0 0
    %10454 = vmatpush1.bf16.msra.mxu0 %v10352
    %10455 = vmatprep.subr.bf16.mxu0 0
    %10456 = vmatpush1.bf16.msra.mxu0 %v10353
    %10457 = vmatprep.subr.bf16.mxu0 0
    %10458 = vmatpush1.bf16.msra.mxu0 %v10354
    %10459 = vmatprep.subr.bf16.mxu0 0
    %10460 = vmatpush1.bf16.msra.mxu0 %v10355
    %10461 = vmatprep.mubr.bf16.mxu0 %v10122
    %10462 = vmatmul.mubr.bf16.gmra.mrb[0].mxu0 %v10121
    %v10463 = vpop.f32.mrb[0].mxu0
    %v10464 = vadd.f32 %v10423, %v10463
    %v10465 = vpop.f32.mrb[0].mxu0
    %v10466 = vpop.f32.mrb[0].mxu0
    %v10467 = vadd.f32 %v10426, %v10466
    %v10468 = vpop.f32.mrb[0].mxu0
    %10469 = vdwg.mxu0
    %v10470 = vadd.f32 %v9806, %v10464
    %v10471 = vadd.f32 %v9807, %v10467
    %s10472 = scalar_lea.vmem [#allocation17], 3
    %v10473 = vld [vmem:[%s10472] sm:$0x1]
    %s10474 = scalar_lea.vmem [#allocation18], 3
    %v10475 = vld [vmem:[%s10474] sm:$0x1]
    %10476 = vadd.xlane.f32.xlu0 %v10470
    %v10477 = vpop.xlane.xlu0 %10476
    %10478 = vadd.xlane.f32.xlu0 %v10471
    %v10479 = vpop.xlane.xlu0 %10478
    %v10480 = vmul.f32 %v10477, %v1942
    %v10481 = vmul.f32 %v10479, %v1942
    %v10482 = vsub.f32 %v10470, %v10480
    %v10483 = vsub.f32 %v10471, %v10481
    %v10484 = vmul.f32 %v10482, %v10482
    %v10485 = vmul.f32 %v10483, %v10483
    %10486 = vadd.xlane.f32.xlu0 %v10484
    %v10487 = vpop.xlane.xlu0 %10486
    %10488 = vadd.xlane.f32.xlu0 %v10485
    %v10489 = vpop.xlane.xlu0 %10488
    %v10490 = vmul.f32 %v10487, %v1942
    %v10491 = vmul.f32 %v10489, %v1942
    %v10492 = vadd.f32 %v10490, 1e-05
    %v10493 = vadd.f32 %v10491, 1e-05
    %v10494 = vrsqrt.pop %v10492
    %v10495 = vrsqrt.pop %v10493
    %v10496 = vmul.f32 %v10482, %v10494
    %v10497 = vmul.f32 %v10483, %v10495
    %v10499 = vlaneseq
    %v10500 = vshrl.u32 %v10499, 7
    %v10501 = vsub.s32 0, %v10500
    %v10502 = vrot.slane %v10473, %v10501
    %v10504 = vmul.f32 %v10496, %v10502
    %v10505 = vmul.f32 %v10497, %v10502
    %v10507 = vlaneseq
    %v10508 = vshrl.u32 %v10507, 7
    %v10509 = vsub.s32 0, %v10508
    %v10510 = vrot.slane %v10475, %v10509
    %v10512 = vadd.f32 %v10504, %v10510
    %v10513 = vadd.f32 %v10505, %v10510
    %10514 = vst [vmem:[#allocation35] sm:$0xff] %v10512
    %10515 = vst [vmem:[#allocation35 + $0x8] sm:$0xff] %v10513
    %v10516 = vpack.c.bf16 %v10513, %v10512
    %v10517 = vld [vmem:[%s55] sm:$0xff]
    %v10518 = vld [vmem:[%s55 + $0x8] sm:$0xff]
    %v10519 = vld [vmem:[%s55 + $0x10] sm:$0xff]
    %v10520 = vld [vmem:[%s55 + $0x18] sm:$0xff]
    %v10521 = vld [vmem:[%s55 + $0x20] sm:$0xff]
    %v10522 = vld [vmem:[%s55 + $0x28] sm:$0xff]
    %v10523 = vld [vmem:[%s55 + $0x30] sm:$0xff]
    %v10524 = vld [vmem:[%s55 + $0x38] sm:$0xff]
    %v10525 = vld [vmem:[%s55 + $0x40] sm:$0xff]
    %v10526 = vld [vmem:[%s55 + $0x48] sm:$0xff]
    %v10527 = vld [vmem:[%s55 + $0x50] sm:$0xff]
    %v10528 = vld [vmem:[%s55 + $0x58] sm:$0xff]
    %v10529 = vld [vmem:[%s55 + $0x60] sm:$0xff]
    %v10530 = vld [vmem:[%s55 + $0x68] sm:$0xff]
    %v10531 = vld [vmem:[%s55 + $0x70] sm:$0xff]
    %v10532 = vld [vmem:[%s55 + $0x78] sm:$0xff]
    %v10533 = vld [vmem:[%s57] sm:$0x3]
    %v10535 = vlaneseq
    %v10536 = vshrl.u32 %v10535, 7
    %v10537 = vsub.s32 0, %v10536
    %v10538 = vrot.slane %v10533, %v10537
    %v10539 = vlaneseq
    %v10540 = vshrl.u32 %v10539, 7
    %v10541 = vsub.s32 1, %v10540
    %v10542 = vrot.slane %v10533, %v10541
    %v10561 = vunpack.c.l.b16 %v10517
    %v10562 = vunpack.c.h.b16 %v10517
    %v10563 = vunpack.c.l.b16 %v10518
    %v10564 = vunpack.c.h.b16 %v10518
    %v10565 = vunpack.c.l.b16 %v10519
    %v10566 = vunpack.c.h.b16 %v10519
    %v10567 = vunpack.c.l.b16 %v10520
    %v10568 = vunpack.c.h.b16 %v10520
    %v10569 = vunpack.c.l.b16 %v10521
    %v10570 = vunpack.c.h.b16 %v10521
    %v10571 = vunpack.c.l.b16 %v10522
    %v10572 = vunpack.c.h.b16 %v10522
    %v10573 = vunpack.c.l.b16 %v10523
    %v10574 = vunpack.c.h.b16 %v10523
    %v10575 = vunpack.c.l.b16 %v10524
    %v10576 = vunpack.c.h.b16 %v10524
    %v10577 = vunpack.c.l.b16 %v10525
    %v10578 = vunpack.c.h.b16 %v10525
    %v10579 = vunpack.c.l.b16 %v10526
    %v10580 = vunpack.c.h.b16 %v10526
    %v10581 = vunpack.c.l.b16 %v10527
    %v10582 = vunpack.c.h.b16 %v10527
    %v10583 = vunpack.c.l.b16 %v10528
    %v10584 = vunpack.c.h.b16 %v10528
    %v10585 = vunpack.c.l.b16 %v10529
    %v10586 = vunpack.c.h.b16 %v10529
    %v10587 = vunpack.c.l.b16 %v10530
    %v10588 = vunpack.c.h.b16 %v10530
    %v10589 = vunpack.c.l.b16 %v10531
    %v10590 = vunpack.c.h.b16 %v10531
    %v10591 = vunpack.c.l.b16 %v10532
    %v10592 = vunpack.c.h.b16 %v10532
    %v10593 = vpack.c.b16 %v10563, %v10561
    %v10594 = vpack.c.b16 %v10564, %v10562
    %v10595 = vpack.c.b16 %v10567, %v10565
    %v10596 = vpack.c.b16 %v10568, %v10566
    %v10597 = vpack.c.b16 %v10571, %v10569
    %v10598 = vpack.c.b16 %v10572, %v10570
    %v10599 = vpack.c.b16 %v10575, %v10573
    %v10600 = vpack.c.b16 %v10576, %v10574
    %v10601 = vpack.c.b16 %v10579, %v10577
    %v10602 = vpack.c.b16 %v10580, %v10578
    %v10603 = vpack.c.b16 %v10583, %v10581
    %v10604 = vpack.c.b16 %v10584, %v10582
    %v10605 = vpack.c.b16 %v10587, %v10585
    %v10606 = vpack.c.b16 %v10588, %v10586
    %v10607 = vpack.c.b16 %v10591, %v10589
    %v10608 = vpack.c.b16 %v10592, %v10590
    %10625 = vmatprep.subr.bf16.mxu0 %v10594
    %10626 = vmatpush1.bf16.msra.mxu0 %v10593
    %10627 = vmatprep.subr.bf16.mxu0 %v10596
    %10628 = vmatpush1.bf16.msra.mxu0 %v10595
    %10629 = vmatprep.subr.bf16.mxu0 %v10598
    %10630 = vmatpush1.bf16.msra.mxu0 %v10597
    %10631 = vmatprep.subr.bf16.mxu0 %v10600
    %10632 = vmatpush1.bf16.msra.mxu0 %v10599
    %10633 = vmatprep.subr.bf16.mxu0 %v10602
    %10634 = vmatpush1.bf16.msra.mxu0 %v10601
    %10635 = vmatprep.subr.bf16.mxu0 %v10604
    %10636 = vmatpush1.bf16.msra.mxu0 %v10603
    %10637 = vmatprep.subr.bf16.mxu0 %v10606
    %10638 = vmatpush1.bf16.msra.mxu0 %v10605
    %10639 = vmatprep.subr.bf16.mxu0 %v10608
    %10640 = vmatpush1.bf16.msra.mxu0 %v10607
    %10641 = vmatprep.subr.bf16.mxu0 0
    %10642 = vmatpush1.bf16.msra.mxu0 0
    %10643 = vmatprep.subr.bf16.mxu0 0
    %10644 = vmatpush1.bf16.msra.mxu0 0
    %10645 = vmatprep.subr.bf16.mxu0 0
    %10646 = vmatpush1.bf16.msra.mxu0 0
    %10647 = vmatprep.subr.bf16.mxu0 0
    %10648 = vmatpush1.bf16.msra.mxu0 0
    %10649 = vmatprep.subr.bf16.mxu0 0
    %10650 = vmatpush1.bf16.msra.mxu0 0
    %10651 = vmatprep.subr.bf16.mxu0 0
    %10652 = vmatpush1.bf16.msra.mxu0 0
    %10653 = vmatprep.subr.bf16.mxu0 0
    %10654 = vmatpush1.bf16.msra.mxu0 0
    %10655 = vmatprep.subr.bf16.mxu0 0
    %10656 = vmatpush1.bf16.msra.mxu0 0
    %10657 = vmatprep.mubr.bf16.mxu0 0
    %10658 = vmatmul.mubr.bf16.gmra.mrb[0].mxu0 %v10516
    %v10659 = vpop.f32.mrb[0].mxu0
    %v10660 = vadd.f32 %v10538, %v10659
    %v10661 = vpop.f32.mrb[0].mxu0
    %v10662 = vadd.f32 %v10542, %v10661
    %v10663 = vpop.f32.mrb[0].mxu0
    %v10664 = vadd.f32 %v10538, %v10663
    %v10665 = vpop.f32.mrb[0].mxu0
    %v10666 = vadd.f32 %v10542, %v10665
    %10667 = vdwg.mxu0
    %10668 = vst [vmem:[#allocation32] sm:$0xff] %v10660
    %10669 = vst [vmem:[#allocation32 + $0x8] sm:$0xff] %v10662
    %10670 = vst [vmem:[#allocation32 + $0x10] sm:$0xff] %v10664
    %10671 = vst [vmem:[#allocation32 + $0x18] sm:$0xff] %v10666
    // Predicated region
    $region190: #{transformer_semcom_forward.1} parent=1 // pred_check
      _
    $region191: #{transformer_semcom_forward.1} parent=1 // pred_check_branch
      %10673 = sbr.rel (0) target = $region193
    $region192: #{transformer_semcom_forward.1} parent=1 // pred_region
      %s10675 = ssub.s32 512, 512
      %10676 = vsyncadd [#allocation5], %s10675
      %s10677 = sshll.u32 [#allocation32], 4
      %s10678 = int_to_ptr.vmem [resolvable:$true] %s10677
      %10683 = dma.vmem_to_hbm [thread:$0]  %s10678, 512, %s59, [#allocation5], 256, 256, 16
    $region193: #{transformer_semcom_forward.1} parent=1 // pred_fallthru
      _
    // Predicated region
    $region194: #{transformer_semcom_forward.1} parent=1 // pred_check
      _
    $region195: #{transformer_semcom_forward.1} parent=1 // pred_check_branch
      %10685 = sbr.rel (0) target = $region197
    $region196: #{transformer_semcom_forward.1} parent=1 // pred_region
      %s10687 = ssub.s32 256, 256
      %10688 = vsyncadd [#allocation34], %s10687
      %s10689 = sshll.u32 [#allocation33], 4
      %s10690 = int_to_ptr.vmem [resolvable:$true] %s10689
      %10695 = dma.vmem_to_hbm [thread:$0]  %s10690, 256, %s61, [#allocation34], 128, 128, 8
    $region197: #{transformer_semcom_forward.1} parent=1 // pred_fallthru
      _
    // Predicated region
    $region198: #{transformer_semcom_forward.1} parent=1 // pred_check
      _
    $region199: #{transformer_semcom_forward.1} parent=1 // pred_check_branch
      %10697 = sbr.rel (0) target = $region201
    $region200: #{transformer_semcom_forward.1} parent=1 // pred_region
      %s10699 = ssub.s32 256, 256
      %10700 = vsyncadd [#allocation34], %s10699
      %s10701 = sshll.u32 [#allocation35], 4
      %s10702 = int_to_ptr.vmem [resolvable:$true] %s10701
      %10707 = dma.vmem_to_hbm [thread:$0]  %s10702, 256, %s63, [#allocation34], 128, 128, 8
    $region201: #{transformer_semcom_forward.1} parent=1 // pred_fallthru
      _
    // Predicated region
    $region202: #{transformer_semcom_forward.1} parent=1 // pred_check
      _
    $region203: #{transformer_semcom_forward.1} parent=1 // pred_check_branch
      %10709 = sbr.rel (0) target = $region205
    $region204: #{transformer_semcom_forward.1} parent=1 // pred_region
      %10710 = dma.done [#allocation5], 512
    $region205: #{transformer_semcom_forward.1} parent=1 // pred_fallthru
      _
    // Predicated region
    $region206: #{transformer_semcom_forward.1} parent=1 // pred_check
      _
    $region207: #{transformer_semcom_forward.1} parent=1 // pred_check_branch
      %10712 = sbr.rel (0) target = $region209
    $region208: #{transformer_semcom_forward.1} parent=1 // pred_region
      %10713 = dma.done [#allocation34], 256
    $region209: #{transformer_semcom_forward.1} parent=1 // pred_fallthru
      _
    // Predicated region
    $region210: #{transformer_semcom_forward.1} parent=1 // pred_check
      _
    $region211: #{transformer_semcom_forward.1} parent=1 // pred_check_branch
      %10715 = sbr.rel (0) target = $region213
    $region212: #{transformer_semcom_forward.1} parent=1 // pred_region
      %10716 = dma.done [#allocation34], 256
    $region213: #{transformer_semcom_forward.1} parent=1 // pred_fallthru
      _
    %10717 = vsyncpa [#allocation4], 1
    %10718 = vsyncpa [#allocation7], 1
    %10719 = vsyncpa [#allocation10], 1
    %10720 = vsyncpa [#allocation13], 1
    %10721 = vsyncpa [#allocation16], 1
    %10722 = vsyncpa [#allocation19], 1
    %10723 = vsyncpa [#allocation22], 1
    %10724 = vsyncpa [#allocation25], 1
    %10725 = vsyncpa [#allocation28], 1
    %10726 = vsyncpa [#allocation31], 1
    %10727 = vsyncpa [#allocation5], 1
    %10728 = vsyncpa [#allocation34], 1

</llo_original>
